<compile_context>
chip_gen: v7x
topology: tpu7x:2x2x1
jax: 0.10.0
libtpu: 0.0.40
codegen_flags: <defaults>
</compile_context>

<pallas_src>
import jax
import jax.numpy as jnp
from jax.experimental import pallas as pl
from jax.experimental.pallas import tpu as pltpu

BN_EPS = 1e-5
_MAX_ROW_TILE = 1024


def _pick_row_tile(rows):
    """Largest row tile <= _MAX_ROW_TILE that divides `rows` (full rows if small)."""
    if rows <= _MAX_ROW_TILE:
        return rows
    for rt in (1024, 512, 256, 128, 64, 32, 16, 8):
        if rows % rt == 0:
            return rt
    return rows


# ---------------------------------------------------------------------------
# Kernel bodies: one MXU GEMM per conv; BN / bias / activation / residual fused.
# ---------------------------------------------------------------------------
def _gemm_bn_prelu_kernel(p_ref, w_ref, scale_ref, shift_ref, alpha_ref, o_ref):
    # p_ref      : (1, RT, 9*Cin) bf16   folded-tap patches for this row tile
    # w_ref      : (9*Cin, Cout)  bf16   folded-tap weights
    # scale/shift: (1, Cout)      f32    folded BatchNorm affine
    # alpha_ref  : (1,)           f32    PReLU slope (SMEM scalar)
    # o_ref      : (1, RT, Cout)  f32
    acc = jnp.dot(p_ref[0], w_ref[...], preferred_element_type=jnp.float32)
    y = acc * scale_ref[...] + shift_ref[...]           # BatchNorm (inference, folded)
    a = alpha_ref[0]                                    # PReLU (single shared slope)
    o_ref[0] = jnp.where(y > 0, y, a * y)


def _gemm_bn_res_lrelu_kernel(p_ref, w_ref, scale_ref, shift_ref, res_ref, o_ref):
    # Residual-branch tail: conv(+bias folded) -> BN, + identity, leaky_relu(0.2).
    # res_ref : (1, RT, Cout) f32   identity shortcut, same row tile as the output.
    acc = jnp.dot(p_ref[0], w_ref[...], preferred_element_type=jnp.float32)
    y = acc * scale_ref[...] + shift_ref[...] + res_ref[0]
    o_ref[0] = jnp.where(y > 0, y, 0.2 * y)             # F.leaky_relu(., 0.2)


# ---------------------------------------------------------------------------
# Layer wrappers
# ---------------------------------------------------------------------------
def _im2col(x, stride):
    """(B, H, W, Cin) f32 -> bf16 patches (B, Ho*Wo, 9*Cin) with taps folded into K."""
    b, h, w, cin = x.shape
    ho = (h - 1) // stride + 1
    wo = (w - 1) // stride + 1
    xp = jnp.pad(x, ((0, 0), (1, 1), (1, 1), (0, 0))).astype(jnp.bfloat16)
    taps = []
    for ky in range(3):
        for kx in range(3):
            sl = xp[:, ky:ky + stride * (ho - 1) + 1:stride,
                    kx:kx + stride * (wo - 1) + 1:stride, :]
            taps.append(sl.reshape(b, ho * wo, cin))
    return jnp.concatenate(taps, axis=-1), ho, wo


def conv_bn_prelu(x, p, stride=1):
    """convBatch: Conv2d(3x3, pad=1, bias=False) -> BatchNorm2d -> PReLU."""
    b, cin = x.shape[0], x.shape[-1]
    cout = p["w"].shape[-1]
    patches, ho, wo = _im2col(x, stride)
    rows = ho * wo
    rt = _pick_row_tile(rows)
    nrt = rows // rt
    out = pl.pallas_call(
        _gemm_bn_prelu_kernel,
        out_shape=jax.ShapeDtypeStruct((b, rows, cout), jnp.float32),
        grid=(b, nrt),
        in_specs=[
            pl.BlockSpec((1, rt, 9 * cin), lambda i, r: (i, r, 0)),
            pl.BlockSpec((9 * cin, cout), lambda i, r: (0, 0)),
            pl.BlockSpec((1, cout), lambda i, r: (0, 0)),
            pl.BlockSpec((1, cout), lambda i, r: (0, 0)),
            pl.BlockSpec(memory_space=pltpu.MemorySpace.SMEM),   # PReLU alpha (scalar)
        ],
        out_specs=pl.BlockSpec((1, rt, cout), lambda i, r: (i, r, 0)),
        compiler_params=pltpu.CompilerParams(
            dimension_semantics=("parallel", "parallel")),
    )(patches, p["w"], p["scale"], p["shift"], p["alpha"])
    return out.reshape(b, ho, wo, cout)


def conv_bn_residual_lrelu(x, p, identity):
    """[Conv2d(3x3, pad=1, bias=True) -> BN] + identity, then leaky_relu(0.2)."""
    b, cin = x.shape[0], x.shape[-1]
    cout = p["w"].shape[-1]
    patches, ho, wo = _im2col(x, 1)
    rows = ho * wo
    rt = _pick_row_tile(rows)
    nrt = rows // rt
    res = identity.reshape(b, rows, cout).astype(jnp.float32)
    out = pl.pallas_call(
        _gemm_bn_res_lrelu_kernel,
        out_shape=jax.ShapeDtypeStruct((b, rows, cout), jnp.float32),
        grid=(b, nrt),
        in_specs=[
            pl.BlockSpec((1, rt, 9 * cin), lambda i, r: (i, r, 0)),
            pl.BlockSpec((9 * cin, cout), lambda i, r: (0, 0)),
            pl.BlockSpec((1, cout), lambda i, r: (0, 0)),
            pl.BlockSpec((1, cout), lambda i, r: (0, 0)),
            pl.BlockSpec((1, rt, cout), lambda i, r: (i, r, 0)),
        ],
        out_specs=pl.BlockSpec((1, rt, cout), lambda i, r: (i, r, 0)),
        compiler_params=pltpu.CompilerParams(
            dimension_semantics=("parallel", "parallel")),
    )(patches, p["w"], p["scale"], p["shift"], res)
    return out.reshape(b, ho, wo, cout)


# ---------------------------------------------------------------------------
# Deterministic parameter construction (PyTorch-init-like, synthetic weights).
# ---------------------------------------------------------------------------
def _fold_bn(gamma, beta, mean, var, bias):
    scale = gamma / jnp.sqrt(var + BN_EPS)
    shift = beta + scale * (bias - mean)
    return scale[None, :].astype(jnp.float32), shift[None, :].astype(jnp.float32)


def _convbatch_params(key, cin, cout):
    w = jax.random.normal(key, (9, cin, cout), jnp.float32) / jnp.sqrt(9.0 * cin)
    scale, shift = _fold_bn(jnp.ones(cout), jnp.zeros(cout),
                            jnp.zeros(cout), jnp.ones(cout), jnp.zeros(cout))
    return dict(w=w.reshape(9 * cin, cout).astype(jnp.bfloat16),   # folded-tap, bf16
                scale=scale, shift=shift,
                alpha=jnp.full((1,), 0.25, jnp.float32))           # nn.PReLU() default


def _conv_bn_params(key, cin, cout):
    kw, kb = jax.random.split(key)
    w = jax.random.normal(kw, (9, cin, cout), jnp.float32) / jnp.sqrt(9.0 * cin)
    bias = 0.01 * jax.random.normal(kb, (cout,), jnp.float32)
    scale, shift = _fold_bn(jnp.ones(cout), jnp.zeros(cout),
                            jnp.zeros(cout), jnp.ones(cout), bias)
    return dict(w=w.reshape(9 * cin, cout).astype(jnp.bfloat16), scale=scale, shift=shift)


def init_params(key, nin, nG):
    keys = jax.random.split(key, 10)
    return {
        "conv0_0": _convbatch_params(keys[0], nin, nG),
        "conv0_1": _convbatch_params(keys[1], nG, nG),
        "conv1_0": _convbatch_params(keys[2], nG, 2 * nG),
        "conv1_1": _convbatch_params(keys[3], 2 * nG, 2 * nG),
        "conv2_0": _convbatch_params(keys[4], 2 * nG, 4 * nG),
        "conv2_1": _convbatch_params(keys[5], 4 * nG, 4 * nG),
        "bridge_0": _convbatch_params(keys[6], 4 * nG, 8 * nG),
        "bridge_res_a": _convbatch_params(keys[7], 8 * nG, 8 * nG),
        "bridge_res_b": _conv_bn_params(keys[8], 8 * nG, 8 * nG),
        "bridge_1": _convbatch_params(keys[9], 8 * nG, 8 * nG),
    }


# ---------------------------------------------------------------------------
# SharedEncoder forward (returns (result, x0, x1, x2) in NHWC).
# ---------------------------------------------------------------------------
def shared_encoder_forward(x_nhwc, params, has_dropout=False):
    x = x_nhwc.astype(jnp.float32)                       # input.float()

    h = conv_bn_prelu(x, params["conv0_0"], stride=1)
    x0 = conv_bn_prelu(h, params["conv0_1"], stride=1)

    h = conv_bn_prelu(x0, params["conv1_0"], stride=2)
    x1 = conv_bn_prelu(h, params["conv1_1"], stride=1)

    h = conv_bn_prelu(x1, params["conv2_0"], stride=2)
    x2 = conv_bn_prelu(h, params["conv2_1"], stride=1)

    h = conv_bn_prelu(x2, params["bridge_0"], stride=2)          # convBatch s2
    t = conv_bn_prelu(h, params["bridge_res_a"], stride=1)       # residualConv: convBatch
    r = conv_bn_residual_lrelu(t, params["bridge_res_b"], identity=h)  # conv+BN + id, lrelu
    result = conv_bn_prelu(r, params["bridge_1"], stride=1)      # convBatch

    if has_dropout:
        # TODO(synk): Dropout2d(p=0.5) training-mode channel mask not implemented
        # (default has_dropout=False / eval mode is identity).
        pass
    return result, x0, x1, x2


if __name__ == "__main__":
    key = jax.random.PRNGKey(0)
    k_in, k_par = jax.random.split(key)

    B, C, H, W = 2, 3, 16, 16       # PyTorch NCHW input (2, 3, 16, 16)
    nG = 8                          # small channel width for the demo

    x_nchw = jax.random.normal(k_in, (B, C, H, W), jnp.float32)
    x_nhwc = jnp.transpose(x_nchw, (0, 2, 3, 1))

    params = init_params(k_par, C, nG)
    fwd = jax.jit(lambda xx, pp: shared_encoder_forward(xx, pp, has_dropout=False))
    result, x0, x1, x2 = fwd(x_nhwc, params)
    jax.block_until_ready((result, x0, x1, x2))

    assert x0.shape == (B, 16, 16, nG)
    assert x1.shape == (B, 8, 8, 2 * nG)
    assert x2.shape == (B, 4, 4, 4 * nG)
    assert result.shape == (B, 2, 2, 8 * nG)
    assert all(bool(jnp.isfinite(a).all()) for a in (result, x0, x1, x2))

    print("KERNEL_OK")
</pallas_src>

<mosaic_0001>
module attributes {stable_mosaic.version = 11 : i64} {
  func.func @_gemm_bn_prelu_kernel(%arg0: i32, %arg1: i32, %arg2: memref<1x256x27xbf16, #tpu.memory_space<vmem>>, %arg3: memref<27x8xbf16, #tpu.memory_space<vmem>>, %arg4: memref<1x8xf32, #tpu.memory_space<vmem>>, %arg5: memref<1x8xf32, #tpu.memory_space<vmem>>, %arg6: memref<1xf32, #tpu.memory_space<smem>>, %arg7: memref<1x256x8xf32, #tpu.memory_space<vmem>>) attributes {dimension_semantics = [#tpu.dimension_semantics<parallel>, #tpu.dimension_semantics<parallel>], iteration_bounds = array<i64: 2, 1>, scalar_prefetch = 0 : i64, scratch_operands = 0 : i64, tpu.core_type = #tpu.core_type<tc>, window_params = [{transform_indices = @transform_0, window_bounds = array<i64: 1, 256, 27>}, {pipeline_mode = #tpu.pipeline_mode<synchronous>, transform_indices = @transform_1, window_bounds = array<i64: 27, 8>}, {pipeline_mode = #tpu.pipeline_mode<synchronous>, transform_indices = @transform_2, window_bounds = array<i64: 1, 8>}, {pipeline_mode = #tpu.pipeline_mode<synchronous>, transform_indices = @transform_3, window_bounds = array<i64: 1, 8>}, {transform_indices = @transform_4, window_bounds = array<i64: 1>}, {transform_indices = @transform_5, window_bounds = array<i64: 1, 256, 8>}]} {
    %c0 = arith.constant 0 : index
    %c0_0 = arith.constant 0 : index
    %c0_1 = arith.constant 0 : index
    %0 = vector.load %arg2[%c0, %c0_0, %c0_1] : memref<1x256x27xbf16, #tpu.memory_space<vmem>>, vector<1x256x27xbf16>
    %1 = vector.shape_cast %0 : vector<1x256x27xbf16> to vector<256x27xbf16>
    %c0_2 = arith.constant 0 : index
    %c0_3 = arith.constant 0 : index
    %2 = vector.load %arg3[%c0_2, %c0_3] : memref<27x8xbf16, #tpu.memory_space<vmem>>, vector<27x8xbf16>
    %cst = arith.constant dense<0.000000e+00> : vector<256x8xf32>
    %3 = tpu.matmul %1, %2, %cst {dimension_numbers = #tpu.dot_dimension_numbers<[1], [0], [0], [1], [0, 0, 1, 1], [], []>} : vector<256x27xbf16>, vector<27x8xbf16>, vector<256x8xf32> -> vector<256x8xf32>
    %c0_4 = arith.constant 0 : index
    %c0_5 = arith.constant 0 : index
    %4 = vector.load %arg4[%c0_4, %c0_5] : memref<1x8xf32, #tpu.memory_space<vmem>>, vector<1x8xf32>
    %5 = vector.broadcast %4 : vector<1x8xf32> to vector<256x8xf32>
    %6 = arith.mulf %3, %5 : vector<256x8xf32>
    %c0_6 = arith.constant 0 : index
    %c0_7 = arith.constant 0 : index
    %7 = vector.load %arg5[%c0_6, %c0_7] : memref<1x8xf32, #tpu.memory_space<vmem>>, vector<1x8xf32>
    %8 = vector.broadcast %7 : vector<1x8xf32> to vector<256x8xf32>
    %9 = arith.addf %6, %8 : vector<256x8xf32>
    %c0_8 = arith.constant 0 : index
    %10 = memref.load %arg6[%c0_8] : memref<1xf32, #tpu.memory_space<smem>>
    %cst_9 = arith.constant 0.000000e+00 : f32
    %11 = vector.broadcast %cst_9 : f32 to vector<256x8xf32>
    %12 = arith.cmpf ogt, %9, %11 : vector<256x8xf32>
    %13 = vector.broadcast %10 : f32 to vector<256x8xf32>
    %14 = arith.mulf %13, %9 : vector<256x8xf32>
    %15 = arith.select %12, %9, %14 : vector<256x8xi1>, vector<256x8xf32>
    %c0_10 = arith.constant 0 : index
    %c0_11 = arith.constant 0 : index
    %c0_12 = arith.constant 0 : index
    %16 = vector.load %arg7[%c0_10, %c0_11, %c0_12] : memref<1x256x8xf32, #tpu.memory_space<vmem>>, vector<1x256x8xf32>
    %17 = vector.shape_cast %16 : vector<1x256x8xf32> to vector<256x8xf32>
    %18 = vector.shape_cast %15 : vector<256x8xf32> to vector<1x256x8xf32>
    tpu.vector_store %arg7[%c0_10, %c0_11, %c0_12], %18 {strides = array<i32>} : memref<1x256x8xf32, #tpu.memory_space<vmem>>, vector<1x256x8xf32>,
    return
  }
  func.func @transform_0(%arg0: i32, %arg1: i32) -> (i32, i32, i32) {
    %c0_i32 = arith.constant 0 : i32
    %c0_i32_0 = arith.constant 0 : i32
    return %arg0, %arg1, %c0_i32 : i32, i32, i32
  }
  func.func @transform_1(%arg0: i32, %arg1: i32) -> (i32, i32) {
    %c0_i32 = arith.constant 0 : i32
    %c0_i32_0 = arith.constant 0 : i32
    %c0_i32_1 = arith.constant 0 : i32
    return %c0_i32, %c0_i32_0 : i32, i32
  }
  func.func @transform_2(%arg0: i32, %arg1: i32) -> (i32, i32) {
    %c0_i32 = arith.constant 0 : i32
    %c0_i32_0 = arith.constant 0 : i32
    %c0_i32_1 = arith.constant 0 : i32
    return %c0_i32, %c0_i32_0 : i32, i32
  }
  func.func @transform_3(%arg0: i32, %arg1: i32) -> (i32, i32) {
    %c0_i32 = arith.constant 0 : i32
    %c0_i32_0 = arith.constant 0 : i32
    %c0_i32_1 = arith.constant 0 : i32
    return %c0_i32, %c0_i32_0 : i32, i32
  }
  func.func @transform_4(%arg0: i32, %arg1: i32) -> i32 {
    %c0_i32 = arith.constant 0 : i32
    %c0_i32_0 = arith.constant 0 : i32
    return %c0_i32 : i32
  }
  func.func @transform_5(%arg0: i32, %arg1: i32) -> (i32, i32, i32) {
    %c0_i32 = arith.constant 0 : i32
    %c0_i32_0 = arith.constant 0 : i32
    return %arg0, %arg1, %c0_i32 : i32, i32, i32
  }
}

module attributes {stable_mosaic.version = 11 : i64} {
  func.func @_gemm_bn_prelu_kernel(%arg0: i32, %arg1: i32, %arg2: memref<1x256x72xbf16, #tpu.memory_space<vmem>>, %arg3: memref<72x8xbf16, #tpu.memory_space<vmem>>, %arg4: memref<1x8xf32, #tpu.memory_space<vmem>>, %arg5: memref<1x8xf32, #tpu.memory_space<vmem>>, %arg6: memref<1xf32, #tpu.memory_space<smem>>, %arg7: memref<1x256x8xf32, #tpu.memory_space<vmem>>) attributes {dimension_semantics = [#tpu.dimension_semantics<parallel>, #tpu.dimension_semantics<parallel>], iteration_bounds = array<i64: 2, 1>, scalar_prefetch = 0 : i64, scratch_operands = 0 : i64, tpu.core_type = #tpu.core_type<tc>, window_params = [{transform_indices = @transform_0, window_bounds = array<i64: 1, 256, 72>}, {pipeline_mode = #tpu.pipeline_mode<synchronous>, transform_indices = @transform_1, window_bounds = array<i64: 72, 8>}, {pipeline_mode = #tpu.pipeline_mode<synchronous>, transform_indices = @transform_2, window_bounds = array<i64: 1, 8>}, {pipeline_mode = #tpu.pipeline_mode<synchronous>, transform_indices = @transform_3, window_bounds = array<i64: 1, 8>}, {transform_indices = @transform_4, window_bounds = array<i64: 1>}, {transform_indices = @transform_5, window_bounds = array<i64: 1, 256, 8>}]} {
    %c0 = arith.constant 0 : index
    %c0_0 = arith.constant 0 : index
    %c0_1 = arith.constant 0 : index
    %0 = vector.load %arg2[%c0, %c0_0, %c0_1] : memref<1x256x72xbf16, #tpu.memory_space<vmem>>, vector<1x256x72xbf16>
    %1 = vector.shape_cast %0 : vector<1x256x72xbf16> to vector<256x72xbf16>
    %c0_2 = arith.constant 0 : index
    %c0_3 = arith.constant 0 : index
    %2 = vector.load %arg3[%c0_2, %c0_3] : memref<72x8xbf16, #tpu.memory_space<vmem>>, vector<72x8xbf16>
    %cst = arith.constant dense<0.000000e+00> : vector<256x8xf32>
    %3 = tpu.matmul %1, %2, %cst {dimension_numbers = #tpu.dot_dimension_numbers<[1], [0], [0], [1], [0, 0, 1, 1], [], []>} : vector<256x72xbf16>, vector<72x8xbf16>, vector<256x8xf32> -> vector<256x8xf32>
    %c0_4 = arith.constant 0 : index
    %c0_5 = arith.constant 0 : index
    %4 = vector.load %arg4[%c0_4, %c0_5] : memref<1x8xf32, #tpu.memory_space<vmem>>, vector<1x8xf32>
    %5 = vector.broadcast %4 : vector<1x8xf32> to vector<256x8xf32>
    %6 = arith.mulf %3, %5 : vector<256x8xf32>
    %c0_6 = arith.constant 0 : index
    %c0_7 = arith.constant 0 : index
    %7 = vector.load %arg5[%c0_6, %c0_7] : memref<1x8xf32, #tpu.memory_space<vmem>>, vector<1x8xf32>
    %8 = vector.broadcast %7 : vector<1x8xf32> to vector<256x8xf32>
    %9 = arith.addf %6, %8 : vector<256x8xf32>
    %c0_8 = arith.constant 0 : index
    %10 = memref.load %arg6[%c0_8] : memref<1xf32, #tpu.memory_space<smem>>
    %cst_9 = arith.constant 0.000000e+00 : f32
    %11 = vector.broadcast %cst_9 : f32 to vector<256x8xf32>
    %12 = arith.cmpf ogt, %9, %11 : vector<256x8xf32>
    %13 = vector.broadcast %10 : f32 to vector<256x8xf32>
    %14 = arith.mulf %13, %9 : vector<256x8xf32>
    %15 = arith.select %12, %9, %14 : vector<256x8xi1>, vector<256x8xf32>
    %c0_10 = arith.constant 0 : index
    %c0_11 = arith.constant 0 : index
    %c0_12 = arith.constant 0 : index
    %16 = vector.load %arg7[%c0_10, %c0_11, %c0_12] : memref<1x256x8xf32, #tpu.memory_space<vmem>>, vector<1x256x8xf32>
    %17 = vector.shape_cast %16 : vector<1x256x8xf32> to vector<256x8xf32>
    %18 = vector.shape_cast %15 : vector<256x8xf32> to vector<1x256x8xf32>
    tpu.vector_store %arg7[%c0_10, %c0_11, %c0_12], %18 {strides = array<i32>} : memref<1x256x8xf32, #tpu.memory_space<vmem>>, vector<1x256x8xf32>,
    return
  }
  func.func @transform_0(%arg0: i32, %arg1: i32) -> (i32, i32, i32) {
    %c0_i32 = arith.constant 0 : i32
    %c0_i32_0 = arith.constant 0 : i32
    return %arg0, %arg1, %c0_i32 : i32, i32, i32
  }
  func.func @transform_1(%arg0: i32, %arg1: i32) -> (i32, i32) {
    %c0_i32 = arith.constant 0 : i32
    %c0_i32_0 = arith.constant 0 : i32
    %c0_i32_1 = arith.constant 0 : i32
    return %c0_i32, %c0_i32_0 : i32, i32
  }
  func.func @transform_2(%arg0: i32, %arg1: i32) -> (i32, i32) {
    %c0_i32 = arith.constant 0 : i32
    %c0_i32_0 = arith.constant 0 : i32
    %c0_i32_1 = arith.constant 0 : i32
    return %c0_i32, %c0_i32_0 : i32, i32
  }
  func.func @transform_3(%arg0: i32, %arg1: i32) -> (i32, i32) {
    %c0_i32 = arith.constant 0 : i32
    %c0_i32_0 = arith.constant 0 : i32
    %c0_i32_1 = arith.constant 0 : i32
    return %c0_i32, %c0_i32_0 : i32, i32
  }
  func.func @transform_4(%arg0: i32, %arg1: i32) -> i32 {
    %c0_i32 = arith.constant 0 : i32
    %c0_i32_0 = arith.constant 0 : i32
    return %c0_i32 : i32
  }
  func.func @transform_5(%arg0: i32, %arg1: i32) -> (i32, i32, i32) {
    %c0_i32 = arith.constant 0 : i32
    %c0_i32_0 = arith.constant 0 : i32
    return %arg0, %arg1, %c0_i32 : i32, i32, i32
  }
}

module attributes {stable_mosaic.version = 11 : i64} {
  func.func @_gemm_bn_prelu_kernel(%arg0: i32, %arg1: i32, %arg2: memref<1x64x72xbf16, #tpu.memory_space<vmem>>, %arg3: memref<72x16xbf16, #tpu.memory_space<vmem>>, %arg4: memref<1x16xf32, #tpu.memory_space<vmem>>, %arg5: memref<1x16xf32, #tpu.memory_space<vmem>>, %arg6: memref<1xf32, #tpu.memory_space<smem>>, %arg7: memref<1x64x16xf32, #tpu.memory_space<vmem>>) attributes {dimension_semantics = [#tpu.dimension_semantics<parallel>, #tpu.dimension_semantics<parallel>], iteration_bounds = array<i64: 2, 1>, scalar_prefetch = 0 : i64, scratch_operands = 0 : i64, tpu.core_type = #tpu.core_type<tc>, window_params = [{transform_indices = @transform_0, window_bounds = array<i64: 1, 64, 72>}, {pipeline_mode = #tpu.pipeline_mode<synchronous>, transform_indices = @transform_1, window_bounds = array<i64: 72, 16>}, {pipeline_mode = #tpu.pipeline_mode<synchronous>, transform_indices = @transform_2, window_bounds = array<i64: 1, 16>}, {pipeline_mode = #tpu.pipeline_mode<synchronous>, transform_indices = @transform_3, window_bounds = array<i64: 1, 16>}, {transform_indices = @transform_4, window_bounds = array<i64: 1>}, {transform_indices = @transform_5, window_bounds = array<i64: 1, 64, 16>}]} {
    %c0 = arith.constant 0 : index
    %c0_0 = arith.constant 0 : index
    %c0_1 = arith.constant 0 : index
    %0 = vector.load %arg2[%c0, %c0_0, %c0_1] : memref<1x64x72xbf16, #tpu.memory_space<vmem>>, vector<1x64x72xbf16>
    %1 = vector.shape_cast %0 : vector<1x64x72xbf16> to vector<64x72xbf16>
    %c0_2 = arith.constant 0 : index
    %c0_3 = arith.constant 0 : index
    %2 = vector.load %arg3[%c0_2, %c0_3] : memref<72x16xbf16, #tpu.memory_space<vmem>>, vector<72x16xbf16>
    %cst = arith.constant dense<0.000000e+00> : vector<64x16xf32>
    %3 = tpu.matmul %1, %2, %cst {dimension_numbers = #tpu.dot_dimension_numbers<[1], [0], [0], [1], [0, 0, 1, 1], [], []>} : vector<64x72xbf16>, vector<72x16xbf16>, vector<64x16xf32> -> vector<64x16xf32>
    %c0_4 = arith.constant 0 : index
    %c0_5 = arith.constant 0 : index
    %4 = vector.load %arg4[%c0_4, %c0_5] : memref<1x16xf32, #tpu.memory_space<vmem>>, vector<1x16xf32>
    %5 = vector.broadcast %4 : vector<1x16xf32> to vector<64x16xf32>
    %6 = arith.mulf %3, %5 : vector<64x16xf32>
    %c0_6 = arith.constant 0 : index
    %c0_7 = arith.constant 0 : index
    %7 = vector.load %arg5[%c0_6, %c0_7] : memref<1x16xf32, #tpu.memory_space<vmem>>, vector<1x16xf32>
    %8 = vector.broadcast %7 : vector<1x16xf32> to vector<64x16xf32>
    %9 = arith.addf %6, %8 : vector<64x16xf32>
    %c0_8 = arith.constant 0 : index
    %10 = memref.load %arg6[%c0_8] : memref<1xf32, #tpu.memory_space<smem>>
    %cst_9 = arith.constant 0.000000e+00 : f32
    %11 = vector.broadcast %cst_9 : f32 to vector<64x16xf32>
    %12 = arith.cmpf ogt, %9, %11 : vector<64x16xf32>
    %13 = vector.broadcast %10 : f32 to vector<64x16xf32>
    %14 = arith.mulf %13, %9 : vector<64x16xf32>
    %15 = arith.select %12, %9, %14 : vector<64x16xi1>, vector<64x16xf32>
    %c0_10 = arith.constant 0 : index
    %c0_11 = arith.constant 0 : index
    %c0_12 = arith.constant 0 : index
    %16 = vector.load %arg7[%c0_10, %c0_11, %c0_12] : memref<1x64x16xf32, #tpu.memory_space<vmem>>, vector<1x64x16xf32>
    %17 = vector.shape_cast %16 : vector<1x64x16xf32> to vector<64x16xf32>
    %18 = vector.shape_cast %15 : vector<64x16xf32> to vector<1x64x16xf32>
    tpu.vector_store %arg7[%c0_10, %c0_11, %c0_12], %18 {strides = array<i32>} : memref<1x64x16xf32, #tpu.memory_space<vmem>>, vector<1x64x16xf32>,
    return
  }
  func.func @transform_0(%arg0: i32, %arg1: i32) -> (i32, i32, i32) {
    %c0_i32 = arith.constant 0 : i32
    %c0_i32_0 = arith.constant 0 : i32
    return %arg0, %arg1, %c0_i32 : i32, i32, i32
  }
  func.func @transform_1(%arg0: i32, %arg1: i32) -> (i32, i32) {
    %c0_i32 = arith.constant 0 : i32
    %c0_i32_0 = arith.constant 0 : i32
    %c0_i32_1 = arith.constant 0 : i32
    return %c0_i32, %c0_i32_0 : i32, i32
  }
  func.func @transform_2(%arg0: i32, %arg1: i32) -> (i32, i32) {
    %c0_i32 = arith.constant 0 : i32
    %c0_i32_0 = arith.constant 0 : i32
    %c0_i32_1 = arith.constant 0 : i32
    return %c0_i32, %c0_i32_0 : i32, i32
  }
  func.func @transform_3(%arg0: i32, %arg1: i32) -> (i32, i32) {
    %c0_i32 = arith.constant 0 : i32
    %c0_i32_0 = arith.constant 0 : i32
    %c0_i32_1 = arith.constant 0 : i32
    return %c0_i32, %c0_i32_0 : i32, i32
  }
  func.func @transform_4(%arg0: i32, %arg1: i32) -> i32 {
    %c0_i32 = arith.constant 0 : i32
    %c0_i32_0 = arith.constant 0 : i32
    return %c0_i32 : i32
  }
  func.func @transform_5(%arg0: i32, %arg1: i32) -> (i32, i32, i32) {
    %c0_i32 = arith.constant 0 : i32
    %c0_i32_0 = arith.constant 0 : i32
    return %arg0, %arg1, %c0_i32 : i32, i32, i32
  }
}

module attributes {stable_mosaic.version = 11 : i64} {
  func.func @_gemm_bn_prelu_kernel(%arg0: i32, %arg1: i32, %arg2: memref<1x64x144xbf16, #tpu.memory_space<vmem>>, %arg3: memref<144x16xbf16, #tpu.memory_space<vmem>>, %arg4: memref<1x16xf32, #tpu.memory_space<vmem>>, %arg5: memref<1x16xf32, #tpu.memory_space<vmem>>, %arg6: memref<1xf32, #tpu.memory_space<smem>>, %arg7: memref<1x64x16xf32, #tpu.memory_space<vmem>>) attributes {dimension_semantics = [#tpu.dimension_semantics<parallel>, #tpu.dimension_semantics<parallel>], iteration_bounds = array<i64: 2, 1>, scalar_prefetch = 0 : i64, scratch_operands = 0 : i64, tpu.core_type = #tpu.core_type<tc>, window_params = [{transform_indices = @transform_0, window_bounds = array<i64: 1, 64, 144>}, {pipeline_mode = #tpu.pipeline_mode<synchronous>, transform_indices = @transform_1, window_bounds = array<i64: 144, 16>}, {pipeline_mode = #tpu.pipeline_mode<synchronous>, transform_indices = @transform_2, window_bounds = array<i64: 1, 16>}, {pipeline_mode = #tpu.pipeline_mode<synchronous>, transform_indices = @transform_3, window_bounds = array<i64: 1, 16>}, {transform_indices = @transform_4, window_bounds = array<i64: 1>}, {transform_indices = @transform_5, window_bounds = array<i64: 1, 64, 16>}]} {
    %c0 = arith.constant 0 : index
    %c0_0 = arith.constant 0 : index
    %c0_1 = arith.constant 0 : index
    %0 = vector.load %arg2[%c0, %c0_0, %c0_1] : memref<1x64x144xbf16, #tpu.memory_space<vmem>>, vector<1x64x144xbf16>
    %1 = vector.shape_cast %0 : vector<1x64x144xbf16> to vector<64x144xbf16>
    %c0_2 = arith.constant 0 : index
    %c0_3 = arith.constant 0 : index
    %2 = vector.load %arg3[%c0_2, %c0_3] : memref<144x16xbf16, #tpu.memory_space<vmem>>, vector<144x16xbf16>
    %cst = arith.constant dense<0.000000e+00> : vector<64x16xf32>
    %3 = tpu.matmul %1, %2, %cst {dimension_numbers = #tpu.dot_dimension_numbers<[1], [0], [0], [1], [0, 0, 1, 1], [], []>} : vector<64x144xbf16>, vector<144x16xbf16>, vector<64x16xf32> -> vector<64x16xf32>
    %c0_4 = arith.constant 0 : index
    %c0_5 = arith.constant 0 : index
    %4 = vector.load %arg4[%c0_4, %c0_5] : memref<1x16xf32, #tpu.memory_space<vmem>>, vector<1x16xf32>
    %5 = vector.broadcast %4 : vector<1x16xf32> to vector<64x16xf32>
    %6 = arith.mulf %3, %5 : vector<64x16xf32>
    %c0_6 = arith.constant 0 : index
    %c0_7 = arith.constant 0 : index
    %7 = vector.load %arg5[%c0_6, %c0_7] : memref<1x16xf32, #tpu.memory_space<vmem>>, vector<1x16xf32>
    %8 = vector.broadcast %7 : vector<1x16xf32> to vector<64x16xf32>
    %9 = arith.addf %6, %8 : vector<64x16xf32>
    %c0_8 = arith.constant 0 : index
    %10 = memref.load %arg6[%c0_8] : memref<1xf32, #tpu.memory_space<smem>>
    %cst_9 = arith.constant 0.000000e+00 : f32
    %11 = vector.broadcast %cst_9 : f32 to vector<64x16xf32>
    %12 = arith.cmpf ogt, %9, %11 : vector<64x16xf32>
    %13 = vector.broadcast %10 : f32 to vector<64x16xf32>
    %14 = arith.mulf %13, %9 : vector<64x16xf32>
    %15 = arith.select %12, %9, %14 : vector<64x16xi1>, vector<64x16xf32>
    %c0_10 = arith.constant 0 : index
    %c0_11 = arith.constant 0 : index
    %c0_12 = arith.constant 0 : index
    %16 = vector.load %arg7[%c0_10, %c0_11, %c0_12] : memref<1x64x16xf32, #tpu.memory_space<vmem>>, vector<1x64x16xf32>
    %17 = vector.shape_cast %16 : vector<1x64x16xf32> to vector<64x16xf32>
    %18 = vector.shape_cast %15 : vector<64x16xf32> to vector<1x64x16xf32>
    tpu.vector_store %arg7[%c0_10, %c0_11, %c0_12], %18 {strides = array<i32>} : memref<1x64x16xf32, #tpu.memory_space<vmem>>, vector<1x64x16xf32>,
    return
  }
  func.func @transform_0(%arg0: i32, %arg1: i32) -> (i32, i32, i32) {
    %c0_i32 = arith.constant 0 : i32
    %c0_i32_0 = arith.constant 0 : i32
    return %arg0, %arg1, %c0_i32 : i32, i32, i32
  }
  func.func @transform_1(%arg0: i32, %arg1: i32) -> (i32, i32) {
    %c0_i32 = arith.constant 0 : i32
    %c0_i32_0 = arith.constant 0 : i32
    %c0_i32_1 = arith.constant 0 : i32
    return %c0_i32, %c0_i32_0 : i32, i32
  }
  func.func @transform_2(%arg0: i32, %arg1: i32) -> (i32, i32) {
    %c0_i32 = arith.constant 0 : i32
    %c0_i32_0 = arith.constant 0 : i32
    %c0_i32_1 = arith.constant 0 : i32
    return %c0_i32, %c0_i32_0 : i32, i32
  }
  func.func @transform_3(%arg0: i32, %arg1: i32) -> (i32, i32) {
    %c0_i32 = arith.constant 0 : i32
    %c0_i32_0 = arith.constant 0 : i32
    %c0_i32_1 = arith.constant 0 : i32
    return %c0_i32, %c0_i32_0 : i32, i32
  }
  func.func @transform_4(%arg0: i32, %arg1: i32) -> i32 {
    %c0_i32 = arith.constant 0 : i32
    %c0_i32_0 = arith.constant 0 : i32
    return %c0_i32 : i32
  }
  func.func @transform_5(%arg0: i32, %arg1: i32) -> (i32, i32, i32) {
    %c0_i32 = arith.constant 0 : i32
    %c0_i32_0 = arith.constant 0 : i32
    return %arg0, %arg1, %c0_i32 : i32, i32, i32
  }
}

module attributes {stable_mosaic.version = 11 : i64} {
  func.func @_gemm_bn_prelu_kernel(%arg0: i32, %arg1: i32, %arg2: memref<1x16x144xbf16, #tpu.memory_space<vmem>>, %arg3: memref<144x32xbf16, #tpu.memory_space<vmem>>, %arg4: memref<1x32xf32, #tpu.memory_space<vmem>>, %arg5: memref<1x32xf32, #tpu.memory_space<vmem>>, %arg6: memref<1xf32, #tpu.memory_space<smem>>, %arg7: memref<1x16x32xf32, #tpu.memory_space<vmem>>) attributes {dimension_semantics = [#tpu.dimension_semantics<parallel>, #tpu.dimension_semantics<parallel>], iteration_bounds = array<i64: 2, 1>, scalar_prefetch = 0 : i64, scratch_operands = 0 : i64, tpu.core_type = #tpu.core_type<tc>, window_params = [{transform_indices = @transform_0, window_bounds = array<i64: 1, 16, 144>}, {pipeline_mode = #tpu.pipeline_mode<synchronous>, transform_indices = @transform_1, window_bounds = array<i64: 144, 32>}, {pipeline_mode = #tpu.pipeline_mode<synchronous>, transform_indices = @transform_2, window_bounds = array<i64: 1, 32>}, {pipeline_mode = #tpu.pipeline_mode<synchronous>, transform_indices = @transform_3, window_bounds = array<i64: 1, 32>}, {transform_indices = @transform_4, window_bounds = array<i64: 1>}, {transform_indices = @transform_5, window_bounds = array<i64: 1, 16, 32>}]} {
    %c0 = arith.constant 0 : index
    %c0_0 = arith.constant 0 : index
    %c0_1 = arith.constant 0 : index
    %0 = vector.load %arg2[%c0, %c0_0, %c0_1] : memref<1x16x144xbf16, #tpu.memory_space<vmem>>, vector<1x16x144xbf16>
    %1 = vector.shape_cast %0 : vector<1x16x144xbf16> to vector<16x144xbf16>
    %c0_2 = arith.constant 0 : index
    %c0_3 = arith.constant 0 : index
    %2 = vector.load %arg3[%c0_2, %c0_3] : memref<144x32xbf16, #tpu.memory_space<vmem>>, vector<144x32xbf16>
    %cst = arith.constant dense<0.000000e+00> : vector<16x32xf32>
    %3 = tpu.matmul %1, %2, %cst {dimension_numbers = #tpu.dot_dimension_numbers<[1], [0], [0], [1], [0, 0, 1, 1], [], []>} : vector<16x144xbf16>, vector<144x32xbf16>, vector<16x32xf32> -> vector<16x32xf32>
    %c0_4 = arith.constant 0 : index
    %c0_5 = arith.constant 0 : index
    %4 = vector.load %arg4[%c0_4, %c0_5] : memref<1x32xf32, #tpu.memory_space<vmem>>, vector<1x32xf32>
    %5 = vector.broadcast %4 : vector<1x32xf32> to vector<16x32xf32>
    %6 = arith.mulf %3, %5 : vector<16x32xf32>
    %c0_6 = arith.constant 0 : index
    %c0_7 = arith.constant 0 : index
    %7 = vector.load %arg5[%c0_6, %c0_7] : memref<1x32xf32, #tpu.memory_space<vmem>>, vector<1x32xf32>
    %8 = vector.broadcast %7 : vector<1x32xf32> to vector<16x32xf32>
    %9 = arith.addf %6, %8 : vector<16x32xf32>
    %c0_8 = arith.constant 0 : index
    %10 = memref.load %arg6[%c0_8] : memref<1xf32, #tpu.memory_space<smem>>
    %cst_9 = arith.constant 0.000000e+00 : f32
    %11 = vector.broadcast %cst_9 : f32 to vector<16x32xf32>
    %12 = arith.cmpf ogt, %9, %11 : vector<16x32xf32>
    %13 = vector.broadcast %10 : f32 to vector<16x32xf32>
    %14 = arith.mulf %13, %9 : vector<16x32xf32>
    %15 = arith.select %12, %9, %14 : vector<16x32xi1>, vector<16x32xf32>
    %c0_10 = arith.constant 0 : index
    %c0_11 = arith.constant 0 : index
    %c0_12 = arith.constant 0 : index
    %16 = vector.load %arg7[%c0_10, %c0_11, %c0_12] : memref<1x16x32xf32, #tpu.memory_space<vmem>>, vector<1x16x32xf32>
    %17 = vector.shape_cast %16 : vector<1x16x32xf32> to vector<16x32xf32>
    %18 = vector.shape_cast %15 : vector<16x32xf32> to vector<1x16x32xf32>
    tpu.vector_store %arg7[%c0_10, %c0_11, %c0_12], %18 {strides = array<i32>} : memref<1x16x32xf32, #tpu.memory_space<vmem>>, vector<1x16x32xf32>,
    return
  }
  func.func @transform_0(%arg0: i32, %arg1: i32) -> (i32, i32, i32) {
    %c0_i32 = arith.constant 0 : i32
    %c0_i32_0 = arith.constant 0 : i32
    return %arg0, %arg1, %c0_i32 : i32, i32, i32
  }
  func.func @transform_1(%arg0: i32, %arg1: i32) -> (i32, i32) {
    %c0_i32 = arith.constant 0 : i32
    %c0_i32_0 = arith.constant 0 : i32
    %c0_i32_1 = arith.constant 0 : i32
    return %c0_i32, %c0_i32_0 : i32, i32
  }
  func.func @transform_2(%arg0: i32, %arg1: i32) -> (i32, i32) {
    %c0_i32 = arith.constant 0 : i32
    %c0_i32_0 = arith.constant 0 : i32
    %c0_i32_1 = arith.constant 0 : i32
    return %c0_i32, %c0_i32_0 : i32, i32
  }
  func.func @transform_3(%arg0: i32, %arg1: i32) -> (i32, i32) {
    %c0_i32 = arith.constant 0 : i32
    %c0_i32_0 = arith.constant 0 : i32
    %c0_i32_1 = arith.constant 0 : i32
    return %c0_i32, %c0_i32_0 : i32, i32
  }
  func.func @transform_4(%arg0: i32, %arg1: i32) -> i32 {
    %c0_i32 = arith.constant 0 : i32
    %c0_i32_0 = arith.constant 0 : i32
    return %c0_i32 : i32
  }
  func.func @transform_5(%arg0: i32, %arg1: i32) -> (i32, i32, i32) {
    %c0_i32 = arith.constant 0 : i32
    %c0_i32_0 = arith.constant 0 : i32
    return %arg0, %arg1, %c0_i32 : i32, i32, i32
  }
}

module attributes {stable_mosaic.version = 11 : i64} {
  func.func @_gemm_bn_prelu_kernel(%arg0: i32, %arg1: i32, %arg2: memref<1x16x288xbf16, #tpu.memory_space<vmem>>, %arg3: memref<288x32xbf16, #tpu.memory_space<vmem>>, %arg4: memref<1x32xf32, #tpu.memory_space<vmem>>, %arg5: memref<1x32xf32, #tpu.memory_space<vmem>>, %arg6: memref<1xf32, #tpu.memory_space<smem>>, %arg7: memref<1x16x32xf32, #tpu.memory_space<vmem>>) attributes {dimension_semantics = [#tpu.dimension_semantics<parallel>, #tpu.dimension_semantics<parallel>], iteration_bounds = array<i64: 2, 1>, scalar_prefetch = 0 : i64, scratch_operands = 0 : i64, tpu.core_type = #tpu.core_type<tc>, window_params = [{transform_indices = @transform_0, window_bounds = array<i64: 1, 16, 288>}, {pipeline_mode = #tpu.pipeline_mode<synchronous>, transform_indices = @transform_1, window_bounds = array<i64: 288, 32>}, {pipeline_mode = #tpu.pipeline_mode<synchronous>, transform_indices = @transform_2, window_bounds = array<i64: 1, 32>}, {pipeline_mode = #tpu.pipeline_mode<synchronous>, transform_indices = @transform_3, window_bounds = array<i64: 1, 32>}, {transform_indices = @transform_4, window_bounds = array<i64: 1>}, {transform_indices = @transform_5, window_bounds = array<i64: 1, 16, 32>}]} {
    %c0 = arith.constant 0 : index
    %c0_0 = arith.constant 0 : index
    %c0_1 = arith.constant 0 : index
    %0 = vector.load %arg2[%c0, %c0_0, %c0_1] : memref<1x16x288xbf16, #tpu.memory_space<vmem>>, vector<1x16x288xbf16>
    %1 = vector.shape_cast %0 : vector<1x16x288xbf16> to vector<16x288xbf16>
    %c0_2 = arith.constant 0 : index
    %c0_3 = arith.constant 0 : index
    %2 = vector.load %arg3[%c0_2, %c0_3] : memref<288x32xbf16, #tpu.memory_space<vmem>>, vector<288x32xbf16>
    %cst = arith.constant dense<0.000000e+00> : vector<16x32xf32>
    %3 = tpu.matmul %1, %2, %cst {dimension_numbers = #tpu.dot_dimension_numbers<[1], [0], [0], [1], [0, 0, 1, 1], [], []>} : vector<16x288xbf16>, vector<288x32xbf16>, vector<16x32xf32> -> vector<16x32xf32>
    %c0_4 = arith.constant 0 : index
    %c0_5 = arith.constant 0 : index
    %4 = vector.load %arg4[%c0_4, %c0_5] : memref<1x32xf32, #tpu.memory_space<vmem>>, vector<1x32xf32>
    %5 = vector.broadcast %4 : vector<1x32xf32> to vector<16x32xf32>
    %6 = arith.mulf %3, %5 : vector<16x32xf32>
    %c0_6 = arith.constant 0 : index
    %c0_7 = arith.constant 0 : index
    %7 = vector.load %arg5[%c0_6, %c0_7] : memref<1x32xf32, #tpu.memory_space<vmem>>, vector<1x32xf32>
    %8 = vector.broadcast %7 : vector<1x32xf32> to vector<16x32xf32>
    %9 = arith.addf %6, %8 : vector<16x32xf32>
    %c0_8 = arith.constant 0 : index
    %10 = memref.load %arg6[%c0_8] : memref<1xf32, #tpu.memory_space<smem>>
    %cst_9 = arith.constant 0.000000e+00 : f32
    %11 = vector.broadcast %cst_9 : f32 to vector<16x32xf32>
    %12 = arith.cmpf ogt, %9, %11 : vector<16x32xf32>
    %13 = vector.broadcast %10 : f32 to vector<16x32xf32>
    %14 = arith.mulf %13, %9 : vector<16x32xf32>
    %15 = arith.select %12, %9, %14 : vector<16x32xi1>, vector<16x32xf32>
    %c0_10 = arith.constant 0 : index
    %c0_11 = arith.constant 0 : index
    %c0_12 = arith.constant 0 : index
    %16 = vector.load %arg7[%c0_10, %c0_11, %c0_12] : memref<1x16x32xf32, #tpu.memory_space<vmem>>, vector<1x16x32xf32>
    %17 = vector.shape_cast %16 : vector<1x16x32xf32> to vector<16x32xf32>
    %18 = vector.shape_cast %15 : vector<16x32xf32> to vector<1x16x32xf32>
    tpu.vector_store %arg7[%c0_10, %c0_11, %c0_12], %18 {strides = array<i32>} : memref<1x16x32xf32, #tpu.memory_space<vmem>>, vector<1x16x32xf32>,
    return
  }
  func.func @transform_0(%arg0: i32, %arg1: i32) -> (i32, i32, i32) {
    %c0_i32 = arith.constant 0 : i32
    %c0_i32_0 = arith.constant 0 : i32
    return %arg0, %arg1, %c0_i32 : i32, i32, i32
  }
  func.func @transform_1(%arg0: i32, %arg1: i32) -> (i32, i32) {
    %c0_i32 = arith.constant 0 : i32
    %c0_i32_0 = arith.constant 0 : i32
    %c0_i32_1 = arith.constant 0 : i32
    return %c0_i32, %c0_i32_0 : i32, i32
  }
  func.func @transform_2(%arg0: i32, %arg1: i32) -> (i32, i32) {
    %c0_i32 = arith.constant 0 : i32
    %c0_i32_0 = arith.constant 0 : i32
    %c0_i32_1 = arith.constant 0 : i32
    return %c0_i32, %c0_i32_0 : i32, i32
  }
  func.func @transform_3(%arg0: i32, %arg1: i32) -> (i32, i32) {
    %c0_i32 = arith.constant 0 : i32
    %c0_i32_0 = arith.constant 0 : i32
    %c0_i32_1 = arith.constant 0 : i32
    return %c0_i32, %c0_i32_0 : i32, i32
  }
  func.func @transform_4(%arg0: i32, %arg1: i32) -> i32 {
    %c0_i32 = arith.constant 0 : i32
    %c0_i32_0 = arith.constant 0 : i32
    return %c0_i32 : i32
  }
  func.func @transform_5(%arg0: i32, %arg1: i32) -> (i32, i32, i32) {
    %c0_i32 = arith.constant 0 : i32
    %c0_i32_0 = arith.constant 0 : i32
    return %arg0, %arg1, %c0_i32 : i32, i32, i32
  }
}

module attributes {stable_mosaic.version = 11 : i64} {
  func.func @_gemm_bn_res_lrelu_kernel(%arg0: i32, %arg1: i32, %arg2: memref<1x4x576xbf16, #tpu.memory_space<vmem>>, %arg3: memref<576x64xbf16, #tpu.memory_space<vmem>>, %arg4: memref<1x64xf32, #tpu.memory_space<vmem>>, %arg5: memref<1x64xf32, #tpu.memory_space<vmem>>, %arg6: memref<1x4x64xf32, #tpu.memory_space<vmem>>, %arg7: memref<1x4x64xf32, #tpu.memory_space<vmem>>) attributes {dimension_semantics = [#tpu.dimension_semantics<parallel>, #tpu.dimension_semantics<parallel>], iteration_bounds = array<i64: 2, 1>, scalar_prefetch = 0 : i64, scratch_operands = 0 : i64, tpu.core_type = #tpu.core_type<tc>, window_params = [{transform_indices = @transform_0, window_bounds = array<i64: 1, 4, 576>}, {pipeline_mode = #tpu.pipeline_mode<synchronous>, transform_indices = @transform_1, window_bounds = array<i64: 576, 64>}, {pipeline_mode = #tpu.pipeline_mode<synchronous>, transform_indices = @transform_2, window_bounds = array<i64: 1, 64>}, {pipeline_mode = #tpu.pipeline_mode<synchronous>, transform_indices = @transform_3, window_bounds = array<i64: 1, 64>}, {transform_indices = @transform_4, window_bounds = array<i64: 1, 4, 64>}, {transform_indices = @transform_5, window_bounds = array<i64: 1, 4, 64>}]} {
    %c0 = arith.constant 0 : index
    %c0_0 = arith.constant 0 : index
    %c0_1 = arith.constant 0 : index
    %0 = vector.load %arg2[%c0, %c0_0, %c0_1] : memref<1x4x576xbf16, #tpu.memory_space<vmem>>, vector<1x4x576xbf16>
    %1 = vector.shape_cast %0 : vector<1x4x576xbf16> to vector<4x576xbf16>
    %c0_2 = arith.constant 0 : index
    %c0_3 = arith.constant 0 : index
    %2 = vector.load %arg3[%c0_2, %c0_3] : memref<576x64xbf16, #tpu.memory_space<vmem>>, vector<576x64xbf16>
    %cst = arith.constant dense<0.000000e+00> : vector<4x64xf32>
    %3 = tpu.matmul %1, %2, %cst {dimension_numbers = #tpu.dot_dimension_numbers<[1], [0], [0], [1], [0, 0, 1, 1], [], []>} : vector<4x576xbf16>, vector<576x64xbf16>, vector<4x64xf32> -> vector<4x64xf32>
    %c0_4 = arith.constant 0 : index
    %c0_5 = arith.constant 0 : index
    %4 = vector.load %arg4[%c0_4, %c0_5] : memref<1x64xf32, #tpu.memory_space<vmem>>, vector<1x64xf32>
    %5 = vector.broadcast %4 : vector<1x64xf32> to vector<4x64xf32>
    %6 = arith.mulf %3, %5 : vector<4x64xf32>
    %c0_6 = arith.constant 0 : index
    %c0_7 = arith.constant 0 : index
    %7 = vector.load %arg5[%c0_6, %c0_7] : memref<1x64xf32, #tpu.memory_space<vmem>>, vector<1x64xf32>
    %8 = vector.broadcast %7 : vector<1x64xf32> to vector<4x64xf32>
    %9 = arith.addf %6, %8 : vector<4x64xf32>
    %c0_8 = arith.constant 0 : index
    %c0_9 = arith.constant 0 : index
    %c0_10 = arith.constant 0 : index
    %10 = vector.load %arg6[%c0_8, %c0_9, %c0_10] : memref<1x4x64xf32, #tpu.memory_space<vmem>>, vector<1x4x64xf32>
    %11 = vector.shape_cast %10 : vector<1x4x64xf32> to vector<4x64xf32>
    %12 = arith.addf %9, %11 : vector<4x64xf32>
    %cst_11 = arith.constant 0.000000e+00 : f32
    %13 = vector.broadcast %cst_11 : f32 to vector<4x64xf32>
    %14 = arith.cmpf ogt, %12, %13 : vector<4x64xf32>
    %cst_12 = arith.constant 2.000000e-01 : f32
    %15 = vector.broadcast %cst_12 : f32 to vector<4x64xf32>
    %16 = arith.mulf %15, %12 : vector<4x64xf32>
    %17 = arith.select %14, %12, %16 : vector<4x64xi1>, vector<4x64xf32>
    %c0_13 = arith.constant 0 : index
    %c0_14 = arith.constant 0 : index
    %c0_15 = arith.constant 0 : index
    %18 = vector.load %arg7[%c0_13, %c0_14, %c0_15] : memref<1x4x64xf32, #tpu.memory_space<vmem>>, vector<1x4x64xf32>
    %19 = vector.shape_cast %18 : vector<1x4x64xf32> to vector<4x64xf32>
    %20 = vector.shape_cast %17 : vector<4x64xf32> to vector<1x4x64xf32>
    tpu.vector_store %arg7[%c0_13, %c0_14, %c0_15], %20 {strides = array<i32>} : memref<1x4x64xf32, #tpu.memory_space<vmem>>, vector<1x4x64xf32>,
    return
  }
  func.func @transform_0(%arg0: i32, %arg1: i32) -> (i32, i32, i32) {
    %c0_i32 = arith.constant 0 : i32
    %c0_i32_0 = arith.constant 0 : i32
    return %arg0, %arg1, %c0_i32 : i32, i32, i32
  }
  func.func @transform_1(%arg0: i32, %arg1: i32) -> (i32, i32) {
    %c0_i32 = arith.constant 0 : i32
    %c0_i32_0 = arith.constant 0 : i32
    %c0_i32_1 = arith.constant 0 : i32
    return %c0_i32, %c0_i32_0 : i32, i32
  }
  func.func @transform_2(%arg0: i32, %arg1: i32) -> (i32, i32) {
    %c0_i32 = arith.constant 0 : i32
    %c0_i32_0 = arith.constant 0 : i32
    %c0_i32_1 = arith.constant 0 : i32
    return %c0_i32, %c0_i32_0 : i32, i32
  }
  func.func @transform_3(%arg0: i32, %arg1: i32) -> (i32, i32) {
    %c0_i32 = arith.constant 0 : i32
    %c0_i32_0 = arith.constant 0 : i32
    %c0_i32_1 = arith.constant 0 : i32
    return %c0_i32, %c0_i32_0 : i32, i32
  }
  func.func @transform_4(%arg0: i32, %arg1: i32) -> (i32, i32, i32) {
    %c0_i32 = arith.constant 0 : i32
    %c0_i32_0 = arith.constant 0 : i32
    return %arg0, %arg1, %c0_i32 : i32, i32, i32
  }
  func.func @transform_5(%arg0: i32, %arg1: i32) -> (i32, i32, i32) {
    %c0_i32 = arith.constant 0 : i32
    %c0_i32_0 = arith.constant 0 : i32
    return %arg0, %arg1, %c0_i32 : i32, i32, i32
  }
}

module attributes {stable_mosaic.version = 11 : i64} {
  func.func @_gemm_bn_prelu_kernel(%arg0: i32, %arg1: i32, %arg2: memref<1x4x576xbf16, #tpu.memory_space<vmem>>, %arg3: memref<576x64xbf16, #tpu.memory_space<vmem>>, %arg4: memref<1x64xf32, #tpu.memory_space<vmem>>, %arg5: memref<1x64xf32, #tpu.memory_space<vmem>>, %arg6: memref<1xf32, #tpu.memory_space<smem>>, %arg7: memref<1x4x64xf32, #tpu.memory_space<vmem>>) attributes {dimension_semantics = [#tpu.dimension_semantics<parallel>, #tpu.dimension_semantics<parallel>], iteration_bounds = array<i64: 2, 1>, scalar_prefetch = 0 : i64, scratch_operands = 0 : i64, tpu.core_type = #tpu.core_type<tc>, window_params = [{transform_indices = @transform_0, window_bounds = array<i64: 1, 4, 576>}, {pipeline_mode = #tpu.pipeline_mode<synchronous>, transform_indices = @transform_1, window_bounds = array<i64: 576, 64>}, {pipeline_mode = #tpu.pipeline_mode<synchronous>, transform_indices = @transform_2, window_bounds = array<i64: 1, 64>}, {pipeline_mode = #tpu.pipeline_mode<synchronous>, transform_indices = @transform_3, window_bounds = array<i64: 1, 64>}, {transform_indices = @transform_4, window_bounds = array<i64: 1>}, {transform_indices = @transform_5, window_bounds = array<i64: 1, 4, 64>}]} {
    %c0 = arith.constant 0 : index
    %c0_0 = arith.constant 0 : index
    %c0_1 = arith.constant 0 : index
    %0 = vector.load %arg2[%c0, %c0_0, %c0_1] : memref<1x4x576xbf16, #tpu.memory_space<vmem>>, vector<1x4x576xbf16>
    %1 = vector.shape_cast %0 : vector<1x4x576xbf16> to vector<4x576xbf16>
    %c0_2 = arith.constant 0 : index
    %c0_3 = arith.constant 0 : index
    %2 = vector.load %arg3[%c0_2, %c0_3] : memref<576x64xbf16, #tpu.memory_space<vmem>>, vector<576x64xbf16>
    %cst = arith.constant dense<0.000000e+00> : vector<4x64xf32>
    %3 = tpu.matmul %1, %2, %cst {dimension_numbers = #tpu.dot_dimension_numbers<[1], [0], [0], [1], [0, 0, 1, 1], [], []>} : vector<4x576xbf16>, vector<576x64xbf16>, vector<4x64xf32> -> vector<4x64xf32>
    %c0_4 = arith.constant 0 : index
    %c0_5 = arith.constant 0 : index
    %4 = vector.load %arg4[%c0_4, %c0_5] : memref<1x64xf32, #tpu.memory_space<vmem>>, vector<1x64xf32>
    %5 = vector.broadcast %4 : vector<1x64xf32> to vector<4x64xf32>
    %6 = arith.mulf %3, %5 : vector<4x64xf32>
    %c0_6 = arith.constant 0 : index
    %c0_7 = arith.constant 0 : index
    %7 = vector.load %arg5[%c0_6, %c0_7] : memref<1x64xf32, #tpu.memory_space<vmem>>, vector<1x64xf32>
    %8 = vector.broadcast %7 : vector<1x64xf32> to vector<4x64xf32>
    %9 = arith.addf %6, %8 : vector<4x64xf32>
    %c0_8 = arith.constant 0 : index
    %10 = memref.load %arg6[%c0_8] : memref<1xf32, #tpu.memory_space<smem>>
    %cst_9 = arith.constant 0.000000e+00 : f32
    %11 = vector.broadcast %cst_9 : f32 to vector<4x64xf32>
    %12 = arith.cmpf ogt, %9, %11 : vector<4x64xf32>
    %13 = vector.broadcast %10 : f32 to vector<4x64xf32>
    %14 = arith.mulf %13, %9 : vector<4x64xf32>
    %15 = arith.select %12, %9, %14 : vector<4x64xi1>, vector<4x64xf32>
    %c0_10 = arith.constant 0 : index
    %c0_11 = arith.constant 0 : index
    %c0_12 = arith.constant 0 : index
    %16 = vector.load %arg7[%c0_10, %c0_11, %c0_12] : memref<1x4x64xf32, #tpu.memory_space<vmem>>, vector<1x4x64xf32>
    %17 = vector.shape_cast %16 : vector<1x4x64xf32> to vector<4x64xf32>
    %18 = vector.shape_cast %15 : vector<4x64xf32> to vector<1x4x64xf32>
    tpu.vector_store %arg7[%c0_10, %c0_11, %c0_12], %18 {strides = array<i32>} : memref<1x4x64xf32, #tpu.memory_space<vmem>>, vector<1x4x64xf32>,
    return
  }
  func.func @transform_0(%arg0: i32, %arg1: i32) -> (i32, i32, i32) {
    %c0_i32 = arith.constant 0 : i32
    %c0_i32_0 = arith.constant 0 : i32
    return %arg0, %arg1, %c0_i32 : i32, i32, i32
  }
  func.func @transform_1(%arg0: i32, %arg1: i32) -> (i32, i32) {
    %c0_i32 = arith.constant 0 : i32
    %c0_i32_0 = arith.constant 0 : i32
    %c0_i32_1 = arith.constant 0 : i32
    return %c0_i32, %c0_i32_0 : i32, i32
  }
  func.func @transform_2(%arg0: i32, %arg1: i32) -> (i32, i32) {
    %c0_i32 = arith.constant 0 : i32
    %c0_i32_0 = arith.constant 0 : i32
    %c0_i32_1 = arith.constant 0 : i32
    return %c0_i32, %c0_i32_0 : i32, i32
  }
  func.func @transform_3(%arg0: i32, %arg1: i32) -> (i32, i32) {
    %c0_i32 = arith.constant 0 : i32
    %c0_i32_0 = arith.constant 0 : i32
    %c0_i32_1 = arith.constant 0 : i32
    return %c0_i32, %c0_i32_0 : i32, i32
  }
  func.func @transform_4(%arg0: i32, %arg1: i32) -> i32 {
    %c0_i32 = arith.constant 0 : i32
    %c0_i32_0 = arith.constant 0 : i32
    return %c0_i32 : i32
  }
  func.func @transform_5(%arg0: i32, %arg1: i32) -> (i32, i32, i32) {
    %c0_i32 = arith.constant 0 : i32
    %c0_i32_0 = arith.constant 0 : i32
    return %arg0, %arg1, %c0_i32 : i32, i32, i32
  }
}

module attributes {stable_mosaic.version = 11 : i64} {
  func.func @_gemm_bn_prelu_kernel(%arg0: i32, %arg1: i32, %arg2: memref<1x4x288xbf16, #tpu.memory_space<vmem>>, %arg3: memref<288x64xbf16, #tpu.memory_space<vmem>>, %arg4: memref<1x64xf32, #tpu.memory_space<vmem>>, %arg5: memref<1x64xf32, #tpu.memory_space<vmem>>, %arg6: memref<1xf32, #tpu.memory_space<smem>>, %arg7: memref<1x4x64xf32, #tpu.memory_space<vmem>>) attributes {dimension_semantics = [#tpu.dimension_semantics<parallel>, #tpu.dimension_semantics<parallel>], iteration_bounds = array<i64: 2, 1>, scalar_prefetch = 0 : i64, scratch_operands = 0 : i64, tpu.core_type = #tpu.core_type<tc>, window_params = [{transform_indices = @transform_0, window_bounds = array<i64: 1, 4, 288>}, {pipeline_mode = #tpu.pipeline_mode<synchronous>, transform_indices = @transform_1, window_bounds = array<i64: 288, 64>}, {pipeline_mode = #tpu.pipeline_mode<synchronous>, transform_indices = @transform_2, window_bounds = array<i64: 1, 64>}, {pipeline_mode = #tpu.pipeline_mode<synchronous>, transform_indices = @transform_3, window_bounds = array<i64: 1, 64>}, {transform_indices = @transform_4, window_bounds = array<i64: 1>}, {transform_indices = @transform_5, window_bounds = array<i64: 1, 4, 64>}]} {
    %c0 = arith.constant 0 : index
    %c0_0 = arith.constant 0 : index
    %c0_1 = arith.constant 0 : index
    %0 = vector.load %arg2[%c0, %c0_0, %c0_1] : memref<1x4x288xbf16, #tpu.memory_space<vmem>>, vector<1x4x288xbf16>
    %1 = vector.shape_cast %0 : vector<1x4x288xbf16> to vector<4x288xbf16>
    %c0_2 = arith.constant 0 : index
    %c0_3 = arith.constant 0 : index
    %2 = vector.load %arg3[%c0_2, %c0_3] : memref<288x64xbf16, #tpu.memory_space<vmem>>, vector<288x64xbf16>
    %cst = arith.constant dense<0.000000e+00> : vector<4x64xf32>
    %3 = tpu.matmul %1, %2, %cst {dimension_numbers = #tpu.dot_dimension_numbers<[1], [0], [0], [1], [0, 0, 1, 1], [], []>} : vector<4x288xbf16>, vector<288x64xbf16>, vector<4x64xf32> -> vector<4x64xf32>
    %c0_4 = arith.constant 0 : index
    %c0_5 = arith.constant 0 : index
    %4 = vector.load %arg4[%c0_4, %c0_5] : memref<1x64xf32, #tpu.memory_space<vmem>>, vector<1x64xf32>
    %5 = vector.broadcast %4 : vector<1x64xf32> to vector<4x64xf32>
    %6 = arith.mulf %3, %5 : vector<4x64xf32>
    %c0_6 = arith.constant 0 : index
    %c0_7 = arith.constant 0 : index
    %7 = vector.load %arg5[%c0_6, %c0_7] : memref<1x64xf32, #tpu.memory_space<vmem>>, vector<1x64xf32>
    %8 = vector.broadcast %7 : vector<1x64xf32> to vector<4x64xf32>
    %9 = arith.addf %6, %8 : vector<4x64xf32>
    %c0_8 = arith.constant 0 : index
    %10 = memref.load %arg6[%c0_8] : memref<1xf32, #tpu.memory_space<smem>>
    %cst_9 = arith.constant 0.000000e+00 : f32
    %11 = vector.broadcast %cst_9 : f32 to vector<4x64xf32>
    %12 = arith.cmpf ogt, %9, %11 : vector<4x64xf32>
    %13 = vector.broadcast %10 : f32 to vector<4x64xf32>
    %14 = arith.mulf %13, %9 : vector<4x64xf32>
    %15 = arith.select %12, %9, %14 : vector<4x64xi1>, vector<4x64xf32>
    %c0_10 = arith.constant 0 : index
    %c0_11 = arith.constant 0 : index
    %c0_12 = arith.constant 0 : index
    %16 = vector.load %arg7[%c0_10, %c0_11, %c0_12] : memref<1x4x64xf32, #tpu.memory_space<vmem>>, vector<1x4x64xf32>
    %17 = vector.shape_cast %16 : vector<1x4x64xf32> to vector<4x64xf32>
    %18 = vector.shape_cast %15 : vector<4x64xf32> to vector<1x4x64xf32>
    tpu.vector_store %arg7[%c0_10, %c0_11, %c0_12], %18 {strides = array<i32>} : memref<1x4x64xf32, #tpu.memory_space<vmem>>, vector<1x4x64xf32>,
    return
  }
  func.func @transform_0(%arg0: i32, %arg1: i32) -> (i32, i32, i32) {
    %c0_i32 = arith.constant 0 : i32
    %c0_i32_0 = arith.constant 0 : i32
    return %arg0, %arg1, %c0_i32 : i32, i32, i32
  }
  func.func @transform_1(%arg0: i32, %arg1: i32) -> (i32, i32) {
    %c0_i32 = arith.constant 0 : i32
    %c0_i32_0 = arith.constant 0 : i32
    %c0_i32_1 = arith.constant 0 : i32
    return %c0_i32, %c0_i32_0 : i32, i32
  }
  func.func @transform_2(%arg0: i32, %arg1: i32) -> (i32, i32) {
    %c0_i32 = arith.constant 0 : i32
    %c0_i32_0 = arith.constant 0 : i32
    %c0_i32_1 = arith.constant 0 : i32
    return %c0_i32, %c0_i32_0 : i32, i32
  }
  func.func @transform_3(%arg0: i32, %arg1: i32) -> (i32, i32) {
    %c0_i32 = arith.constant 0 : i32
    %c0_i32_0 = arith.constant 0 : i32
    %c0_i32_1 = arith.constant 0 : i32
    return %c0_i32, %c0_i32_0 : i32, i32
  }
  func.func @transform_4(%arg0: i32, %arg1: i32) -> i32 {
    %c0_i32 = arith.constant 0 : i32
    %c0_i32_0 = arith.constant 0 : i32
    return %c0_i32 : i32
  }
  func.func @transform_5(%arg0: i32, %arg1: i32) -> (i32, i32, i32) {
    %c0_i32 = arith.constant 0 : i32
    %c0_i32_0 = arith.constant 0 : i32
    return %arg0, %arg1, %c0_i32 : i32, i32, i32
  }
}

module attributes {stable_mosaic.version = 11 : i64} {
  func.func @_gemm_bn_prelu_kernel(%arg0: i32, %arg1: i32, %arg2: memref<1x4x576xbf16, #tpu.memory_space<vmem>>, %arg3: memref<576x64xbf16, #tpu.memory_space<vmem>>, %arg4: memref<1x64xf32, #tpu.memory_space<vmem>>, %arg5: memref<1x64xf32, #tpu.memory_space<vmem>>, %arg6: memref<1xf32, #tpu.memory_space<smem>>, %arg7: memref<1x4x64xf32, #tpu.memory_space<vmem>>) attributes {dimension_semantics = [#tpu.dimension_semantics<parallel>, #tpu.dimension_semantics<parallel>], iteration_bounds = array<i64: 2, 1>, scalar_prefetch = 0 : i64, scratch_operands = 0 : i64, tpu.core_type = #tpu.core_type<tc>, window_params = [{transform_indices = @transform_0, window_bounds = array<i64: 1, 4, 576>}, {pipeline_mode = #tpu.pipeline_mode<synchronous>, transform_indices = @transform_1, window_bounds = array<i64: 576, 64>}, {pipeline_mode = #tpu.pipeline_mode<synchronous>, transform_indices = @transform_2, window_bounds = array<i64: 1, 64>}, {pipeline_mode = #tpu.pipeline_mode<synchronous>, transform_indices = @transform_3, window_bounds = array<i64: 1, 64>}, {transform_indices = @transform_4, window_bounds = array<i64: 1>}, {transform_indices = @transform_5, window_bounds = array<i64: 1, 4, 64>}]} {
    %c0 = arith.constant 0 : index
    %c0_0 = arith.constant 0 : index
    %c0_1 = arith.constant 0 : index
    %0 = vector.load %arg2[%c0, %c0_0, %c0_1] : memref<1x4x576xbf16, #tpu.memory_space<vmem>>, vector<1x4x576xbf16>
    %1 = vector.shape_cast %0 : vector<1x4x576xbf16> to vector<4x576xbf16>
    %c0_2 = arith.constant 0 : index
    %c0_3 = arith.constant 0 : index
    %2 = vector.load %arg3[%c0_2, %c0_3] : memref<576x64xbf16, #tpu.memory_space<vmem>>, vector<576x64xbf16>
    %cst = arith.constant dense<0.000000e+00> : vector<4x64xf32>
    %3 = tpu.matmul %1, %2, %cst {dimension_numbers = #tpu.dot_dimension_numbers<[1], [0], [0], [1], [0, 0, 1, 1], [], []>} : vector<4x576xbf16>, vector<576x64xbf16>, vector<4x64xf32> -> vector<4x64xf32>
    %c0_4 = arith.constant 0 : index
    %c0_5 = arith.constant 0 : index
    %4 = vector.load %arg4[%c0_4, %c0_5] : memref<1x64xf32, #tpu.memory_space<vmem>>, vector<1x64xf32>
    %5 = vector.broadcast %4 : vector<1x64xf32> to vector<4x64xf32>
    %6 = arith.mulf %3, %5 : vector<4x64xf32>
    %c0_6 = arith.constant 0 : index
    %c0_7 = arith.constant 0 : index
    %7 = vector.load %arg5[%c0_6, %c0_7] : memref<1x64xf32, #tpu.memory_space<vmem>>, vector<1x64xf32>
    %8 = vector.broadcast %7 : vector<1x64xf32> to vector<4x64xf32>
    %9 = arith.addf %6, %8 : vector<4x64xf32>
    %c0_8 = arith.constant 0 : index
    %10 = memref.load %arg6[%c0_8] : memref<1xf32, #tpu.memory_space<smem>>
    %cst_9 = arith.constant 0.000000e+00 : f32
    %11 = vector.broadcast %cst_9 : f32 to vector<4x64xf32>
    %12 = arith.cmpf ogt, %9, %11 : vector<4x64xf32>
    %13 = vector.broadcast %10 : f32 to vector<4x64xf32>
    %14 = arith.mulf %13, %9 : vector<4x64xf32>
    %15 = arith.select %12, %9, %14 : vector<4x64xi1>, vector<4x64xf32>
    %c0_10 = arith.constant 0 : index
    %c0_11 = arith.constant 0 : index
    %c0_12 = arith.constant 0 : index
    %16 = vector.load %arg7[%c0_10, %c0_11, %c0_12] : memref<1x4x64xf32, #tpu.memory_space<vmem>>, vector<1x4x64xf32>
    %17 = vector.shape_cast %16 : vector<1x4x64xf32> to vector<4x64xf32>
    %18 = vector.shape_cast %15 : vector<4x64xf32> to vector<1x4x64xf32>
    tpu.vector_store %arg7[%c0_10, %c0_11, %c0_12], %18 {strides = array<i32>} : memref<1x4x64xf32, #tpu.memory_space<vmem>>, vector<1x4x64xf32>,
    return
  }
  func.func @transform_0(%arg0: i32, %arg1: i32) -> (i32, i32, i32) {
    %c0_i32 = arith.constant 0 : i32
    %c0_i32_0 = arith.constant 0 : i32
    return %arg0, %arg1, %c0_i32 : i32, i32, i32
  }
  func.func @transform_1(%arg0: i32, %arg1: i32) -> (i32, i32) {
    %c0_i32 = arith.constant 0 : i32
    %c0_i32_0 = arith.constant 0 : i32
    %c0_i32_1 = arith.constant 0 : i32
    return %c0_i32, %c0_i32_0 : i32, i32
  }
  func.func @transform_2(%arg0: i32, %arg1: i32) -> (i32, i32) {
    %c0_i32 = arith.constant 0 : i32
    %c0_i32_0 = arith.constant 0 : i32
    %c0_i32_1 = arith.constant 0 : i32
    return %c0_i32, %c0_i32_0 : i32, i32
  }
  func.func @transform_3(%arg0: i32, %arg1: i32) -> (i32, i32) {
    %c0_i32 = arith.constant 0 : i32
    %c0_i32_0 = arith.constant 0 : i32
    %c0_i32_1 = arith.constant 0 : i32
    return %c0_i32, %c0_i32_0 : i32, i32
  }
  func.func @transform_4(%arg0: i32, %arg1: i32) -> i32 {
    %c0_i32 = arith.constant 0 : i32
    %c0_i32_0 = arith.constant 0 : i32
    return %c0_i32 : i32
  }
  func.func @transform_5(%arg0: i32, %arg1: i32) -> (i32, i32, i32) {
    %c0_i32 = arith.constant 0 : i32
    %c0_i32_0 = arith.constant 0 : i32
    return %arg0, %arg1, %c0_i32 : i32, i32, i32
  }
}

</mosaic_0001>

<llo_original>
// kernel: _lambda_.10
$region0: #{_lambda_.10}
  #allocation0 [shape = 'u32[]', space=smem, size = 0x4, offset = 0x4, fixed_abs, tag = 'smem constant byte address 0x4 - core index']
  #allocation1 [shape = 'u32[144,128]{1,0:T(1,128)}', space=vmem, size = 0x12000, scoped, tag = 'internal scratch']
  #allocation2 [shape = 'f32[1]{0:T(128)S(6)}', space=smem, size = 0x200, scoped, tag = 'scoped memory for _lambda_.10']
  %s0 = inlined_call_operand.vmem [shape: bf16[2,256,27], index: 0, kind: input, shape index: {}]
  %s1 = inlined_call_operand.vmem [shape: bf16[27,8], index: 1, kind: input, shape index: {}]
  %s2 = inlined_call_operand.vmem [shape: f32[1,8], index: 2, kind: input, shape index: {}]
  %s3 = inlined_call_operand.vmem [shape: f32[1,8], index: 3, kind: input, shape index: {}]
  %s4 = inlined_call_operand.<no memory space> [shape: f32[1], index: 4, kind: input, shape index: {}]
  %s5 = inlined_call_operand.vmem [shape: f32[2,256,8], index: 5, kind: output, shape index: {}]
  %s6 = sld [smem:[#allocation0]]
  $region53: #{_lambda_.10} parent=0
    _
  %s8 = ssub.s32 1, %s6
  %s9 = scalar_select 0, %s8, %s6
  %10 = sst [smem:[#allocation2]] %s4
  loop: start=0, step=1, limit=4
  $region2: #{_lambda_.10} parent=0 // loop_pre_header
    _
  $region3: #{_lambda_.10} parent=0 // loop_header
    %s12 = sphi 0, %s16
    %p13 = scmp.ge.s32.totalorder %s12, 4
    %s19 = sphi 0, %s31
    %s20 = sphi 0, %s27
    %s21 = sphi 0, %s19
    %s22 = sphi 0, %s20
    %s23 = sphi 0, %s21
    %s24 = sphi 0, %s22
    %s36 = sphi 0, %s38
    %s39 = sphi 0, %s36
    %s40 = sphi 0, %s39
    %s56 = sphi 0, %s40
    %s60 = sphi 0, %s60
    %s62 = sphi 0, %s60
    %s63 = sphi 0, %s62
    %s77 = sphi 0, %s63
    %s81 = sphi 0, %s81
    %s83 = sphi 0, %s81
    %s84 = sphi 0, %s83
    %s98 = sphi 0, %s84
    %s102 = sphi 0, %s102
    %s104 = sphi 0, %s102
    %s105 = sphi 0, %s104
    %s119 = sphi 0, %s105
    %s123 = sphi 0, %s123
    %s125 = sphi 0, %s123
    %s126 = sphi 0, %s125
    %s140 = sphi 0, %s126
    %s148 = sphi 0, %s150
    %s151 = sphi 0, %s148
    %s152 = sphi 0, %s151
    %s168 = sphi 0, %s152
  $region4: #{_lambda_.10} parent=0 // loop_header_branch
    %15 = sbr.rel (%p13) target = $region8
  $region5: #{_lambda_.10} parent=0 // loop_body
    %s17 = ssub.s32 %s12, 1
    %s18 = ssub.s32 %s12, 2
    %s25 = sadd.s32 1, %s20
    %p26 = scmp.ge.s32.totalorder %s25, 1
    %s27 = scalar_select %p26, 0, %s25
    %s28 = sadd.s32 1, %s19
    %s29 = scalar_select %p26, %s28, %s19
    %p30 = scmp.ge.s32.totalorder %s29, 2
    %s31 = scalar_select %p30, 0, %s29
    %s32 = ssub.s32 %s19, %s31
    %s33 = ssub.s32 %s20, %s27
    %s34 = sor.u32 %s32, %s33
    %p35 = scmp.eq.s32.totalorder %s34, 0
    %s37 = sadd.s32 %s36, 1
    %s38 = scalar_select %p35, %s36, %s37
    %p41 = pneg %p35
    %p42 = scmp.eq.s32.totalorder %s12, 1
    %p43 = por %p41, %p42
    %p44 = scmp.ne.s32.totalorder %s36, %s39
    %p45 = scmp.eq.s32.totalorder %s12, 0
    %p46 = por %p44, %p45
    %p47 = scmp.ne.s32.totalorder %s36, %s39
    %p48 = scmp.eq.s32.totalorder %s17, 1
    %p49 = por %p47, %p48
    %p50 = scmp.ne.s32.totalorder %s39, %s40
    %p51 = scmp.eq.s32.totalorder %s17, 0
    %p52 = por %p50, %p51
    %p53 = scmp.ne.s32.totalorder %s39, %s40
    %p54 = scmp.eq.s32.totalorder %s18, 1
    %p55 = por %p53, %p54
    %p57 = scmp.ne.s32.totalorder %s40, %s56
    %p58 = scmp.eq.s32.totalorder %s18, 0
    %p59 = por %p57, %p58
    %s61 = sadd.s32 %s60, 1
    %p64 = scmp.eq.s32.totalorder %s12, 1
    %p65 = scmp.ne.s32.totalorder %s60, %s62
    %p66 = scmp.eq.s32.totalorder %s12, 0
    %p67 = por %p65, %p66
    %p68 = scmp.ne.s32.totalorder %s60, %s62
    %p69 = scmp.eq.s32.totalorder %s17, 1
    %p70 = por %p68, %p69
    %p71 = scmp.ne.s32.totalorder %s62, %s63
    %p72 = scmp.eq.s32.totalorder %s17, 0
    %p73 = por %p71, %p72
    %p74 = scmp.ne.s32.totalorder %s62, %s63
    %p75 = scmp.eq.s32.totalorder %s18, 1
    %p76 = por %p74, %p75
    %p78 = scmp.ne.s32.totalorder %s63, %s77
    %p79 = scmp.eq.s32.totalorder %s18, 0
    %p80 = por %p78, %p79
    %s82 = sadd.s32 %s81, 1
    %p85 = scmp.eq.s32.totalorder %s12, 1
    %p86 = scmp.ne.s32.totalorder %s81, %s83
    %p87 = scmp.eq.s32.totalorder %s12, 0
    %p88 = por %p86, %p87
    %p89 = scmp.ne.s32.totalorder %s81, %s83
    %p90 = scmp.eq.s32.totalorder %s17, 1
    %p91 = por %p89, %p90
    %p92 = scmp.ne.s32.totalorder %s83, %s84
    %p93 = scmp.eq.s32.totalorder %s17, 0
    %p94 = por %p92, %p93
    %p95 = scmp.ne.s32.totalorder %s83, %s84
    %p96 = scmp.eq.s32.totalorder %s18, 1
    %p97 = por %p95, %p96
    %p99 = scmp.ne.s32.totalorder %s84, %s98
    %p100 = scmp.eq.s32.totalorder %s18, 0
    %p101 = por %p99, %p100
    %s103 = sadd.s32 %s102, 1
    %p106 = scmp.eq.s32.totalorder %s12, 1
    %p107 = scmp.ne.s32.totalorder %s102, %s104
    %p108 = scmp.eq.s32.totalorder %s12, 0
    %p109 = por %p107, %p108
    %p110 = scmp.ne.s32.totalorder %s102, %s104
    %p111 = scmp.eq.s32.totalorder %s17, 1
    %p112 = por %p110, %p111
    %p113 = scmp.ne.s32.totalorder %s104, %s105
    %p114 = scmp.eq.s32.totalorder %s17, 0
    %p115 = por %p113, %p114
    %p116 = scmp.ne.s32.totalorder %s104, %s105
    %p117 = scmp.eq.s32.totalorder %s18, 1
    %p118 = por %p116, %p117
    %p120 = scmp.ne.s32.totalorder %s105, %s119
    %p121 = scmp.eq.s32.totalorder %s18, 0
    %p122 = por %p120, %p121
    %s124 = sadd.s32 %s123, 1
    %p127 = scmp.eq.s32.totalorder %s12, 1
    %p128 = scmp.ne.s32.totalorder %s123, %s125
    %p129 = scmp.eq.s32.totalorder %s12, 0
    %p130 = por %p128, %p129
    %p131 = scmp.ne.s32.totalorder %s123, %s125
    %p132 = scmp.eq.s32.totalorder %s17, 1
    %p133 = por %p131, %p132
    %p134 = scmp.ne.s32.totalorder %s125, %s126
    %p135 = scmp.eq.s32.totalorder %s17, 0
    %p136 = por %p134, %p135
    %p137 = scmp.ne.s32.totalorder %s125, %s126
    %p138 = scmp.eq.s32.totalorder %s18, 1
    %p139 = por %p137, %p138
    %p141 = scmp.ne.s32.totalorder %s126, %s140
    %p142 = scmp.eq.s32.totalorder %s18, 0
    %p143 = por %p141, %p142
    %s144 = ssub.s32 %s19, %s31
    %s145 = ssub.s32 %s20, %s27
    %s146 = sor.u32 %s144, %s145
    %p147 = scmp.eq.s32.totalorder %s146, 0
    %s149 = sadd.s32 %s148, 1
    %s150 = scalar_select %p147, %s148, %s149
    %p153 = pneg %p147
    %p154 = scmp.eq.s32.totalorder %s12, 1
    %p155 = por %p153, %p154
    %p156 = scmp.ne.s32.totalorder %s148, %s151
    %p157 = scmp.eq.s32.totalorder %s12, 0
    %p158 = por %p156, %p157
    %p159 = scmp.ne.s32.totalorder %s148, %s151
    %p160 = scmp.eq.s32.totalorder %s17, 1
    %p161 = por %p159, %p160
    %p162 = scmp.ne.s32.totalorder %s151, %s152
    %p163 = scmp.eq.s32.totalorder %s17, 0
    %p164 = por %p162, %p163
    %p165 = scmp.ne.s32.totalorder %s151, %s152
    %p166 = scmp.eq.s32.totalorder %s18, 1
    %p167 = por %p165, %p166
    %p169 = scmp.ne.s32.totalorder %s152, %s168
    %p170 = scmp.eq.s32.totalorder %s18, 0
    %p171 = por %p169, %p170
    %p172 = scmp.le.s32.totalorder 1, %s12
    %p173 = scmp.lt.s32.totalorder %s12, 3
    %p174 = pnand %p172, %p173
    %p175 = pneg %p174
    // Predicated region
    $region9: #{_lambda_.10} parent=5 // pred_check
      _
    $region10: #{_lambda_.10} parent=5 // pred_check_branch
      %177 = sbr.rel (%p174) target = $region12
    $region11: #{_lambda_.10} parent=5 // pred_region
      %s178 = ssub.s32 %s12, 1
      // Predicated region
      $region13: #{_lambda_.10} parent=11 // pred_check
        %p179 = pneg %p73
      $region14: #{_lambda_.10} parent=11 // pred_check_branch
        %181 = sbr.rel (%p179) target = $region16
      $region15: #{_lambda_.10} parent=11 // pred_region
        _
      $region16: #{_lambda_.10} parent=11 // pred_fallthru
        _
      // Predicated region
      $region17: #{_lambda_.10} parent=11 // pred_check
        %p182 = pneg %p94
      $region18: #{_lambda_.10} parent=11 // pred_check_branch
        %184 = sbr.rel (%p182) target = $region20
      $region19: #{_lambda_.10} parent=11 // pred_region
        _
      $region20: #{_lambda_.10} parent=11 // pred_fallthru
        _
      // Predicated region
      $region21: #{_lambda_.10} parent=11 // pred_check
        %p185 = pneg %p115
      $region22: #{_lambda_.10} parent=11 // pred_check_branch
        %187 = sbr.rel (%p185) target = $region24
      $region23: #{_lambda_.10} parent=11 // pred_region
        _
      $region24: #{_lambda_.10} parent=11 // pred_fallthru
        _
      // Predicated region
      $region25: #{_lambda_.10} parent=11 // pred_check
        %p188 = pneg %p136
      $region26: #{_lambda_.10} parent=11 // pred_check_branch
        %190 = sbr.rel (%p188) target = $region28
      $region27: #{_lambda_.10} parent=11 // pred_region
        _
      $region28: #{_lambda_.10} parent=11 // pred_fallthru
        _
    $region12: #{_lambda_.10} parent=5 // pred_fallthru
      _
    %p191 = scmp.lt.s32.totalorder %s12, 2
    // Predicated region
    $region29: #{_lambda_.10} parent=5 // pred_check
      %p192 = pneg %p191
    $region30: #{_lambda_.10} parent=5 // pred_check_branch
      %194 = sbr.rel (%p192) target = $region32
    $region31: #{_lambda_.10} parent=5 // pred_region
      // Predicated region
      $region33: #{_lambda_.10} parent=31 // pred_check
        %p195 = pneg %p46
      $region34: #{_lambda_.10} parent=31 // pred_check_branch
        %197 = sbr.rel (%p195) target = $region36
      $region35: #{_lambda_.10} parent=31 // pred_region
        %s198 = smul.u32 32, %s20
        %p199 = scmp.lt.s32.totalorder %s19, 1
        %s200 = scalar_select %p199, %s19, 1
        %p201 = scmp.lt.s32.totalorder %s198, 31
        %s202 = scalar_select %p201, %s198, 31
        %s203 = smul.addr %s200, 32
        %s204 = sadd.s32 %s202, %s203
        %s205 = smul.addr %s204, 4
        %s206 = scalar_lea.vmem %s0, %s205
        %s207 = smul.u32 32, %s20
      $region36: #{_lambda_.10} parent=31 // pred_fallthru
        _
    $region32: #{_lambda_.10} parent=5 // pred_fallthru
      _
    %p208 = scmp.le.s32.totalorder 1, %s12
    %p209 = scmp.lt.s32.totalorder %s12, 3
    %p210 = pnand %p208, %p209
    %p211 = pneg %p210
    // Predicated region
    $region37: #{_lambda_.10} parent=5 // pred_check
      _
    $region38: #{_lambda_.10} parent=5 // pred_check_branch
      %213 = sbr.rel (%p210) target = $region40
    $region39: #{_lambda_.10} parent=5 // pred_region
      %s214 = ssub.s32 %s12, 1
      %s215 = smul.u32 32, %s22
      %p216 = scmp.lt.s32.totalorder %s21, 1
      %s217 = scalar_select %p216, %s21, 1
      %p218 = scmp.lt.s32.totalorder %s215, 31
      %s219 = scalar_select %p218, %s215, 31
      %s220 = smul.addr %s217, 32
      %s221 = sadd.s32 %s219, %s220
      %s222 = smul.addr %s221, 4
      %s223 = scalar_lea.vmem %s0, %s222
      %p224 = pneg %p52
      %p225 = pneg %p49
      %p226 = pneg %p73
      %p227 = pneg %p70
      %p228 = pneg %p94
      %p229 = pneg %p91
      %p230 = pneg %p115
      %p231 = pneg %p112
      %p232 = pneg %p136
      %p233 = pneg %p133
      %p234 = pneg %p164
      %p235 = pneg %p161
      %s236 = smul.u32 32, %s22
      %p237 = scmp.lt.s32.totalorder %s21, 1
      %s238 = scalar_select %p237, %s21, 1
      %p239 = scmp.lt.s32.totalorder %s236, 31
      %s240 = scalar_select %p239, %s236, 31
      %s241 = smul.addr %s238, 32
      %s242 = sadd.s32 %s240, %s241
      %s243 = smul.addr %s242, 8
      %s244 = scalar_lea.vmem %s5, %s243
      %s245 = smul.u32 32, %s22
      %p246 = scmp.lt.s32.totalorder %s21, 1
      %s247 = scalar_select %p246, %s21, 1
      %p248 = scmp.lt.s32.totalorder %s245, 31
      %s249 = scalar_select %p248, %s245, 31
      %s250 = smul.addr %s247, 32
      %s251 = sadd.s32 %s249, %s250
      %s252 = smul.addr %s251, 4
      %s253 = scalar_lea.vmem %s0, %s252
      %s254 = smul.u32 32, %s22
      %s255 = smul.u32 32, %s22
      %p256 = scmp.lt.s32.totalorder %s21, 1
      %s257 = scalar_select %p256, %s21, 1
      %p258 = scmp.lt.s32.totalorder %s255, 31
      %s259 = scalar_select %p258, %s255, 31
      %s260 = smul.addr %s257, 32
      %s261 = sadd.s32 %s259, %s260
      %s262 = smul.addr %s261, 8
      %s263 = scalar_lea.vmem %s5, %s262
      %s264 = smul.u32 32, %s22
      %v266 = vld [vmem:[%s253] sm:$0xf]
      %v267 = vld [vmem:[%s253 + $0x4] sm:$0xf]
      %v268 = vld [vmem:[%s253 + $0x8] sm:$0xf]
      %v269 = vld [vmem:[%s253 + $0xc] sm:$0xf]
      %v270 = vld [vmem:[%s253 + $0x10] sm:$0xf]
      %v271 = vld [vmem:[%s253 + $0x14] sm:$0xf]
      %v272 = vld [vmem:[%s253 + $0x18] sm:$0xf]
      %v273 = vld [vmem:[%s253 + $0x1c] sm:$0xf]
      %v274 = vld [vmem:[%s253 + $0x20] sm:$0xf]
      %v275 = vld [vmem:[%s253 + $0x24] sm:$0xf]
      %v276 = vld [vmem:[%s253 + $0x28] sm:$0xf]
      %v277 = vld [vmem:[%s253 + $0x2c] sm:$0xf]
      %v278 = vld [vmem:[%s253 + $0x30] sm:$0xf]
      %v279 = vld [vmem:[%s253 + $0x34] sm:$0xf]
      %v280 = vld [vmem:[%s253 + $0x38] sm:$0xf]
      %v281 = vld [vmem:[%s253 + $0x3c] sm:$0xf]
      %v282 = vld [vmem:[%s253 + $0x40] sm:$0xf]
      %v283 = vld [vmem:[%s253 + $0x44] sm:$0xf]
      %v284 = vld [vmem:[%s253 + $0x48] sm:$0xf]
      %v285 = vld [vmem:[%s253 + $0x4c] sm:$0xf]
      %v286 = vld [vmem:[%s253 + $0x50] sm:$0xf]
      %v287 = vld [vmem:[%s253 + $0x54] sm:$0xf]
      %v288 = vld [vmem:[%s253 + $0x58] sm:$0xf]
      %v289 = vld [vmem:[%s253 + $0x5c] sm:$0xf]
      %v290 = vld [vmem:[%s253 + $0x60] sm:$0xf]
      %v291 = vld [vmem:[%s253 + $0x64] sm:$0xf]
      %v292 = vld [vmem:[%s253 + $0x68] sm:$0xf]
      %v293 = vld [vmem:[%s253 + $0x6c] sm:$0xf]
      %v294 = vld [vmem:[%s253 + $0x70] sm:$0xf]
      %v295 = vld [vmem:[%s253 + $0x74] sm:$0xf]
      %v296 = vld [vmem:[%s253 + $0x78] sm:$0xf]
      %v297 = vld [vmem:[%s253 + $0x7c] sm:$0xf]
      %v298 = vld [vmem:[%s1] sm:$0xf]
      %v299 = vld [vmem:[%s1 + $0x4] sm:$0xf]
      %v300 = vld [vmem:[%s1 + $0x8] sm:$0xf]
      %v301 = vld [vmem:[%s1 + $0xc] sm:$0x3]
      %v334 = vunpack.c.l.b16 %v266
      %v335 = vunpack.c.l.b16 %v267
      %v336 = vunpack.c.l.b16 %v268
      %v337 = vunpack.c.l.b16 %v269
      %v338 = vunpack.c.l.b16 %v270
      %v339 = vunpack.c.l.b16 %v271
      %v340 = vunpack.c.l.b16 %v272
      %v341 = vunpack.c.l.b16 %v273
      %v342 = vunpack.c.l.b16 %v274
      %v343 = vunpack.c.l.b16 %v275
      %v344 = vunpack.c.l.b16 %v276
      %v345 = vunpack.c.l.b16 %v277
      %v346 = vunpack.c.l.b16 %v278
      %v347 = vunpack.c.l.b16 %v279
      %v348 = vunpack.c.l.b16 %v280
      %v349 = vunpack.c.l.b16 %v281
      %v350 = vunpack.c.l.b16 %v282
      %v351 = vunpack.c.l.b16 %v283
      %v352 = vunpack.c.l.b16 %v284
      %v353 = vunpack.c.l.b16 %v285
      %v354 = vunpack.c.l.b16 %v286
      %v355 = vunpack.c.l.b16 %v287
      %v356 = vunpack.c.l.b16 %v288
      %v357 = vunpack.c.l.b16 %v289
      %v358 = vunpack.c.l.b16 %v290
      %v359 = vunpack.c.l.b16 %v291
      %v360 = vunpack.c.l.b16 %v292
      %v361 = vunpack.c.l.b16 %v293
      %v362 = vunpack.c.l.b16 %v294
      %v363 = vunpack.c.l.b16 %v295
      %v364 = vunpack.c.l.b16 %v296
      %v365 = vunpack.c.l.b16 %v297
      %v366 = vpack.c.b16 %v335, %v334
      %v367 = vpack.c.b16 %v337, %v336
      %v368 = vpack.c.b16 %v339, %v338
      %v369 = vpack.c.b16 %v341, %v340
      %v370 = vpack.c.b16 %v343, %v342
      %v371 = vpack.c.b16 %v345, %v344
      %v372 = vpack.c.b16 %v347, %v346
      %v373 = vpack.c.b16 %v349, %v348
      %v374 = vpack.c.b16 %v351, %v350
      %v375 = vpack.c.b16 %v353, %v352
      %v376 = vpack.c.b16 %v355, %v354
      %v377 = vpack.c.b16 %v357, %v356
      %v378 = vpack.c.b16 %v359, %v358
      %v379 = vpack.c.b16 %v361, %v360
      %v380 = vpack.c.b16 %v363, %v362
      %v381 = vpack.c.b16 %v365, %v364
      %v386 = vunpack.c.l.b16 %v298
      %v387 = vunpack.c.l.b16 %v299
      %v388 = vunpack.c.l.b16 %v300
      %v389 = vunpack.c.l.b16 %v301
      %v390 = vpack.c.b16 %v387, %v386
      %v391 = vpack.c.b16 %v389, %v388
      %vm393 = vcmask 220160
      %v395 = vsel %vm393, %v366, 0
      %v398 = vsel %vm393, %v367, 0
      %v401 = vsel %vm393, %v368, 0
      %v404 = vsel %vm393, %v369, 0
      %v407 = vsel %vm393, %v370, 0
      %v410 = vsel %vm393, %v371, 0
      %v413 = vsel %vm393, %v372, 0
      %v416 = vsel %vm393, %v373, 0
      %v419 = vsel %vm393, %v374, 0
      %v422 = vsel %vm393, %v375, 0
      %v425 = vsel %vm393, %v376, 0
      %v428 = vsel %vm393, %v377, 0
      %v431 = vsel %vm393, %v378, 0
      %v434 = vsel %vm393, %v379, 0
      %v437 = vsel %vm393, %v380, 0
      %v440 = vsel %vm393, %v381, 0
      %vm442 = vcmask 1044480
      %vm443 = vcmask 1045504
      %v444 = vsel %vm442, 4294967295, 65535
      %v445 = vsel %vm443, %v444, 0
      %v447 = vand.u32 %v391, %v445
      %449 = vmatprep.subr.bf16.mxu0 0
      %450 = vmatpush1.bf16.msra.mxu0 %v390
      %451 = vmatprep.subr.bf16.mxu0 0
      %452 = vmatpush1.bf16.msra.mxu0 %v447
      %453 = vmatprep.subr.bf16.mxu0 0
      %454 = vmatpush1.bf16.msra.mxu0 0
      %455 = vmatprep.subr.bf16.mxu0 0
      %456 = vmatpush1.bf16.msra.mxu0 0
      %457 = vmatprep.subr.bf16.mxu0 0
      %458 = vmatpush1.bf16.msra.mxu0 0
      %459 = vmatprep.subr.bf16.mxu0 0
      %460 = vmatpush1.bf16.msra.mxu0 0
      %461 = vmatprep.subr.bf16.mxu0 0
      %462 = vmatpush1.bf16.msra.mxu0 0
      %463 = vmatprep.subr.bf16.mxu0 0
      %464 = vmatpush1.bf16.msra.mxu0 0
      %465 = vmatprep.subr.bf16.mxu0 0
      %466 = vmatpush1.bf16.msra.mxu0 0
      %467 = vmatprep.subr.bf16.mxu0 0
      %468 = vmatpush1.bf16.msra.mxu0 0
      %469 = vmatprep.subr.bf16.mxu0 0
      %470 = vmatpush1.bf16.msra.mxu0 0
      %471 = vmatprep.subr.bf16.mxu0 0
      %472 = vmatpush1.bf16.msra.mxu0 0
      %473 = vmatprep.subr.bf16.mxu0 0
      %474 = vmatpush1.bf16.msra.mxu0 0
      %475 = vmatprep.subr.bf16.mxu0 0
      %476 = vmatpush1.bf16.msra.mxu0 0
      %477 = vmatprep.subr.bf16.mxu0 0
      %478 = vmatpush1.bf16.msra.mxu0 0
      %479 = vmatprep.subr.bf16.mxu0 0
      %480 = vmatpush1.bf16.msra.mxu0 0
      %481 = vmatprep.mubr.bf16.mxu0 0
      %482 = vmatmul.mubr.bf16.gmra.mrb[0].mxu0 %v395
      %v483 = vpop.f32.mrb[0].mxu0
      %v484 = vadd.f32 0.0, %v483
      %v485 = vpop.f32.mrb[0].mxu0
      %v486 = vpop.f32.mrb[0].mxu0
      %v487 = vadd.f32 0.0, %v486
      %v488 = vpop.f32.mrb[0].mxu0
      %489 = vmatprep.mubr.bf16.mxu0 0
      %490 = vmatmul.mubr.bf16.gmra.mrb[0].mxu0 %v398
      %v491 = vpop.f32.mrb[0].mxu0
      %v492 = vadd.f32 0.0, %v491
      %v493 = vpop.f32.mrb[0].mxu0
      %v494 = vpop.f32.mrb[0].mxu0
      %v495 = vadd.f32 0.0, %v494
      %v496 = vpop.f32.mrb[0].mxu0
      %497 = vmatprep.mubr.bf16.mxu0 0
      %498 = vmatmul.mubr.bf16.gmra.mrb[0].mxu0 %v401
      %v499 = vpop.f32.mrb[0].mxu0
      %v500 = vadd.f32 0.0, %v499
      %v501 = vpop.f32.mrb[0].mxu0
      %v502 = vpop.f32.mrb[0].mxu0
      %v503 = vadd.f32 0.0, %v502
      %v504 = vpop.f32.mrb[0].mxu0
      %505 = vmatprep.mubr.bf16.mxu0 0
      %506 = vmatmul.mubr.bf16.gmra.mrb[0].mxu0 %v404
      %v507 = vpop.f32.mrb[0].mxu0
      %v508 = vadd.f32 0.0, %v507
      %v509 = vpop.f32.mrb[0].mxu0
      %v510 = vpop.f32.mrb[0].mxu0
      %v511 = vadd.f32 0.0, %v510
      %v512 = vpop.f32.mrb[0].mxu0
      %513 = vmatprep.mubr.bf16.mxu0 0
      %514 = vmatmul.mubr.bf16.gmra.mrb[0].mxu0 %v407
      %v515 = vpop.f32.mrb[0].mxu0
      %v516 = vadd.f32 0.0, %v515
      %v517 = vpop.f32.mrb[0].mxu0
      %v518 = vpop.f32.mrb[0].mxu0
      %v519 = vadd.f32 0.0, %v518
      %v520 = vpop.f32.mrb[0].mxu0
      %521 = vmatprep.mubr.bf16.mxu0 0
      %522 = vmatmul.mubr.bf16.gmra.mrb[0].mxu0 %v410
      %v523 = vpop.f32.mrb[0].mxu0
      %v524 = vadd.f32 0.0, %v523
      %v525 = vpop.f32.mrb[0].mxu0
      %v526 = vpop.f32.mrb[0].mxu0
      %v527 = vadd.f32 0.0, %v526
      %v528 = vpop.f32.mrb[0].mxu0
      %529 = vmatprep.mubr.bf16.mxu0 0
      %530 = vmatmul.mubr.bf16.gmra.mrb[0].mxu0 %v413
      %v531 = vpop.f32.mrb[0].mxu0
      %v532 = vadd.f32 0.0, %v531
      %v533 = vpop.f32.mrb[0].mxu0
      %v534 = vpop.f32.mrb[0].mxu0
      %v535 = vadd.f32 0.0, %v534
      %v536 = vpop.f32.mrb[0].mxu0
      %537 = vmatprep.mubr.bf16.mxu0 0
      %538 = vmatmul.mubr.bf16.gmra.mrb[0].mxu0 %v416
      %v539 = vpop.f32.mrb[0].mxu0
      %v540 = vadd.f32 0.0, %v539
      %v541 = vpop.f32.mrb[0].mxu0
      %v542 = vpop.f32.mrb[0].mxu0
      %v543 = vadd.f32 0.0, %v542
      %v544 = vpop.f32.mrb[0].mxu0
      %545 = vmatprep.mubr.bf16.mxu0 0
      %546 = vmatmul.mubr.bf16.gmra.mrb[0].mxu0 %v419
      %v547 = vpop.f32.mrb[0].mxu0
      %v548 = vadd.f32 0.0, %v547
      %v549 = vpop.f32.mrb[0].mxu0
      %v550 = vpop.f32.mrb[0].mxu0
      %v551 = vadd.f32 0.0, %v550
      %v552 = vpop.f32.mrb[0].mxu0
      %553 = vmatprep.mubr.bf16.mxu0 0
      %554 = vmatmul.mubr.bf16.gmra.mrb[0].mxu0 %v422
      %v555 = vpop.f32.mrb[0].mxu0
      %v556 = vadd.f32 0.0, %v555
      %v557 = vpop.f32.mrb[0].mxu0
      %v558 = vpop.f32.mrb[0].mxu0
      %v559 = vadd.f32 0.0, %v558
      %v560 = vpop.f32.mrb[0].mxu0
      %561 = vmatprep.mubr.bf16.mxu0 0
      %562 = vmatmul.mubr.bf16.gmra.mrb[0].mxu0 %v425
      %v563 = vpop.f32.mrb[0].mxu0
      %v564 = vadd.f32 0.0, %v563
      %v565 = vpop.f32.mrb[0].mxu0
      %v566 = vpop.f32.mrb[0].mxu0
      %v567 = vadd.f32 0.0, %v566
      %v568 = vpop.f32.mrb[0].mxu0
      %569 = vmatprep.mubr.bf16.mxu0 0
      %570 = vmatmul.mubr.bf16.gmra.mrb[0].mxu0 %v428
      %v571 = vpop.f32.mrb[0].mxu0
      %v572 = vadd.f32 0.0, %v571
      %v573 = vpop.f32.mrb[0].mxu0
      %v574 = vpop.f32.mrb[0].mxu0
      %v575 = vadd.f32 0.0, %v574
      %v576 = vpop.f32.mrb[0].mxu0
      %577 = vmatprep.mubr.bf16.mxu0 0
      %578 = vmatmul.mubr.bf16.gmra.mrb[0].mxu0 %v431
      %v579 = vpop.f32.mrb[0].mxu0
      %v580 = vadd.f32 0.0, %v579
      %v581 = vpop.f32.mrb[0].mxu0
      %v582 = vpop.f32.mrb[0].mxu0
      %v583 = vadd.f32 0.0, %v582
      %v584 = vpop.f32.mrb[0].mxu0
      %585 = vmatprep.mubr.bf16.mxu0 0
      %586 = vmatmul.mubr.bf16.gmra.mrb[0].mxu0 %v434
      %v587 = vpop.f32.mrb[0].mxu0
      %v588 = vadd.f32 0.0, %v587
      %v589 = vpop.f32.mrb[0].mxu0
      %v590 = vpop.f32.mrb[0].mxu0
      %v591 = vadd.f32 0.0, %v590
      %v592 = vpop.f32.mrb[0].mxu0
      %593 = vmatprep.mubr.bf16.mxu0 0
      %594 = vmatmul.mubr.bf16.gmra.mrb[0].mxu0 %v437
      %v595 = vpop.f32.mrb[0].mxu0
      %v596 = vadd.f32 0.0, %v595
      %v597 = vpop.f32.mrb[0].mxu0
      %v598 = vpop.f32.mrb[0].mxu0
      %v599 = vadd.f32 0.0, %v598
      %v600 = vpop.f32.mrb[0].mxu0
      %601 = vmatprep.mubr.bf16.mxu0 0
      %602 = vmatmul.mubr.bf16.gmra.mrb[0].mxu0 %v440
      %v603 = vpop.f32.mrb[0].mxu0
      %v604 = vadd.f32 0.0, %v603
      %v605 = vpop.f32.mrb[0].mxu0
      %v606 = vpop.f32.mrb[0].mxu0
      %v607 = vadd.f32 0.0, %v606
      %v608 = vpop.f32.mrb[0].mxu0
      %609 = vdwg.mxu0
      %v610 = vld [vmem:[%s2] sm:$0x1]
      %v612 = vlaneseq
      %v613 = vshrl.u32 %v612, 7
      %v614 = vsub.s32 0, %v613
      %v615 = vrot.slane %v610, %v614
      %v617 = vmul.f32 %v484, %v615
      %v618 = vmul.f32 %v487, %v615
      %v619 = vmul.f32 %v492, %v615
      %v620 = vmul.f32 %v495, %v615
      %v621 = vmul.f32 %v500, %v615
      %v622 = vmul.f32 %v503, %v615
      %v623 = vmul.f32 %v508, %v615
      %v624 = vmul.f32 %v511, %v615
      %v625 = vmul.f32 %v516, %v615
      %v626 = vmul.f32 %v519, %v615
      %v627 = vmul.f32 %v524, %v615
      %v628 = vmul.f32 %v527, %v615
      %v629 = vmul.f32 %v532, %v615
      %v630 = vmul.f32 %v535, %v615
      %v631 = vmul.f32 %v540, %v615
      %v632 = vmul.f32 %v543, %v615
      %v633 = vmul.f32 %v548, %v615
      %v634 = vmul.f32 %v551, %v615
      %v635 = vmul.f32 %v556, %v615
      %v636 = vmul.f32 %v559, %v615
      %v637 = vmul.f32 %v564, %v615
      %v638 = vmul.f32 %v567, %v615
      %v639 = vmul.f32 %v572, %v615
      %v640 = vmul.f32 %v575, %v615
      %v641 = vmul.f32 %v580, %v615
      %v642 = vmul.f32 %v583, %v615
      %v643 = vmul.f32 %v588, %v615
      %v644 = vmul.f32 %v591, %v615
      %v645 = vmul.f32 %v596, %v615
      %v646 = vmul.f32 %v599, %v615
      %v647 = vmul.f32 %v604, %v615
      %v648 = vmul.f32 %v607, %v615
      %v649 = vld [vmem:[%s3] sm:$0x1]
      %v651 = vlaneseq
      %v652 = vshrl.u32 %v651, 7
      %v653 = vsub.s32 0, %v652
      %v654 = vrot.slane %v649, %v653
      %v656 = vadd.f32 %v617, %v654
      %v657 = vadd.f32 %v618, %v654
      %v658 = vadd.f32 %v619, %v654
      %v659 = vadd.f32 %v620, %v654
      %v660 = vadd.f32 %v621, %v654
      %v661 = vadd.f32 %v622, %v654
      %v662 = vadd.f32 %v623, %v654
      %v663 = vadd.f32 %v624, %v654
      %v664 = vadd.f32 %v625, %v654
      %v665 = vadd.f32 %v626, %v654
      %v666 = vadd.f32 %v627, %v654
      %v667 = vadd.f32 %v628, %v654
      %v668 = vadd.f32 %v629, %v654
      %v669 = vadd.f32 %v630, %v654
      %v670 = vadd.f32 %v631, %v654
      %v671 = vadd.f32 %v632, %v654
      %v672 = vadd.f32 %v633, %v654
      %v673 = vadd.f32 %v634, %v654
      %v674 = vadd.f32 %v635, %v654
      %v675 = vadd.f32 %v636, %v654
      %v676 = vadd.f32 %v637, %v654
      %v677 = vadd.f32 %v638, %v654
      %v678 = vadd.f32 %v639, %v654
      %v679 = vadd.f32 %v640, %v654
      %v680 = vadd.f32 %v641, %v654
      %v681 = vadd.f32 %v642, %v654
      %v682 = vadd.f32 %v643, %v654
      %v683 = vadd.f32 %v644, %v654
      %v684 = vadd.f32 %v645, %v654
      %v685 = vadd.f32 %v646, %v654
      %v686 = vadd.f32 %v647, %v654
      %v687 = vadd.f32 %v648, %v654
      %s688 = sld [smem:[#allocation2]]
      %vm689 = vcmp.gt.f32.partialorder %v656, 0.0
      %vm690 = vcmp.gt.f32.partialorder %v657, 0.0
      %vm691 = vcmp.gt.f32.partialorder %v658, 0.0
      %vm692 = vcmp.gt.f32.partialorder %v659, 0.0
      %vm693 = vcmp.gt.f32.partialorder %v660, 0.0
      %vm694 = vcmp.gt.f32.partialorder %v661, 0.0
      %vm695 = vcmp.gt.f32.partialorder %v662, 0.0
      %vm696 = vcmp.gt.f32.partialorder %v663, 0.0
      %vm697 = vcmp.gt.f32.partialorder %v664, 0.0
      %vm698 = vcmp.gt.f32.partialorder %v665, 0.0
      %vm699 = vcmp.gt.f32.partialorder %v666, 0.0
      %vm700 = vcmp.gt.f32.partialorder %v667, 0.0
      %vm701 = vcmp.gt.f32.partialorder %v668, 0.0
      %vm702 = vcmp.gt.f32.partialorder %v669, 0.0
      %vm703 = vcmp.gt.f32.partialorder %v670, 0.0
      %vm704 = vcmp.gt.f32.partialorder %v671, 0.0
      %vm705 = vcmp.gt.f32.partialorder %v672, 0.0
      %vm706 = vcmp.gt.f32.partialorder %v673, 0.0
      %vm707 = vcmp.gt.f32.partialorder %v674, 0.0
      %vm708 = vcmp.gt.f32.partialorder %v675, 0.0
      %vm709 = vcmp.gt.f32.partialorder %v676, 0.0
      %vm710 = vcmp.gt.f32.partialorder %v677, 0.0
      %vm711 = vcmp.gt.f32.partialorder %v678, 0.0
      %vm712 = vcmp.gt.f32.partialorder %v679, 0.0
      %vm713 = vcmp.gt.f32.partialorder %v680, 0.0
      %vm714 = vcmp.gt.f32.partialorder %v681, 0.0
      %vm715 = vcmp.gt.f32.partialorder %v682, 0.0
      %vm716 = vcmp.gt.f32.partialorder %v683, 0.0
      %vm717 = vcmp.gt.f32.partialorder %v684, 0.0
      %vm718 = vcmp.gt.f32.partialorder %v685, 0.0
      %vm719 = vcmp.gt.f32.partialorder %v686, 0.0
      %vm720 = vcmp.gt.f32.partialorder %v687, 0.0
      %v721 = vstv %s688
      %v722 = vmul.f32 %v721, %v656
      %v723 = vmul.f32 %v721, %v657
      %v724 = vmul.f32 %v721, %v658
      %v725 = vmul.f32 %v721, %v659
      %v726 = vmul.f32 %v721, %v660
      %v727 = vmul.f32 %v721, %v661
      %v728 = vmul.f32 %v721, %v662
      %v729 = vmul.f32 %v721, %v663
      %v730 = vmul.f32 %v721, %v664
      %v731 = vmul.f32 %v721, %v665
      %v732 = vmul.f32 %v721, %v666
      %v733 = vmul.f32 %v721, %v667
      %v734 = vmul.f32 %v721, %v668
      %v735 = vmul.f32 %v721, %v669
      %v736 = vmul.f32 %v721, %v670
      %v737 = vmul.f32 %v721, %v671
      %v738 = vmul.f32 %v721, %v672
      %v739 = vmul.f32 %v721, %v673
      %v740 = vmul.f32 %v721, %v674
      %v741 = vmul.f32 %v721, %v675
      %v742 = vmul.f32 %v721, %v676
      %v743 = vmul.f32 %v721, %v677
      %v744 = vmul.f32 %v721, %v678
      %v745 = vmul.f32 %v721, %v679
      %v746 = vmul.f32 %v721, %v680
      %v747 = vmul.f32 %v721, %v681
      %v748 = vmul.f32 %v721, %v682
      %v749 = vmul.f32 %v721, %v683
      %v750 = vmul.f32 %v721, %v684
      %v751 = vmul.f32 %v721, %v685
      %v752 = vmul.f32 %v721, %v686
      %v753 = vmul.f32 %v721, %v687
      %v754 = vsel %vm689, %v656, %v722
      %v755 = vsel %vm690, %v657, %v723
      %v756 = vsel %vm691, %v658, %v724
      %v757 = vsel %vm692, %v659, %v725
      %v758 = vsel %vm693, %v660, %v726
      %v759 = vsel %vm694, %v661, %v727
      %v760 = vsel %vm695, %v662, %v728
      %v761 = vsel %vm696, %v663, %v729
      %v762 = vsel %vm697, %v664, %v730
      %v763 = vsel %vm698, %v665, %v731
      %v764 = vsel %vm699, %v666, %v732
      %v765 = vsel %vm700, %v667, %v733
      %v766 = vsel %vm701, %v668, %v734
      %v767 = vsel %vm702, %v669, %v735
      %v768 = vsel %vm703, %v670, %v736
      %v769 = vsel %vm704, %v671, %v737
      %v770 = vsel %vm705, %v672, %v738
      %v771 = vsel %vm706, %v673, %v739
      %v772 = vsel %vm707, %v674, %v740
      %v773 = vsel %vm708, %v675, %v741
      %v774 = vsel %vm709, %v676, %v742
      %v775 = vsel %vm710, %v677, %v743
      %v776 = vsel %vm711, %v678, %v744
      %v777 = vsel %vm712, %v679, %v745
      %v778 = vsel %vm713, %v680, %v746
      %v779 = vsel %vm714, %v681, %v747
      %v780 = vsel %vm715, %v682, %v748
      %v781 = vsel %vm716, %v683, %v749
      %v782 = vsel %vm717, %v684, %v750
      %v783 = vsel %vm718, %v685, %v751
      %v784 = vsel %vm719, %v686, %v752
      %v785 = vsel %vm720, %v687, %v753
      %vm786 = vcmask 64512
      %787 = vst.msk [vmem:[%s263] sm:$0xff] %vm786, %v754
      %788 = vst.msk [vmem:[%s263 + $0x8] sm:$0xff] %vm786, %v755
      %789 = vst.msk [vmem:[%s263 + $0x10] sm:$0xff] %vm786, %v756
      %790 = vst.msk [vmem:[%s263 + $0x18] sm:$0xff] %vm786, %v757
      %791 = vst.msk [vmem:[%s263 + $0x20] sm:$0xff] %vm786, %v758
      %792 = vst.msk [vmem:[%s263 + $0x28] sm:$0xff] %vm786, %v759
      %793 = vst.msk [vmem:[%s263 + $0x30] sm:$0xff] %vm786, %v760
      %794 = vst.msk [vmem:[%s263 + $0x38] sm:$0xff] %vm786, %v761
      %795 = vst.msk [vmem:[%s263 + $0x40] sm:$0xff] %vm786, %v762
      %796 = vst.msk [vmem:[%s263 + $0x48] sm:$0xff] %vm786, %v763
      %797 = vst.msk [vmem:[%s263 + $0x50] sm:$0xff] %vm786, %v764
      %798 = vst.msk [vmem:[%s263 + $0x58] sm:$0xff] %vm786, %v765
      %799 = vst.msk [vmem:[%s263 + $0x60] sm:$0xff] %vm786, %v766
      %800 = vst.msk [vmem:[%s263 + $0x68] sm:$0xff] %vm786, %v767
      %801 = vst.msk [vmem:[%s263 + $0x70] sm:$0xff] %vm786, %v768
      %802 = vst.msk [vmem:[%s263 + $0x78] sm:$0xff] %vm786, %v769
      %803 = vst.msk [vmem:[%s263 + $0x80] sm:$0xff] %vm786, %v770
      %804 = vst.msk [vmem:[%s263 + $0x88] sm:$0xff] %vm786, %v771
      %805 = vst.msk [vmem:[%s263 + $0x90] sm:$0xff] %vm786, %v772
      %806 = vst.msk [vmem:[%s263 + $0x98] sm:$0xff] %vm786, %v773
      %807 = vst.msk [vmem:[%s263 + $0xa0] sm:$0xff] %vm786, %v774
      %808 = vst.msk [vmem:[%s263 + $0xa8] sm:$0xff] %vm786, %v775
      %809 = vst.msk [vmem:[%s263 + $0xb0] sm:$0xff] %vm786, %v776
      %810 = vst.msk [vmem:[%s263 + $0xb8] sm:$0xff] %vm786, %v777
      %811 = vst.msk [vmem:[%s263 + $0xc0] sm:$0xff] %vm786, %v778
      %812 = vst.msk [vmem:[%s263 + $0xc8] sm:$0xff] %vm786, %v779
      %813 = vst.msk [vmem:[%s263 + $0xd0] sm:$0xff] %vm786, %v780
      %814 = vst.msk [vmem:[%s263 + $0xd8] sm:$0xff] %vm786, %v781
      %815 = vst.msk [vmem:[%s263 + $0xe0] sm:$0xff] %vm786, %v782
      %816 = vst.msk [vmem:[%s263 + $0xe8] sm:$0xff] %vm786, %v783
      %817 = vst.msk [vmem:[%s263 + $0xf0] sm:$0xff] %vm786, %v784
      %818 = vst.msk [vmem:[%s263 + $0xf8] sm:$0xff] %vm786, %v785
      %s819 = smul.u32 32, %s22
      %p820 = scmp.lt.s32.totalorder %s21, 1
      %s821 = scalar_select %p820, %s21, 1
      %p822 = scmp.lt.s32.totalorder %s819, 31
      %s823 = scalar_select %p822, %s819, 31
      %s824 = smul.addr %s821, 32
      %s825 = sadd.s32 %s823, %s824
      %s826 = smul.addr %s825, 8
      %s827 = scalar_lea.vmem %s5, %s826
      // Predicated region
      $region41: #{_lambda_.10} parent=39 // pred_check
        %p828 = pneg %p161
      $region42: #{_lambda_.10} parent=39 // pred_check_branch
        %830 = sbr.rel (%p828) target = $region44
      $region43: #{_lambda_.10} parent=39 // pred_region
        %s831 = smul.u32 32, %s22
      $region44: #{_lambda_.10} parent=39 // pred_fallthru
        _
    $region40: #{_lambda_.10} parent=5 // pred_fallthru
      _
    %p832 = scmp.le.s32.totalorder 2, %s12
    // Predicated region
    $region45: #{_lambda_.10} parent=5 // pred_check
      %p833 = pneg %p832
    $region46: #{_lambda_.10} parent=5 // pred_check_branch
      %835 = sbr.rel (%p833) target = $region48
    $region47: #{_lambda_.10} parent=5 // pred_region
      %s836 = ssub.s32 %s12, 2
      // Predicated region
      $region49: #{_lambda_.10} parent=47 // pred_check
        %p837 = pneg %p167
      $region50: #{_lambda_.10} parent=47 // pred_check_branch
        %839 = sbr.rel (%p837) target = $region52
      $region51: #{_lambda_.10} parent=47 // pred_region
        %s840 = smul.u32 32, %s24
        %p841 = scmp.lt.s32.totalorder %s23, 1
        %s842 = scalar_select %p841, %s23, 1
        %p843 = scmp.lt.s32.totalorder %s840, 31
        %s844 = scalar_select %p843, %s840, 31
        %s845 = smul.addr %s842, 32
        %s846 = sadd.s32 %s844, %s845
        %s847 = smul.addr %s846, 8
        %s848 = scalar_lea.vmem %s5, %s847
      $region52: #{_lambda_.10} parent=47 // pred_fallthru
        _
    $region48: #{_lambda_.10} parent=5 // pred_fallthru
      _
  $region6: #{_lambda_.10} parent=0 // loop_footer
    %s16 = sadd.s32 1, %s12
  $region7: #{_lambda_.10} parent=0 // loop_footer_branch
    %11 = sbr.rel target = $region3
  $region8: #{_lambda_.10} parent=0 // loop_exit
    _

// kernel: _lambda_.11
$region0: #{_lambda_.11}
  #allocation0 [shape = 'u32[]', space=smem, size = 0x4, offset = 0x4, fixed_abs, tag = 'smem constant byte address 0x4 - core index']
  #allocation1 [shape = 'u32[144,128]{1,0:T(1,128)}', space=vmem, size = 0x12000, scoped, tag = 'internal scratch']
  #allocation2 [shape = 'f32[1]{0:T(128)S(6)}', space=smem, size = 0x200, scoped, tag = 'scoped memory for _lambda_.11']
  %s0 = inlined_call_operand.vmem [shape: bf16[2,256,72], index: 0, kind: input, shape index: {}]
  %s1 = inlined_call_operand.vmem [shape: bf16[72,8], index: 1, kind: input, shape index: {}]
  %s2 = inlined_call_operand.vmem [shape: f32[1,8], index: 2, kind: input, shape index: {}]
  %s3 = inlined_call_operand.vmem [shape: f32[1,8], index: 3, kind: input, shape index: {}]
  %s4 = inlined_call_operand.<no memory space> [shape: f32[1], index: 4, kind: input, shape index: {}]
  %s5 = inlined_call_operand.vmem [shape: f32[2,256,8], index: 5, kind: output, shape index: {}]
  %s6 = sld [smem:[#allocation0]]
  $region53: #{_lambda_.11} parent=0
    _
  %s8 = ssub.s32 1, %s6
  %s9 = scalar_select 0, %s8, %s6
  %10 = sst [smem:[#allocation2]] %s4
  loop: start=0, step=1, limit=4
  $region2: #{_lambda_.11} parent=0 // loop_pre_header
    _
  $region3: #{_lambda_.11} parent=0 // loop_header
    %s12 = sphi 0, %s16
    %p13 = scmp.ge.s32.totalorder %s12, 4
    %s19 = sphi 0, %s31
    %s20 = sphi 0, %s27
    %s21 = sphi 0, %s19
    %s22 = sphi 0, %s20
    %s23 = sphi 0, %s21
    %s24 = sphi 0, %s22
    %s36 = sphi 0, %s38
    %s39 = sphi 0, %s36
    %s40 = sphi 0, %s39
    %s56 = sphi 0, %s40
    %s60 = sphi 0, %s60
    %s62 = sphi 0, %s60
    %s63 = sphi 0, %s62
    %s77 = sphi 0, %s63
    %s81 = sphi 0, %s81
    %s83 = sphi 0, %s81
    %s84 = sphi 0, %s83
    %s98 = sphi 0, %s84
    %s102 = sphi 0, %s102
    %s104 = sphi 0, %s102
    %s105 = sphi 0, %s104
    %s119 = sphi 0, %s105
    %s123 = sphi 0, %s123
    %s125 = sphi 0, %s123
    %s126 = sphi 0, %s125
    %s140 = sphi 0, %s126
    %s148 = sphi 0, %s150
    %s151 = sphi 0, %s148
    %s152 = sphi 0, %s151
    %s168 = sphi 0, %s152
  $region4: #{_lambda_.11} parent=0 // loop_header_branch
    %15 = sbr.rel (%p13) target = $region8
  $region5: #{_lambda_.11} parent=0 // loop_body
    %s17 = ssub.s32 %s12, 1
    %s18 = ssub.s32 %s12, 2
    %s25 = sadd.s32 1, %s20
    %p26 = scmp.ge.s32.totalorder %s25, 1
    %s27 = scalar_select %p26, 0, %s25
    %s28 = sadd.s32 1, %s19
    %s29 = scalar_select %p26, %s28, %s19
    %p30 = scmp.ge.s32.totalorder %s29, 2
    %s31 = scalar_select %p30, 0, %s29
    %s32 = ssub.s32 %s19, %s31
    %s33 = ssub.s32 %s20, %s27
    %s34 = sor.u32 %s32, %s33
    %p35 = scmp.eq.s32.totalorder %s34, 0
    %s37 = sadd.s32 %s36, 1
    %s38 = scalar_select %p35, %s36, %s37
    %p41 = pneg %p35
    %p42 = scmp.eq.s32.totalorder %s12, 1
    %p43 = por %p41, %p42
    %p44 = scmp.ne.s32.totalorder %s36, %s39
    %p45 = scmp.eq.s32.totalorder %s12, 0
    %p46 = por %p44, %p45
    %p47 = scmp.ne.s32.totalorder %s36, %s39
    %p48 = scmp.eq.s32.totalorder %s17, 1
    %p49 = por %p47, %p48
    %p50 = scmp.ne.s32.totalorder %s39, %s40
    %p51 = scmp.eq.s32.totalorder %s17, 0
    %p52 = por %p50, %p51
    %p53 = scmp.ne.s32.totalorder %s39, %s40
    %p54 = scmp.eq.s32.totalorder %s18, 1
    %p55 = por %p53, %p54
    %p57 = scmp.ne.s32.totalorder %s40, %s56
    %p58 = scmp.eq.s32.totalorder %s18, 0
    %p59 = por %p57, %p58
    %s61 = sadd.s32 %s60, 1
    %p64 = scmp.eq.s32.totalorder %s12, 1
    %p65 = scmp.ne.s32.totalorder %s60, %s62
    %p66 = scmp.eq.s32.totalorder %s12, 0
    %p67 = por %p65, %p66
    %p68 = scmp.ne.s32.totalorder %s60, %s62
    %p69 = scmp.eq.s32.totalorder %s17, 1
    %p70 = por %p68, %p69
    %p71 = scmp.ne.s32.totalorder %s62, %s63
    %p72 = scmp.eq.s32.totalorder %s17, 0
    %p73 = por %p71, %p72
    %p74 = scmp.ne.s32.totalorder %s62, %s63
    %p75 = scmp.eq.s32.totalorder %s18, 1
    %p76 = por %p74, %p75
    %p78 = scmp.ne.s32.totalorder %s63, %s77
    %p79 = scmp.eq.s32.totalorder %s18, 0
    %p80 = por %p78, %p79
    %s82 = sadd.s32 %s81, 1
    %p85 = scmp.eq.s32.totalorder %s12, 1
    %p86 = scmp.ne.s32.totalorder %s81, %s83
    %p87 = scmp.eq.s32.totalorder %s12, 0
    %p88 = por %p86, %p87
    %p89 = scmp.ne.s32.totalorder %s81, %s83
    %p90 = scmp.eq.s32.totalorder %s17, 1
    %p91 = por %p89, %p90
    %p92 = scmp.ne.s32.totalorder %s83, %s84
    %p93 = scmp.eq.s32.totalorder %s17, 0
    %p94 = por %p92, %p93
    %p95 = scmp.ne.s32.totalorder %s83, %s84
    %p96 = scmp.eq.s32.totalorder %s18, 1
    %p97 = por %p95, %p96
    %p99 = scmp.ne.s32.totalorder %s84, %s98
    %p100 = scmp.eq.s32.totalorder %s18, 0
    %p101 = por %p99, %p100
    %s103 = sadd.s32 %s102, 1
    %p106 = scmp.eq.s32.totalorder %s12, 1
    %p107 = scmp.ne.s32.totalorder %s102, %s104
    %p108 = scmp.eq.s32.totalorder %s12, 0
    %p109 = por %p107, %p108
    %p110 = scmp.ne.s32.totalorder %s102, %s104
    %p111 = scmp.eq.s32.totalorder %s17, 1
    %p112 = por %p110, %p111
    %p113 = scmp.ne.s32.totalorder %s104, %s105
    %p114 = scmp.eq.s32.totalorder %s17, 0
    %p115 = por %p113, %p114
    %p116 = scmp.ne.s32.totalorder %s104, %s105
    %p117 = scmp.eq.s32.totalorder %s18, 1
    %p118 = por %p116, %p117
    %p120 = scmp.ne.s32.totalorder %s105, %s119
    %p121 = scmp.eq.s32.totalorder %s18, 0
    %p122 = por %p120, %p121
    %s124 = sadd.s32 %s123, 1
    %p127 = scmp.eq.s32.totalorder %s12, 1
    %p128 = scmp.ne.s32.totalorder %s123, %s125
    %p129 = scmp.eq.s32.totalorder %s12, 0
    %p130 = por %p128, %p129
    %p131 = scmp.ne.s32.totalorder %s123, %s125
    %p132 = scmp.eq.s32.totalorder %s17, 1
    %p133 = por %p131, %p132
    %p134 = scmp.ne.s32.totalorder %s125, %s126
    %p135 = scmp.eq.s32.totalorder %s17, 0
    %p136 = por %p134, %p135
    %p137 = scmp.ne.s32.totalorder %s125, %s126
    %p138 = scmp.eq.s32.totalorder %s18, 1
    %p139 = por %p137, %p138
    %p141 = scmp.ne.s32.totalorder %s126, %s140
    %p142 = scmp.eq.s32.totalorder %s18, 0
    %p143 = por %p141, %p142
    %s144 = ssub.s32 %s19, %s31
    %s145 = ssub.s32 %s20, %s27
    %s146 = sor.u32 %s144, %s145
    %p147 = scmp.eq.s32.totalorder %s146, 0
    %s149 = sadd.s32 %s148, 1
    %s150 = scalar_select %p147, %s148, %s149
    %p153 = pneg %p147
    %p154 = scmp.eq.s32.totalorder %s12, 1
    %p155 = por %p153, %p154
    %p156 = scmp.ne.s32.totalorder %s148, %s151
    %p157 = scmp.eq.s32.totalorder %s12, 0
    %p158 = por %p156, %p157
    %p159 = scmp.ne.s32.totalorder %s148, %s151
    %p160 = scmp.eq.s32.totalorder %s17, 1
    %p161 = por %p159, %p160
    %p162 = scmp.ne.s32.totalorder %s151, %s152
    %p163 = scmp.eq.s32.totalorder %s17, 0
    %p164 = por %p162, %p163
    %p165 = scmp.ne.s32.totalorder %s151, %s152
    %p166 = scmp.eq.s32.totalorder %s18, 1
    %p167 = por %p165, %p166
    %p169 = scmp.ne.s32.totalorder %s152, %s168
    %p170 = scmp.eq.s32.totalorder %s18, 0
    %p171 = por %p169, %p170
    %p172 = scmp.le.s32.totalorder 1, %s12
    %p173 = scmp.lt.s32.totalorder %s12, 3
    %p174 = pnand %p172, %p173
    %p175 = pneg %p174
    // Predicated region
    $region9: #{_lambda_.11} parent=5 // pred_check
      _
    $region10: #{_lambda_.11} parent=5 // pred_check_branch
      %177 = sbr.rel (%p174) target = $region12
    $region11: #{_lambda_.11} parent=5 // pred_region
      %s178 = ssub.s32 %s12, 1
      // Predicated region
      $region13: #{_lambda_.11} parent=11 // pred_check
        %p179 = pneg %p73
      $region14: #{_lambda_.11} parent=11 // pred_check_branch
        %181 = sbr.rel (%p179) target = $region16
      $region15: #{_lambda_.11} parent=11 // pred_region
        _
      $region16: #{_lambda_.11} parent=11 // pred_fallthru
        _
      // Predicated region
      $region17: #{_lambda_.11} parent=11 // pred_check
        %p182 = pneg %p94
      $region18: #{_lambda_.11} parent=11 // pred_check_branch
        %184 = sbr.rel (%p182) target = $region20
      $region19: #{_lambda_.11} parent=11 // pred_region
        _
      $region20: #{_lambda_.11} parent=11 // pred_fallthru
        _
      // Predicated region
      $region21: #{_lambda_.11} parent=11 // pred_check
        %p185 = pneg %p115
      $region22: #{_lambda_.11} parent=11 // pred_check_branch
        %187 = sbr.rel (%p185) target = $region24
      $region23: #{_lambda_.11} parent=11 // pred_region
        _
      $region24: #{_lambda_.11} parent=11 // pred_fallthru
        _
      // Predicated region
      $region25: #{_lambda_.11} parent=11 // pred_check
        %p188 = pneg %p136
      $region26: #{_lambda_.11} parent=11 // pred_check_branch
        %190 = sbr.rel (%p188) target = $region28
      $region27: #{_lambda_.11} parent=11 // pred_region
        _
      $region28: #{_lambda_.11} parent=11 // pred_fallthru
        _
    $region12: #{_lambda_.11} parent=5 // pred_fallthru
      _
    %p191 = scmp.lt.s32.totalorder %s12, 2
    // Predicated region
    $region29: #{_lambda_.11} parent=5 // pred_check
      %p192 = pneg %p191
    $region30: #{_lambda_.11} parent=5 // pred_check_branch
      %194 = sbr.rel (%p192) target = $region32
    $region31: #{_lambda_.11} parent=5 // pred_region
      // Predicated region
      $region33: #{_lambda_.11} parent=31 // pred_check
        %p195 = pneg %p46
      $region34: #{_lambda_.11} parent=31 // pred_check_branch
        %197 = sbr.rel (%p195) target = $region36
      $region35: #{_lambda_.11} parent=31 // pred_region
        %s198 = smul.u32 32, %s20
        %p199 = scmp.lt.s32.totalorder %s19, 1
        %s200 = scalar_select %p199, %s19, 1
        %p201 = scmp.lt.s32.totalorder %s198, 31
        %s202 = scalar_select %p201, %s198, 31
        %s203 = smul.addr %s200, 32
        %s204 = sadd.s32 %s202, %s203
        %s205 = smul.addr %s204, 4
        %s206 = scalar_lea.vmem %s0, %s205
        %s207 = smul.u32 32, %s20
      $region36: #{_lambda_.11} parent=31 // pred_fallthru
        _
    $region32: #{_lambda_.11} parent=5 // pred_fallthru
      _
    %p208 = scmp.le.s32.totalorder 1, %s12
    %p209 = scmp.lt.s32.totalorder %s12, 3
    %p210 = pnand %p208, %p209
    %p211 = pneg %p210
    // Predicated region
    $region37: #{_lambda_.11} parent=5 // pred_check
      _
    $region38: #{_lambda_.11} parent=5 // pred_check_branch
      %213 = sbr.rel (%p210) target = $region40
    $region39: #{_lambda_.11} parent=5 // pred_region
      %s214 = ssub.s32 %s12, 1
      %s215 = smul.u32 32, %s22
      %p216 = scmp.lt.s32.totalorder %s21, 1
      %s217 = scalar_select %p216, %s21, 1
      %p218 = scmp.lt.s32.totalorder %s215, 31
      %s219 = scalar_select %p218, %s215, 31
      %s220 = smul.addr %s217, 32
      %s221 = sadd.s32 %s219, %s220
      %s222 = smul.addr %s221, 4
      %s223 = scalar_lea.vmem %s0, %s222
      %p224 = pneg %p52
      %p225 = pneg %p49
      %p226 = pneg %p73
      %p227 = pneg %p70
      %p228 = pneg %p94
      %p229 = pneg %p91
      %p230 = pneg %p115
      %p231 = pneg %p112
      %p232 = pneg %p136
      %p233 = pneg %p133
      %p234 = pneg %p164
      %p235 = pneg %p161
      %s236 = smul.u32 32, %s22
      %p237 = scmp.lt.s32.totalorder %s21, 1
      %s238 = scalar_select %p237, %s21, 1
      %p239 = scmp.lt.s32.totalorder %s236, 31
      %s240 = scalar_select %p239, %s236, 31
      %s241 = smul.addr %s238, 32
      %s242 = sadd.s32 %s240, %s241
      %s243 = smul.addr %s242, 8
      %s244 = scalar_lea.vmem %s5, %s243
      %s245 = smul.u32 32, %s22
      %p246 = scmp.lt.s32.totalorder %s21, 1
      %s247 = scalar_select %p246, %s21, 1
      %p248 = scmp.lt.s32.totalorder %s245, 31
      %s249 = scalar_select %p248, %s245, 31
      %s250 = smul.addr %s247, 32
      %s251 = sadd.s32 %s249, %s250
      %s252 = smul.addr %s251, 4
      %s253 = scalar_lea.vmem %s0, %s252
      %s254 = smul.u32 32, %s22
      %s255 = smul.u32 32, %s22
      %p256 = scmp.lt.s32.totalorder %s21, 1
      %s257 = scalar_select %p256, %s21, 1
      %p258 = scmp.lt.s32.totalorder %s255, 31
      %s259 = scalar_select %p258, %s255, 31
      %s260 = smul.addr %s257, 32
      %s261 = sadd.s32 %s259, %s260
      %s262 = smul.addr %s261, 8
      %s263 = scalar_lea.vmem %s5, %s262
      %s264 = smul.u32 32, %s22
      %v266 = vld [vmem:[%s253] sm:$0xf]
      %v267 = vld [vmem:[%s253 + $0x4] sm:$0xf]
      %v268 = vld [vmem:[%s253 + $0x8] sm:$0xf]
      %v269 = vld [vmem:[%s253 + $0xc] sm:$0xf]
      %v270 = vld [vmem:[%s253 + $0x10] sm:$0xf]
      %v271 = vld [vmem:[%s253 + $0x14] sm:$0xf]
      %v272 = vld [vmem:[%s253 + $0x18] sm:$0xf]
      %v273 = vld [vmem:[%s253 + $0x1c] sm:$0xf]
      %v274 = vld [vmem:[%s253 + $0x20] sm:$0xf]
      %v275 = vld [vmem:[%s253 + $0x24] sm:$0xf]
      %v276 = vld [vmem:[%s253 + $0x28] sm:$0xf]
      %v277 = vld [vmem:[%s253 + $0x2c] sm:$0xf]
      %v278 = vld [vmem:[%s253 + $0x30] sm:$0xf]
      %v279 = vld [vmem:[%s253 + $0x34] sm:$0xf]
      %v280 = vld [vmem:[%s253 + $0x38] sm:$0xf]
      %v281 = vld [vmem:[%s253 + $0x3c] sm:$0xf]
      %v282 = vld [vmem:[%s253 + $0x40] sm:$0xf]
      %v283 = vld [vmem:[%s253 + $0x44] sm:$0xf]
      %v284 = vld [vmem:[%s253 + $0x48] sm:$0xf]
      %v285 = vld [vmem:[%s253 + $0x4c] sm:$0xf]
      %v286 = vld [vmem:[%s253 + $0x50] sm:$0xf]
      %v287 = vld [vmem:[%s253 + $0x54] sm:$0xf]
      %v288 = vld [vmem:[%s253 + $0x58] sm:$0xf]
      %v289 = vld [vmem:[%s253 + $0x5c] sm:$0xf]
      %v290 = vld [vmem:[%s253 + $0x60] sm:$0xf]
      %v291 = vld [vmem:[%s253 + $0x64] sm:$0xf]
      %v292 = vld [vmem:[%s253 + $0x68] sm:$0xf]
      %v293 = vld [vmem:[%s253 + $0x6c] sm:$0xf]
      %v294 = vld [vmem:[%s253 + $0x70] sm:$0xf]
      %v295 = vld [vmem:[%s253 + $0x74] sm:$0xf]
      %v296 = vld [vmem:[%s253 + $0x78] sm:$0xf]
      %v297 = vld [vmem:[%s253 + $0x7c] sm:$0xf]
      %v298 = vld [vmem:[%s1] sm:$0xf]
      %v299 = vld [vmem:[%s1 + $0x4] sm:$0xf]
      %v300 = vld [vmem:[%s1 + $0x8] sm:$0xf]
      %v301 = vld [vmem:[%s1 + $0xc] sm:$0xf]
      %v302 = vld [vmem:[%s1 + $0x10] sm:$0xf]
      %v303 = vld [vmem:[%s1 + $0x14] sm:$0xf]
      %v304 = vld [vmem:[%s1 + $0x18] sm:$0xf]
      %v305 = vld [vmem:[%s1 + $0x1c] sm:$0xf]
      %v306 = vld [vmem:[%s1 + $0x20] sm:$0xf]
      %v339 = vunpack.c.l.b16 %v266
      %v340 = vunpack.c.l.b16 %v267
      %v341 = vunpack.c.l.b16 %v268
      %v342 = vunpack.c.l.b16 %v269
      %v343 = vunpack.c.l.b16 %v270
      %v344 = vunpack.c.l.b16 %v271
      %v345 = vunpack.c.l.b16 %v272
      %v346 = vunpack.c.l.b16 %v273
      %v347 = vunpack.c.l.b16 %v274
      %v348 = vunpack.c.l.b16 %v275
      %v349 = vunpack.c.l.b16 %v276
      %v350 = vunpack.c.l.b16 %v277
      %v351 = vunpack.c.l.b16 %v278
      %v352 = vunpack.c.l.b16 %v279
      %v353 = vunpack.c.l.b16 %v280
      %v354 = vunpack.c.l.b16 %v281
      %v355 = vunpack.c.l.b16 %v282
      %v356 = vunpack.c.l.b16 %v283
      %v357 = vunpack.c.l.b16 %v284
      %v358 = vunpack.c.l.b16 %v285
      %v359 = vunpack.c.l.b16 %v286
      %v360 = vunpack.c.l.b16 %v287
      %v361 = vunpack.c.l.b16 %v288
      %v362 = vunpack.c.l.b16 %v289
      %v363 = vunpack.c.l.b16 %v290
      %v364 = vunpack.c.l.b16 %v291
      %v365 = vunpack.c.l.b16 %v292
      %v366 = vunpack.c.l.b16 %v293
      %v367 = vunpack.c.l.b16 %v294
      %v368 = vunpack.c.l.b16 %v295
      %v369 = vunpack.c.l.b16 %v296
      %v370 = vunpack.c.l.b16 %v297
      %v371 = vpack.c.b16 %v340, %v339
      %v372 = vpack.c.b16 %v342, %v341
      %v373 = vpack.c.b16 %v344, %v343
      %v374 = vpack.c.b16 %v346, %v345
      %v375 = vpack.c.b16 %v348, %v347
      %v376 = vpack.c.b16 %v350, %v349
      %v377 = vpack.c.b16 %v352, %v351
      %v378 = vpack.c.b16 %v354, %v353
      %v379 = vpack.c.b16 %v356, %v355
      %v380 = vpack.c.b16 %v358, %v357
      %v381 = vpack.c.b16 %v360, %v359
      %v382 = vpack.c.b16 %v362, %v361
      %v383 = vpack.c.b16 %v364, %v363
      %v384 = vpack.c.b16 %v366, %v365
      %v385 = vpack.c.b16 %v368, %v367
      %v386 = vpack.c.b16 %v370, %v369
      %v396 = vunpack.c.l.b16 %v298
      %v397 = vunpack.c.l.b16 %v299
      %v398 = vunpack.c.l.b16 %v300
      %v399 = vunpack.c.l.b16 %v301
      %v400 = vunpack.c.l.b16 %v302
      %v401 = vunpack.c.l.b16 %v303
      %v402 = vunpack.c.l.b16 %v304
      %v403 = vunpack.c.l.b16 %v305
      %v404 = vunpack.c.l.b16 %v306
      %v405 = vpack.c.b16 %v397, %v396
      %v406 = vpack.c.b16 %v399, %v398
      %v407 = vpack.c.b16 %v401, %v400
      %v408 = vpack.c.b16 %v403, %v402
      %v409 = vpack.c.b16 %v404, %v404
      %vm414 = vcmask 588800
      %v416 = vsel %vm414, %v371, 0
      %v419 = vsel %vm414, %v372, 0
      %v422 = vsel %vm414, %v373, 0
      %v425 = vsel %vm414, %v374, 0
      %v428 = vsel %vm414, %v375, 0
      %v431 = vsel %vm414, %v376, 0
      %v434 = vsel %vm414, %v377, 0
      %v437 = vsel %vm414, %v378, 0
      %v440 = vsel %vm414, %v379, 0
      %v443 = vsel %vm414, %v380, 0
      %v446 = vsel %vm414, %v381, 0
      %v449 = vsel %vm414, %v382, 0
      %v452 = vsel %vm414, %v383, 0
      %v455 = vsel %vm414, %v384, 0
      %v458 = vsel %vm414, %v385, 0
      %v461 = vsel %vm414, %v386, 0
      %vm463 = vcmask 1043456
      %v465 = vsel %vm463, %v409, 0
      %467 = vmatprep.subr.bf16.mxu0 0
      %468 = vmatpush1.bf16.msra.mxu0 %v405
      %469 = vmatprep.subr.bf16.mxu0 0
      %470 = vmatpush1.bf16.msra.mxu0 %v406
      %471 = vmatprep.subr.bf16.mxu0 0
      %472 = vmatpush1.bf16.msra.mxu0 %v407
      %473 = vmatprep.subr.bf16.mxu0 0
      %474 = vmatpush1.bf16.msra.mxu0 %v408
      %475 = vmatprep.subr.bf16.mxu0 0
      %476 = vmatpush1.bf16.msra.mxu0 %v465
      %477 = vmatprep.subr.bf16.mxu0 0
      %478 = vmatpush1.bf16.msra.mxu0 0
      %479 = vmatprep.subr.bf16.mxu0 0
      %480 = vmatpush1.bf16.msra.mxu0 0
      %481 = vmatprep.subr.bf16.mxu0 0
      %482 = vmatpush1.bf16.msra.mxu0 0
      %483 = vmatprep.subr.bf16.mxu0 0
      %484 = vmatpush1.bf16.msra.mxu0 0
      %485 = vmatprep.subr.bf16.mxu0 0
      %486 = vmatpush1.bf16.msra.mxu0 0
      %487 = vmatprep.subr.bf16.mxu0 0
      %488 = vmatpush1.bf16.msra.mxu0 0
      %489 = vmatprep.subr.bf16.mxu0 0
      %490 = vmatpush1.bf16.msra.mxu0 0
      %491 = vmatprep.subr.bf16.mxu0 0
      %492 = vmatpush1.bf16.msra.mxu0 0
      %493 = vmatprep.subr.bf16.mxu0 0
      %494 = vmatpush1.bf16.msra.mxu0 0
      %495 = vmatprep.subr.bf16.mxu0 0
      %496 = vmatpush1.bf16.msra.mxu0 0
      %497 = vmatprep.subr.bf16.mxu0 0
      %498 = vmatpush1.bf16.msra.mxu0 0
      %499 = vmatprep.mubr.bf16.mxu0 0
      %500 = vmatmul.mubr.bf16.gmra.mrb[0].mxu0 %v416
      %v501 = vpop.f32.mrb[0].mxu0
      %v502 = vadd.f32 0.0, %v501
      %v503 = vpop.f32.mrb[0].mxu0
      %v504 = vpop.f32.mrb[0].mxu0
      %v505 = vadd.f32 0.0, %v504
      %v506 = vpop.f32.mrb[0].mxu0
      %507 = vmatprep.mubr.bf16.mxu0 0
      %508 = vmatmul.mubr.bf16.gmra.mrb[0].mxu0 %v419
      %v509 = vpop.f32.mrb[0].mxu0
      %v510 = vadd.f32 0.0, %v509
      %v511 = vpop.f32.mrb[0].mxu0
      %v512 = vpop.f32.mrb[0].mxu0
      %v513 = vadd.f32 0.0, %v512
      %v514 = vpop.f32.mrb[0].mxu0
      %515 = vmatprep.mubr.bf16.mxu0 0
      %516 = vmatmul.mubr.bf16.gmra.mrb[0].mxu0 %v422
      %v517 = vpop.f32.mrb[0].mxu0
      %v518 = vadd.f32 0.0, %v517
      %v519 = vpop.f32.mrb[0].mxu0
      %v520 = vpop.f32.mrb[0].mxu0
      %v521 = vadd.f32 0.0, %v520
      %v522 = vpop.f32.mrb[0].mxu0
      %523 = vmatprep.mubr.bf16.mxu0 0
      %524 = vmatmul.mubr.bf16.gmra.mrb[0].mxu0 %v425
      %v525 = vpop.f32.mrb[0].mxu0
      %v526 = vadd.f32 0.0, %v525
      %v527 = vpop.f32.mrb[0].mxu0
      %v528 = vpop.f32.mrb[0].mxu0
      %v529 = vadd.f32 0.0, %v528
      %v530 = vpop.f32.mrb[0].mxu0
      %531 = vmatprep.mubr.bf16.mxu0 0
      %532 = vmatmul.mubr.bf16.gmra.mrb[0].mxu0 %v428
      %v533 = vpop.f32.mrb[0].mxu0
      %v534 = vadd.f32 0.0, %v533
      %v535 = vpop.f32.mrb[0].mxu0
      %v536 = vpop.f32.mrb[0].mxu0
      %v537 = vadd.f32 0.0, %v536
      %v538 = vpop.f32.mrb[0].mxu0
      %539 = vmatprep.mubr.bf16.mxu0 0
      %540 = vmatmul.mubr.bf16.gmra.mrb[0].mxu0 %v431
      %v541 = vpop.f32.mrb[0].mxu0
      %v542 = vadd.f32 0.0, %v541
      %v543 = vpop.f32.mrb[0].mxu0
      %v544 = vpop.f32.mrb[0].mxu0
      %v545 = vadd.f32 0.0, %v544
      %v546 = vpop.f32.mrb[0].mxu0
      %547 = vmatprep.mubr.bf16.mxu0 0
      %548 = vmatmul.mubr.bf16.gmra.mrb[0].mxu0 %v434
      %v549 = vpop.f32.mrb[0].mxu0
      %v550 = vadd.f32 0.0, %v549
      %v551 = vpop.f32.mrb[0].mxu0
      %v552 = vpop.f32.mrb[0].mxu0
      %v553 = vadd.f32 0.0, %v552
      %v554 = vpop.f32.mrb[0].mxu0
      %555 = vmatprep.mubr.bf16.mxu0 0
      %556 = vmatmul.mubr.bf16.gmra.mrb[0].mxu0 %v437
      %v557 = vpop.f32.mrb[0].mxu0
      %v558 = vadd.f32 0.0, %v557
      %v559 = vpop.f32.mrb[0].mxu0
      %v560 = vpop.f32.mrb[0].mxu0
      %v561 = vadd.f32 0.0, %v560
      %v562 = vpop.f32.mrb[0].mxu0
      %563 = vmatprep.mubr.bf16.mxu0 0
      %564 = vmatmul.mubr.bf16.gmra.mrb[0].mxu0 %v440
      %v565 = vpop.f32.mrb[0].mxu0
      %v566 = vadd.f32 0.0, %v565
      %v567 = vpop.f32.mrb[0].mxu0
      %v568 = vpop.f32.mrb[0].mxu0
      %v569 = vadd.f32 0.0, %v568
      %v570 = vpop.f32.mrb[0].mxu0
      %571 = vmatprep.mubr.bf16.mxu0 0
      %572 = vmatmul.mubr.bf16.gmra.mrb[0].mxu0 %v443
      %v573 = vpop.f32.mrb[0].mxu0
      %v574 = vadd.f32 0.0, %v573
      %v575 = vpop.f32.mrb[0].mxu0
      %v576 = vpop.f32.mrb[0].mxu0
      %v577 = vadd.f32 0.0, %v576
      %v578 = vpop.f32.mrb[0].mxu0
      %579 = vmatprep.mubr.bf16.mxu0 0
      %580 = vmatmul.mubr.bf16.gmra.mrb[0].mxu0 %v446
      %v581 = vpop.f32.mrb[0].mxu0
      %v582 = vadd.f32 0.0, %v581
      %v583 = vpop.f32.mrb[0].mxu0
      %v584 = vpop.f32.mrb[0].mxu0
      %v585 = vadd.f32 0.0, %v584
      %v586 = vpop.f32.mrb[0].mxu0
      %587 = vmatprep.mubr.bf16.mxu0 0
      %588 = vmatmul.mubr.bf16.gmra.mrb[0].mxu0 %v449
      %v589 = vpop.f32.mrb[0].mxu0
      %v590 = vadd.f32 0.0, %v589
      %v591 = vpop.f32.mrb[0].mxu0
      %v592 = vpop.f32.mrb[0].mxu0
      %v593 = vadd.f32 0.0, %v592
      %v594 = vpop.f32.mrb[0].mxu0
      %595 = vmatprep.mubr.bf16.mxu0 0
      %596 = vmatmul.mubr.bf16.gmra.mrb[0].mxu0 %v452
      %v597 = vpop.f32.mrb[0].mxu0
      %v598 = vadd.f32 0.0, %v597
      %v599 = vpop.f32.mrb[0].mxu0
      %v600 = vpop.f32.mrb[0].mxu0
      %v601 = vadd.f32 0.0, %v600
      %v602 = vpop.f32.mrb[0].mxu0
      %603 = vmatprep.mubr.bf16.mxu0 0
      %604 = vmatmul.mubr.bf16.gmra.mrb[0].mxu0 %v455
      %v605 = vpop.f32.mrb[0].mxu0
      %v606 = vadd.f32 0.0, %v605
      %v607 = vpop.f32.mrb[0].mxu0
      %v608 = vpop.f32.mrb[0].mxu0
      %v609 = vadd.f32 0.0, %v608
      %v610 = vpop.f32.mrb[0].mxu0
      %611 = vmatprep.mubr.bf16.mxu0 0
      %612 = vmatmul.mubr.bf16.gmra.mrb[0].mxu0 %v458
      %v613 = vpop.f32.mrb[0].mxu0
      %v614 = vadd.f32 0.0, %v613
      %v615 = vpop.f32.mrb[0].mxu0
      %v616 = vpop.f32.mrb[0].mxu0
      %v617 = vadd.f32 0.0, %v616
      %v618 = vpop.f32.mrb[0].mxu0
      %619 = vmatprep.mubr.bf16.mxu0 0
      %620 = vmatmul.mubr.bf16.gmra.mrb[0].mxu0 %v461
      %v621 = vpop.f32.mrb[0].mxu0
      %v622 = vadd.f32 0.0, %v621
      %v623 = vpop.f32.mrb[0].mxu0
      %v624 = vpop.f32.mrb[0].mxu0
      %v625 = vadd.f32 0.0, %v624
      %v626 = vpop.f32.mrb[0].mxu0
      %627 = vdwg.mxu0
      %v628 = vld [vmem:[%s2] sm:$0x1]
      %v630 = vlaneseq
      %v631 = vshrl.u32 %v630, 7
      %v632 = vsub.s32 0, %v631
      %v633 = vrot.slane %v628, %v632
      %v635 = vmul.f32 %v502, %v633
      %v636 = vmul.f32 %v505, %v633
      %v637 = vmul.f32 %v510, %v633
      %v638 = vmul.f32 %v513, %v633
      %v639 = vmul.f32 %v518, %v633
      %v640 = vmul.f32 %v521, %v633
      %v641 = vmul.f32 %v526, %v633
      %v642 = vmul.f32 %v529, %v633
      %v643 = vmul.f32 %v534, %v633
      %v644 = vmul.f32 %v537, %v633
      %v645 = vmul.f32 %v542, %v633
      %v646 = vmul.f32 %v545, %v633
      %v647 = vmul.f32 %v550, %v633
      %v648 = vmul.f32 %v553, %v633
      %v649 = vmul.f32 %v558, %v633
      %v650 = vmul.f32 %v561, %v633
      %v651 = vmul.f32 %v566, %v633
      %v652 = vmul.f32 %v569, %v633
      %v653 = vmul.f32 %v574, %v633
      %v654 = vmul.f32 %v577, %v633
      %v655 = vmul.f32 %v582, %v633
      %v656 = vmul.f32 %v585, %v633
      %v657 = vmul.f32 %v590, %v633
      %v658 = vmul.f32 %v593, %v633
      %v659 = vmul.f32 %v598, %v633
      %v660 = vmul.f32 %v601, %v633
      %v661 = vmul.f32 %v606, %v633
      %v662 = vmul.f32 %v609, %v633
      %v663 = vmul.f32 %v614, %v633
      %v664 = vmul.f32 %v617, %v633
      %v665 = vmul.f32 %v622, %v633
      %v666 = vmul.f32 %v625, %v633
      %v667 = vld [vmem:[%s3] sm:$0x1]
      %v669 = vlaneseq
      %v670 = vshrl.u32 %v669, 7
      %v671 = vsub.s32 0, %v670
      %v672 = vrot.slane %v667, %v671
      %v674 = vadd.f32 %v635, %v672
      %v675 = vadd.f32 %v636, %v672
      %v676 = vadd.f32 %v637, %v672
      %v677 = vadd.f32 %v638, %v672
      %v678 = vadd.f32 %v639, %v672
      %v679 = vadd.f32 %v640, %v672
      %v680 = vadd.f32 %v641, %v672
      %v681 = vadd.f32 %v642, %v672
      %v682 = vadd.f32 %v643, %v672
      %v683 = vadd.f32 %v644, %v672
      %v684 = vadd.f32 %v645, %v672
      %v685 = vadd.f32 %v646, %v672
      %v686 = vadd.f32 %v647, %v672
      %v687 = vadd.f32 %v648, %v672
      %v688 = vadd.f32 %v649, %v672
      %v689 = vadd.f32 %v650, %v672
      %v690 = vadd.f32 %v651, %v672
      %v691 = vadd.f32 %v652, %v672
      %v692 = vadd.f32 %v653, %v672
      %v693 = vadd.f32 %v654, %v672
      %v694 = vadd.f32 %v655, %v672
      %v695 = vadd.f32 %v656, %v672
      %v696 = vadd.f32 %v657, %v672
      %v697 = vadd.f32 %v658, %v672
      %v698 = vadd.f32 %v659, %v672
      %v699 = vadd.f32 %v660, %v672
      %v700 = vadd.f32 %v661, %v672
      %v701 = vadd.f32 %v662, %v672
      %v702 = vadd.f32 %v663, %v672
      %v703 = vadd.f32 %v664, %v672
      %v704 = vadd.f32 %v665, %v672
      %v705 = vadd.f32 %v666, %v672
      %s706 = sld [smem:[#allocation2]]
      %vm707 = vcmp.gt.f32.partialorder %v674, 0.0
      %vm708 = vcmp.gt.f32.partialorder %v675, 0.0
      %vm709 = vcmp.gt.f32.partialorder %v676, 0.0
      %vm710 = vcmp.gt.f32.partialorder %v677, 0.0
      %vm711 = vcmp.gt.f32.partialorder %v678, 0.0
      %vm712 = vcmp.gt.f32.partialorder %v679, 0.0
      %vm713 = vcmp.gt.f32.partialorder %v680, 0.0
      %vm714 = vcmp.gt.f32.partialorder %v681, 0.0
      %vm715 = vcmp.gt.f32.partialorder %v682, 0.0
      %vm716 = vcmp.gt.f32.partialorder %v683, 0.0
      %vm717 = vcmp.gt.f32.partialorder %v684, 0.0
      %vm718 = vcmp.gt.f32.partialorder %v685, 0.0
      %vm719 = vcmp.gt.f32.partialorder %v686, 0.0
      %vm720 = vcmp.gt.f32.partialorder %v687, 0.0
      %vm721 = vcmp.gt.f32.partialorder %v688, 0.0
      %vm722 = vcmp.gt.f32.partialorder %v689, 0.0
      %vm723 = vcmp.gt.f32.partialorder %v690, 0.0
      %vm724 = vcmp.gt.f32.partialorder %v691, 0.0
      %vm725 = vcmp.gt.f32.partialorder %v692, 0.0
      %vm726 = vcmp.gt.f32.partialorder %v693, 0.0
      %vm727 = vcmp.gt.f32.partialorder %v694, 0.0
      %vm728 = vcmp.gt.f32.partialorder %v695, 0.0
      %vm729 = vcmp.gt.f32.partialorder %v696, 0.0
      %vm730 = vcmp.gt.f32.partialorder %v697, 0.0
      %vm731 = vcmp.gt.f32.partialorder %v698, 0.0
      %vm732 = vcmp.gt.f32.partialorder %v699, 0.0
      %vm733 = vcmp.gt.f32.partialorder %v700, 0.0
      %vm734 = vcmp.gt.f32.partialorder %v701, 0.0
      %vm735 = vcmp.gt.f32.partialorder %v702, 0.0
      %vm736 = vcmp.gt.f32.partialorder %v703, 0.0
      %vm737 = vcmp.gt.f32.partialorder %v704, 0.0
      %vm738 = vcmp.gt.f32.partialorder %v705, 0.0
      %v739 = vstv %s706
      %v740 = vmul.f32 %v739, %v674
      %v741 = vmul.f32 %v739, %v675
      %v742 = vmul.f32 %v739, %v676
      %v743 = vmul.f32 %v739, %v677
      %v744 = vmul.f32 %v739, %v678
      %v745 = vmul.f32 %v739, %v679
      %v746 = vmul.f32 %v739, %v680
      %v747 = vmul.f32 %v739, %v681
      %v748 = vmul.f32 %v739, %v682
      %v749 = vmul.f32 %v739, %v683
      %v750 = vmul.f32 %v739, %v684
      %v751 = vmul.f32 %v739, %v685
      %v752 = vmul.f32 %v739, %v686
      %v753 = vmul.f32 %v739, %v687
      %v754 = vmul.f32 %v739, %v688
      %v755 = vmul.f32 %v739, %v689
      %v756 = vmul.f32 %v739, %v690
      %v757 = vmul.f32 %v739, %v691
      %v758 = vmul.f32 %v739, %v692
      %v759 = vmul.f32 %v739, %v693
      %v760 = vmul.f32 %v739, %v694
      %v761 = vmul.f32 %v739, %v695
      %v762 = vmul.f32 %v739, %v696
      %v763 = vmul.f32 %v739, %v697
      %v764 = vmul.f32 %v739, %v698
      %v765 = vmul.f32 %v739, %v699
      %v766 = vmul.f32 %v739, %v700
      %v767 = vmul.f32 %v739, %v701
      %v768 = vmul.f32 %v739, %v702
      %v769 = vmul.f32 %v739, %v703
      %v770 = vmul.f32 %v739, %v704
      %v771 = vmul.f32 %v739, %v705
      %v772 = vsel %vm707, %v674, %v740
      %v773 = vsel %vm708, %v675, %v741
      %v774 = vsel %vm709, %v676, %v742
      %v775 = vsel %vm710, %v677, %v743
      %v776 = vsel %vm711, %v678, %v744
      %v777 = vsel %vm712, %v679, %v745
      %v778 = vsel %vm713, %v680, %v746
      %v779 = vsel %vm714, %v681, %v747
      %v780 = vsel %vm715, %v682, %v748
      %v781 = vsel %vm716, %v683, %v749
      %v782 = vsel %vm717, %v684, %v750
      %v783 = vsel %vm718, %v685, %v751
      %v784 = vsel %vm719, %v686, %v752
      %v785 = vsel %vm720, %v687, %v753
      %v786 = vsel %vm721, %v688, %v754
      %v787 = vsel %vm722, %v689, %v755
      %v788 = vsel %vm723, %v690, %v756
      %v789 = vsel %vm724, %v691, %v757
      %v790 = vsel %vm725, %v692, %v758
      %v791 = vsel %vm726, %v693, %v759
      %v792 = vsel %vm727, %v694, %v760
      %v793 = vsel %vm728, %v695, %v761
      %v794 = vsel %vm729, %v696, %v762
      %v795 = vsel %vm730, %v697, %v763
      %v796 = vsel %vm731, %v698, %v764
      %v797 = vsel %vm732, %v699, %v765
      %v798 = vsel %vm733, %v700, %v766
      %v799 = vsel %vm734, %v701, %v767
      %v800 = vsel %vm735, %v702, %v768
      %v801 = vsel %vm736, %v703, %v769
      %v802 = vsel %vm737, %v704, %v770
      %v803 = vsel %vm738, %v705, %v771
      %vm804 = vcmask 64512
      %805 = vst.msk [vmem:[%s263] sm:$0xff] %vm804, %v772
      %806 = vst.msk [vmem:[%s263 + $0x8] sm:$0xff] %vm804, %v773
      %807 = vst.msk [vmem:[%s263 + $0x10] sm:$0xff] %vm804, %v774
      %808 = vst.msk [vmem:[%s263 + $0x18] sm:$0xff] %vm804, %v775
      %809 = vst.msk [vmem:[%s263 + $0x20] sm:$0xff] %vm804, %v776
      %810 = vst.msk [vmem:[%s263 + $0x28] sm:$0xff] %vm804, %v777
      %811 = vst.msk [vmem:[%s263 + $0x30] sm:$0xff] %vm804, %v778
      %812 = vst.msk [vmem:[%s263 + $0x38] sm:$0xff] %vm804, %v779
      %813 = vst.msk [vmem:[%s263 + $0x40] sm:$0xff] %vm804, %v780
      %814 = vst.msk [vmem:[%s263 + $0x48] sm:$0xff] %vm804, %v781
      %815 = vst.msk [vmem:[%s263 + $0x50] sm:$0xff] %vm804, %v782
      %816 = vst.msk [vmem:[%s263 + $0x58] sm:$0xff] %vm804, %v783
      %817 = vst.msk [vmem:[%s263 + $0x60] sm:$0xff] %vm804, %v784
      %818 = vst.msk [vmem:[%s263 + $0x68] sm:$0xff] %vm804, %v785
      %819 = vst.msk [vmem:[%s263 + $0x70] sm:$0xff] %vm804, %v786
      %820 = vst.msk [vmem:[%s263 + $0x78] sm:$0xff] %vm804, %v787
      %821 = vst.msk [vmem:[%s263 + $0x80] sm:$0xff] %vm804, %v788
      %822 = vst.msk [vmem:[%s263 + $0x88] sm:$0xff] %vm804, %v789
      %823 = vst.msk [vmem:[%s263 + $0x90] sm:$0xff] %vm804, %v790
      %824 = vst.msk [vmem:[%s263 + $0x98] sm:$0xff] %vm804, %v791
      %825 = vst.msk [vmem:[%s263 + $0xa0] sm:$0xff] %vm804, %v792
      %826 = vst.msk [vmem:[%s263 + $0xa8] sm:$0xff] %vm804, %v793
      %827 = vst.msk [vmem:[%s263 + $0xb0] sm:$0xff] %vm804, %v794
      %828 = vst.msk [vmem:[%s263 + $0xb8] sm:$0xff] %vm804, %v795
      %829 = vst.msk [vmem:[%s263 + $0xc0] sm:$0xff] %vm804, %v796
      %830 = vst.msk [vmem:[%s263 + $0xc8] sm:$0xff] %vm804, %v797
      %831 = vst.msk [vmem:[%s263 + $0xd0] sm:$0xff] %vm804, %v798
      %832 = vst.msk [vmem:[%s263 + $0xd8] sm:$0xff] %vm804, %v799
      %833 = vst.msk [vmem:[%s263 + $0xe0] sm:$0xff] %vm804, %v800
      %834 = vst.msk [vmem:[%s263 + $0xe8] sm:$0xff] %vm804, %v801
      %835 = vst.msk [vmem:[%s263 + $0xf0] sm:$0xff] %vm804, %v802
      %836 = vst.msk [vmem:[%s263 + $0xf8] sm:$0xff] %vm804, %v803
      %s837 = smul.u32 32, %s22
      %p838 = scmp.lt.s32.totalorder %s21, 1
      %s839 = scalar_select %p838, %s21, 1
      %p840 = scmp.lt.s32.totalorder %s837, 31
      %s841 = scalar_select %p840, %s837, 31
      %s842 = smul.addr %s839, 32
      %s843 = sadd.s32 %s841, %s842
      %s844 = smul.addr %s843, 8
      %s845 = scalar_lea.vmem %s5, %s844
      // Predicated region
      $region41: #{_lambda_.11} parent=39 // pred_check
        %p846 = pneg %p161
      $region42: #{_lambda_.11} parent=39 // pred_check_branch
        %848 = sbr.rel (%p846) target = $region44
      $region43: #{_lambda_.11} parent=39 // pred_region
        %s849 = smul.u32 32, %s22
      $region44: #{_lambda_.11} parent=39 // pred_fallthru
        _
    $region40: #{_lambda_.11} parent=5 // pred_fallthru
      _
    %p850 = scmp.le.s32.totalorder 2, %s12
    // Predicated region
    $region45: #{_lambda_.11} parent=5 // pred_check
      %p851 = pneg %p850
    $region46: #{_lambda_.11} parent=5 // pred_check_branch
      %853 = sbr.rel (%p851) target = $region48
    $region47: #{_lambda_.11} parent=5 // pred_region
      %s854 = ssub.s32 %s12, 2
      // Predicated region
      $region49: #{_lambda_.11} parent=47 // pred_check
        %p855 = pneg %p167
      $region50: #{_lambda_.11} parent=47 // pred_check_branch
        %857 = sbr.rel (%p855) target = $region52
      $region51: #{_lambda_.11} parent=47 // pred_region
        %s858 = smul.u32 32, %s24
        %p859 = scmp.lt.s32.totalorder %s23, 1
        %s860 = scalar_select %p859, %s23, 1
        %p861 = scmp.lt.s32.totalorder %s858, 31
        %s862 = scalar_select %p861, %s858, 31
        %s863 = smul.addr %s860, 32
        %s864 = sadd.s32 %s862, %s863
        %s865 = smul.addr %s864, 8
        %s866 = scalar_lea.vmem %s5, %s865
      $region52: #{_lambda_.11} parent=47 // pred_fallthru
        _
    $region48: #{_lambda_.11} parent=5 // pred_fallthru
      _
  $region6: #{_lambda_.11} parent=0 // loop_footer
    %s16 = sadd.s32 1, %s12
  $region7: #{_lambda_.11} parent=0 // loop_footer_branch
    %11 = sbr.rel target = $region3
  $region8: #{_lambda_.11} parent=0 // loop_exit
    _

// kernel: _lambda_.12
$region0: #{_lambda_.12}
  #allocation0 [shape = 'u32[]', space=smem, size = 0x4, offset = 0x4, fixed_abs, tag = 'smem constant byte address 0x4 - core index']
  #allocation1 [shape = 'u32[144,128]{1,0:T(1,128)}', space=vmem, size = 0x12000, scoped, tag = 'internal scratch']
  #allocation2 [shape = 'f32[1]{0:T(128)S(6)}', space=smem, size = 0x200, scoped, tag = 'scoped memory for _lambda_.12']
  %s0 = inlined_call_operand.vmem [shape: bf16[2,64,72], index: 0, kind: input, shape index: {}]
  %s1 = inlined_call_operand.vmem [shape: bf16[72,16], index: 1, kind: input, shape index: {}]
  %s2 = inlined_call_operand.vmem [shape: f32[1,16], index: 2, kind: input, shape index: {}]
  %s3 = inlined_call_operand.vmem [shape: f32[1,16], index: 3, kind: input, shape index: {}]
  %s4 = inlined_call_operand.<no memory space> [shape: f32[1], index: 4, kind: input, shape index: {}]
  %s5 = inlined_call_operand.vmem [shape: f32[2,64,16], index: 5, kind: output, shape index: {}]
  %s6 = sld [smem:[#allocation0]]
  $region53: #{_lambda_.12} parent=0
    _
  %s8 = ssub.s32 1, %s6
  %s9 = scalar_select 0, %s8, %s6
  %10 = sst [smem:[#allocation2]] %s4
  loop: start=0, step=1, limit=4
  $region2: #{_lambda_.12} parent=0 // loop_pre_header
    _
  $region3: #{_lambda_.12} parent=0 // loop_header
    %s12 = sphi 0, %s16
    %p13 = scmp.ge.s32.totalorder %s12, 4
    %s19 = sphi 0, %s31
    %s20 = sphi 0, %s27
    %s21 = sphi 0, %s19
    %s22 = sphi 0, %s20
    %s23 = sphi 0, %s21
    %s24 = sphi 0, %s22
    %s36 = sphi 0, %s38
    %s39 = sphi 0, %s36
    %s40 = sphi 0, %s39
    %s56 = sphi 0, %s40
    %s60 = sphi 0, %s60
    %s62 = sphi 0, %s60
    %s63 = sphi 0, %s62
    %s77 = sphi 0, %s63
    %s81 = sphi 0, %s81
    %s83 = sphi 0, %s81
    %s84 = sphi 0, %s83
    %s98 = sphi 0, %s84
    %s102 = sphi 0, %s102
    %s104 = sphi 0, %s102
    %s105 = sphi 0, %s104
    %s119 = sphi 0, %s105
    %s123 = sphi 0, %s123
    %s125 = sphi 0, %s123
    %s126 = sphi 0, %s125
    %s140 = sphi 0, %s126
    %s148 = sphi 0, %s150
    %s151 = sphi 0, %s148
    %s152 = sphi 0, %s151
    %s168 = sphi 0, %s152
  $region4: #{_lambda_.12} parent=0 // loop_header_branch
    %15 = sbr.rel (%p13) target = $region8
  $region5: #{_lambda_.12} parent=0 // loop_body
    %s17 = ssub.s32 %s12, 1
    %s18 = ssub.s32 %s12, 2
    %s25 = sadd.s32 1, %s20
    %p26 = scmp.ge.s32.totalorder %s25, 1
    %s27 = scalar_select %p26, 0, %s25
    %s28 = sadd.s32 1, %s19
    %s29 = scalar_select %p26, %s28, %s19
    %p30 = scmp.ge.s32.totalorder %s29, 2
    %s31 = scalar_select %p30, 0, %s29
    %s32 = ssub.s32 %s19, %s31
    %s33 = ssub.s32 %s20, %s27
    %s34 = sor.u32 %s32, %s33
    %p35 = scmp.eq.s32.totalorder %s34, 0
    %s37 = sadd.s32 %s36, 1
    %s38 = scalar_select %p35, %s36, %s37
    %p41 = pneg %p35
    %p42 = scmp.eq.s32.totalorder %s12, 1
    %p43 = por %p41, %p42
    %p44 = scmp.ne.s32.totalorder %s36, %s39
    %p45 = scmp.eq.s32.totalorder %s12, 0
    %p46 = por %p44, %p45
    %p47 = scmp.ne.s32.totalorder %s36, %s39
    %p48 = scmp.eq.s32.totalorder %s17, 1
    %p49 = por %p47, %p48
    %p50 = scmp.ne.s32.totalorder %s39, %s40
    %p51 = scmp.eq.s32.totalorder %s17, 0
    %p52 = por %p50, %p51
    %p53 = scmp.ne.s32.totalorder %s39, %s40
    %p54 = scmp.eq.s32.totalorder %s18, 1
    %p55 = por %p53, %p54
    %p57 = scmp.ne.s32.totalorder %s40, %s56
    %p58 = scmp.eq.s32.totalorder %s18, 0
    %p59 = por %p57, %p58
    %s61 = sadd.s32 %s60, 1
    %p64 = scmp.eq.s32.totalorder %s12, 1
    %p65 = scmp.ne.s32.totalorder %s60, %s62
    %p66 = scmp.eq.s32.totalorder %s12, 0
    %p67 = por %p65, %p66
    %p68 = scmp.ne.s32.totalorder %s60, %s62
    %p69 = scmp.eq.s32.totalorder %s17, 1
    %p70 = por %p68, %p69
    %p71 = scmp.ne.s32.totalorder %s62, %s63
    %p72 = scmp.eq.s32.totalorder %s17, 0
    %p73 = por %p71, %p72
    %p74 = scmp.ne.s32.totalorder %s62, %s63
    %p75 = scmp.eq.s32.totalorder %s18, 1
    %p76 = por %p74, %p75
    %p78 = scmp.ne.s32.totalorder %s63, %s77
    %p79 = scmp.eq.s32.totalorder %s18, 0
    %p80 = por %p78, %p79
    %s82 = sadd.s32 %s81, 1
    %p85 = scmp.eq.s32.totalorder %s12, 1
    %p86 = scmp.ne.s32.totalorder %s81, %s83
    %p87 = scmp.eq.s32.totalorder %s12, 0
    %p88 = por %p86, %p87
    %p89 = scmp.ne.s32.totalorder %s81, %s83
    %p90 = scmp.eq.s32.totalorder %s17, 1
    %p91 = por %p89, %p90
    %p92 = scmp.ne.s32.totalorder %s83, %s84
    %p93 = scmp.eq.s32.totalorder %s17, 0
    %p94 = por %p92, %p93
    %p95 = scmp.ne.s32.totalorder %s83, %s84
    %p96 = scmp.eq.s32.totalorder %s18, 1
    %p97 = por %p95, %p96
    %p99 = scmp.ne.s32.totalorder %s84, %s98
    %p100 = scmp.eq.s32.totalorder %s18, 0
    %p101 = por %p99, %p100
    %s103 = sadd.s32 %s102, 1
    %p106 = scmp.eq.s32.totalorder %s12, 1
    %p107 = scmp.ne.s32.totalorder %s102, %s104
    %p108 = scmp.eq.s32.totalorder %s12, 0
    %p109 = por %p107, %p108
    %p110 = scmp.ne.s32.totalorder %s102, %s104
    %p111 = scmp.eq.s32.totalorder %s17, 1
    %p112 = por %p110, %p111
    %p113 = scmp.ne.s32.totalorder %s104, %s105
    %p114 = scmp.eq.s32.totalorder %s17, 0
    %p115 = por %p113, %p114
    %p116 = scmp.ne.s32.totalorder %s104, %s105
    %p117 = scmp.eq.s32.totalorder %s18, 1
    %p118 = por %p116, %p117
    %p120 = scmp.ne.s32.totalorder %s105, %s119
    %p121 = scmp.eq.s32.totalorder %s18, 0
    %p122 = por %p120, %p121
    %s124 = sadd.s32 %s123, 1
    %p127 = scmp.eq.s32.totalorder %s12, 1
    %p128 = scmp.ne.s32.totalorder %s123, %s125
    %p129 = scmp.eq.s32.totalorder %s12, 0
    %p130 = por %p128, %p129
    %p131 = scmp.ne.s32.totalorder %s123, %s125
    %p132 = scmp.eq.s32.totalorder %s17, 1
    %p133 = por %p131, %p132
    %p134 = scmp.ne.s32.totalorder %s125, %s126
    %p135 = scmp.eq.s32.totalorder %s17, 0
    %p136 = por %p134, %p135
    %p137 = scmp.ne.s32.totalorder %s125, %s126
    %p138 = scmp.eq.s32.totalorder %s18, 1
    %p139 = por %p137, %p138
    %p141 = scmp.ne.s32.totalorder %s126, %s140
    %p142 = scmp.eq.s32.totalorder %s18, 0
    %p143 = por %p141, %p142
    %s144 = ssub.s32 %s19, %s31
    %s145 = ssub.s32 %s20, %s27
    %s146 = sor.u32 %s144, %s145
    %p147 = scmp.eq.s32.totalorder %s146, 0
    %s149 = sadd.s32 %s148, 1
    %s150 = scalar_select %p147, %s148, %s149
    %p153 = pneg %p147
    %p154 = scmp.eq.s32.totalorder %s12, 1
    %p155 = por %p153, %p154
    %p156 = scmp.ne.s32.totalorder %s148, %s151
    %p157 = scmp.eq.s32.totalorder %s12, 0
    %p158 = por %p156, %p157
    %p159 = scmp.ne.s32.totalorder %s148, %s151
    %p160 = scmp.eq.s32.totalorder %s17, 1
    %p161 = por %p159, %p160
    %p162 = scmp.ne.s32.totalorder %s151, %s152
    %p163 = scmp.eq.s32.totalorder %s17, 0
    %p164 = por %p162, %p163
    %p165 = scmp.ne.s32.totalorder %s151, %s152
    %p166 = scmp.eq.s32.totalorder %s18, 1
    %p167 = por %p165, %p166
    %p169 = scmp.ne.s32.totalorder %s152, %s168
    %p170 = scmp.eq.s32.totalorder %s18, 0
    %p171 = por %p169, %p170
    %p172 = scmp.le.s32.totalorder 1, %s12
    %p173 = scmp.lt.s32.totalorder %s12, 3
    %p174 = pnand %p172, %p173
    %p175 = pneg %p174
    // Predicated region
    $region9: #{_lambda_.12} parent=5 // pred_check
      _
    $region10: #{_lambda_.12} parent=5 // pred_check_branch
      %177 = sbr.rel (%p174) target = $region12
    $region11: #{_lambda_.12} parent=5 // pred_region
      %s178 = ssub.s32 %s12, 1
      // Predicated region
      $region13: #{_lambda_.12} parent=11 // pred_check
        %p179 = pneg %p73
      $region14: #{_lambda_.12} parent=11 // pred_check_branch
        %181 = sbr.rel (%p179) target = $region16
      $region15: #{_lambda_.12} parent=11 // pred_region
        _
      $region16: #{_lambda_.12} parent=11 // pred_fallthru
        _
      // Predicated region
      $region17: #{_lambda_.12} parent=11 // pred_check
        %p182 = pneg %p94
      $region18: #{_lambda_.12} parent=11 // pred_check_branch
        %184 = sbr.rel (%p182) target = $region20
      $region19: #{_lambda_.12} parent=11 // pred_region
        _
      $region20: #{_lambda_.12} parent=11 // pred_fallthru
        _
      // Predicated region
      $region21: #{_lambda_.12} parent=11 // pred_check
        %p185 = pneg %p115
      $region22: #{_lambda_.12} parent=11 // pred_check_branch
        %187 = sbr.rel (%p185) target = $region24
      $region23: #{_lambda_.12} parent=11 // pred_region
        _
      $region24: #{_lambda_.12} parent=11 // pred_fallthru
        _
      // Predicated region
      $region25: #{_lambda_.12} parent=11 // pred_check
        %p188 = pneg %p136
      $region26: #{_lambda_.12} parent=11 // pred_check_branch
        %190 = sbr.rel (%p188) target = $region28
      $region27: #{_lambda_.12} parent=11 // pred_region
        _
      $region28: #{_lambda_.12} parent=11 // pred_fallthru
        _
    $region12: #{_lambda_.12} parent=5 // pred_fallthru
      _
    %p191 = scmp.lt.s32.totalorder %s12, 2
    // Predicated region
    $region29: #{_lambda_.12} parent=5 // pred_check
      %p192 = pneg %p191
    $region30: #{_lambda_.12} parent=5 // pred_check_branch
      %194 = sbr.rel (%p192) target = $region32
    $region31: #{_lambda_.12} parent=5 // pred_region
      // Predicated region
      $region33: #{_lambda_.12} parent=31 // pred_check
        %p195 = pneg %p46
      $region34: #{_lambda_.12} parent=31 // pred_check_branch
        %197 = sbr.rel (%p195) target = $region36
      $region35: #{_lambda_.12} parent=31 // pred_region
        %s198 = smul.u32 8, %s20
        %p199 = scmp.lt.s32.totalorder %s19, 1
        %s200 = scalar_select %p199, %s19, 1
        %p201 = scmp.lt.s32.totalorder %s198, 7
        %s202 = scalar_select %p201, %s198, 7
        %s203 = smul.addr %s200, 8
        %s204 = sadd.s32 %s202, %s203
        %s205 = smul.addr %s204, 4
        %s206 = scalar_lea.vmem %s0, %s205
        %s207 = smul.u32 8, %s20
      $region36: #{_lambda_.12} parent=31 // pred_fallthru
        _
    $region32: #{_lambda_.12} parent=5 // pred_fallthru
      _
    %p208 = scmp.le.s32.totalorder 1, %s12
    %p209 = scmp.lt.s32.totalorder %s12, 3
    %p210 = pnand %p208, %p209
    %p211 = pneg %p210
    // Predicated region
    $region37: #{_lambda_.12} parent=5 // pred_check
      _
    $region38: #{_lambda_.12} parent=5 // pred_check_branch
      %213 = sbr.rel (%p210) target = $region40
    $region39: #{_lambda_.12} parent=5 // pred_region
      %s214 = ssub.s32 %s12, 1
      %s215 = smul.u32 8, %s22
      %p216 = scmp.lt.s32.totalorder %s21, 1
      %s217 = scalar_select %p216, %s21, 1
      %p218 = scmp.lt.s32.totalorder %s215, 7
      %s219 = scalar_select %p218, %s215, 7
      %s220 = smul.addr %s217, 8
      %s221 = sadd.s32 %s219, %s220
      %s222 = smul.addr %s221, 4
      %s223 = scalar_lea.vmem %s0, %s222
      %p224 = pneg %p52
      %p225 = pneg %p49
      %p226 = pneg %p73
      %p227 = pneg %p70
      %p228 = pneg %p94
      %p229 = pneg %p91
      %p230 = pneg %p115
      %p231 = pneg %p112
      %p232 = pneg %p136
      %p233 = pneg %p133
      %p234 = pneg %p164
      %p235 = pneg %p161
      %s236 = smul.u32 8, %s22
      %p237 = scmp.lt.s32.totalorder %s21, 1
      %s238 = scalar_select %p237, %s21, 1
      %p239 = scmp.lt.s32.totalorder %s236, 7
      %s240 = scalar_select %p239, %s236, 7
      %s241 = smul.addr %s238, 8
      %s242 = sadd.s32 %s240, %s241
      %s243 = smul.addr %s242, 8
      %s244 = scalar_lea.vmem %s5, %s243
      %s245 = smul.u32 8, %s22
      %p246 = scmp.lt.s32.totalorder %s21, 1
      %s247 = scalar_select %p246, %s21, 1
      %p248 = scmp.lt.s32.totalorder %s245, 7
      %s249 = scalar_select %p248, %s245, 7
      %s250 = smul.addr %s247, 8
      %s251 = sadd.s32 %s249, %s250
      %s252 = smul.addr %s251, 4
      %s253 = scalar_lea.vmem %s0, %s252
      %s254 = smul.u32 8, %s22
      %s255 = smul.u32 8, %s22
      %p256 = scmp.lt.s32.totalorder %s21, 1
      %s257 = scalar_select %p256, %s21, 1
      %p258 = scmp.lt.s32.totalorder %s255, 7
      %s259 = scalar_select %p258, %s255, 7
      %s260 = smul.addr %s257, 8
      %s261 = sadd.s32 %s259, %s260
      %s262 = smul.addr %s261, 8
      %s263 = scalar_lea.vmem %s5, %s262
      %s264 = smul.u32 8, %s22
      %v266 = vld [vmem:[%s253] sm:$0xf]
      %v267 = vld [vmem:[%s253 + $0x4] sm:$0xf]
      %v268 = vld [vmem:[%s253 + $0x8] sm:$0xf]
      %v269 = vld [vmem:[%s253 + $0xc] sm:$0xf]
      %v270 = vld [vmem:[%s253 + $0x10] sm:$0xf]
      %v271 = vld [vmem:[%s253 + $0x14] sm:$0xf]
      %v272 = vld [vmem:[%s253 + $0x18] sm:$0xf]
      %v273 = vld [vmem:[%s253 + $0x1c] sm:$0xf]
      %v274 = vld [vmem:[%s1] sm:$0xf]
      %v275 = vld [vmem:[%s1 + $0x4] sm:$0xf]
      %v276 = vld [vmem:[%s1 + $0x8] sm:$0xf]
      %v277 = vld [vmem:[%s1 + $0xc] sm:$0xf]
      %v278 = vld [vmem:[%s1 + $0x10] sm:$0xf]
      %v279 = vld [vmem:[%s1 + $0x14] sm:$0xf]
      %v280 = vld [vmem:[%s1 + $0x18] sm:$0xf]
      %v281 = vld [vmem:[%s1 + $0x1c] sm:$0xf]
      %v282 = vld [vmem:[%s1 + $0x20] sm:$0xf]
      %v291 = vunpack.c.l.b16 %v266
      %v292 = vunpack.c.l.b16 %v267
      %v293 = vunpack.c.l.b16 %v268
      %v294 = vunpack.c.l.b16 %v269
      %v295 = vunpack.c.l.b16 %v270
      %v296 = vunpack.c.l.b16 %v271
      %v297 = vunpack.c.l.b16 %v272
      %v298 = vunpack.c.l.b16 %v273
      %v299 = vpack.c.b16 %v292, %v291
      %v300 = vpack.c.b16 %v294, %v293
      %v301 = vpack.c.b16 %v296, %v295
      %v302 = vpack.c.b16 %v298, %v297
      %v312 = vunpack.c.l.b16 %v274
      %v313 = vunpack.c.l.b16 %v275
      %v314 = vunpack.c.l.b16 %v276
      %v315 = vunpack.c.l.b16 %v277
      %v316 = vunpack.c.l.b16 %v278
      %v317 = vunpack.c.l.b16 %v279
      %v318 = vunpack.c.l.b16 %v280
      %v319 = vunpack.c.l.b16 %v281
      %v320 = vunpack.c.l.b16 %v282
      %v321 = vpack.c.b16 %v313, %v312
      %v322 = vpack.c.b16 %v315, %v314
      %v323 = vpack.c.b16 %v317, %v316
      %v324 = vpack.c.b16 %v319, %v318
      %v325 = vpack.c.b16 %v320, %v320
      %vm330 = vcmask 588800
      %v332 = vsel %vm330, %v299, 0
      %v335 = vsel %vm330, %v300, 0
      %v338 = vsel %vm330, %v301, 0
      %v341 = vsel %vm330, %v302, 0
      %vm343 = vcmask 1043456
      %v345 = vsel %vm343, %v325, 0
      %347 = vmatprep.subr.bf16.mxu0 0
      %348 = vmatpush1.bf16.msra.mxu0 %v321
      %349 = vmatprep.subr.bf16.mxu0 0
      %350 = vmatpush1.bf16.msra.mxu0 %v322
      %351 = vmatprep.subr.bf16.mxu0 0
      %352 = vmatpush1.bf16.msra.mxu0 %v323
      %353 = vmatprep.subr.bf16.mxu0 0
      %354 = vmatpush1.bf16.msra.mxu0 %v324
      %355 = vmatprep.subr.bf16.mxu0 0
      %356 = vmatpush1.bf16.msra.mxu0 %v345
      %357 = vmatprep.subr.bf16.mxu0 0
      %358 = vmatpush1.bf16.msra.mxu0 0
      %359 = vmatprep.subr.bf16.mxu0 0
      %360 = vmatpush1.bf16.msra.mxu0 0
      %361 = vmatprep.subr.bf16.mxu0 0
      %362 = vmatpush1.bf16.msra.mxu0 0
      %363 = vmatprep.subr.bf16.mxu0 0
      %364 = vmatpush1.bf16.msra.mxu0 0
      %365 = vmatprep.subr.bf16.mxu0 0
      %366 = vmatpush1.bf16.msra.mxu0 0
      %367 = vmatprep.subr.bf16.mxu0 0
      %368 = vmatpush1.bf16.msra.mxu0 0
      %369 = vmatprep.subr.bf16.mxu0 0
      %370 = vmatpush1.bf16.msra.mxu0 0
      %371 = vmatprep.subr.bf16.mxu0 0
      %372 = vmatpush1.bf16.msra.mxu0 0
      %373 = vmatprep.subr.bf16.mxu0 0
      %374 = vmatpush1.bf16.msra.mxu0 0
      %375 = vmatprep.subr.bf16.mxu0 0
      %376 = vmatpush1.bf16.msra.mxu0 0
      %377 = vmatprep.subr.bf16.mxu0 0
      %378 = vmatpush1.bf16.msra.mxu0 0
      %379 = vmatprep.mubr.bf16.mxu0 0
      %380 = vmatmul.mubr.bf16.gmra.mrb[0].mxu0 %v332
      %v381 = vpop.f32.mrb[0].mxu0
      %v382 = vadd.f32 0.0, %v381
      %v383 = vpop.f32.mrb[0].mxu0
      %v384 = vpop.f32.mrb[0].mxu0
      %v385 = vadd.f32 0.0, %v384
      %v386 = vpop.f32.mrb[0].mxu0
      %387 = vmatprep.mubr.bf16.mxu0 0
      %388 = vmatmul.mubr.bf16.gmra.mrb[0].mxu0 %v335
      %v389 = vpop.f32.mrb[0].mxu0
      %v390 = vadd.f32 0.0, %v389
      %v391 = vpop.f32.mrb[0].mxu0
      %v392 = vpop.f32.mrb[0].mxu0
      %v393 = vadd.f32 0.0, %v392
      %v394 = vpop.f32.mrb[0].mxu0
      %395 = vmatprep.mubr.bf16.mxu0 0
      %396 = vmatmul.mubr.bf16.gmra.mrb[0].mxu0 %v338
      %v397 = vpop.f32.mrb[0].mxu0
      %v398 = vadd.f32 0.0, %v397
      %v399 = vpop.f32.mrb[0].mxu0
      %v400 = vpop.f32.mrb[0].mxu0
      %v401 = vadd.f32 0.0, %v400
      %v402 = vpop.f32.mrb[0].mxu0
      %403 = vmatprep.mubr.bf16.mxu0 0
      %404 = vmatmul.mubr.bf16.gmra.mrb[0].mxu0 %v341
      %v405 = vpop.f32.mrb[0].mxu0
      %v406 = vadd.f32 0.0, %v405
      %v407 = vpop.f32.mrb[0].mxu0
      %v408 = vpop.f32.mrb[0].mxu0
      %v409 = vadd.f32 0.0, %v408
      %v410 = vpop.f32.mrb[0].mxu0
      %411 = vdwg.mxu0
      %v412 = vld [vmem:[%s2] sm:$0x1]
      %v414 = vlaneseq
      %v415 = vshrl.u32 %v414, 7
      %v416 = vsub.s32 0, %v415
      %v417 = vrot.slane %v412, %v416
      %v419 = vmul.f32 %v382, %v417
      %v420 = vmul.f32 %v385, %v417
      %v421 = vmul.f32 %v390, %v417
      %v422 = vmul.f32 %v393, %v417
      %v423 = vmul.f32 %v398, %v417
      %v424 = vmul.f32 %v401, %v417
      %v425 = vmul.f32 %v406, %v417
      %v426 = vmul.f32 %v409, %v417
      %v427 = vld [vmem:[%s3] sm:$0x1]
      %v429 = vlaneseq
      %v430 = vshrl.u32 %v429, 7
      %v431 = vsub.s32 0, %v430
      %v432 = vrot.slane %v427, %v431
      %v434 = vadd.f32 %v419, %v432
      %v435 = vadd.f32 %v420, %v432
      %v436 = vadd.f32 %v421, %v432
      %v437 = vadd.f32 %v422, %v432
      %v438 = vadd.f32 %v423, %v432
      %v439 = vadd.f32 %v424, %v432
      %v440 = vadd.f32 %v425, %v432
      %v441 = vadd.f32 %v426, %v432
      %s442 = sld [smem:[#allocation2]]
      %vm443 = vcmp.gt.f32.partialorder %v434, 0.0
      %vm444 = vcmp.gt.f32.partialorder %v435, 0.0
      %vm445 = vcmp.gt.f32.partialorder %v436, 0.0
      %vm446 = vcmp.gt.f32.partialorder %v437, 0.0
      %vm447 = vcmp.gt.f32.partialorder %v438, 0.0
      %vm448 = vcmp.gt.f32.partialorder %v439, 0.0
      %vm449 = vcmp.gt.f32.partialorder %v440, 0.0
      %vm450 = vcmp.gt.f32.partialorder %v441, 0.0
      %v451 = vstv %s442
      %v452 = vmul.f32 %v451, %v434
      %v453 = vmul.f32 %v451, %v435
      %v454 = vmul.f32 %v451, %v436
      %v455 = vmul.f32 %v451, %v437
      %v456 = vmul.f32 %v451, %v438
      %v457 = vmul.f32 %v451, %v439
      %v458 = vmul.f32 %v451, %v440
      %v459 = vmul.f32 %v451, %v441
      %v460 = vsel %vm443, %v434, %v452
      %v461 = vsel %vm444, %v435, %v453
      %v462 = vsel %vm445, %v436, %v454
      %v463 = vsel %vm446, %v437, %v455
      %v464 = vsel %vm447, %v438, %v456
      %v465 = vsel %vm448, %v439, %v457
      %v466 = vsel %vm449, %v440, %v458
      %v467 = vsel %vm450, %v441, %v459
      %vm468 = vcmask 130048
      %469 = vst.msk [vmem:[%s263] sm:$0xff] %vm468, %v460
      %470 = vst.msk [vmem:[%s263 + $0x8] sm:$0xff] %vm468, %v461
      %471 = vst.msk [vmem:[%s263 + $0x10] sm:$0xff] %vm468, %v462
      %472 = vst.msk [vmem:[%s263 + $0x18] sm:$0xff] %vm468, %v463
      %473 = vst.msk [vmem:[%s263 + $0x20] sm:$0xff] %vm468, %v464
      %474 = vst.msk [vmem:[%s263 + $0x28] sm:$0xff] %vm468, %v465
      %475 = vst.msk [vmem:[%s263 + $0x30] sm:$0xff] %vm468, %v466
      %476 = vst.msk [vmem:[%s263 + $0x38] sm:$0xff] %vm468, %v467
      %s477 = smul.u32 8, %s22
      %p478 = scmp.lt.s32.totalorder %s21, 1
      %s479 = scalar_select %p478, %s21, 1
      %p480 = scmp.lt.s32.totalorder %s477, 7
      %s481 = scalar_select %p480, %s477, 7
      %s482 = smul.addr %s479, 8
      %s483 = sadd.s32 %s481, %s482
      %s484 = smul.addr %s483, 8
      %s485 = scalar_lea.vmem %s5, %s484
      // Predicated region
      $region41: #{_lambda_.12} parent=39 // pred_check
        %p486 = pneg %p161
      $region42: #{_lambda_.12} parent=39 // pred_check_branch
        %488 = sbr.rel (%p486) target = $region44
      $region43: #{_lambda_.12} parent=39 // pred_region
        %s489 = smul.u32 8, %s22
      $region44: #{_lambda_.12} parent=39 // pred_fallthru
        _
    $region40: #{_lambda_.12} parent=5 // pred_fallthru
      _
    %p490 = scmp.le.s32.totalorder 2, %s12
    // Predicated region
    $region45: #{_lambda_.12} parent=5 // pred_check
      %p491 = pneg %p490
    $region46: #{_lambda_.12} parent=5 // pred_check_branch
      %493 = sbr.rel (%p491) target = $region48
    $region47: #{_lambda_.12} parent=5 // pred_region
      %s494 = ssub.s32 %s12, 2
      // Predicated region
      $region49: #{_lambda_.12} parent=47 // pred_check
        %p495 = pneg %p167
      $region50: #{_lambda_.12} parent=47 // pred_check_branch
        %497 = sbr.rel (%p495) target = $region52
      $region51: #{_lambda_.12} parent=47 // pred_region
        %s498 = smul.u32 8, %s24
        %p499 = scmp.lt.s32.totalorder %s23, 1
        %s500 = scalar_select %p499, %s23, 1
        %p501 = scmp.lt.s32.totalorder %s498, 7
        %s502 = scalar_select %p501, %s498, 7
        %s503 = smul.addr %s500, 8
        %s504 = sadd.s32 %s502, %s503
        %s505 = smul.addr %s504, 8
        %s506 = scalar_lea.vmem %s5, %s505
      $region52: #{_lambda_.12} parent=47 // pred_fallthru
        _
    $region48: #{_lambda_.12} parent=5 // pred_fallthru
      _
  $region6: #{_lambda_.12} parent=0 // loop_footer
    %s16 = sadd.s32 1, %s12
  $region7: #{_lambda_.12} parent=0 // loop_footer_branch
    %11 = sbr.rel target = $region3
  $region8: #{_lambda_.12} parent=0 // loop_exit
    _

// kernel: _lambda_.13
$region0: #{_lambda_.13}
  #allocation0 [shape = 'u32[]', space=smem, size = 0x4, offset = 0x4, fixed_abs, tag = 'smem constant byte address 0x4 - core index']
  #allocation1 [shape = 'u32[144,128]{1,0:T(1,128)}', space=vmem, size = 0x12000, scoped, tag = 'internal scratch']
  #allocation2 [shape = 'f32[1]{0:T(128)S(6)}', space=smem, size = 0x200, scoped, tag = 'scoped memory for _lambda_.13']
  %s0 = inlined_call_operand.vmem [shape: bf16[2,64,144], index: 0, kind: input, shape index: {}]
  %s1 = inlined_call_operand.vmem [shape: bf16[144,16], index: 1, kind: input, shape index: {}]
  %s2 = inlined_call_operand.vmem [shape: f32[1,16], index: 2, kind: input, shape index: {}]
  %s3 = inlined_call_operand.vmem [shape: f32[1,16], index: 3, kind: input, shape index: {}]
  %s4 = inlined_call_operand.<no memory space> [shape: f32[1], index: 4, kind: input, shape index: {}]
  %s5 = inlined_call_operand.vmem [shape: f32[2,64,16], index: 5, kind: output, shape index: {}]
  %s6 = sld [smem:[#allocation0]]
  $region53: #{_lambda_.13} parent=0
    _
  %s8 = ssub.s32 1, %s6
  %s9 = scalar_select 0, %s8, %s6
  %10 = sst [smem:[#allocation2]] %s4
  loop: start=0, step=1, limit=4
  $region2: #{_lambda_.13} parent=0 // loop_pre_header
    _
  $region3: #{_lambda_.13} parent=0 // loop_header
    %s12 = sphi 0, %s16
    %p13 = scmp.ge.s32.totalorder %s12, 4
    %s19 = sphi 0, %s31
    %s20 = sphi 0, %s27
    %s21 = sphi 0, %s19
    %s22 = sphi 0, %s20
    %s23 = sphi 0, %s21
    %s24 = sphi 0, %s22
    %s36 = sphi 0, %s38
    %s39 = sphi 0, %s36
    %s40 = sphi 0, %s39
    %s56 = sphi 0, %s40
    %s60 = sphi 0, %s60
    %s62 = sphi 0, %s60
    %s63 = sphi 0, %s62
    %s77 = sphi 0, %s63
    %s81 = sphi 0, %s81
    %s83 = sphi 0, %s81
    %s84 = sphi 0, %s83
    %s98 = sphi 0, %s84
    %s102 = sphi 0, %s102
    %s104 = sphi 0, %s102
    %s105 = sphi 0, %s104
    %s119 = sphi 0, %s105
    %s123 = sphi 0, %s123
    %s125 = sphi 0, %s123
    %s126 = sphi 0, %s125
    %s140 = sphi 0, %s126
    %s148 = sphi 0, %s150
    %s151 = sphi 0, %s148
    %s152 = sphi 0, %s151
    %s168 = sphi 0, %s152
  $region4: #{_lambda_.13} parent=0 // loop_header_branch
    %15 = sbr.rel (%p13) target = $region8
  $region5: #{_lambda_.13} parent=0 // loop_body
    %s17 = ssub.s32 %s12, 1
    %s18 = ssub.s32 %s12, 2
    %s25 = sadd.s32 1, %s20
    %p26 = scmp.ge.s32.totalorder %s25, 1
    %s27 = scalar_select %p26, 0, %s25
    %s28 = sadd.s32 1, %s19
    %s29 = scalar_select %p26, %s28, %s19
    %p30 = scmp.ge.s32.totalorder %s29, 2
    %s31 = scalar_select %p30, 0, %s29
    %s32 = ssub.s32 %s19, %s31
    %s33 = ssub.s32 %s20, %s27
    %s34 = sor.u32 %s32, %s33
    %p35 = scmp.eq.s32.totalorder %s34, 0
    %s37 = sadd.s32 %s36, 1
    %s38 = scalar_select %p35, %s36, %s37
    %p41 = pneg %p35
    %p42 = scmp.eq.s32.totalorder %s12, 1
    %p43 = por %p41, %p42
    %p44 = scmp.ne.s32.totalorder %s36, %s39
    %p45 = scmp.eq.s32.totalorder %s12, 0
    %p46 = por %p44, %p45
    %p47 = scmp.ne.s32.totalorder %s36, %s39
    %p48 = scmp.eq.s32.totalorder %s17, 1
    %p49 = por %p47, %p48
    %p50 = scmp.ne.s32.totalorder %s39, %s40
    %p51 = scmp.eq.s32.totalorder %s17, 0
    %p52 = por %p50, %p51
    %p53 = scmp.ne.s32.totalorder %s39, %s40
    %p54 = scmp.eq.s32.totalorder %s18, 1
    %p55 = por %p53, %p54
    %p57 = scmp.ne.s32.totalorder %s40, %s56
    %p58 = scmp.eq.s32.totalorder %s18, 0
    %p59 = por %p57, %p58
    %s61 = sadd.s32 %s60, 1
    %p64 = scmp.eq.s32.totalorder %s12, 1
    %p65 = scmp.ne.s32.totalorder %s60, %s62
    %p66 = scmp.eq.s32.totalorder %s12, 0
    %p67 = por %p65, %p66
    %p68 = scmp.ne.s32.totalorder %s60, %s62
    %p69 = scmp.eq.s32.totalorder %s17, 1
    %p70 = por %p68, %p69
    %p71 = scmp.ne.s32.totalorder %s62, %s63
    %p72 = scmp.eq.s32.totalorder %s17, 0
    %p73 = por %p71, %p72
    %p74 = scmp.ne.s32.totalorder %s62, %s63
    %p75 = scmp.eq.s32.totalorder %s18, 1
    %p76 = por %p74, %p75
    %p78 = scmp.ne.s32.totalorder %s63, %s77
    %p79 = scmp.eq.s32.totalorder %s18, 0
    %p80 = por %p78, %p79
    %s82 = sadd.s32 %s81, 1
    %p85 = scmp.eq.s32.totalorder %s12, 1
    %p86 = scmp.ne.s32.totalorder %s81, %s83
    %p87 = scmp.eq.s32.totalorder %s12, 0
    %p88 = por %p86, %p87
    %p89 = scmp.ne.s32.totalorder %s81, %s83
    %p90 = scmp.eq.s32.totalorder %s17, 1
    %p91 = por %p89, %p90
    %p92 = scmp.ne.s32.totalorder %s83, %s84
    %p93 = scmp.eq.s32.totalorder %s17, 0
    %p94 = por %p92, %p93
    %p95 = scmp.ne.s32.totalorder %s83, %s84
    %p96 = scmp.eq.s32.totalorder %s18, 1
    %p97 = por %p95, %p96
    %p99 = scmp.ne.s32.totalorder %s84, %s98
    %p100 = scmp.eq.s32.totalorder %s18, 0
    %p101 = por %p99, %p100
    %s103 = sadd.s32 %s102, 1
    %p106 = scmp.eq.s32.totalorder %s12, 1
    %p107 = scmp.ne.s32.totalorder %s102, %s104
    %p108 = scmp.eq.s32.totalorder %s12, 0
    %p109 = por %p107, %p108
    %p110 = scmp.ne.s32.totalorder %s102, %s104
    %p111 = scmp.eq.s32.totalorder %s17, 1
    %p112 = por %p110, %p111
    %p113 = scmp.ne.s32.totalorder %s104, %s105
    %p114 = scmp.eq.s32.totalorder %s17, 0
    %p115 = por %p113, %p114
    %p116 = scmp.ne.s32.totalorder %s104, %s105
    %p117 = scmp.eq.s32.totalorder %s18, 1
    %p118 = por %p116, %p117
    %p120 = scmp.ne.s32.totalorder %s105, %s119
    %p121 = scmp.eq.s32.totalorder %s18, 0
    %p122 = por %p120, %p121
    %s124 = sadd.s32 %s123, 1
    %p127 = scmp.eq.s32.totalorder %s12, 1
    %p128 = scmp.ne.s32.totalorder %s123, %s125
    %p129 = scmp.eq.s32.totalorder %s12, 0
    %p130 = por %p128, %p129
    %p131 = scmp.ne.s32.totalorder %s123, %s125
    %p132 = scmp.eq.s32.totalorder %s17, 1
    %p133 = por %p131, %p132
    %p134 = scmp.ne.s32.totalorder %s125, %s126
    %p135 = scmp.eq.s32.totalorder %s17, 0
    %p136 = por %p134, %p135
    %p137 = scmp.ne.s32.totalorder %s125, %s126
    %p138 = scmp.eq.s32.totalorder %s18, 1
    %p139 = por %p137, %p138
    %p141 = scmp.ne.s32.totalorder %s126, %s140
    %p142 = scmp.eq.s32.totalorder %s18, 0
    %p143 = por %p141, %p142
    %s144 = ssub.s32 %s19, %s31
    %s145 = ssub.s32 %s20, %s27
    %s146 = sor.u32 %s144, %s145
    %p147 = scmp.eq.s32.totalorder %s146, 0
    %s149 = sadd.s32 %s148, 1
    %s150 = scalar_select %p147, %s148, %s149
    %p153 = pneg %p147
    %p154 = scmp.eq.s32.totalorder %s12, 1
    %p155 = por %p153, %p154
    %p156 = scmp.ne.s32.totalorder %s148, %s151
    %p157 = scmp.eq.s32.totalorder %s12, 0
    %p158 = por %p156, %p157
    %p159 = scmp.ne.s32.totalorder %s148, %s151
    %p160 = scmp.eq.s32.totalorder %s17, 1
    %p161 = por %p159, %p160
    %p162 = scmp.ne.s32.totalorder %s151, %s152
    %p163 = scmp.eq.s32.totalorder %s17, 0
    %p164 = por %p162, %p163
    %p165 = scmp.ne.s32.totalorder %s151, %s152
    %p166 = scmp.eq.s32.totalorder %s18, 1
    %p167 = por %p165, %p166
    %p169 = scmp.ne.s32.totalorder %s152, %s168
    %p170 = scmp.eq.s32.totalorder %s18, 0
    %p171 = por %p169, %p170
    %p172 = scmp.le.s32.totalorder 1, %s12
    %p173 = scmp.lt.s32.totalorder %s12, 3
    %p174 = pnand %p172, %p173
    %p175 = pneg %p174
    // Predicated region
    $region9: #{_lambda_.13} parent=5 // pred_check
      _
    $region10: #{_lambda_.13} parent=5 // pred_check_branch
      %177 = sbr.rel (%p174) target = $region12
    $region11: #{_lambda_.13} parent=5 // pred_region
      %s178 = ssub.s32 %s12, 1
      // Predicated region
      $region13: #{_lambda_.13} parent=11 // pred_check
        %p179 = pneg %p73
      $region14: #{_lambda_.13} parent=11 // pred_check_branch
        %181 = sbr.rel (%p179) target = $region16
      $region15: #{_lambda_.13} parent=11 // pred_region
        _
      $region16: #{_lambda_.13} parent=11 // pred_fallthru
        _
      // Predicated region
      $region17: #{_lambda_.13} parent=11 // pred_check
        %p182 = pneg %p94
      $region18: #{_lambda_.13} parent=11 // pred_check_branch
        %184 = sbr.rel (%p182) target = $region20
      $region19: #{_lambda_.13} parent=11 // pred_region
        _
      $region20: #{_lambda_.13} parent=11 // pred_fallthru
        _
      // Predicated region
      $region21: #{_lambda_.13} parent=11 // pred_check
        %p185 = pneg %p115
      $region22: #{_lambda_.13} parent=11 // pred_check_branch
        %187 = sbr.rel (%p185) target = $region24
      $region23: #{_lambda_.13} parent=11 // pred_region
        _
      $region24: #{_lambda_.13} parent=11 // pred_fallthru
        _
      // Predicated region
      $region25: #{_lambda_.13} parent=11 // pred_check
        %p188 = pneg %p136
      $region26: #{_lambda_.13} parent=11 // pred_check_branch
        %190 = sbr.rel (%p188) target = $region28
      $region27: #{_lambda_.13} parent=11 // pred_region
        _
      $region28: #{_lambda_.13} parent=11 // pred_fallthru
        _
    $region12: #{_lambda_.13} parent=5 // pred_fallthru
      _
    %p191 = scmp.lt.s32.totalorder %s12, 2
    // Predicated region
    $region29: #{_lambda_.13} parent=5 // pred_check
      %p192 = pneg %p191
    $region30: #{_lambda_.13} parent=5 // pred_check_branch
      %194 = sbr.rel (%p192) target = $region32
    $region31: #{_lambda_.13} parent=5 // pred_region
      // Predicated region
      $region33: #{_lambda_.13} parent=31 // pred_check
        %p195 = pneg %p46
      $region34: #{_lambda_.13} parent=31 // pred_check_branch
        %197 = sbr.rel (%p195) target = $region36
      $region35: #{_lambda_.13} parent=31 // pred_region
        %s198 = smul.u32 8, %s20
        %p199 = scmp.lt.s32.totalorder %s19, 1
        %s200 = scalar_select %p199, %s19, 1
        %p201 = scmp.lt.s32.totalorder %s198, 7
        %s202 = scalar_select %p201, %s198, 7
        %s203 = smul.addr %s202, 2
        %s204 = smul.addr %s200, 16
        %s205 = sadd.s32 %s203, %s204
        %s206 = smul.addr %s205, 4
        %s207 = scalar_lea.vmem %s0, %s206
        %s208 = smul.u32 8, %s20
      $region36: #{_lambda_.13} parent=31 // pred_fallthru
        _
    $region32: #{_lambda_.13} parent=5 // pred_fallthru
      _
    %p209 = scmp.le.s32.totalorder 1, %s12
    %p210 = scmp.lt.s32.totalorder %s12, 3
    %p211 = pnand %p209, %p210
    %p212 = pneg %p211
    // Predicated region
    $region37: #{_lambda_.13} parent=5 // pred_check
      _
    $region38: #{_lambda_.13} parent=5 // pred_check_branch
      %214 = sbr.rel (%p211) target = $region40
    $region39: #{_lambda_.13} parent=5 // pred_region
      %s215 = ssub.s32 %s12, 1
      %s216 = smul.u32 8, %s22
      %p217 = scmp.lt.s32.totalorder %s21, 1
      %s218 = scalar_select %p217, %s21, 1
      %p219 = scmp.lt.s32.totalorder %s216, 7
      %s220 = scalar_select %p219, %s216, 7
      %s221 = smul.addr %s220, 2
      %s222 = smul.addr %s218, 16
      %s223 = sadd.s32 %s221, %s222
      %s224 = smul.addr %s223, 4
      %s225 = scalar_lea.vmem %s0, %s224
      %p226 = pneg %p52
      %p227 = pneg %p49
      %p228 = pneg %p73
      %p229 = pneg %p70
      %p230 = pneg %p94
      %p231 = pneg %p91
      %p232 = pneg %p115
      %p233 = pneg %p112
      %p234 = pneg %p136
      %p235 = pneg %p133
      %p236 = pneg %p164
      %p237 = pneg %p161
      %s238 = smul.u32 8, %s22
      %p239 = scmp.lt.s32.totalorder %s21, 1
      %s240 = scalar_select %p239, %s21, 1
      %p241 = scmp.lt.s32.totalorder %s238, 7
      %s242 = scalar_select %p241, %s238, 7
      %s243 = smul.addr %s240, 8
      %s244 = sadd.s32 %s242, %s243
      %s245 = smul.addr %s244, 8
      %s246 = scalar_lea.vmem %s5, %s245
      %s247 = smul.u32 8, %s22
      %p248 = scmp.lt.s32.totalorder %s21, 1
      %s249 = scalar_select %p248, %s21, 1
      %p250 = scmp.lt.s32.totalorder %s247, 7
      %s251 = scalar_select %p250, %s247, 7
      %s252 = smul.addr %s251, 2
      %s253 = smul.addr %s249, 16
      %s254 = sadd.s32 %s252, %s253
      %s255 = smul.addr %s254, 4
      %s256 = scalar_lea.vmem %s0, %s255
      %s257 = smul.u32 8, %s22
      %s258 = smul.u32 8, %s22
      %p259 = scmp.lt.s32.totalorder %s21, 1
      %s260 = scalar_select %p259, %s21, 1
      %p261 = scmp.lt.s32.totalorder %s258, 7
      %s262 = scalar_select %p261, %s258, 7
      %s263 = smul.addr %s260, 8
      %s264 = sadd.s32 %s262, %s263
      %s265 = smul.addr %s264, 8
      %s266 = scalar_lea.vmem %s5, %s265
      %s267 = smul.u32 8, %s22
      %v269 = vld [vmem:[%s256] sm:$0xff]
      %v270 = vld [vmem:[%s256 + $0x8] sm:$0xff]
      %v271 = vld [vmem:[%s256 + $0x10] sm:$0xff]
      %v272 = vld [vmem:[%s256 + $0x18] sm:$0xff]
      %v273 = vld [vmem:[%s256 + $0x20] sm:$0xff]
      %v274 = vld [vmem:[%s256 + $0x28] sm:$0xff]
      %v275 = vld [vmem:[%s256 + $0x30] sm:$0xff]
      %v276 = vld [vmem:[%s256 + $0x38] sm:$0xff]
      %v277 = vld [vmem:[%s1] sm:$0xf]
      %v278 = vld [vmem:[%s1 + $0x4] sm:$0xf]
      %v279 = vld [vmem:[%s1 + $0x8] sm:$0xf]
      %v280 = vld [vmem:[%s1 + $0xc] sm:$0xf]
      %v281 = vld [vmem:[%s1 + $0x10] sm:$0xf]
      %v282 = vld [vmem:[%s1 + $0x14] sm:$0xf]
      %v283 = vld [vmem:[%s1 + $0x18] sm:$0xf]
      %v284 = vld [vmem:[%s1 + $0x1c] sm:$0xf]
      %v285 = vld [vmem:[%s1 + $0x20] sm:$0xf]
      %v286 = vld [vmem:[%s1 + $0x24] sm:$0xf]
      %v287 = vld [vmem:[%s1 + $0x28] sm:$0xf]
      %v288 = vld [vmem:[%s1 + $0x2c] sm:$0xf]
      %v289 = vld [vmem:[%s1 + $0x30] sm:$0xf]
      %v290 = vld [vmem:[%s1 + $0x34] sm:$0xf]
      %v291 = vld [vmem:[%s1 + $0x38] sm:$0xf]
      %v292 = vld [vmem:[%s1 + $0x3c] sm:$0xf]
      %v293 = vld [vmem:[%s1 + $0x40] sm:$0xf]
      %v294 = vld [vmem:[%s1 + $0x44] sm:$0xf]
      %v303 = vunpack.c.l.b16 %v269
      %v304 = vunpack.c.h.b16 %v269
      %v305 = vunpack.c.l.b16 %v270
      %v306 = vunpack.c.h.b16 %v270
      %v307 = vunpack.c.l.b16 %v271
      %v308 = vunpack.c.h.b16 %v271
      %v309 = vunpack.c.l.b16 %v272
      %v310 = vunpack.c.h.b16 %v272
      %v311 = vunpack.c.l.b16 %v273
      %v312 = vunpack.c.h.b16 %v273
      %v313 = vunpack.c.l.b16 %v274
      %v314 = vunpack.c.h.b16 %v274
      %v315 = vunpack.c.l.b16 %v275
      %v316 = vunpack.c.h.b16 %v275
      %v317 = vunpack.c.l.b16 %v276
      %v318 = vunpack.c.h.b16 %v276
      %v319 = vpack.c.b16 %v305, %v303
      %v320 = vpack.c.b16 %v306, %v304
      %v321 = vpack.c.b16 %v309, %v307
      %v322 = vpack.c.b16 %v310, %v308
      %v323 = vpack.c.b16 %v313, %v311
      %v324 = vpack.c.b16 %v314, %v312
      %v325 = vpack.c.b16 %v317, %v315
      %v326 = vpack.c.b16 %v318, %v316
      %v349 = vunpack.c.l.b16 %v277
      %v350 = vunpack.c.l.b16 %v278
      %v351 = vunpack.c.l.b16 %v279
      %v352 = vunpack.c.l.b16 %v280
      %v353 = vunpack.c.l.b16 %v281
      %v354 = vunpack.c.l.b16 %v282
      %v355 = vunpack.c.l.b16 %v283
      %v356 = vunpack.c.l.b16 %v284
      %v357 = vunpack.c.l.b16 %v285
      %v358 = vunpack.c.l.b16 %v286
      %v359 = vunpack.c.l.b16 %v287
      %v360 = vunpack.c.l.b16 %v288
      %v361 = vunpack.c.l.b16 %v289
      %v362 = vunpack.c.l.b16 %v290
      %v363 = vunpack.c.l.b16 %v291
      %v364 = vunpack.c.l.b16 %v292
      %v365 = vunpack.c.l.b16 %v293
      %v366 = vunpack.c.l.b16 %v294
      %v367 = vpack.c.b16 %v350, %v349
      %v368 = vpack.c.b16 %v352, %v351
      %v369 = vpack.c.b16 %v354, %v353
      %v370 = vpack.c.b16 %v356, %v355
      %v371 = vpack.c.b16 %v358, %v357
      %v372 = vpack.c.b16 %v360, %v359
      %v373 = vpack.c.b16 %v362, %v361
      %v374 = vpack.c.b16 %v364, %v363
      %v375 = vpack.c.b16 %v366, %v365
      %vm385 = vcmask 130048
      %v387 = vsel %vm385, %v320, 0
      %v390 = vsel %vm385, %v322, 0
      %v393 = vsel %vm385, %v324, 0
      %v396 = vsel %vm385, %v326, 0
      %398 = vmatprep.subr.bf16.mxu0 0
      %399 = vmatpush1.bf16.msra.mxu0 %v367
      %400 = vmatprep.subr.bf16.mxu0 0
      %401 = vmatpush1.bf16.msra.mxu0 %v368
      %402 = vmatprep.subr.bf16.mxu0 0
      %403 = vmatpush1.bf16.msra.mxu0 %v369
      %404 = vmatprep.subr.bf16.mxu0 0
      %405 = vmatpush1.bf16.msra.mxu0 %v370
      %406 = vmatprep.subr.bf16.mxu0 0
      %407 = vmatpush1.bf16.msra.mxu0 %v371
      %408 = vmatprep.subr.bf16.mxu0 0
      %409 = vmatpush1.bf16.msra.mxu0 %v372
      %410 = vmatprep.subr.bf16.mxu0 0
      %411 = vmatpush1.bf16.msra.mxu0 %v373
      %412 = vmatprep.subr.bf16.mxu0 0
      %413 = vmatpush1.bf16.msra.mxu0 %v374
      %414 = vmatprep.subr.bf16.mxu0 0
      %415 = vmatpush1.bf16.msra.mxu0 %v375
      %416 = vmatprep.subr.bf16.mxu0 0
      %417 = vmatpush1.bf16.msra.mxu0 0
      %418 = vmatprep.subr.bf16.mxu0 0
      %419 = vmatpush1.bf16.msra.mxu0 0
      %420 = vmatprep.subr.bf16.mxu0 0
      %421 = vmatpush1.bf16.msra.mxu0 0
      %422 = vmatprep.subr.bf16.mxu0 0
      %423 = vmatpush1.bf16.msra.mxu0 0
      %424 = vmatprep.subr.bf16.mxu0 0
      %425 = vmatpush1.bf16.msra.mxu0 0
      %426 = vmatprep.subr.bf16.mxu0 0
      %427 = vmatpush1.bf16.msra.mxu0 0
      %428 = vmatprep.subr.bf16.mxu0 0
      %429 = vmatpush1.bf16.msra.mxu0 0
      %430 = vmatprep.mubr.bf16.mxu0 %v387
      %431 = vmatmul.mubr.bf16.gmra.mrb[0].mxu0 %v319
      %v432 = vpop.f32.mrb[0].mxu0
      %v433 = vadd.f32 0.0, %v432
      %v434 = vpop.f32.mrb[0].mxu0
      %v435 = vpop.f32.mrb[0].mxu0
      %v436 = vadd.f32 0.0, %v435
      %v437 = vpop.f32.mrb[0].mxu0
      %438 = vmatprep.mubr.bf16.mxu0 %v390
      %439 = vmatmul.mubr.bf16.gmra.mrb[0].mxu0 %v321
      %v440 = vpop.f32.mrb[0].mxu0
      %v441 = vadd.f32 0.0, %v440
      %v442 = vpop.f32.mrb[0].mxu0
      %v443 = vpop.f32.mrb[0].mxu0
      %v444 = vadd.f32 0.0, %v443
      %v445 = vpop.f32.mrb[0].mxu0
      %446 = vmatprep.mubr.bf16.mxu0 %v393
      %447 = vmatmul.mubr.bf16.gmra.mrb[0].mxu0 %v323
      %v448 = vpop.f32.mrb[0].mxu0
      %v449 = vadd.f32 0.0, %v448
      %v450 = vpop.f32.mrb[0].mxu0
      %v451 = vpop.f32.mrb[0].mxu0
      %v452 = vadd.f32 0.0, %v451
      %v453 = vpop.f32.mrb[0].mxu0
      %454 = vmatprep.mubr.bf16.mxu0 %v396
      %455 = vmatmul.mubr.bf16.gmra.mrb[0].mxu0 %v325
      %v456 = vpop.f32.mrb[0].mxu0
      %v457 = vadd.f32 0.0, %v456
      %v458 = vpop.f32.mrb[0].mxu0
      %v459 = vpop.f32.mrb[0].mxu0
      %v460 = vadd.f32 0.0, %v459
      %v461 = vpop.f32.mrb[0].mxu0
      %462 = vdwg.mxu0
      %v463 = vld [vmem:[%s2] sm:$0x1]
      %v465 = vlaneseq
      %v466 = vshrl.u32 %v465, 7
      %v467 = vsub.s32 0, %v466
      %v468 = vrot.slane %v463, %v467
      %v470 = vmul.f32 %v433, %v468
      %v471 = vmul.f32 %v436, %v468
      %v472 = vmul.f32 %v441, %v468
      %v473 = vmul.f32 %v444, %v468
      %v474 = vmul.f32 %v449, %v468
      %v475 = vmul.f32 %v452, %v468
      %v476 = vmul.f32 %v457, %v468
      %v477 = vmul.f32 %v460, %v468
      %v478 = vld [vmem:[%s3] sm:$0x1]
      %v480 = vlaneseq
      %v481 = vshrl.u32 %v480, 7
      %v482 = vsub.s32 0, %v481
      %v483 = vrot.slane %v478, %v482
      %v485 = vadd.f32 %v470, %v483
      %v486 = vadd.f32 %v471, %v483
      %v487 = vadd.f32 %v472, %v483
      %v488 = vadd.f32 %v473, %v483
      %v489 = vadd.f32 %v474, %v483
      %v490 = vadd.f32 %v475, %v483
      %v491 = vadd.f32 %v476, %v483
      %v492 = vadd.f32 %v477, %v483
      %s493 = sld [smem:[#allocation2]]
      %vm494 = vcmp.gt.f32.partialorder %v485, 0.0
      %vm495 = vcmp.gt.f32.partialorder %v486, 0.0
      %vm496 = vcmp.gt.f32.partialorder %v487, 0.0
      %vm497 = vcmp.gt.f32.partialorder %v488, 0.0
      %vm498 = vcmp.gt.f32.partialorder %v489, 0.0
      %vm499 = vcmp.gt.f32.partialorder %v490, 0.0
      %vm500 = vcmp.gt.f32.partialorder %v491, 0.0
      %vm501 = vcmp.gt.f32.partialorder %v492, 0.0
      %v502 = vstv %s493
      %v503 = vmul.f32 %v502, %v485
      %v504 = vmul.f32 %v502, %v486
      %v505 = vmul.f32 %v502, %v487
      %v506 = vmul.f32 %v502, %v488
      %v507 = vmul.f32 %v502, %v489
      %v508 = vmul.f32 %v502, %v490
      %v509 = vmul.f32 %v502, %v491
      %v510 = vmul.f32 %v502, %v492
      %v511 = vsel %vm494, %v485, %v503
      %v512 = vsel %vm495, %v486, %v504
      %v513 = vsel %vm496, %v487, %v505
      %v514 = vsel %vm497, %v488, %v506
      %v515 = vsel %vm498, %v489, %v507
      %v516 = vsel %vm499, %v490, %v508
      %v517 = vsel %vm500, %v491, %v509
      %v518 = vsel %vm501, %v492, %v510
      %519 = vst.msk [vmem:[%s266] sm:$0xff] %vm385, %v511
      %520 = vst.msk [vmem:[%s266 + $0x8] sm:$0xff] %vm385, %v512
      %521 = vst.msk [vmem:[%s266 + $0x10] sm:$0xff] %vm385, %v513
      %522 = vst.msk [vmem:[%s266 + $0x18] sm:$0xff] %vm385, %v514
      %523 = vst.msk [vmem:[%s266 + $0x20] sm:$0xff] %vm385, %v515
      %524 = vst.msk [vmem:[%s266 + $0x28] sm:$0xff] %vm385, %v516
      %525 = vst.msk [vmem:[%s266 + $0x30] sm:$0xff] %vm385, %v517
      %526 = vst.msk [vmem:[%s266 + $0x38] sm:$0xff] %vm385, %v518
      %s527 = smul.u32 8, %s22
      %p528 = scmp.lt.s32.totalorder %s21, 1
      %s529 = scalar_select %p528, %s21, 1
      %p530 = scmp.lt.s32.totalorder %s527, 7
      %s531 = scalar_select %p530, %s527, 7
      %s532 = smul.addr %s529, 8
      %s533 = sadd.s32 %s531, %s532
      %s534 = smul.addr %s533, 8
      %s535 = scalar_lea.vmem %s5, %s534
      // Predicated region
      $region41: #{_lambda_.13} parent=39 // pred_check
        %p536 = pneg %p161
      $region42: #{_lambda_.13} parent=39 // pred_check_branch
        %538 = sbr.rel (%p536) target = $region44
      $region43: #{_lambda_.13} parent=39 // pred_region
        %s539 = smul.u32 8, %s22
      $region44: #{_lambda_.13} parent=39 // pred_fallthru
        _
    $region40: #{_lambda_.13} parent=5 // pred_fallthru
      _
    %p540 = scmp.le.s32.totalorder 2, %s12
    // Predicated region
    $region45: #{_lambda_.13} parent=5 // pred_check
      %p541 = pneg %p540
    $region46: #{_lambda_.13} parent=5 // pred_check_branch
      %543 = sbr.rel (%p541) target = $region48
    $region47: #{_lambda_.13} parent=5 // pred_region
      %s544 = ssub.s32 %s12, 2
      // Predicated region
      $region49: #{_lambda_.13} parent=47 // pred_check
        %p545 = pneg %p167
      $region50: #{_lambda_.13} parent=47 // pred_check_branch
        %547 = sbr.rel (%p545) target = $region52
      $region51: #{_lambda_.13} parent=47 // pred_region
        %s548 = smul.u32 8, %s24
        %p549 = scmp.lt.s32.totalorder %s23, 1
        %s550 = scalar_select %p549, %s23, 1
        %p551 = scmp.lt.s32.totalorder %s548, 7
        %s552 = scalar_select %p551, %s548, 7
        %s553 = smul.addr %s550, 8
        %s554 = sadd.s32 %s552, %s553
        %s555 = smul.addr %s554, 8
        %s556 = scalar_lea.vmem %s5, %s555
      $region52: #{_lambda_.13} parent=47 // pred_fallthru
        _
    $region48: #{_lambda_.13} parent=5 // pred_fallthru
      _
  $region6: #{_lambda_.13} parent=0 // loop_footer
    %s16 = sadd.s32 1, %s12
  $region7: #{_lambda_.13} parent=0 // loop_footer_branch
    %11 = sbr.rel target = $region3
  $region8: #{_lambda_.13} parent=0 // loop_exit
    _

// kernel: _lambda_.14
$region0: #{_lambda_.14}
  #allocation0 [shape = 'u32[]', space=smem, size = 0x4, offset = 0x4, fixed_abs, tag = 'smem constant byte address 0x4 - core index']
  #allocation1 [shape = 'u32[144,128]{1,0:T(1,128)}', space=vmem, size = 0x12000, scoped, tag = 'internal scratch']
  #allocation2 [shape = 'f32[1]{0:T(128)S(6)}', space=smem, size = 0x200, scoped, tag = 'scoped memory for _lambda_.14']
  %s0 = inlined_call_operand.vmem [shape: bf16[2,16,144], index: 0, kind: input, shape index: {}]
  %s1 = inlined_call_operand.vmem [shape: bf16[144,32], index: 1, kind: input, shape index: {}]
  %s2 = inlined_call_operand.vmem [shape: f32[1,32], index: 2, kind: input, shape index: {}]
  %s3 = inlined_call_operand.vmem [shape: f32[1,32], index: 3, kind: input, shape index: {}]
  %s4 = inlined_call_operand.<no memory space> [shape: f32[1], index: 4, kind: input, shape index: {}]
  %s5 = inlined_call_operand.vmem [shape: f32[2,16,32], index: 5, kind: output, shape index: {}]
  %s6 = sld [smem:[#allocation0]]
  $region53: #{_lambda_.14} parent=0
    _
  %s8 = ssub.s32 1, %s6
  %s9 = scalar_select 0, %s8, %s6
  %10 = sst [smem:[#allocation2]] %s4
  loop: start=0, step=1, limit=4
  $region2: #{_lambda_.14} parent=0 // loop_pre_header
    _
  $region3: #{_lambda_.14} parent=0 // loop_header
    %s12 = sphi 0, %s16
    %p13 = scmp.ge.s32.totalorder %s12, 4
    %s19 = sphi 0, %s31
    %s20 = sphi 0, %s27
    %s21 = sphi 0, %s19
    %s22 = sphi 0, %s20
    %s23 = sphi 0, %s21
    %s24 = sphi 0, %s22
    %s36 = sphi 0, %s38
    %s39 = sphi 0, %s36
    %s40 = sphi 0, %s39
    %s56 = sphi 0, %s40
    %s60 = sphi 0, %s60
    %s62 = sphi 0, %s60
    %s63 = sphi 0, %s62
    %s77 = sphi 0, %s63
    %s81 = sphi 0, %s81
    %s83 = sphi 0, %s81
    %s84 = sphi 0, %s83
    %s98 = sphi 0, %s84
    %s102 = sphi 0, %s102
    %s104 = sphi 0, %s102
    %s105 = sphi 0, %s104
    %s119 = sphi 0, %s105
    %s123 = sphi 0, %s123
    %s125 = sphi 0, %s123
    %s126 = sphi 0, %s125
    %s140 = sphi 0, %s126
    %s148 = sphi 0, %s150
    %s151 = sphi 0, %s148
    %s152 = sphi 0, %s151
    %s168 = sphi 0, %s152
  $region4: #{_lambda_.14} parent=0 // loop_header_branch
    %15 = sbr.rel (%p13) target = $region8
  $region5: #{_lambda_.14} parent=0 // loop_body
    %s17 = ssub.s32 %s12, 1
    %s18 = ssub.s32 %s12, 2
    %s25 = sadd.s32 1, %s20
    %p26 = scmp.ge.s32.totalorder %s25, 1
    %s27 = scalar_select %p26, 0, %s25
    %s28 = sadd.s32 1, %s19
    %s29 = scalar_select %p26, %s28, %s19
    %p30 = scmp.ge.s32.totalorder %s29, 2
    %s31 = scalar_select %p30, 0, %s29
    %s32 = ssub.s32 %s19, %s31
    %s33 = ssub.s32 %s20, %s27
    %s34 = sor.u32 %s32, %s33
    %p35 = scmp.eq.s32.totalorder %s34, 0
    %s37 = sadd.s32 %s36, 1
    %s38 = scalar_select %p35, %s36, %s37
    %p41 = pneg %p35
    %p42 = scmp.eq.s32.totalorder %s12, 1
    %p43 = por %p41, %p42
    %p44 = scmp.ne.s32.totalorder %s36, %s39
    %p45 = scmp.eq.s32.totalorder %s12, 0
    %p46 = por %p44, %p45
    %p47 = scmp.ne.s32.totalorder %s36, %s39
    %p48 = scmp.eq.s32.totalorder %s17, 1
    %p49 = por %p47, %p48
    %p50 = scmp.ne.s32.totalorder %s39, %s40
    %p51 = scmp.eq.s32.totalorder %s17, 0
    %p52 = por %p50, %p51
    %p53 = scmp.ne.s32.totalorder %s39, %s40
    %p54 = scmp.eq.s32.totalorder %s18, 1
    %p55 = por %p53, %p54
    %p57 = scmp.ne.s32.totalorder %s40, %s56
    %p58 = scmp.eq.s32.totalorder %s18, 0
    %p59 = por %p57, %p58
    %s61 = sadd.s32 %s60, 1
    %p64 = scmp.eq.s32.totalorder %s12, 1
    %p65 = scmp.ne.s32.totalorder %s60, %s62
    %p66 = scmp.eq.s32.totalorder %s12, 0
    %p67 = por %p65, %p66
    %p68 = scmp.ne.s32.totalorder %s60, %s62
    %p69 = scmp.eq.s32.totalorder %s17, 1
    %p70 = por %p68, %p69
    %p71 = scmp.ne.s32.totalorder %s62, %s63
    %p72 = scmp.eq.s32.totalorder %s17, 0
    %p73 = por %p71, %p72
    %p74 = scmp.ne.s32.totalorder %s62, %s63
    %p75 = scmp.eq.s32.totalorder %s18, 1
    %p76 = por %p74, %p75
    %p78 = scmp.ne.s32.totalorder %s63, %s77
    %p79 = scmp.eq.s32.totalorder %s18, 0
    %p80 = por %p78, %p79
    %s82 = sadd.s32 %s81, 1
    %p85 = scmp.eq.s32.totalorder %s12, 1
    %p86 = scmp.ne.s32.totalorder %s81, %s83
    %p87 = scmp.eq.s32.totalorder %s12, 0
    %p88 = por %p86, %p87
    %p89 = scmp.ne.s32.totalorder %s81, %s83
    %p90 = scmp.eq.s32.totalorder %s17, 1
    %p91 = por %p89, %p90
    %p92 = scmp.ne.s32.totalorder %s83, %s84
    %p93 = scmp.eq.s32.totalorder %s17, 0
    %p94 = por %p92, %p93
    %p95 = scmp.ne.s32.totalorder %s83, %s84
    %p96 = scmp.eq.s32.totalorder %s18, 1
    %p97 = por %p95, %p96
    %p99 = scmp.ne.s32.totalorder %s84, %s98
    %p100 = scmp.eq.s32.totalorder %s18, 0
    %p101 = por %p99, %p100
    %s103 = sadd.s32 %s102, 1
    %p106 = scmp.eq.s32.totalorder %s12, 1
    %p107 = scmp.ne.s32.totalorder %s102, %s104
    %p108 = scmp.eq.s32.totalorder %s12, 0
    %p109 = por %p107, %p108
    %p110 = scmp.ne.s32.totalorder %s102, %s104
    %p111 = scmp.eq.s32.totalorder %s17, 1
    %p112 = por %p110, %p111
    %p113 = scmp.ne.s32.totalorder %s104, %s105
    %p114 = scmp.eq.s32.totalorder %s17, 0
    %p115 = por %p113, %p114
    %p116 = scmp.ne.s32.totalorder %s104, %s105
    %p117 = scmp.eq.s32.totalorder %s18, 1
    %p118 = por %p116, %p117
    %p120 = scmp.ne.s32.totalorder %s105, %s119
    %p121 = scmp.eq.s32.totalorder %s18, 0
    %p122 = por %p120, %p121
    %s124 = sadd.s32 %s123, 1
    %p127 = scmp.eq.s32.totalorder %s12, 1
    %p128 = scmp.ne.s32.totalorder %s123, %s125
    %p129 = scmp.eq.s32.totalorder %s12, 0
    %p130 = por %p128, %p129
    %p131 = scmp.ne.s32.totalorder %s123, %s125
    %p132 = scmp.eq.s32.totalorder %s17, 1
    %p133 = por %p131, %p132
    %p134 = scmp.ne.s32.totalorder %s125, %s126
    %p135 = scmp.eq.s32.totalorder %s17, 0
    %p136 = por %p134, %p135
    %p137 = scmp.ne.s32.totalorder %s125, %s126
    %p138 = scmp.eq.s32.totalorder %s18, 1
    %p139 = por %p137, %p138
    %p141 = scmp.ne.s32.totalorder %s126, %s140
    %p142 = scmp.eq.s32.totalorder %s18, 0
    %p143 = por %p141, %p142
    %s144 = ssub.s32 %s19, %s31
    %s145 = ssub.s32 %s20, %s27
    %s146 = sor.u32 %s144, %s145
    %p147 = scmp.eq.s32.totalorder %s146, 0
    %s149 = sadd.s32 %s148, 1
    %s150 = scalar_select %p147, %s148, %s149
    %p153 = pneg %p147
    %p154 = scmp.eq.s32.totalorder %s12, 1
    %p155 = por %p153, %p154
    %p156 = scmp.ne.s32.totalorder %s148, %s151
    %p157 = scmp.eq.s32.totalorder %s12, 0
    %p158 = por %p156, %p157
    %p159 = scmp.ne.s32.totalorder %s148, %s151
    %p160 = scmp.eq.s32.totalorder %s17, 1
    %p161 = por %p159, %p160
    %p162 = scmp.ne.s32.totalorder %s151, %s152
    %p163 = scmp.eq.s32.totalorder %s17, 0
    %p164 = por %p162, %p163
    %p165 = scmp.ne.s32.totalorder %s151, %s152
    %p166 = scmp.eq.s32.totalorder %s18, 1
    %p167 = por %p165, %p166
    %p169 = scmp.ne.s32.totalorder %s152, %s168
    %p170 = scmp.eq.s32.totalorder %s18, 0
    %p171 = por %p169, %p170
    %p172 = scmp.le.s32.totalorder 1, %s12
    %p173 = scmp.lt.s32.totalorder %s12, 3
    %p174 = pnand %p172, %p173
    %p175 = pneg %p174
    // Predicated region
    $region9: #{_lambda_.14} parent=5 // pred_check
      _
    $region10: #{_lambda_.14} parent=5 // pred_check_branch
      %177 = sbr.rel (%p174) target = $region12
    $region11: #{_lambda_.14} parent=5 // pred_region
      %s178 = ssub.s32 %s12, 1
      // Predicated region
      $region13: #{_lambda_.14} parent=11 // pred_check
        %p179 = pneg %p73
      $region14: #{_lambda_.14} parent=11 // pred_check_branch
        %181 = sbr.rel (%p179) target = $region16
      $region15: #{_lambda_.14} parent=11 // pred_region
        _
      $region16: #{_lambda_.14} parent=11 // pred_fallthru
        _
      // Predicated region
      $region17: #{_lambda_.14} parent=11 // pred_check
        %p182 = pneg %p94
      $region18: #{_lambda_.14} parent=11 // pred_check_branch
        %184 = sbr.rel (%p182) target = $region20
      $region19: #{_lambda_.14} parent=11 // pred_region
        _
      $region20: #{_lambda_.14} parent=11 // pred_fallthru
        _
      // Predicated region
      $region21: #{_lambda_.14} parent=11 // pred_check
        %p185 = pneg %p115
      $region22: #{_lambda_.14} parent=11 // pred_check_branch
        %187 = sbr.rel (%p185) target = $region24
      $region23: #{_lambda_.14} parent=11 // pred_region
        _
      $region24: #{_lambda_.14} parent=11 // pred_fallthru
        _
      // Predicated region
      $region25: #{_lambda_.14} parent=11 // pred_check
        %p188 = pneg %p136
      $region26: #{_lambda_.14} parent=11 // pred_check_branch
        %190 = sbr.rel (%p188) target = $region28
      $region27: #{_lambda_.14} parent=11 // pred_region
        _
      $region28: #{_lambda_.14} parent=11 // pred_fallthru
        _
    $region12: #{_lambda_.14} parent=5 // pred_fallthru
      _
    %p191 = scmp.lt.s32.totalorder %s12, 2
    // Predicated region
    $region29: #{_lambda_.14} parent=5 // pred_check
      %p192 = pneg %p191
    $region30: #{_lambda_.14} parent=5 // pred_check_branch
      %194 = sbr.rel (%p192) target = $region32
    $region31: #{_lambda_.14} parent=5 // pred_region
      // Predicated region
      $region33: #{_lambda_.14} parent=31 // pred_check
        %p195 = pneg %p46
      $region34: #{_lambda_.14} parent=31 // pred_check_branch
        %197 = sbr.rel (%p195) target = $region36
      $region35: #{_lambda_.14} parent=31 // pred_region
        %s198 = smul.u32 2, %s20
        %p199 = scmp.lt.s32.totalorder %s19, 1
        %s200 = scalar_select %p199, %s19, 1
        %p201 = scmp.lt.s32.totalorder %s198, 1
        %s202 = scalar_select %p201, %s198, 1
        %s203 = smul.addr %s202, 2
        %s204 = smul.addr %s200, 4
        %s205 = sadd.s32 %s203, %s204
        %s206 = smul.addr %s205, 4
        %s207 = scalar_lea.vmem %s0, %s206
        %s208 = smul.u32 2, %s20
      $region36: #{_lambda_.14} parent=31 // pred_fallthru
        _
    $region32: #{_lambda_.14} parent=5 // pred_fallthru
      _
    %p209 = scmp.le.s32.totalorder 1, %s12
    %p210 = scmp.lt.s32.totalorder %s12, 3
    %p211 = pnand %p209, %p210
    %p212 = pneg %p211
    // Predicated region
    $region37: #{_lambda_.14} parent=5 // pred_check
      _
    $region38: #{_lambda_.14} parent=5 // pred_check_branch
      %214 = sbr.rel (%p211) target = $region40
    $region39: #{_lambda_.14} parent=5 // pred_region
      %s215 = ssub.s32 %s12, 1
      %s216 = smul.u32 2, %s22
      %p217 = scmp.lt.s32.totalorder %s21, 1
      %s218 = scalar_select %p217, %s21, 1
      %p219 = scmp.lt.s32.totalorder %s216, 1
      %s220 = scalar_select %p219, %s216, 1
      %s221 = smul.addr %s220, 2
      %s222 = smul.addr %s218, 4
      %s223 = sadd.s32 %s221, %s222
      %s224 = smul.addr %s223, 4
      %s225 = scalar_lea.vmem %s0, %s224
      %p226 = pneg %p52
      %p227 = pneg %p49
      %p228 = pneg %p73
      %p229 = pneg %p70
      %p230 = pneg %p94
      %p231 = pneg %p91
      %p232 = pneg %p115
      %p233 = pneg %p112
      %p234 = pneg %p136
      %p235 = pneg %p133
      %p236 = pneg %p164
      %p237 = pneg %p161
      %s238 = smul.u32 2, %s22
      %p239 = scmp.lt.s32.totalorder %s21, 1
      %s240 = scalar_select %p239, %s21, 1
      %p241 = scmp.lt.s32.totalorder %s238, 1
      %s242 = scalar_select %p241, %s238, 1
      %s243 = smul.addr %s240, 2
      %s244 = sadd.s32 %s242, %s243
      %s245 = smul.addr %s244, 8
      %s246 = scalar_lea.vmem %s5, %s245
      %s247 = smul.u32 2, %s22
      %p248 = scmp.lt.s32.totalorder %s21, 1
      %s249 = scalar_select %p248, %s21, 1
      %p250 = scmp.lt.s32.totalorder %s247, 1
      %s251 = scalar_select %p250, %s247, 1
      %s252 = smul.addr %s251, 2
      %s253 = smul.addr %s249, 4
      %s254 = sadd.s32 %s252, %s253
      %s255 = smul.addr %s254, 4
      %s256 = scalar_lea.vmem %s0, %s255
      %s257 = smul.u32 2, %s22
      %s258 = smul.u32 2, %s22
      %p259 = scmp.lt.s32.totalorder %s21, 1
      %s260 = scalar_select %p259, %s21, 1
      %p261 = scmp.lt.s32.totalorder %s258, 1
      %s262 = scalar_select %p261, %s258, 1
      %s263 = smul.addr %s260, 2
      %s264 = sadd.s32 %s262, %s263
      %s265 = smul.addr %s264, 8
      %s266 = scalar_lea.vmem %s5, %s265
      %s267 = smul.u32 2, %s22
      %v269 = vld [vmem:[%s256] sm:$0xff]
      %v270 = vld [vmem:[%s256 + $0x8] sm:$0xff]
      %v271 = vld [vmem:[%s1] sm:$0xf]
      %v272 = vld [vmem:[%s1 + $0x4] sm:$0xf]
      %v273 = vld [vmem:[%s1 + $0x8] sm:$0xf]
      %v274 = vld [vmem:[%s1 + $0xc] sm:$0xf]
      %v275 = vld [vmem:[%s1 + $0x10] sm:$0xf]
      %v276 = vld [vmem:[%s1 + $0x14] sm:$0xf]
      %v277 = vld [vmem:[%s1 + $0x18] sm:$0xf]
      %v278 = vld [vmem:[%s1 + $0x1c] sm:$0xf]
      %v279 = vld [vmem:[%s1 + $0x20] sm:$0xf]
      %v280 = vld [vmem:[%s1 + $0x24] sm:$0xf]
      %v281 = vld [vmem:[%s1 + $0x28] sm:$0xf]
      %v282 = vld [vmem:[%s1 + $0x2c] sm:$0xf]
      %v283 = vld [vmem:[%s1 + $0x30] sm:$0xf]
      %v284 = vld [vmem:[%s1 + $0x34] sm:$0xf]
      %v285 = vld [vmem:[%s1 + $0x38] sm:$0xf]
      %v286 = vld [vmem:[%s1 + $0x3c] sm:$0xf]
      %v287 = vld [vmem:[%s1 + $0x40] sm:$0xf]
      %v288 = vld [vmem:[%s1 + $0x44] sm:$0xf]
      %v291 = vunpack.c.l.b16 %v269
      %v292 = vunpack.c.h.b16 %v269
      %v293 = vunpack.c.l.b16 %v270
      %v294 = vunpack.c.h.b16 %v270
      %v295 = vpack.c.b16 %v293, %v291
      %v296 = vpack.c.b16 %v294, %v292
      %v316 = vunpack.c.l.b16 %v271
      %v317 = vunpack.c.l.b16 %v272
      %v318 = vunpack.c.l.b16 %v273
      %v319 = vunpack.c.l.b16 %v274
      %v320 = vunpack.c.l.b16 %v275
      %v321 = vunpack.c.l.b16 %v276
      %v322 = vunpack.c.l.b16 %v277
      %v323 = vunpack.c.l.b16 %v278
      %v324 = vunpack.c.l.b16 %v279
      %v325 = vunpack.c.l.b16 %v280
      %v326 = vunpack.c.l.b16 %v281
      %v327 = vunpack.c.l.b16 %v282
      %v328 = vunpack.c.l.b16 %v283
      %v329 = vunpack.c.l.b16 %v284
      %v330 = vunpack.c.l.b16 %v285
      %v331 = vunpack.c.l.b16 %v286
      %v332 = vunpack.c.l.b16 %v287
      %v333 = vunpack.c.l.b16 %v288
      %v334 = vpack.c.b16 %v317, %v316
      %v335 = vpack.c.b16 %v319, %v318
      %v336 = vpack.c.b16 %v321, %v320
      %v337 = vpack.c.b16 %v323, %v322
      %v338 = vpack.c.b16 %v325, %v324
      %v339 = vpack.c.b16 %v327, %v326
      %v340 = vpack.c.b16 %v329, %v328
      %v341 = vpack.c.b16 %v331, %v330
      %v342 = vpack.c.b16 %v333, %v332
      %vm352 = vcmask 130048
      %v354 = vsel %vm352, %v296, 0
      %356 = vmatprep.subr.bf16.mxu0 0
      %357 = vmatpush1.bf16.msra.mxu0 %v334
      %358 = vmatprep.subr.bf16.mxu0 0
      %359 = vmatpush1.bf16.msra.mxu0 %v335
      %360 = vmatprep.subr.bf16.mxu0 0
      %361 = vmatpush1.bf16.msra.mxu0 %v336
      %362 = vmatprep.subr.bf16.mxu0 0
      %363 = vmatpush1.bf16.msra.mxu0 %v337
      %364 = vmatprep.subr.bf16.mxu0 0
      %365 = vmatpush1.bf16.msra.mxu0 %v338
      %366 = vmatprep.subr.bf16.mxu0 0
      %367 = vmatpush1.bf16.msra.mxu0 %v339
      %368 = vmatprep.subr.bf16.mxu0 0
      %369 = vmatpush1.bf16.msra.mxu0 %v340
      %370 = vmatprep.subr.bf16.mxu0 0
      %371 = vmatpush1.bf16.msra.mxu0 %v341
      %372 = vmatprep.subr.bf16.mxu0 0
      %373 = vmatpush1.bf16.msra.mxu0 %v342
      %374 = vmatprep.subr.bf16.mxu0 0
      %375 = vmatpush1.bf16.msra.mxu0 0
      %376 = vmatprep.subr.bf16.mxu0 0
      %377 = vmatpush1.bf16.msra.mxu0 0
      %378 = vmatprep.subr.bf16.mxu0 0
      %379 = vmatpush1.bf16.msra.mxu0 0
      %380 = vmatprep.subr.bf16.mxu0 0
      %381 = vmatpush1.bf16.msra.mxu0 0
      %382 = vmatprep.subr.bf16.mxu0 0
      %383 = vmatpush1.bf16.msra.mxu0 0
      %384 = vmatprep.subr.bf16.mxu0 0
      %385 = vmatpush1.bf16.msra.mxu0 0
      %386 = vmatprep.subr.bf16.mxu0 0
      %387 = vmatpush1.bf16.msra.mxu0 0
      %388 = vmatprep.mubr.bf16.mxu0 %v354
      %389 = vmatmul.mubr.bf16.gmra.mrb[0].mxu0 %v295
      %v390 = vpop.f32.mrb[0].mxu0
      %v391 = vadd.f32 0.0, %v390
      %v392 = vpop.f32.mrb[0].mxu0
      %v393 = vpop.f32.mrb[0].mxu0
      %v394 = vadd.f32 0.0, %v393
      %v395 = vpop.f32.mrb[0].mxu0
      %396 = vdwg.mxu0
      %v397 = vld [vmem:[%s2] sm:$0x1]
      %v399 = vlaneseq
      %v400 = vshrl.u32 %v399, 7
      %v401 = vsub.s32 0, %v400
      %v402 = vrot.slane %v397, %v401
      %v404 = vmul.f32 %v391, %v402
      %v405 = vmul.f32 %v394, %v402
      %v406 = vld [vmem:[%s3] sm:$0x1]
      %v408 = vlaneseq
      %v409 = vshrl.u32 %v408, 7
      %v410 = vsub.s32 0, %v409
      %v411 = vrot.slane %v406, %v410
      %v413 = vadd.f32 %v404, %v411
      %v414 = vadd.f32 %v405, %v411
      %s415 = sld [smem:[#allocation2]]
      %vm416 = vcmp.gt.f32.partialorder %v413, 0.0
      %vm417 = vcmp.gt.f32.partialorder %v414, 0.0
      %v418 = vstv %s415
      %v419 = vmul.f32 %v418, %v413
      %v420 = vmul.f32 %v418, %v414
      %v421 = vsel %vm416, %v413, %v419
      %v422 = vsel %vm417, %v414, %v420
      %vm423 = vcmask 261120
      %424 = vst.msk [vmem:[%s266] sm:$0xff] %vm423, %v421
      %425 = vst.msk [vmem:[%s266 + $0x8] sm:$0xff] %vm423, %v422
      %s426 = smul.u32 2, %s22
      %p427 = scmp.lt.s32.totalorder %s21, 1
      %s428 = scalar_select %p427, %s21, 1
      %p429 = scmp.lt.s32.totalorder %s426, 1
      %s430 = scalar_select %p429, %s426, 1
      %s431 = smul.addr %s428, 2
      %s432 = sadd.s32 %s430, %s431
      %s433 = smul.addr %s432, 8
      %s434 = scalar_lea.vmem %s5, %s433
      // Predicated region
      $region41: #{_lambda_.14} parent=39 // pred_check
        %p435 = pneg %p161
      $region42: #{_lambda_.14} parent=39 // pred_check_branch
        %437 = sbr.rel (%p435) target = $region44
      $region43: #{_lambda_.14} parent=39 // pred_region
        %s438 = smul.u32 2, %s22
      $region44: #{_lambda_.14} parent=39 // pred_fallthru
        _
    $region40: #{_lambda_.14} parent=5 // pred_fallthru
      _
    %p439 = scmp.le.s32.totalorder 2, %s12
    // Predicated region
    $region45: #{_lambda_.14} parent=5 // pred_check
      %p440 = pneg %p439
    $region46: #{_lambda_.14} parent=5 // pred_check_branch
      %442 = sbr.rel (%p440) target = $region48
    $region47: #{_lambda_.14} parent=5 // pred_region
      %s443 = ssub.s32 %s12, 2
      // Predicated region
      $region49: #{_lambda_.14} parent=47 // pred_check
        %p444 = pneg %p167
      $region50: #{_lambda_.14} parent=47 // pred_check_branch
        %446 = sbr.rel (%p444) target = $region52
      $region51: #{_lambda_.14} parent=47 // pred_region
        %s447 = smul.u32 2, %s24
        %p448 = scmp.lt.s32.totalorder %s23, 1
        %s449 = scalar_select %p448, %s23, 1
        %p450 = scmp.lt.s32.totalorder %s447, 1
        %s451 = scalar_select %p450, %s447, 1
        %s452 = smul.addr %s449, 2
        %s453 = sadd.s32 %s451, %s452
        %s454 = smul.addr %s453, 8
        %s455 = scalar_lea.vmem %s5, %s454
      $region52: #{_lambda_.14} parent=47 // pred_fallthru
        _
    $region48: #{_lambda_.14} parent=5 // pred_fallthru
      _
  $region6: #{_lambda_.14} parent=0 // loop_footer
    %s16 = sadd.s32 1, %s12
  $region7: #{_lambda_.14} parent=0 // loop_footer_branch
    %11 = sbr.rel target = $region3
  $region8: #{_lambda_.14} parent=0 // loop_exit
    _

// kernel: _lambda_.15
$region0: #{_lambda_.15}
  #allocation0 [shape = 'u32[]', space=smem, size = 0x4, offset = 0x4, fixed_abs, tag = 'smem constant byte address 0x4 - core index']
  #allocation1 [shape = 'u32[144,128]{1,0:T(1,128)}', space=vmem, size = 0x12000, scoped, tag = 'internal scratch']
  #allocation2 [shape = 'f32[1]{0:T(128)S(6)}', space=smem, size = 0x200, scoped, tag = 'scoped memory for _lambda_.15']
  %s0 = inlined_call_operand.vmem [shape: bf16[2,16,288], index: 0, kind: input, shape index: {}]
  %s1 = inlined_call_operand.vmem [shape: bf16[288,32], index: 1, kind: input, shape index: {}]
  %s2 = inlined_call_operand.vmem [shape: f32[1,32], index: 2, kind: input, shape index: {}]
  %s3 = inlined_call_operand.vmem [shape: f32[1,32], index: 3, kind: input, shape index: {}]
  %s4 = inlined_call_operand.<no memory space> [shape: f32[1], index: 4, kind: input, shape index: {}]
  %s5 = inlined_call_operand.vmem [shape: f32[2,16,32], index: 5, kind: output, shape index: {}]
  %s6 = sld [smem:[#allocation0]]
  $region53: #{_lambda_.15} parent=0
    _
  %s8 = ssub.s32 1, %s6
  %s9 = scalar_select 0, %s8, %s6
  %10 = sst [smem:[#allocation2]] %s4
  loop: start=0, step=1, limit=4
  $region2: #{_lambda_.15} parent=0 // loop_pre_header
    _
  $region3: #{_lambda_.15} parent=0 // loop_header
    %s12 = sphi 0, %s16
    %p13 = scmp.ge.s32.totalorder %s12, 4
    %s19 = sphi 0, %s31
    %s20 = sphi 0, %s27
    %s21 = sphi 0, %s19
    %s22 = sphi 0, %s20
    %s23 = sphi 0, %s21
    %s24 = sphi 0, %s22
    %s36 = sphi 0, %s38
    %s39 = sphi 0, %s36
    %s40 = sphi 0, %s39
    %s56 = sphi 0, %s40
    %s60 = sphi 0, %s60
    %s62 = sphi 0, %s60
    %s63 = sphi 0, %s62
    %s77 = sphi 0, %s63
    %s81 = sphi 0, %s81
    %s83 = sphi 0, %s81
    %s84 = sphi 0, %s83
    %s98 = sphi 0, %s84
    %s102 = sphi 0, %s102
    %s104 = sphi 0, %s102
    %s105 = sphi 0, %s104
    %s119 = sphi 0, %s105
    %s123 = sphi 0, %s123
    %s125 = sphi 0, %s123
    %s126 = sphi 0, %s125
    %s140 = sphi 0, %s126
    %s148 = sphi 0, %s150
    %s151 = sphi 0, %s148
    %s152 = sphi 0, %s151
    %s168 = sphi 0, %s152
  $region4: #{_lambda_.15} parent=0 // loop_header_branch
    %15 = sbr.rel (%p13) target = $region8
  $region5: #{_lambda_.15} parent=0 // loop_body
    %s17 = ssub.s32 %s12, 1
    %s18 = ssub.s32 %s12, 2
    %s25 = sadd.s32 1, %s20
    %p26 = scmp.ge.s32.totalorder %s25, 1
    %s27 = scalar_select %p26, 0, %s25
    %s28 = sadd.s32 1, %s19
    %s29 = scalar_select %p26, %s28, %s19
    %p30 = scmp.ge.s32.totalorder %s29, 2
    %s31 = scalar_select %p30, 0, %s29
    %s32 = ssub.s32 %s19, %s31
    %s33 = ssub.s32 %s20, %s27
    %s34 = sor.u32 %s32, %s33
    %p35 = scmp.eq.s32.totalorder %s34, 0
    %s37 = sadd.s32 %s36, 1
    %s38 = scalar_select %p35, %s36, %s37
    %p41 = pneg %p35
    %p42 = scmp.eq.s32.totalorder %s12, 1
    %p43 = por %p41, %p42
    %p44 = scmp.ne.s32.totalorder %s36, %s39
    %p45 = scmp.eq.s32.totalorder %s12, 0
    %p46 = por %p44, %p45
    %p47 = scmp.ne.s32.totalorder %s36, %s39
    %p48 = scmp.eq.s32.totalorder %s17, 1
    %p49 = por %p47, %p48
    %p50 = scmp.ne.s32.totalorder %s39, %s40
    %p51 = scmp.eq.s32.totalorder %s17, 0
    %p52 = por %p50, %p51
    %p53 = scmp.ne.s32.totalorder %s39, %s40
    %p54 = scmp.eq.s32.totalorder %s18, 1
    %p55 = por %p53, %p54
    %p57 = scmp.ne.s32.totalorder %s40, %s56
    %p58 = scmp.eq.s32.totalorder %s18, 0
    %p59 = por %p57, %p58
    %s61 = sadd.s32 %s60, 1
    %p64 = scmp.eq.s32.totalorder %s12, 1
    %p65 = scmp.ne.s32.totalorder %s60, %s62
    %p66 = scmp.eq.s32.totalorder %s12, 0
    %p67 = por %p65, %p66
    %p68 = scmp.ne.s32.totalorder %s60, %s62
    %p69 = scmp.eq.s32.totalorder %s17, 1
    %p70 = por %p68, %p69
    %p71 = scmp.ne.s32.totalorder %s62, %s63
    %p72 = scmp.eq.s32.totalorder %s17, 0
    %p73 = por %p71, %p72
    %p74 = scmp.ne.s32.totalorder %s62, %s63
    %p75 = scmp.eq.s32.totalorder %s18, 1
    %p76 = por %p74, %p75
    %p78 = scmp.ne.s32.totalorder %s63, %s77
    %p79 = scmp.eq.s32.totalorder %s18, 0
    %p80 = por %p78, %p79
    %s82 = sadd.s32 %s81, 1
    %p85 = scmp.eq.s32.totalorder %s12, 1
    %p86 = scmp.ne.s32.totalorder %s81, %s83
    %p87 = scmp.eq.s32.totalorder %s12, 0
    %p88 = por %p86, %p87
    %p89 = scmp.ne.s32.totalorder %s81, %s83
    %p90 = scmp.eq.s32.totalorder %s17, 1
    %p91 = por %p89, %p90
    %p92 = scmp.ne.s32.totalorder %s83, %s84
    %p93 = scmp.eq.s32.totalorder %s17, 0
    %p94 = por %p92, %p93
    %p95 = scmp.ne.s32.totalorder %s83, %s84
    %p96 = scmp.eq.s32.totalorder %s18, 1
    %p97 = por %p95, %p96
    %p99 = scmp.ne.s32.totalorder %s84, %s98
    %p100 = scmp.eq.s32.totalorder %s18, 0
    %p101 = por %p99, %p100
    %s103 = sadd.s32 %s102, 1
    %p106 = scmp.eq.s32.totalorder %s12, 1
    %p107 = scmp.ne.s32.totalorder %s102, %s104
    %p108 = scmp.eq.s32.totalorder %s12, 0
    %p109 = por %p107, %p108
    %p110 = scmp.ne.s32.totalorder %s102, %s104
    %p111 = scmp.eq.s32.totalorder %s17, 1
    %p112 = por %p110, %p111
    %p113 = scmp.ne.s32.totalorder %s104, %s105
    %p114 = scmp.eq.s32.totalorder %s17, 0
    %p115 = por %p113, %p114
    %p116 = scmp.ne.s32.totalorder %s104, %s105
    %p117 = scmp.eq.s32.totalorder %s18, 1
    %p118 = por %p116, %p117
    %p120 = scmp.ne.s32.totalorder %s105, %s119
    %p121 = scmp.eq.s32.totalorder %s18, 0
    %p122 = por %p120, %p121
    %s124 = sadd.s32 %s123, 1
    %p127 = scmp.eq.s32.totalorder %s12, 1
    %p128 = scmp.ne.s32.totalorder %s123, %s125
    %p129 = scmp.eq.s32.totalorder %s12, 0
    %p130 = por %p128, %p129
    %p131 = scmp.ne.s32.totalorder %s123, %s125
    %p132 = scmp.eq.s32.totalorder %s17, 1
    %p133 = por %p131, %p132
    %p134 = scmp.ne.s32.totalorder %s125, %s126
    %p135 = scmp.eq.s32.totalorder %s17, 0
    %p136 = por %p134, %p135
    %p137 = scmp.ne.s32.totalorder %s125, %s126
    %p138 = scmp.eq.s32.totalorder %s18, 1
    %p139 = por %p137, %p138
    %p141 = scmp.ne.s32.totalorder %s126, %s140
    %p142 = scmp.eq.s32.totalorder %s18, 0
    %p143 = por %p141, %p142
    %s144 = ssub.s32 %s19, %s31
    %s145 = ssub.s32 %s20, %s27
    %s146 = sor.u32 %s144, %s145
    %p147 = scmp.eq.s32.totalorder %s146, 0
    %s149 = sadd.s32 %s148, 1
    %s150 = scalar_select %p147, %s148, %s149
    %p153 = pneg %p147
    %p154 = scmp.eq.s32.totalorder %s12, 1
    %p155 = por %p153, %p154
    %p156 = scmp.ne.s32.totalorder %s148, %s151
    %p157 = scmp.eq.s32.totalorder %s12, 0
    %p158 = por %p156, %p157
    %p159 = scmp.ne.s32.totalorder %s148, %s151
    %p160 = scmp.eq.s32.totalorder %s17, 1
    %p161 = por %p159, %p160
    %p162 = scmp.ne.s32.totalorder %s151, %s152
    %p163 = scmp.eq.s32.totalorder %s17, 0
    %p164 = por %p162, %p163
    %p165 = scmp.ne.s32.totalorder %s151, %s152
    %p166 = scmp.eq.s32.totalorder %s18, 1
    %p167 = por %p165, %p166
    %p169 = scmp.ne.s32.totalorder %s152, %s168
    %p170 = scmp.eq.s32.totalorder %s18, 0
    %p171 = por %p169, %p170
    %p172 = scmp.le.s32.totalorder 1, %s12
    %p173 = scmp.lt.s32.totalorder %s12, 3
    %p174 = pnand %p172, %p173
    %p175 = pneg %p174
    // Predicated region
    $region9: #{_lambda_.15} parent=5 // pred_check
      _
    $region10: #{_lambda_.15} parent=5 // pred_check_branch
      %177 = sbr.rel (%p174) target = $region12
    $region11: #{_lambda_.15} parent=5 // pred_region
      %s178 = ssub.s32 %s12, 1
      // Predicated region
      $region13: #{_lambda_.15} parent=11 // pred_check
        %p179 = pneg %p73
      $region14: #{_lambda_.15} parent=11 // pred_check_branch
        %181 = sbr.rel (%p179) target = $region16
      $region15: #{_lambda_.15} parent=11 // pred_region
        _
      $region16: #{_lambda_.15} parent=11 // pred_fallthru
        _
      // Predicated region
      $region17: #{_lambda_.15} parent=11 // pred_check
        %p182 = pneg %p94
      $region18: #{_lambda_.15} parent=11 // pred_check_branch
        %184 = sbr.rel (%p182) target = $region20
      $region19: #{_lambda_.15} parent=11 // pred_region
        _
      $region20: #{_lambda_.15} parent=11 // pred_fallthru
        _
      // Predicated region
      $region21: #{_lambda_.15} parent=11 // pred_check
        %p185 = pneg %p115
      $region22: #{_lambda_.15} parent=11 // pred_check_branch
        %187 = sbr.rel (%p185) target = $region24
      $region23: #{_lambda_.15} parent=11 // pred_region
        _
      $region24: #{_lambda_.15} parent=11 // pred_fallthru
        _
      // Predicated region
      $region25: #{_lambda_.15} parent=11 // pred_check
        %p188 = pneg %p136
      $region26: #{_lambda_.15} parent=11 // pred_check_branch
        %190 = sbr.rel (%p188) target = $region28
      $region27: #{_lambda_.15} parent=11 // pred_region
        _
      $region28: #{_lambda_.15} parent=11 // pred_fallthru
        _
    $region12: #{_lambda_.15} parent=5 // pred_fallthru
      _
    %p191 = scmp.lt.s32.totalorder %s12, 2
    // Predicated region
    $region29: #{_lambda_.15} parent=5 // pred_check
      %p192 = pneg %p191
    $region30: #{_lambda_.15} parent=5 // pred_check_branch
      %194 = sbr.rel (%p192) target = $region32
    $region31: #{_lambda_.15} parent=5 // pred_region
      // Predicated region
      $region33: #{_lambda_.15} parent=31 // pred_check
        %p195 = pneg %p46
      $region34: #{_lambda_.15} parent=31 // pred_check_branch
        %197 = sbr.rel (%p195) target = $region36
      $region35: #{_lambda_.15} parent=31 // pred_region
        %s198 = smul.u32 2, %s20
        %p199 = scmp.lt.s32.totalorder %s19, 1
        %s200 = scalar_select %p199, %s19, 1
        %p201 = scmp.lt.s32.totalorder %s198, 1
        %s202 = scalar_select %p201, %s198, 1
        %s203 = smul.addr %s202, 3
        %s204 = smul.addr %s200, 6
        %s205 = sadd.s32 %s203, %s204
        %s206 = smul.addr %s205, 4
        %s207 = scalar_lea.vmem %s0, %s206
        %s208 = smul.u32 2, %s20
      $region36: #{_lambda_.15} parent=31 // pred_fallthru
        _
    $region32: #{_lambda_.15} parent=5 // pred_fallthru
      _
    %p209 = scmp.le.s32.totalorder 1, %s12
    %p210 = scmp.lt.s32.totalorder %s12, 3
    %p211 = pnand %p209, %p210
    %p212 = pneg %p211
    // Predicated region
    $region37: #{_lambda_.15} parent=5 // pred_check
      _
    $region38: #{_lambda_.15} parent=5 // pred_check_branch
      %214 = sbr.rel (%p211) target = $region40
    $region39: #{_lambda_.15} parent=5 // pred_region
      %s215 = ssub.s32 %s12, 1
      %s216 = smul.u32 2, %s22
      %p217 = scmp.lt.s32.totalorder %s21, 1
      %s218 = scalar_select %p217, %s21, 1
      %p219 = scmp.lt.s32.totalorder %s216, 1
      %s220 = scalar_select %p219, %s216, 1
      %s221 = smul.addr %s220, 3
      %s222 = smul.addr %s218, 6
      %s223 = sadd.s32 %s221, %s222
      %s224 = smul.addr %s223, 4
      %s225 = scalar_lea.vmem %s0, %s224
      %p226 = pneg %p52
      %p227 = pneg %p49
      %p228 = pneg %p73
      %p229 = pneg %p70
      %p230 = pneg %p94
      %p231 = pneg %p91
      %p232 = pneg %p115
      %p233 = pneg %p112
      %p234 = pneg %p136
      %p235 = pneg %p133
      %p236 = pneg %p164
      %p237 = pneg %p161
      %s238 = smul.u32 2, %s22
      %p239 = scmp.lt.s32.totalorder %s21, 1
      %s240 = scalar_select %p239, %s21, 1
      %p241 = scmp.lt.s32.totalorder %s238, 1
      %s242 = scalar_select %p241, %s238, 1
      %s243 = smul.addr %s240, 2
      %s244 = sadd.s32 %s242, %s243
      %s245 = smul.addr %s244, 8
      %s246 = scalar_lea.vmem %s5, %s245
      %s247 = smul.u32 2, %s22
      %p248 = scmp.lt.s32.totalorder %s21, 1
      %s249 = scalar_select %p248, %s21, 1
      %p250 = scmp.lt.s32.totalorder %s247, 1
      %s251 = scalar_select %p250, %s247, 1
      %s252 = smul.addr %s251, 3
      %s253 = smul.addr %s249, 6
      %s254 = sadd.s32 %s252, %s253
      %s255 = smul.addr %s254, 4
      %s256 = scalar_lea.vmem %s0, %s255
      %s257 = smul.u32 2, %s22
      %s258 = smul.u32 2, %s22
      %p259 = scmp.lt.s32.totalorder %s21, 1
      %s260 = scalar_select %p259, %s21, 1
      %p261 = scmp.lt.s32.totalorder %s258, 1
      %s262 = scalar_select %p261, %s258, 1
      %s263 = smul.addr %s260, 2
      %s264 = sadd.s32 %s262, %s263
      %s265 = smul.addr %s264, 8
      %s266 = scalar_lea.vmem %s5, %s265
      %s267 = smul.u32 2, %s22
      %v269 = vld [vmem:[%s256] sm:$0xff]
      %v270 = vld [vmem:[%s256 + $0x8] sm:$0xf]
      %v271 = vld [vmem:[%s256 + $0xc] sm:$0xff]
      %v272 = vld [vmem:[%s256 + $0x14] sm:$0xf]
      %v273 = vld [vmem:[%s1] sm:$0xf]
      %v274 = vld [vmem:[%s1 + $0x4] sm:$0xf]
      %v275 = vld [vmem:[%s1 + $0x8] sm:$0xf]
      %v276 = vld [vmem:[%s1 + $0xc] sm:$0xf]
      %v277 = vld [vmem:[%s1 + $0x10] sm:$0xf]
      %v278 = vld [vmem:[%s1 + $0x14] sm:$0xf]
      %v279 = vld [vmem:[%s1 + $0x18] sm:$0xf]
      %v280 = vld [vmem:[%s1 + $0x1c] sm:$0xf]
      %v281 = vld [vmem:[%s1 + $0x20] sm:$0xf]
      %v282 = vld [vmem:[%s1 + $0x24] sm:$0xf]
      %v283 = vld [vmem:[%s1 + $0x28] sm:$0xf]
      %v284 = vld [vmem:[%s1 + $0x2c] sm:$0xf]
      %v285 = vld [vmem:[%s1 + $0x30] sm:$0xf]
      %v286 = vld [vmem:[%s1 + $0x34] sm:$0xf]
      %v287 = vld [vmem:[%s1 + $0x38] sm:$0xf]
      %v288 = vld [vmem:[%s1 + $0x3c] sm:$0xf]
      %v289 = vld [vmem:[%s1 + $0x40] sm:$0xf]
      %v290 = vld [vmem:[%s1 + $0x44] sm:$0xf]
      %v291 = vld [vmem:[%s1 + $0x48] sm:$0xf]
      %v292 = vld [vmem:[%s1 + $0x4c] sm:$0xf]
      %v293 = vld [vmem:[%s1 + $0x50] sm:$0xf]
      %v294 = vld [vmem:[%s1 + $0x54] sm:$0xf]
      %v295 = vld [vmem:[%s1 + $0x58] sm:$0xf]
      %v296 = vld [vmem:[%s1 + $0x5c] sm:$0xf]
      %v297 = vld [vmem:[%s1 + $0x60] sm:$0xf]
      %v298 = vld [vmem:[%s1 + $0x64] sm:$0xf]
      %v299 = vld [vmem:[%s1 + $0x68] sm:$0xf]
      %v300 = vld [vmem:[%s1 + $0x6c] sm:$0xf]
      %v301 = vld [vmem:[%s1 + $0x70] sm:$0xf]
      %v302 = vld [vmem:[%s1 + $0x74] sm:$0xf]
      %v303 = vld [vmem:[%s1 + $0x78] sm:$0xf]
      %v304 = vld [vmem:[%s1 + $0x7c] sm:$0xf]
      %v305 = vld [vmem:[%s1 + $0x80] sm:$0xf]
      %v306 = vld [vmem:[%s1 + $0x84] sm:$0xf]
      %v307 = vld [vmem:[%s1 + $0x88] sm:$0xf]
      %v308 = vld [vmem:[%s1 + $0x8c] sm:$0xf]
      %v313 = vunpack.c.l.b16 %v269
      %v314 = vunpack.c.h.b16 %v269
      %v315 = vunpack.c.l.b16 %v270
      %v316 = vunpack.c.l.b16 %v271
      %v317 = vunpack.c.h.b16 %v271
      %v318 = vunpack.c.l.b16 %v272
      %v319 = vpack.c.b16 %v316, %v313
      %v320 = vpack.c.b16 %v317, %v314
      %v321 = vpack.c.b16 %v318, %v315
      %v360 = vunpack.c.l.b16 %v273
      %v361 = vunpack.c.l.b16 %v274
      %v362 = vunpack.c.l.b16 %v275
      %v363 = vunpack.c.l.b16 %v276
      %v364 = vunpack.c.l.b16 %v277
      %v365 = vunpack.c.l.b16 %v278
      %v366 = vunpack.c.l.b16 %v279
      %v367 = vunpack.c.l.b16 %v280
      %v368 = vunpack.c.l.b16 %v281
      %v369 = vunpack.c.l.b16 %v282
      %v370 = vunpack.c.l.b16 %v283
      %v371 = vunpack.c.l.b16 %v284
      %v372 = vunpack.c.l.b16 %v285
      %v373 = vunpack.c.l.b16 %v286
      %v374 = vunpack.c.l.b16 %v287
      %v375 = vunpack.c.l.b16 %v288
      %v376 = vunpack.c.l.b16 %v289
      %v377 = vunpack.c.l.b16 %v290
      %v378 = vunpack.c.l.b16 %v291
      %v379 = vunpack.c.l.b16 %v292
      %v380 = vunpack.c.l.b16 %v293
      %v381 = vunpack.c.l.b16 %v294
      %v382 = vunpack.c.l.b16 %v295
      %v383 = vunpack.c.l.b16 %v296
      %v384 = vunpack.c.l.b16 %v297
      %v385 = vunpack.c.l.b16 %v298
      %v386 = vunpack.c.l.b16 %v299
      %v387 = vunpack.c.l.b16 %v300
      %v388 = vunpack.c.l.b16 %v301
      %v389 = vunpack.c.l.b16 %v302
      %v390 = vunpack.c.l.b16 %v303
      %v391 = vunpack.c.l.b16 %v304
      %v392 = vunpack.c.l.b16 %v305
      %v393 = vunpack.c.l.b16 %v306
      %v394 = vunpack.c.l.b16 %v307
      %v395 = vunpack.c.l.b16 %v308
      %v396 = vpack.c.b16 %v361, %v360
      %v397 = vpack.c.b16 %v363, %v362
      %v398 = vpack.c.b16 %v365, %v364
      %v399 = vpack.c.b16 %v367, %v366
      %v400 = vpack.c.b16 %v369, %v368
      %v401 = vpack.c.b16 %v371, %v370
      %v402 = vpack.c.b16 %v373, %v372
      %v403 = vpack.c.b16 %v375, %v374
      %v404 = vpack.c.b16 %v377, %v376
      %v405 = vpack.c.b16 %v379, %v378
      %v406 = vpack.c.b16 %v381, %v380
      %v407 = vpack.c.b16 %v383, %v382
      %v408 = vpack.c.b16 %v385, %v384
      %v409 = vpack.c.b16 %v387, %v386
      %v410 = vpack.c.b16 %v389, %v388
      %v411 = vpack.c.b16 %v391, %v390
      %v412 = vpack.c.b16 %v393, %v392
      %v413 = vpack.c.b16 %v395, %v394
      %vm432 = vcmask 261120
      %v434 = vsel %vm432, %v321, 0
      %436 = vmatprep.subr.bf16.mxu0 0
      %437 = vmatpush1.bf16.msra.mxu0 %v396
      %438 = vmatprep.subr.bf16.mxu0 0
      %439 = vmatpush1.bf16.msra.mxu0 %v397
      %440 = vmatprep.subr.bf16.mxu0 0
      %441 = vmatpush1.bf16.msra.mxu0 %v398
      %442 = vmatprep.subr.bf16.mxu0 0
      %443 = vmatpush1.bf16.msra.mxu0 %v399
      %444 = vmatprep.subr.bf16.mxu0 0
      %445 = vmatpush1.bf16.msra.mxu0 %v400
      %446 = vmatprep.subr.bf16.mxu0 0
      %447 = vmatpush1.bf16.msra.mxu0 %v401
      %448 = vmatprep.subr.bf16.mxu0 0
      %449 = vmatpush1.bf16.msra.mxu0 %v402
      %450 = vmatprep.subr.bf16.mxu0 0
      %451 = vmatpush1.bf16.msra.mxu0 %v403
      %452 = vmatprep.subr.bf16.mxu0 0
      %453 = vmatpush1.bf16.msra.mxu0 %v404
      %454 = vmatprep.subr.bf16.mxu0 0
      %455 = vmatpush1.bf16.msra.mxu0 %v405
      %456 = vmatprep.subr.bf16.mxu0 0
      %457 = vmatpush1.bf16.msra.mxu0 %v406
      %458 = vmatprep.subr.bf16.mxu0 0
      %459 = vmatpush1.bf16.msra.mxu0 %v407
      %460 = vmatprep.subr.bf16.mxu0 0
      %461 = vmatpush1.bf16.msra.mxu0 %v408
      %462 = vmatprep.subr.bf16.mxu0 0
      %463 = vmatpush1.bf16.msra.mxu0 %v409
      %464 = vmatprep.subr.bf16.mxu0 0
      %465 = vmatpush1.bf16.msra.mxu0 %v410
      %466 = vmatprep.subr.bf16.mxu0 0
      %467 = vmatpush1.bf16.msra.mxu0 %v411
      %468 = vmatprep.mubr.bf16.mxu0 %v320
      %469 = vmatmul.mubr.bf16.gmra.mrb[0].mxu0 %v319
      %v470 = vpop.f32.mrb[0].mxu0
      %v471 = vadd.f32 0.0, %v470
      %v472 = vpop.f32.mrb[0].mxu0
      %v473 = vpop.f32.mrb[0].mxu0
      %v474 = vadd.f32 0.0, %v473
      %v475 = vpop.f32.mrb[0].mxu0
      %476 = vdwg.mxu0
      %477 = vmatprep.subr.bf16.mxu0 0
      %478 = vmatpush1.bf16.msra.mxu0 %v412
      %479 = vmatprep.subr.bf16.mxu0 0
      %480 = vmatpush1.bf16.msra.mxu0 %v413
      %481 = vmatprep.subr.bf16.mxu0 0
      %482 = vmatpush1.bf16.msra.mxu0 0
      %483 = vmatprep.subr.bf16.mxu0 0
      %484 = vmatpush1.bf16.msra.mxu0 0
      %485 = vmatprep.subr.bf16.mxu0 0
      %486 = vmatpush1.bf16.msra.mxu0 0
      %487 = vmatprep.subr.bf16.mxu0 0
      %488 = vmatpush1.bf16.msra.mxu0 0
      %489 = vmatprep.subr.bf16.mxu0 0
      %490 = vmatpush1.bf16.msra.mxu0 0
      %491 = vmatprep.subr.bf16.mxu0 0
      %492 = vmatpush1.bf16.msra.mxu0 0
      %493 = vmatprep.subr.bf16.mxu0 0
      %494 = vmatpush1.bf16.msra.mxu0 0
      %495 = vmatprep.subr.bf16.mxu0 0
      %496 = vmatpush1.bf16.msra.mxu0 0
      %497 = vmatprep.subr.bf16.mxu0 0
      %498 = vmatpush1.bf16.msra.mxu0 0
      %499 = vmatprep.subr.bf16.mxu0 0
      %500 = vmatpush1.bf16.msra.mxu0 0
      %501 = vmatprep.subr.bf16.mxu0 0
      %502 = vmatpush1.bf16.msra.mxu0 0
      %503 = vmatprep.subr.bf16.mxu0 0
      %504 = vmatpush1.bf16.msra.mxu0 0
      %505 = vmatprep.subr.bf16.mxu0 0
      %506 = vmatpush1.bf16.msra.mxu0 0
      %507 = vmatprep.subr.bf16.mxu0 0
      %508 = vmatpush1.bf16.msra.mxu0 0
      %509 = vmatprep.mubr.bf16.mxu0 0
      %510 = vmatmul.mubr.bf16.gmra.mrb[0].mxu0 %v434
      %v511 = vpop.f32.mrb[0].mxu0
      %v512 = vadd.f32 %v471, %v511
      %v513 = vpop.f32.mrb[0].mxu0
      %v514 = vpop.f32.mrb[0].mxu0
      %v515 = vadd.f32 %v474, %v514
      %v516 = vpop.f32.mrb[0].mxu0
      %517 = vdwg.mxu0
      %v518 = vld [vmem:[%s2] sm:$0x1]
      %v520 = vlaneseq
      %v521 = vshrl.u32 %v520, 7
      %v522 = vsub.s32 0, %v521
      %v523 = vrot.slane %v518, %v522
      %v525 = vmul.f32 %v512, %v523
      %v526 = vmul.f32 %v515, %v523
      %v527 = vld [vmem:[%s3] sm:$0x1]
      %v529 = vlaneseq
      %v530 = vshrl.u32 %v529, 7
      %v531 = vsub.s32 0, %v530
      %v532 = vrot.slane %v527, %v531
      %v534 = vadd.f32 %v525, %v532
      %v535 = vadd.f32 %v526, %v532
      %s536 = sld [smem:[#allocation2]]
      %vm537 = vcmp.gt.f32.partialorder %v534, 0.0
      %vm538 = vcmp.gt.f32.partialorder %v535, 0.0
      %v539 = vstv %s536
      %v540 = vmul.f32 %v539, %v534
      %v541 = vmul.f32 %v539, %v535
      %v542 = vsel %vm537, %v534, %v540
      %v543 = vsel %vm538, %v535, %v541
      %544 = vst.msk [vmem:[%s266] sm:$0xff] %vm432, %v542
      %545 = vst.msk [vmem:[%s266 + $0x8] sm:$0xff] %vm432, %v543
      %s546 = smul.u32 2, %s22
      %p547 = scmp.lt.s32.totalorder %s21, 1
      %s548 = scalar_select %p547, %s21, 1
      %p549 = scmp.lt.s32.totalorder %s546, 1
      %s550 = scalar_select %p549, %s546, 1
      %s551 = smul.addr %s548, 2
      %s552 = sadd.s32 %s550, %s551
      %s553 = smul.addr %s552, 8
      %s554 = scalar_lea.vmem %s5, %s553
      // Predicated region
      $region41: #{_lambda_.15} parent=39 // pred_check
        %p555 = pneg %p161
      $region42: #{_lambda_.15} parent=39 // pred_check_branch
        %557 = sbr.rel (%p555) target = $region44
      $region43: #{_lambda_.15} parent=39 // pred_region
        %s558 = smul.u32 2, %s22
      $region44: #{_lambda_.15} parent=39 // pred_fallthru
        _
    $region40: #{_lambda_.15} parent=5 // pred_fallthru
      _
    %p559 = scmp.le.s32.totalorder 2, %s12
    // Predicated region
    $region45: #{_lambda_.15} parent=5 // pred_check
      %p560 = pneg %p559
    $region46: #{_lambda_.15} parent=5 // pred_check_branch
      %562 = sbr.rel (%p560) target = $region48
    $region47: #{_lambda_.15} parent=5 // pred_region
      %s563 = ssub.s32 %s12, 2
      // Predicated region
      $region49: #{_lambda_.15} parent=47 // pred_check
        %p564 = pneg %p167
      $region50: #{_lambda_.15} parent=47 // pred_check_branch
        %566 = sbr.rel (%p564) target = $region52
      $region51: #{_lambda_.15} parent=47 // pred_region
        %s567 = smul.u32 2, %s24
        %p568 = scmp.lt.s32.totalorder %s23, 1
        %s569 = scalar_select %p568, %s23, 1
        %p570 = scmp.lt.s32.totalorder %s567, 1
        %s571 = scalar_select %p570, %s567, 1
        %s572 = smul.addr %s569, 2
        %s573 = sadd.s32 %s571, %s572
        %s574 = smul.addr %s573, 8
        %s575 = scalar_lea.vmem %s5, %s574
      $region52: #{_lambda_.15} parent=47 // pred_fallthru
        _
    $region48: #{_lambda_.15} parent=5 // pred_fallthru
      _
  $region6: #{_lambda_.15} parent=0 // loop_footer
    %s16 = sadd.s32 1, %s12
  $region7: #{_lambda_.15} parent=0 // loop_footer_branch
    %11 = sbr.rel target = $region3
  $region8: #{_lambda_.15} parent=0 // loop_exit
    _

// kernel: _lambda_.16
$region0: #{_lambda_.16}
  #allocation0 [shape = 'u32[]', space=smem, size = 0x4, offset = 0x4, fixed_abs, tag = 'smem constant byte address 0x4 - core index']
  #allocation1 [shape = 'u32[144,128]{1,0:T(1,128)}', space=vmem, size = 0x12000, scoped, tag = 'internal scratch']
  #allocation2 [shape = 'f32[1]{0:T(128)S(6)}', space=smem, size = 0x200, scoped, tag = 'scoped memory for _lambda_.16']
  %s0 = inlined_call_operand.vmem [shape: bf16[2,4,288], index: 0, kind: input, shape index: {}]
  %s1 = inlined_call_operand.vmem [shape: bf16[288,64], index: 1, kind: input, shape index: {}]
  %s2 = inlined_call_operand.vmem [shape: f32[1,64], index: 2, kind: input, shape index: {}]
  %s3 = inlined_call_operand.vmem [shape: f32[1,64], index: 3, kind: input, shape index: {}]
  %s4 = inlined_call_operand.<no memory space> [shape: f32[1], index: 4, kind: input, shape index: {}]
  %s5 = inlined_call_operand.vmem [shape: f32[2,4,64], index: 5, kind: output, shape index: {}]
  %s6 = sld [smem:[#allocation0]]
  $region53: #{_lambda_.16} parent=0
    _
  %s8 = ssub.s32 1, %s6
  %s9 = scalar_select 0, %s8, %s6
  %10 = sst [smem:[#allocation2]] %s4
  loop: start=0, step=1, limit=4
  $region2: #{_lambda_.16} parent=0 // loop_pre_header
    _
  $region3: #{_lambda_.16} parent=0 // loop_header
    %s12 = sphi 0, %s16
    %p13 = scmp.ge.s32.totalorder %s12, 4
    %s19 = sphi 0, %s31
    %s20 = sphi 0, %s27
    %s21 = sphi 0, %s19
    %s22 = sphi 0, %s20
    %s23 = sphi 0, %s21
    %s24 = sphi 0, %s22
    %s36 = sphi 0, %s38
    %s39 = sphi 0, %s36
    %s40 = sphi 0, %s39
    %s56 = sphi 0, %s40
    %s60 = sphi 0, %s60
    %s62 = sphi 0, %s60
    %s63 = sphi 0, %s62
    %s77 = sphi 0, %s63
    %s81 = sphi 0, %s81
    %s83 = sphi 0, %s81
    %s84 = sphi 0, %s83
    %s98 = sphi 0, %s84
    %s102 = sphi 0, %s102
    %s104 = sphi 0, %s102
    %s105 = sphi 0, %s104
    %s119 = sphi 0, %s105
    %s123 = sphi 0, %s123
    %s125 = sphi 0, %s123
    %s126 = sphi 0, %s125
    %s140 = sphi 0, %s126
    %s148 = sphi 0, %s150
    %s151 = sphi 0, %s148
    %s152 = sphi 0, %s151
    %s168 = sphi 0, %s152
  $region4: #{_lambda_.16} parent=0 // loop_header_branch
    %15 = sbr.rel (%p13) target = $region8
  $region5: #{_lambda_.16} parent=0 // loop_body
    %s17 = ssub.s32 %s12, 1
    %s18 = ssub.s32 %s12, 2
    %s25 = sadd.s32 1, %s20
    %p26 = scmp.ge.s32.totalorder %s25, 1
    %s27 = scalar_select %p26, 0, %s25
    %s28 = sadd.s32 1, %s19
    %s29 = scalar_select %p26, %s28, %s19
    %p30 = scmp.ge.s32.totalorder %s29, 2
    %s31 = scalar_select %p30, 0, %s29
    %s32 = ssub.s32 %s19, %s31
    %s33 = ssub.s32 %s20, %s27
    %s34 = sor.u32 %s32, %s33
    %p35 = scmp.eq.s32.totalorder %s34, 0
    %s37 = sadd.s32 %s36, 1
    %s38 = scalar_select %p35, %s36, %s37
    %p41 = pneg %p35
    %p42 = scmp.eq.s32.totalorder %s12, 1
    %p43 = por %p41, %p42
    %p44 = scmp.ne.s32.totalorder %s36, %s39
    %p45 = scmp.eq.s32.totalorder %s12, 0
    %p46 = por %p44, %p45
    %p47 = scmp.ne.s32.totalorder %s36, %s39
    %p48 = scmp.eq.s32.totalorder %s17, 1
    %p49 = por %p47, %p48
    %p50 = scmp.ne.s32.totalorder %s39, %s40
    %p51 = scmp.eq.s32.totalorder %s17, 0
    %p52 = por %p50, %p51
    %p53 = scmp.ne.s32.totalorder %s39, %s40
    %p54 = scmp.eq.s32.totalorder %s18, 1
    %p55 = por %p53, %p54
    %p57 = scmp.ne.s32.totalorder %s40, %s56
    %p58 = scmp.eq.s32.totalorder %s18, 0
    %p59 = por %p57, %p58
    %s61 = sadd.s32 %s60, 1
    %p64 = scmp.eq.s32.totalorder %s12, 1
    %p65 = scmp.ne.s32.totalorder %s60, %s62
    %p66 = scmp.eq.s32.totalorder %s12, 0
    %p67 = por %p65, %p66
    %p68 = scmp.ne.s32.totalorder %s60, %s62
    %p69 = scmp.eq.s32.totalorder %s17, 1
    %p70 = por %p68, %p69
    %p71 = scmp.ne.s32.totalorder %s62, %s63
    %p72 = scmp.eq.s32.totalorder %s17, 0
    %p73 = por %p71, %p72
    %p74 = scmp.ne.s32.totalorder %s62, %s63
    %p75 = scmp.eq.s32.totalorder %s18, 1
    %p76 = por %p74, %p75
    %p78 = scmp.ne.s32.totalorder %s63, %s77
    %p79 = scmp.eq.s32.totalorder %s18, 0
    %p80 = por %p78, %p79
    %s82 = sadd.s32 %s81, 1
    %p85 = scmp.eq.s32.totalorder %s12, 1
    %p86 = scmp.ne.s32.totalorder %s81, %s83
    %p87 = scmp.eq.s32.totalorder %s12, 0
    %p88 = por %p86, %p87
    %p89 = scmp.ne.s32.totalorder %s81, %s83
    %p90 = scmp.eq.s32.totalorder %s17, 1
    %p91 = por %p89, %p90
    %p92 = scmp.ne.s32.totalorder %s83, %s84
    %p93 = scmp.eq.s32.totalorder %s17, 0
    %p94 = por %p92, %p93
    %p95 = scmp.ne.s32.totalorder %s83, %s84
    %p96 = scmp.eq.s32.totalorder %s18, 1
    %p97 = por %p95, %p96
    %p99 = scmp.ne.s32.totalorder %s84, %s98
    %p100 = scmp.eq.s32.totalorder %s18, 0
    %p101 = por %p99, %p100
    %s103 = sadd.s32 %s102, 1
    %p106 = scmp.eq.s32.totalorder %s12, 1
    %p107 = scmp.ne.s32.totalorder %s102, %s104
    %p108 = scmp.eq.s32.totalorder %s12, 0
    %p109 = por %p107, %p108
    %p110 = scmp.ne.s32.totalorder %s102, %s104
    %p111 = scmp.eq.s32.totalorder %s17, 1
    %p112 = por %p110, %p111
    %p113 = scmp.ne.s32.totalorder %s104, %s105
    %p114 = scmp.eq.s32.totalorder %s17, 0
    %p115 = por %p113, %p114
    %p116 = scmp.ne.s32.totalorder %s104, %s105
    %p117 = scmp.eq.s32.totalorder %s18, 1
    %p118 = por %p116, %p117
    %p120 = scmp.ne.s32.totalorder %s105, %s119
    %p121 = scmp.eq.s32.totalorder %s18, 0
    %p122 = por %p120, %p121
    %s124 = sadd.s32 %s123, 1
    %p127 = scmp.eq.s32.totalorder %s12, 1
    %p128 = scmp.ne.s32.totalorder %s123, %s125
    %p129 = scmp.eq.s32.totalorder %s12, 0
    %p130 = por %p128, %p129
    %p131 = scmp.ne.s32.totalorder %s123, %s125
    %p132 = scmp.eq.s32.totalorder %s17, 1
    %p133 = por %p131, %p132
    %p134 = scmp.ne.s32.totalorder %s125, %s126
    %p135 = scmp.eq.s32.totalorder %s17, 0
    %p136 = por %p134, %p135
    %p137 = scmp.ne.s32.totalorder %s125, %s126
    %p138 = scmp.eq.s32.totalorder %s18, 1
    %p139 = por %p137, %p138
    %p141 = scmp.ne.s32.totalorder %s126, %s140
    %p142 = scmp.eq.s32.totalorder %s18, 0
    %p143 = por %p141, %p142
    %s144 = ssub.s32 %s19, %s31
    %s145 = ssub.s32 %s20, %s27
    %s146 = sor.u32 %s144, %s145
    %p147 = scmp.eq.s32.totalorder %s146, 0
    %s149 = sadd.s32 %s148, 1
    %s150 = scalar_select %p147, %s148, %s149
    %p153 = pneg %p147
    %p154 = scmp.eq.s32.totalorder %s12, 1
    %p155 = por %p153, %p154
    %p156 = scmp.ne.s32.totalorder %s148, %s151
    %p157 = scmp.eq.s32.totalorder %s12, 0
    %p158 = por %p156, %p157
    %p159 = scmp.ne.s32.totalorder %s148, %s151
    %p160 = scmp.eq.s32.totalorder %s17, 1
    %p161 = por %p159, %p160
    %p162 = scmp.ne.s32.totalorder %s151, %s152
    %p163 = scmp.eq.s32.totalorder %s17, 0
    %p164 = por %p162, %p163
    %p165 = scmp.ne.s32.totalorder %s151, %s152
    %p166 = scmp.eq.s32.totalorder %s18, 1
    %p167 = por %p165, %p166
    %p169 = scmp.ne.s32.totalorder %s152, %s168
    %p170 = scmp.eq.s32.totalorder %s18, 0
    %p171 = por %p169, %p170
    %p172 = scmp.le.s32.totalorder 1, %s12
    %p173 = scmp.lt.s32.totalorder %s12, 3
    %p174 = pnand %p172, %p173
    %p175 = pneg %p174
    // Predicated region
    $region9: #{_lambda_.16} parent=5 // pred_check
      _
    $region10: #{_lambda_.16} parent=5 // pred_check_branch
      %177 = sbr.rel (%p174) target = $region12
    $region11: #{_lambda_.16} parent=5 // pred_region
      %s178 = ssub.s32 %s12, 1
      // Predicated region
      $region13: #{_lambda_.16} parent=11 // pred_check
        %p179 = pneg %p73
      $region14: #{_lambda_.16} parent=11 // pred_check_branch
        %181 = sbr.rel (%p179) target = $region16
      $region15: #{_lambda_.16} parent=11 // pred_region
        _
      $region16: #{_lambda_.16} parent=11 // pred_fallthru
        _
      // Predicated region
      $region17: #{_lambda_.16} parent=11 // pred_check
        %p182 = pneg %p94
      $region18: #{_lambda_.16} parent=11 // pred_check_branch
        %184 = sbr.rel (%p182) target = $region20
      $region19: #{_lambda_.16} parent=11 // pred_region
        _
      $region20: #{_lambda_.16} parent=11 // pred_fallthru
        _
      // Predicated region
      $region21: #{_lambda_.16} parent=11 // pred_check
        %p185 = pneg %p115
      $region22: #{_lambda_.16} parent=11 // pred_check_branch
        %187 = sbr.rel (%p185) target = $region24
      $region23: #{_lambda_.16} parent=11 // pred_region
        _
      $region24: #{_lambda_.16} parent=11 // pred_fallthru
        _
      // Predicated region
      $region25: #{_lambda_.16} parent=11 // pred_check
        %p188 = pneg %p136
      $region26: #{_lambda_.16} parent=11 // pred_check_branch
        %190 = sbr.rel (%p188) target = $region28
      $region27: #{_lambda_.16} parent=11 // pred_region
        _
      $region28: #{_lambda_.16} parent=11 // pred_fallthru
        _
    $region12: #{_lambda_.16} parent=5 // pred_fallthru
      _
    %p191 = scmp.lt.s32.totalorder %s12, 2
    // Predicated region
    $region29: #{_lambda_.16} parent=5 // pred_check
      %p192 = pneg %p191
    $region30: #{_lambda_.16} parent=5 // pred_check_branch
      %194 = sbr.rel (%p192) target = $region32
    $region31: #{_lambda_.16} parent=5 // pred_region
      // Predicated region
      $region33: #{_lambda_.16} parent=31 // pred_check
        %p195 = pneg %p46
      $region34: #{_lambda_.16} parent=31 // pred_check_branch
        %197 = sbr.rel (%p195) target = $region36
      $region35: #{_lambda_.16} parent=31 // pred_region
        %p198 = scmp.lt.s32.totalorder %s19, 1
        %s199 = scalar_select %p198, %s19, 1
        %p200 = scmp.lt.s32.totalorder %s20, 0
        %s201 = scalar_select %p200, %s20, 0
        %s202 = smul.addr %s201, 3
        %s203 = smul.addr %s199, 3
        %s204 = sadd.s32 %s202, %s203
        %s205 = smul.addr %s204, 2
        %s206 = scalar_lea.vmem %s0, %s205
      $region36: #{_lambda_.16} parent=31 // pred_fallthru
        _
    $region32: #{_lambda_.16} parent=5 // pred_fallthru
      _
    %p207 = scmp.le.s32.totalorder 1, %s12
    %p208 = scmp.lt.s32.totalorder %s12, 3
    %p209 = pnand %p207, %p208
    %p210 = pneg %p209
    // Predicated region
    $region37: #{_lambda_.16} parent=5 // pred_check
      _
    $region38: #{_lambda_.16} parent=5 // pred_check_branch
      %212 = sbr.rel (%p209) target = $region40
    $region39: #{_lambda_.16} parent=5 // pred_region
      %s213 = ssub.s32 %s12, 1
      %p214 = scmp.lt.s32.totalorder %s21, 1
      %s215 = scalar_select %p214, %s21, 1
      %p216 = scmp.lt.s32.totalorder %s22, 0
      %s217 = scalar_select %p216, %s22, 0
      %s218 = smul.addr %s217, 3
      %s219 = smul.addr %s215, 3
      %s220 = sadd.s32 %s218, %s219
      %s221 = smul.addr %s220, 2
      %s222 = scalar_lea.vmem %s0, %s221
      %p223 = pneg %p52
      %p224 = pneg %p49
      %p225 = pneg %p73
      %p226 = pneg %p70
      %p227 = pneg %p94
      %p228 = pneg %p91
      %p229 = pneg %p115
      %p230 = pneg %p112
      %p231 = pneg %p136
      %p232 = pneg %p133
      %p233 = pneg %p164
      %p234 = pneg %p161
      %p235 = scmp.lt.s32.totalorder %s21, 1
      %s236 = scalar_select %p235, %s21, 1
      %p237 = scmp.lt.s32.totalorder %s22, 0
      %s238 = scalar_select %p237, %s22, 0
      %s239 = sadd.s32 %s238, %s236
      %s240 = smul.addr %s239, 4
      %s241 = scalar_lea.vmem %s5, %s240
      %p242 = scmp.lt.s32.totalorder %s21, 1
      %s243 = scalar_select %p242, %s21, 1
      %p244 = scmp.lt.s32.totalorder %s22, 0
      %s245 = scalar_select %p244, %s22, 0
      %s246 = smul.addr %s245, 3
      %s247 = smul.addr %s243, 3
      %s248 = sadd.s32 %s246, %s247
      %s249 = smul.addr %s248, 2
      %s250 = scalar_lea.vmem %s0, %s249
      %p251 = scmp.lt.s32.totalorder %s21, 1
      %s252 = scalar_select %p251, %s21, 1
      %p253 = scmp.lt.s32.totalorder %s22, 0
      %s254 = scalar_select %p253, %s22, 0
      %s255 = sadd.s32 %s254, %s252
      %s256 = smul.addr %s255, 4
      %s257 = scalar_lea.vmem %s5, %s256
      %v259 = vld [vmem:[%s250] sm:$0x3f]
      %v260 = vld [vmem:[%s1] sm:$0xf]
      %v261 = vld [vmem:[%s1 + $0x4] sm:$0xf]
      %v262 = vld [vmem:[%s1 + $0x8] sm:$0xf]
      %v263 = vld [vmem:[%s1 + $0xc] sm:$0xf]
      %v264 = vld [vmem:[%s1 + $0x10] sm:$0xf]
      %v265 = vld [vmem:[%s1 + $0x14] sm:$0xf]
      %v266 = vld [vmem:[%s1 + $0x18] sm:$0xf]
      %v267 = vld [vmem:[%s1 + $0x1c] sm:$0xf]
      %v268 = vld [vmem:[%s1 + $0x20] sm:$0xf]
      %v269 = vld [vmem:[%s1 + $0x24] sm:$0xf]
      %v270 = vld [vmem:[%s1 + $0x28] sm:$0xf]
      %v271 = vld [vmem:[%s1 + $0x2c] sm:$0xf]
      %v272 = vld [vmem:[%s1 + $0x30] sm:$0xf]
      %v273 = vld [vmem:[%s1 + $0x34] sm:$0xf]
      %v274 = vld [vmem:[%s1 + $0x38] sm:$0xf]
      %v275 = vld [vmem:[%s1 + $0x3c] sm:$0xf]
      %v276 = vld [vmem:[%s1 + $0x40] sm:$0xf]
      %v277 = vld [vmem:[%s1 + $0x44] sm:$0xf]
      %v278 = vld [vmem:[%s1 + $0x48] sm:$0xf]
      %v279 = vld [vmem:[%s1 + $0x4c] sm:$0xf]
      %v280 = vld [vmem:[%s1 + $0x50] sm:$0xf]
      %v281 = vld [vmem:[%s1 + $0x54] sm:$0xf]
      %v282 = vld [vmem:[%s1 + $0x58] sm:$0xf]
      %v283 = vld [vmem:[%s1 + $0x5c] sm:$0xf]
      %v284 = vld [vmem:[%s1 + $0x60] sm:$0xf]
      %v285 = vld [vmem:[%s1 + $0x64] sm:$0xf]
      %v286 = vld [vmem:[%s1 + $0x68] sm:$0xf]
      %v287 = vld [vmem:[%s1 + $0x6c] sm:$0xf]
      %v288 = vld [vmem:[%s1 + $0x70] sm:$0xf]
      %v289 = vld [vmem:[%s1 + $0x74] sm:$0xf]
      %v290 = vld [vmem:[%s1 + $0x78] sm:$0xf]
      %v291 = vld [vmem:[%s1 + $0x7c] sm:$0xf]
      %v292 = vld [vmem:[%s1 + $0x80] sm:$0xf]
      %v293 = vld [vmem:[%s1 + $0x84] sm:$0xf]
      %v294 = vld [vmem:[%s1 + $0x88] sm:$0xf]
      %v295 = vld [vmem:[%s1 + $0x8c] sm:$0xf]
      %v297 = vcombine.high %v259, %v259
      %v299 = vunpack.c.l.s4 1983009808
      %v300 = vunpack.c.0.s8 %v299
      %v301 = vlaneseq
      %v302 = vshrl.u32 %v301, 7
      %v303 = vsub.s32 %v300, %v302
      %v304 = vrot.slane %v259, %v303
      %v306 = vunpack.c.l.s4 1983009808
      %v307 = vunpack.c.0.s8 %v306
      %v308 = vlaneseq
      %v309 = vshrl.u32 %v308, 7
      %v310 = vsub.s32 %v307, %v309
      %v311 = vrot.slane %v297, %v310
      %v312 = vcombine.high %v304, %v304
      %v351 = vunpack.c.l.b16 %v260
      %v352 = vunpack.c.l.b16 %v261
      %v353 = vunpack.c.l.b16 %v262
      %v354 = vunpack.c.l.b16 %v263
      %v355 = vunpack.c.l.b16 %v264
      %v356 = vunpack.c.l.b16 %v265
      %v357 = vunpack.c.l.b16 %v266
      %v358 = vunpack.c.l.b16 %v267
      %v359 = vunpack.c.l.b16 %v268
      %v360 = vunpack.c.l.b16 %v269
      %v361 = vunpack.c.l.b16 %v270
      %v362 = vunpack.c.l.b16 %v271
      %v363 = vunpack.c.l.b16 %v272
      %v364 = vunpack.c.l.b16 %v273
      %v365 = vunpack.c.l.b16 %v274
      %v366 = vunpack.c.l.b16 %v275
      %v367 = vunpack.c.l.b16 %v276
      %v368 = vunpack.c.l.b16 %v277
      %v369 = vunpack.c.l.b16 %v278
      %v370 = vunpack.c.l.b16 %v279
      %v371 = vunpack.c.l.b16 %v280
      %v372 = vunpack.c.l.b16 %v281
      %v373 = vunpack.c.l.b16 %v282
      %v374 = vunpack.c.l.b16 %v283
      %v375 = vunpack.c.l.b16 %v284
      %v376 = vunpack.c.l.b16 %v285
      %v377 = vunpack.c.l.b16 %v286
      %v378 = vunpack.c.l.b16 %v287
      %v379 = vunpack.c.l.b16 %v288
      %v380 = vunpack.c.l.b16 %v289
      %v381 = vunpack.c.l.b16 %v290
      %v382 = vunpack.c.l.b16 %v291
      %v383 = vunpack.c.l.b16 %v292
      %v384 = vunpack.c.l.b16 %v293
      %v385 = vunpack.c.l.b16 %v294
      %v386 = vunpack.c.l.b16 %v295
      %v387 = vpack.c.b16 %v352, %v351
      %v388 = vpack.c.b16 %v354, %v353
      %v389 = vpack.c.b16 %v356, %v355
      %v390 = vpack.c.b16 %v358, %v357
      %v391 = vpack.c.b16 %v360, %v359
      %v392 = vpack.c.b16 %v362, %v361
      %v393 = vpack.c.b16 %v364, %v363
      %v394 = vpack.c.b16 %v366, %v365
      %v395 = vpack.c.b16 %v368, %v367
      %v396 = vpack.c.b16 %v370, %v369
      %v397 = vpack.c.b16 %v372, %v371
      %v398 = vpack.c.b16 %v374, %v373
      %v399 = vpack.c.b16 %v376, %v375
      %v400 = vpack.c.b16 %v378, %v377
      %v401 = vpack.c.b16 %v380, %v379
      %v402 = vpack.c.b16 %v382, %v381
      %v403 = vpack.c.b16 %v384, %v383
      %v404 = vpack.c.b16 %v386, %v385
      %vm423 = vcmask 261120
      %v425 = vsel %vm423, %v311, 0
      %427 = vmatprep.subr.bf16.mxu0 0
      %428 = vmatpush1.bf16.msra.mxu0 %v387
      %429 = vmatprep.subr.bf16.mxu0 0
      %430 = vmatpush1.bf16.msra.mxu0 %v388
      %431 = vmatprep.subr.bf16.mxu0 0
      %432 = vmatpush1.bf16.msra.mxu0 %v389
      %433 = vmatprep.subr.bf16.mxu0 0
      %434 = vmatpush1.bf16.msra.mxu0 %v390
      %435 = vmatprep.subr.bf16.mxu0 0
      %436 = vmatpush1.bf16.msra.mxu0 %v391
      %437 = vmatprep.subr.bf16.mxu0 0
      %438 = vmatpush1.bf16.msra.mxu0 %v392
      %439 = vmatprep.subr.bf16.mxu0 0
      %440 = vmatpush1.bf16.msra.mxu0 %v393
      %441 = vmatprep.subr.bf16.mxu0 0
      %442 = vmatpush1.bf16.msra.mxu0 %v394
      %443 = vmatprep.subr.bf16.mxu0 0
      %444 = vmatpush1.bf16.msra.mxu0 %v395
      %445 = vmatprep.subr.bf16.mxu0 0
      %446 = vmatpush1.bf16.msra.mxu0 %v396
      %447 = vmatprep.subr.bf16.mxu0 0
      %448 = vmatpush1.bf16.msra.mxu0 %v397
      %449 = vmatprep.subr.bf16.mxu0 0
      %450 = vmatpush1.bf16.msra.mxu0 %v398
      %451 = vmatprep.subr.bf16.mxu0 0
      %452 = vmatpush1.bf16.msra.mxu0 %v399
      %453 = vmatprep.subr.bf16.mxu0 0
      %454 = vmatpush1.bf16.msra.mxu0 %v400
      %455 = vmatprep.subr.bf16.mxu0 0
      %456 = vmatpush1.bf16.msra.mxu0 %v401
      %457 = vmatprep.subr.bf16.mxu0 0
      %458 = vmatpush1.bf16.msra.mxu0 %v402
      %459 = vmatprep.mubr.bf16.mxu0 %v312
      %460 = vmatmul.mubr.bf16.gmra.mrb[0].mxu0 %v304
      %v461 = vpop.f32.mrb[0].mxu0
      %v462 = vadd.f32 0.0, %v461
      %v463 = vpop.f32.mrb[0].mxu0
      %v464 = vpop.f32.mrb[0].mxu0
      %v465 = vpop.f32.mrb[0].mxu0
      %466 = vdwg.mxu0
      %467 = vmatprep.subr.bf16.mxu0 0
      %468 = vmatpush1.bf16.msra.mxu0 %v403
      %469 = vmatprep.subr.bf16.mxu0 0
      %470 = vmatpush1.bf16.msra.mxu0 %v404
      %471 = vmatprep.subr.bf16.mxu0 0
      %472 = vmatpush1.bf16.msra.mxu0 0
      %473 = vmatprep.subr.bf16.mxu0 0
      %474 = vmatpush1.bf16.msra.mxu0 0
      %475 = vmatprep.subr.bf16.mxu0 0
      %476 = vmatpush1.bf16.msra.mxu0 0
      %477 = vmatprep.subr.bf16.mxu0 0
      %478 = vmatpush1.bf16.msra.mxu0 0
      %479 = vmatprep.subr.bf16.mxu0 0
      %480 = vmatpush1.bf16.msra.mxu0 0
      %481 = vmatprep.subr.bf16.mxu0 0
      %482 = vmatpush1.bf16.msra.mxu0 0
      %483 = vmatprep.subr.bf16.mxu0 0
      %484 = vmatpush1.bf16.msra.mxu0 0
      %485 = vmatprep.subr.bf16.mxu0 0
      %486 = vmatpush1.bf16.msra.mxu0 0
      %487 = vmatprep.subr.bf16.mxu0 0
      %488 = vmatpush1.bf16.msra.mxu0 0
      %489 = vmatprep.subr.bf16.mxu0 0
      %490 = vmatpush1.bf16.msra.mxu0 0
      %491 = vmatprep.subr.bf16.mxu0 0
      %492 = vmatpush1.bf16.msra.mxu0 0
      %493 = vmatprep.subr.bf16.mxu0 0
      %494 = vmatpush1.bf16.msra.mxu0 0
      %495 = vmatprep.subr.bf16.mxu0 0
      %496 = vmatpush1.bf16.msra.mxu0 0
      %497 = vmatprep.subr.bf16.mxu0 0
      %498 = vmatpush1.bf16.msra.mxu0 0
      %499 = vmatprep.mubr.bf16.mxu0 0
      %500 = vmatmul.mubr.bf16.gmra.mrb[0].mxu0 %v425
      %v501 = vpop.f32.mrb[0].mxu0
      %v502 = vadd.f32 %v462, %v501
      %v503 = vpop.f32.mrb[0].mxu0
      %v504 = vpop.f32.mrb[0].mxu0
      %v505 = vpop.f32.mrb[0].mxu0
      %506 = vdwg.mxu0
      %v507 = vld [vmem:[%s2] sm:$0x1]
      %v509 = vlaneseq
      %v510 = vshrl.u32 %v509, 7
      %v511 = vsub.s32 0, %v510
      %v512 = vrot.slane %v507, %v511
      %v514 = vmul.f32 %v502, %v512
      %v515 = vld [vmem:[%s3] sm:$0x1]
      %v517 = vlaneseq
      %v518 = vshrl.u32 %v517, 7
      %v519 = vsub.s32 0, %v518
      %v520 = vrot.slane %v515, %v519
      %v522 = vadd.f32 %v514, %v520
      %s523 = sld [smem:[#allocation2]]
      %vm524 = vcmp.gt.f32.partialorder %v522, 0.0
      %v525 = vstv %s523
      %v526 = vmul.f32 %v525, %v522
      %v527 = vsel %vm524, %v522, %v526
      %vm528 = vcmask 519168
      %529 = vst.msk [vmem:[%s257] sm:$0xf] %vm528, %v527
      %p530 = scmp.lt.s32.totalorder %s21, 1
      %s531 = scalar_select %p530, %s21, 1
      %p532 = scmp.lt.s32.totalorder %s22, 0
      %s533 = scalar_select %p532, %s22, 0
      %s534 = sadd.s32 %s533, %s531
      %s535 = smul.addr %s534, 4
      %s536 = scalar_lea.vmem %s5, %s535
      // Predicated region
      $region41: #{_lambda_.16} parent=39 // pred_check
        %p537 = pneg %p161
      $region42: #{_lambda_.16} parent=39 // pred_check_branch
        %539 = sbr.rel (%p537) target = $region44
      $region43: #{_lambda_.16} parent=39 // pred_region
        _
      $region44: #{_lambda_.16} parent=39 // pred_fallthru
        _
    $region40: #{_lambda_.16} parent=5 // pred_fallthru
      _
    %p540 = scmp.le.s32.totalorder 2, %s12
    // Predicated region
    $region45: #{_lambda_.16} parent=5 // pred_check
      %p541 = pneg %p540
    $region46: #{_lambda_.16} parent=5 // pred_check_branch
      %543 = sbr.rel (%p541) target = $region48
    $region47: #{_lambda_.16} parent=5 // pred_region
      %s544 = ssub.s32 %s12, 2
      // Predicated region
      $region49: #{_lambda_.16} parent=47 // pred_check
        %p545 = pneg %p167
      $region50: #{_lambda_.16} parent=47 // pred_check_branch
        %547 = sbr.rel (%p545) target = $region52
      $region51: #{_lambda_.16} parent=47 // pred_region
        %p548 = scmp.lt.s32.totalorder %s23, 1
        %s549 = scalar_select %p548, %s23, 1
        %p550 = scmp.lt.s32.totalorder %s24, 0
        %s551 = scalar_select %p550, %s24, 0
        %s552 = sadd.s32 %s551, %s549
        %s553 = smul.addr %s552, 4
        %s554 = scalar_lea.vmem %s5, %s553
      $region52: #{_lambda_.16} parent=47 // pred_fallthru
        _
    $region48: #{_lambda_.16} parent=5 // pred_fallthru
      _
  $region6: #{_lambda_.16} parent=0 // loop_footer
    %s16 = sadd.s32 1, %s12
  $region7: #{_lambda_.16} parent=0 // loop_footer_branch
    %11 = sbr.rel target = $region3
  $region8: #{_lambda_.16} parent=0 // loop_exit
    _

// kernel: _lambda_.17
$region0: #{_lambda_.17}
  #allocation0 [shape = 'u32[]', space=smem, size = 0x4, offset = 0x4, fixed_abs, tag = 'smem constant byte address 0x4 - core index']
  #allocation1 [shape = 'u32[144,128]{1,0:T(1,128)}', space=vmem, size = 0x12000, scoped, tag = 'internal scratch']
  #allocation2 [shape = 'f32[1]{0:T(128)S(6)}', space=smem, size = 0x200, scoped, tag = 'scoped memory for _lambda_.17']
  %s0 = inlined_call_operand.vmem [shape: bf16[2,4,576], index: 0, kind: input, shape index: {}]
  %s1 = inlined_call_operand.vmem [shape: bf16[576,64], index: 1, kind: input, shape index: {}]
  %s2 = inlined_call_operand.vmem [shape: f32[1,64], index: 2, kind: input, shape index: {}]
  %s3 = inlined_call_operand.vmem [shape: f32[1,64], index: 3, kind: input, shape index: {}]
  %s4 = inlined_call_operand.<no memory space> [shape: f32[1], index: 4, kind: input, shape index: {}]
  %s5 = inlined_call_operand.vmem [shape: f32[2,4,64], index: 5, kind: output, shape index: {}]
  %s6 = sld [smem:[#allocation0]]
  $region53: #{_lambda_.17} parent=0
    _
  %s8 = ssub.s32 1, %s6
  %s9 = scalar_select 0, %s8, %s6
  %10 = sst [smem:[#allocation2]] %s4
  loop: start=0, step=1, limit=4
  $region2: #{_lambda_.17} parent=0 // loop_pre_header
    _
  $region3: #{_lambda_.17} parent=0 // loop_header
    %s12 = sphi 0, %s16
    %p13 = scmp.ge.s32.totalorder %s12, 4
    %s19 = sphi 0, %s31
    %s20 = sphi 0, %s27
    %s21 = sphi 0, %s19
    %s22 = sphi 0, %s20
    %s23 = sphi 0, %s21
    %s24 = sphi 0, %s22
    %s36 = sphi 0, %s38
    %s39 = sphi 0, %s36
    %s40 = sphi 0, %s39
    %s56 = sphi 0, %s40
    %s60 = sphi 0, %s60
    %s62 = sphi 0, %s60
    %s63 = sphi 0, %s62
    %s77 = sphi 0, %s63
    %s81 = sphi 0, %s81
    %s83 = sphi 0, %s81
    %s84 = sphi 0, %s83
    %s98 = sphi 0, %s84
    %s102 = sphi 0, %s102
    %s104 = sphi 0, %s102
    %s105 = sphi 0, %s104
    %s119 = sphi 0, %s105
    %s123 = sphi 0, %s123
    %s125 = sphi 0, %s123
    %s126 = sphi 0, %s125
    %s140 = sphi 0, %s126
    %s148 = sphi 0, %s150
    %s151 = sphi 0, %s148
    %s152 = sphi 0, %s151
    %s168 = sphi 0, %s152
  $region4: #{_lambda_.17} parent=0 // loop_header_branch
    %15 = sbr.rel (%p13) target = $region8
  $region5: #{_lambda_.17} parent=0 // loop_body
    %s17 = ssub.s32 %s12, 1
    %s18 = ssub.s32 %s12, 2
    %s25 = sadd.s32 1, %s20
    %p26 = scmp.ge.s32.totalorder %s25, 1
    %s27 = scalar_select %p26, 0, %s25
    %s28 = sadd.s32 1, %s19
    %s29 = scalar_select %p26, %s28, %s19
    %p30 = scmp.ge.s32.totalorder %s29, 2
    %s31 = scalar_select %p30, 0, %s29
    %s32 = ssub.s32 %s19, %s31
    %s33 = ssub.s32 %s20, %s27
    %s34 = sor.u32 %s32, %s33
    %p35 = scmp.eq.s32.totalorder %s34, 0
    %s37 = sadd.s32 %s36, 1
    %s38 = scalar_select %p35, %s36, %s37
    %p41 = pneg %p35
    %p42 = scmp.eq.s32.totalorder %s12, 1
    %p43 = por %p41, %p42
    %p44 = scmp.ne.s32.totalorder %s36, %s39
    %p45 = scmp.eq.s32.totalorder %s12, 0
    %p46 = por %p44, %p45
    %p47 = scmp.ne.s32.totalorder %s36, %s39
    %p48 = scmp.eq.s32.totalorder %s17, 1
    %p49 = por %p47, %p48
    %p50 = scmp.ne.s32.totalorder %s39, %s40
    %p51 = scmp.eq.s32.totalorder %s17, 0
    %p52 = por %p50, %p51
    %p53 = scmp.ne.s32.totalorder %s39, %s40
    %p54 = scmp.eq.s32.totalorder %s18, 1
    %p55 = por %p53, %p54
    %p57 = scmp.ne.s32.totalorder %s40, %s56
    %p58 = scmp.eq.s32.totalorder %s18, 0
    %p59 = por %p57, %p58
    %s61 = sadd.s32 %s60, 1
    %p64 = scmp.eq.s32.totalorder %s12, 1
    %p65 = scmp.ne.s32.totalorder %s60, %s62
    %p66 = scmp.eq.s32.totalorder %s12, 0
    %p67 = por %p65, %p66
    %p68 = scmp.ne.s32.totalorder %s60, %s62
    %p69 = scmp.eq.s32.totalorder %s17, 1
    %p70 = por %p68, %p69
    %p71 = scmp.ne.s32.totalorder %s62, %s63
    %p72 = scmp.eq.s32.totalorder %s17, 0
    %p73 = por %p71, %p72
    %p74 = scmp.ne.s32.totalorder %s62, %s63
    %p75 = scmp.eq.s32.totalorder %s18, 1
    %p76 = por %p74, %p75
    %p78 = scmp.ne.s32.totalorder %s63, %s77
    %p79 = scmp.eq.s32.totalorder %s18, 0
    %p80 = por %p78, %p79
    %s82 = sadd.s32 %s81, 1
    %p85 = scmp.eq.s32.totalorder %s12, 1
    %p86 = scmp.ne.s32.totalorder %s81, %s83
    %p87 = scmp.eq.s32.totalorder %s12, 0
    %p88 = por %p86, %p87
    %p89 = scmp.ne.s32.totalorder %s81, %s83
    %p90 = scmp.eq.s32.totalorder %s17, 1
    %p91 = por %p89, %p90
    %p92 = scmp.ne.s32.totalorder %s83, %s84
    %p93 = scmp.eq.s32.totalorder %s17, 0
    %p94 = por %p92, %p93
    %p95 = scmp.ne.s32.totalorder %s83, %s84
    %p96 = scmp.eq.s32.totalorder %s18, 1
    %p97 = por %p95, %p96
    %p99 = scmp.ne.s32.totalorder %s84, %s98
    %p100 = scmp.eq.s32.totalorder %s18, 0
    %p101 = por %p99, %p100
    %s103 = sadd.s32 %s102, 1
    %p106 = scmp.eq.s32.totalorder %s12, 1
    %p107 = scmp.ne.s32.totalorder %s102, %s104
    %p108 = scmp.eq.s32.totalorder %s12, 0
    %p109 = por %p107, %p108
    %p110 = scmp.ne.s32.totalorder %s102, %s104
    %p111 = scmp.eq.s32.totalorder %s17, 1
    %p112 = por %p110, %p111
    %p113 = scmp.ne.s32.totalorder %s104, %s105
    %p114 = scmp.eq.s32.totalorder %s17, 0
    %p115 = por %p113, %p114
    %p116 = scmp.ne.s32.totalorder %s104, %s105
    %p117 = scmp.eq.s32.totalorder %s18, 1
    %p118 = por %p116, %p117
    %p120 = scmp.ne.s32.totalorder %s105, %s119
    %p121 = scmp.eq.s32.totalorder %s18, 0
    %p122 = por %p120, %p121
    %s124 = sadd.s32 %s123, 1
    %p127 = scmp.eq.s32.totalorder %s12, 1
    %p128 = scmp.ne.s32.totalorder %s123, %s125
    %p129 = scmp.eq.s32.totalorder %s12, 0
    %p130 = por %p128, %p129
    %p131 = scmp.ne.s32.totalorder %s123, %s125
    %p132 = scmp.eq.s32.totalorder %s17, 1
    %p133 = por %p131, %p132
    %p134 = scmp.ne.s32.totalorder %s125, %s126
    %p135 = scmp.eq.s32.totalorder %s17, 0
    %p136 = por %p134, %p135
    %p137 = scmp.ne.s32.totalorder %s125, %s126
    %p138 = scmp.eq.s32.totalorder %s18, 1
    %p139 = por %p137, %p138
    %p141 = scmp.ne.s32.totalorder %s126, %s140
    %p142 = scmp.eq.s32.totalorder %s18, 0
    %p143 = por %p141, %p142
    %s144 = ssub.s32 %s19, %s31
    %s145 = ssub.s32 %s20, %s27
    %s146 = sor.u32 %s144, %s145
    %p147 = scmp.eq.s32.totalorder %s146, 0
    %s149 = sadd.s32 %s148, 1
    %s150 = scalar_select %p147, %s148, %s149
    %p153 = pneg %p147
    %p154 = scmp.eq.s32.totalorder %s12, 1
    %p155 = por %p153, %p154
    %p156 = scmp.ne.s32.totalorder %s148, %s151
    %p157 = scmp.eq.s32.totalorder %s12, 0
    %p158 = por %p156, %p157
    %p159 = scmp.ne.s32.totalorder %s148, %s151
    %p160 = scmp.eq.s32.totalorder %s17, 1
    %p161 = por %p159, %p160
    %p162 = scmp.ne.s32.totalorder %s151, %s152
    %p163 = scmp.eq.s32.totalorder %s17, 0
    %p164 = por %p162, %p163
    %p165 = scmp.ne.s32.totalorder %s151, %s152
    %p166 = scmp.eq.s32.totalorder %s18, 1
    %p167 = por %p165, %p166
    %p169 = scmp.ne.s32.totalorder %s152, %s168
    %p170 = scmp.eq.s32.totalorder %s18, 0
    %p171 = por %p169, %p170
    %p172 = scmp.le.s32.totalorder 1, %s12
    %p173 = scmp.lt.s32.totalorder %s12, 3
    %p174 = pnand %p172, %p173
    %p175 = pneg %p174
    // Predicated region
    $region9: #{_lambda_.17} parent=5 // pred_check
      _
    $region10: #{_lambda_.17} parent=5 // pred_check_branch
      %177 = sbr.rel (%p174) target = $region12
    $region11: #{_lambda_.17} parent=5 // pred_region
      %s178 = ssub.s32 %s12, 1
      // Predicated region
      $region13: #{_lambda_.17} parent=11 // pred_check
        %p179 = pneg %p73
      $region14: #{_lambda_.17} parent=11 // pred_check_branch
        %181 = sbr.rel (%p179) target = $region16
      $region15: #{_lambda_.17} parent=11 // pred_region
        _
      $region16: #{_lambda_.17} parent=11 // pred_fallthru
        _
      // Predicated region
      $region17: #{_lambda_.17} parent=11 // pred_check
        %p182 = pneg %p94
      $region18: #{_lambda_.17} parent=11 // pred_check_branch
        %184 = sbr.rel (%p182) target = $region20
      $region19: #{_lambda_.17} parent=11 // pred_region
        _
      $region20: #{_lambda_.17} parent=11 // pred_fallthru
        _
      // Predicated region
      $region21: #{_lambda_.17} parent=11 // pred_check
        %p185 = pneg %p115
      $region22: #{_lambda_.17} parent=11 // pred_check_branch
        %187 = sbr.rel (%p185) target = $region24
      $region23: #{_lambda_.17} parent=11 // pred_region
        _
      $region24: #{_lambda_.17} parent=11 // pred_fallthru
        _
      // Predicated region
      $region25: #{_lambda_.17} parent=11 // pred_check
        %p188 = pneg %p136
      $region26: #{_lambda_.17} parent=11 // pred_check_branch
        %190 = sbr.rel (%p188) target = $region28
      $region27: #{_lambda_.17} parent=11 // pred_region
        _
      $region28: #{_lambda_.17} parent=11 // pred_fallthru
        _
    $region12: #{_lambda_.17} parent=5 // pred_fallthru
      _
    %p191 = scmp.lt.s32.totalorder %s12, 2
    // Predicated region
    $region29: #{_lambda_.17} parent=5 // pred_check
      %p192 = pneg %p191
    $region30: #{_lambda_.17} parent=5 // pred_check_branch
      %194 = sbr.rel (%p192) target = $region32
    $region31: #{_lambda_.17} parent=5 // pred_region
      // Predicated region
      $region33: #{_lambda_.17} parent=31 // pred_check
        %p195 = pneg %p46
      $region34: #{_lambda_.17} parent=31 // pred_check_branch
        %197 = sbr.rel (%p195) target = $region36
      $region35: #{_lambda_.17} parent=31 // pred_region
        %p198 = scmp.lt.s32.totalorder %s19, 1
        %s199 = scalar_select %p198, %s19, 1
        %p200 = scmp.lt.s32.totalorder %s20, 0
        %s201 = scalar_select %p200, %s20, 0
        %s202 = smul.addr %s201, 5
        %s203 = smul.addr %s199, 5
        %s204 = sadd.s32 %s202, %s203
        %s205 = smul.addr %s204, 2
        %s206 = scalar_lea.vmem %s0, %s205
      $region36: #{_lambda_.17} parent=31 // pred_fallthru
        _
    $region32: #{_lambda_.17} parent=5 // pred_fallthru
      _
    %p207 = scmp.le.s32.totalorder 1, %s12
    %p208 = scmp.lt.s32.totalorder %s12, 3
    %p209 = pnand %p207, %p208
    %p210 = pneg %p209
    // Predicated region
    $region37: #{_lambda_.17} parent=5 // pred_check
      _
    $region38: #{_lambda_.17} parent=5 // pred_check_branch
      %212 = sbr.rel (%p209) target = $region40
    $region39: #{_lambda_.17} parent=5 // pred_region
      %s213 = ssub.s32 %s12, 1
      %p214 = scmp.lt.s32.totalorder %s21, 1
      %s215 = scalar_select %p214, %s21, 1
      %p216 = scmp.lt.s32.totalorder %s22, 0
      %s217 = scalar_select %p216, %s22, 0
      %s218 = smul.addr %s217, 5
      %s219 = smul.addr %s215, 5
      %s220 = sadd.s32 %s218, %s219
      %s221 = smul.addr %s220, 2
      %s222 = scalar_lea.vmem %s0, %s221
      %p223 = pneg %p52
      %p224 = pneg %p49
      %p225 = pneg %p73
      %p226 = pneg %p70
      %p227 = pneg %p94
      %p228 = pneg %p91
      %p229 = pneg %p115
      %p230 = pneg %p112
      %p231 = pneg %p136
      %p232 = pneg %p133
      %p233 = pneg %p164
      %p234 = pneg %p161
      %p235 = scmp.lt.s32.totalorder %s21, 1
      %s236 = scalar_select %p235, %s21, 1
      %p237 = scmp.lt.s32.totalorder %s22, 0
      %s238 = scalar_select %p237, %s22, 0
      %s239 = sadd.s32 %s238, %s236
      %s240 = smul.addr %s239, 4
      %s241 = scalar_lea.vmem %s5, %s240
      %p242 = scmp.lt.s32.totalorder %s21, 1
      %s243 = scalar_select %p242, %s21, 1
      %p244 = scmp.lt.s32.totalorder %s22, 0
      %s245 = scalar_select %p244, %s22, 0
      %s246 = smul.addr %s245, 5
      %s247 = smul.addr %s243, 5
      %s248 = sadd.s32 %s246, %s247
      %s249 = smul.addr %s248, 2
      %s250 = scalar_lea.vmem %s0, %s249
      %p251 = scmp.lt.s32.totalorder %s21, 1
      %s252 = scalar_select %p251, %s21, 1
      %p253 = scmp.lt.s32.totalorder %s22, 0
      %s254 = scalar_select %p253, %s22, 0
      %s255 = sadd.s32 %s254, %s252
      %s256 = smul.addr %s255, 4
      %s257 = scalar_lea.vmem %s5, %s256
      %v259 = vld [vmem:[%s250] sm:$0xff]
      %v260 = vld [vmem:[%s250 + $0x8] sm:$0x3]
      %v261 = vld [vmem:[%s1] sm:$0xf]
      %v262 = vld [vmem:[%s1 + $0x4] sm:$0xf]
      %v263 = vld [vmem:[%s1 + $0x8] sm:$0xf]
      %v264 = vld [vmem:[%s1 + $0xc] sm:$0xf]
      %v265 = vld [vmem:[%s1 + $0x10] sm:$0xf]
      %v266 = vld [vmem:[%s1 + $0x14] sm:$0xf]
      %v267 = vld [vmem:[%s1 + $0x18] sm:$0xf]
      %v268 = vld [vmem:[%s1 + $0x1c] sm:$0xf]
      %v269 = vld [vmem:[%s1 + $0x20] sm:$0xf]
      %v270 = vld [vmem:[%s1 + $0x24] sm:$0xf]
      %v271 = vld [vmem:[%s1 + $0x28] sm:$0xf]
      %v272 = vld [vmem:[%s1 + $0x2c] sm:$0xf]
      %v273 = vld [vmem:[%s1 + $0x30] sm:$0xf]
      %v274 = vld [vmem:[%s1 + $0x34] sm:$0xf]
      %v275 = vld [vmem:[%s1 + $0x38] sm:$0xf]
      %v276 = vld [vmem:[%s1 + $0x3c] sm:$0xf]
      %v277 = vld [vmem:[%s1 + $0x40] sm:$0xf]
      %v278 = vld [vmem:[%s1 + $0x44] sm:$0xf]
      %v279 = vld [vmem:[%s1 + $0x48] sm:$0xf]
      %v280 = vld [vmem:[%s1 + $0x4c] sm:$0xf]
      %v281 = vld [vmem:[%s1 + $0x50] sm:$0xf]
      %v282 = vld [vmem:[%s1 + $0x54] sm:$0xf]
      %v283 = vld [vmem:[%s1 + $0x58] sm:$0xf]
      %v284 = vld [vmem:[%s1 + $0x5c] sm:$0xf]
      %v285 = vld [vmem:[%s1 + $0x60] sm:$0xf]
      %v286 = vld [vmem:[%s1 + $0x64] sm:$0xf]
      %v287 = vld [vmem:[%s1 + $0x68] sm:$0xf]
      %v288 = vld [vmem:[%s1 + $0x6c] sm:$0xf]
      %v289 = vld [vmem:[%s1 + $0x70] sm:$0xf]
      %v290 = vld [vmem:[%s1 + $0x74] sm:$0xf]
      %v291 = vld [vmem:[%s1 + $0x78] sm:$0xf]
      %v292 = vld [vmem:[%s1 + $0x7c] sm:$0xf]
      %v293 = vld [vmem:[%s1 + $0x80] sm:$0xf]
      %v294 = vld [vmem:[%s1 + $0x84] sm:$0xf]
      %v295 = vld [vmem:[%s1 + $0x88] sm:$0xf]
      %v296 = vld [vmem:[%s1 + $0x8c] sm:$0xf]
      %v297 = vld [vmem:[%s1 + $0x90] sm:$0xf]
      %v298 = vld [vmem:[%s1 + $0x94] sm:$0xf]
      %v299 = vld [vmem:[%s1 + $0x98] sm:$0xf]
      %v300 = vld [vmem:[%s1 + $0x9c] sm:$0xf]
      %v301 = vld [vmem:[%s1 + $0xa0] sm:$0xf]
      %v302 = vld [vmem:[%s1 + $0xa4] sm:$0xf]
      %v303 = vld [vmem:[%s1 + $0xa8] sm:$0xf]
      %v304 = vld [vmem:[%s1 + $0xac] sm:$0xf]
      %v305 = vld [vmem:[%s1 + $0xb0] sm:$0xf]
      %v306 = vld [vmem:[%s1 + $0xb4] sm:$0xf]
      %v307 = vld [vmem:[%s1 + $0xb8] sm:$0xf]
      %v308 = vld [vmem:[%s1 + $0xbc] sm:$0xf]
      %v309 = vld [vmem:[%s1 + $0xc0] sm:$0xf]
      %v310 = vld [vmem:[%s1 + $0xc4] sm:$0xf]
      %v311 = vld [vmem:[%s1 + $0xc8] sm:$0xf]
      %v312 = vld [vmem:[%s1 + $0xcc] sm:$0xf]
      %v313 = vld [vmem:[%s1 + $0xd0] sm:$0xf]
      %v314 = vld [vmem:[%s1 + $0xd4] sm:$0xf]
      %v315 = vld [vmem:[%s1 + $0xd8] sm:$0xf]
      %v316 = vld [vmem:[%s1 + $0xdc] sm:$0xf]
      %v317 = vld [vmem:[%s1 + $0xe0] sm:$0xf]
      %v318 = vld [vmem:[%s1 + $0xe4] sm:$0xf]
      %v319 = vld [vmem:[%s1 + $0xe8] sm:$0xf]
      %v320 = vld [vmem:[%s1 + $0xec] sm:$0xf]
      %v321 = vld [vmem:[%s1 + $0xf0] sm:$0xf]
      %v322 = vld [vmem:[%s1 + $0xf4] sm:$0xf]
      %v323 = vld [vmem:[%s1 + $0xf8] sm:$0xf]
      %v324 = vld [vmem:[%s1 + $0xfc] sm:$0xf]
      %v325 = vld [vmem:[%s1 + $0x100] sm:$0xf]
      %v326 = vld [vmem:[%s1 + $0x104] sm:$0xf]
      %v327 = vld [vmem:[%s1 + $0x108] sm:$0xf]
      %v328 = vld [vmem:[%s1 + $0x10c] sm:$0xf]
      %v329 = vld [vmem:[%s1 + $0x110] sm:$0xf]
      %v330 = vld [vmem:[%s1 + $0x114] sm:$0xf]
      %v331 = vld [vmem:[%s1 + $0x118] sm:$0xf]
      %v332 = vld [vmem:[%s1 + $0x11c] sm:$0xf]
      %v335 = vcombine.high %v259, %v259
      %v337 = vunpack.c.l.s4 1983009808
      %v338 = vunpack.c.0.s8 %v337
      %v339 = vlaneseq
      %v340 = vshrl.u32 %v339, 7
      %v341 = vsub.s32 %v338, %v340
      %v342 = vrot.slane %v259, %v341
      %v344 = vunpack.c.l.s4 1983009808
      %v345 = vunpack.c.0.s8 %v344
      %v346 = vlaneseq
      %v347 = vshrl.u32 %v346, 7
      %v348 = vsub.s32 %v345, %v347
      %v349 = vrot.slane %v335, %v348
      %v350 = vcombine.high %v342, %v342
      %v351 = vcombine.high %v349, %v349
      %v353 = vunpack.c.l.s4 1983009808
      %v354 = vunpack.c.0.s8 %v353
      %v355 = vlaneseq
      %v356 = vshrl.u32 %v355, 7
      %v357 = vsub.s32 %v354, %v356
      %v358 = vrot.slane %v260, %v357
      %v435 = vunpack.c.l.b16 %v261
      %v436 = vunpack.c.l.b16 %v262
      %v437 = vunpack.c.l.b16 %v263
      %v438 = vunpack.c.l.b16 %v264
      %v439 = vunpack.c.l.b16 %v265
      %v440 = vunpack.c.l.b16 %v266
      %v441 = vunpack.c.l.b16 %v267
      %v442 = vunpack.c.l.b16 %v268
      %v443 = vunpack.c.l.b16 %v269
      %v444 = vunpack.c.l.b16 %v270
      %v445 = vunpack.c.l.b16 %v271
      %v446 = vunpack.c.l.b16 %v272
      %v447 = vunpack.c.l.b16 %v273
      %v448 = vunpack.c.l.b16 %v274
      %v449 = vunpack.c.l.b16 %v275
      %v450 = vunpack.c.l.b16 %v276
      %v451 = vunpack.c.l.b16 %v277
      %v452 = vunpack.c.l.b16 %v278
      %v453 = vunpack.c.l.b16 %v279
      %v454 = vunpack.c.l.b16 %v280
      %v455 = vunpack.c.l.b16 %v281
      %v456 = vunpack.c.l.b16 %v282
      %v457 = vunpack.c.l.b16 %v283
      %v458 = vunpack.c.l.b16 %v284
      %v459 = vunpack.c.l.b16 %v285
      %v460 = vunpack.c.l.b16 %v286
      %v461 = vunpack.c.l.b16 %v287
      %v462 = vunpack.c.l.b16 %v288
      %v463 = vunpack.c.l.b16 %v289
      %v464 = vunpack.c.l.b16 %v290
      %v465 = vunpack.c.l.b16 %v291
      %v466 = vunpack.c.l.b16 %v292
      %v467 = vunpack.c.l.b16 %v293
      %v468 = vunpack.c.l.b16 %v294
      %v469 = vunpack.c.l.b16 %v295
      %v470 = vunpack.c.l.b16 %v296
      %v471 = vunpack.c.l.b16 %v297
      %v472 = vunpack.c.l.b16 %v298
      %v473 = vunpack.c.l.b16 %v299
      %v474 = vunpack.c.l.b16 %v300
      %v475 = vunpack.c.l.b16 %v301
      %v476 = vunpack.c.l.b16 %v302
      %v477 = vunpack.c.l.b16 %v303
      %v478 = vunpack.c.l.b16 %v304
      %v479 = vunpack.c.l.b16 %v305
      %v480 = vunpack.c.l.b16 %v306
      %v481 = vunpack.c.l.b16 %v307
      %v482 = vunpack.c.l.b16 %v308
      %v483 = vunpack.c.l.b16 %v309
      %v484 = vunpack.c.l.b16 %v310
      %v485 = vunpack.c.l.b16 %v311
      %v486 = vunpack.c.l.b16 %v312
      %v487 = vunpack.c.l.b16 %v313
      %v488 = vunpack.c.l.b16 %v314
      %v489 = vunpack.c.l.b16 %v315
      %v490 = vunpack.c.l.b16 %v316
      %v491 = vunpack.c.l.b16 %v317
      %v492 = vunpack.c.l.b16 %v318
      %v493 = vunpack.c.l.b16 %v319
      %v494 = vunpack.c.l.b16 %v320
      %v495 = vunpack.c.l.b16 %v321
      %v496 = vunpack.c.l.b16 %v322
      %v497 = vunpack.c.l.b16 %v323
      %v498 = vunpack.c.l.b16 %v324
      %v499 = vunpack.c.l.b16 %v325
      %v500 = vunpack.c.l.b16 %v326
      %v501 = vunpack.c.l.b16 %v327
      %v502 = vunpack.c.l.b16 %v328
      %v503 = vunpack.c.l.b16 %v329
      %v504 = vunpack.c.l.b16 %v330
      %v505 = vunpack.c.l.b16 %v331
      %v506 = vunpack.c.l.b16 %v332
      %v507 = vpack.c.b16 %v436, %v435
      %v508 = vpack.c.b16 %v438, %v437
      %v509 = vpack.c.b16 %v440, %v439
      %v510 = vpack.c.b16 %v442, %v441
      %v511 = vpack.c.b16 %v444, %v443
      %v512 = vpack.c.b16 %v446, %v445
      %v513 = vpack.c.b16 %v448, %v447
      %v514 = vpack.c.b16 %v450, %v449
      %v515 = vpack.c.b16 %v452, %v451
      %v516 = vpack.c.b16 %v454, %v453
      %v517 = vpack.c.b16 %v456, %v455
      %v518 = vpack.c.b16 %v458, %v457
      %v519 = vpack.c.b16 %v460, %v459
      %v520 = vpack.c.b16 %v462, %v461
      %v521 = vpack.c.b16 %v464, %v463
      %v522 = vpack.c.b16 %v466, %v465
      %v523 = vpack.c.b16 %v468, %v467
      %v524 = vpack.c.b16 %v470, %v469
      %v525 = vpack.c.b16 %v472, %v471
      %v526 = vpack.c.b16 %v474, %v473
      %v527 = vpack.c.b16 %v476, %v475
      %v528 = vpack.c.b16 %v478, %v477
      %v529 = vpack.c.b16 %v480, %v479
      %v530 = vpack.c.b16 %v482, %v481
      %v531 = vpack.c.b16 %v484, %v483
      %v532 = vpack.c.b16 %v486, %v485
      %v533 = vpack.c.b16 %v488, %v487
      %v534 = vpack.c.b16 %v490, %v489
      %v535 = vpack.c.b16 %v492, %v491
      %v536 = vpack.c.b16 %v494, %v493
      %v537 = vpack.c.b16 %v496, %v495
      %v538 = vpack.c.b16 %v498, %v497
      %v539 = vpack.c.b16 %v500, %v499
      %v540 = vpack.c.b16 %v502, %v501
      %v541 = vpack.c.b16 %v504, %v503
      %v542 = vpack.c.b16 %v506, %v505
      %vm579 = vcmask 523264
      %v581 = vsel %vm579, %v358, 0
      %583 = vmatprep.subr.bf16.mxu0 0
      %584 = vmatpush1.bf16.msra.mxu0 %v507
      %585 = vmatprep.subr.bf16.mxu0 0
      %586 = vmatpush1.bf16.msra.mxu0 %v508
      %587 = vmatprep.subr.bf16.mxu0 0
      %588 = vmatpush1.bf16.msra.mxu0 %v509
      %589 = vmatprep.subr.bf16.mxu0 0
      %590 = vmatpush1.bf16.msra.mxu0 %v510
      %591 = vmatprep.subr.bf16.mxu0 0
      %592 = vmatpush1.bf16.msra.mxu0 %v511
      %593 = vmatprep.subr.bf16.mxu0 0
      %594 = vmatpush1.bf16.msra.mxu0 %v512
      %595 = vmatprep.subr.bf16.mxu0 0
      %596 = vmatpush1.bf16.msra.mxu0 %v513
      %597 = vmatprep.subr.bf16.mxu0 0
      %598 = vmatpush1.bf16.msra.mxu0 %v514
      %599 = vmatprep.subr.bf16.mxu0 0
      %600 = vmatpush1.bf16.msra.mxu0 %v515
      %601 = vmatprep.subr.bf16.mxu0 0
      %602 = vmatpush1.bf16.msra.mxu0 %v516
      %603 = vmatprep.subr.bf16.mxu0 0
      %604 = vmatpush1.bf16.msra.mxu0 %v517
      %605 = vmatprep.subr.bf16.mxu0 0
      %606 = vmatpush1.bf16.msra.mxu0 %v518
      %607 = vmatprep.subr.bf16.mxu0 0
      %608 = vmatpush1.bf16.msra.mxu0 %v519
      %609 = vmatprep.subr.bf16.mxu0 0
      %610 = vmatpush1.bf16.msra.mxu0 %v520
      %611 = vmatprep.subr.bf16.mxu0 0
      %612 = vmatpush1.bf16.msra.mxu0 %v521
      %613 = vmatprep.subr.bf16.mxu0 0
      %614 = vmatpush1.bf16.msra.mxu0 %v522
      %615 = vmatprep.mubr.bf16.mxu0 %v350
      %616 = vmatmul.mubr.bf16.gmra.mrb[0].mxu0 %v342
      %v617 = vpop.f32.mrb[0].mxu0
      %v618 = vadd.f32 0.0, %v617
      %v619 = vpop.f32.mrb[0].mxu0
      %v620 = vpop.f32.mrb[0].mxu0
      %v621 = vpop.f32.mrb[0].mxu0
      %622 = vdwg.mxu0
      %623 = vmatprep.subr.bf16.mxu0 0
      %624 = vmatpush1.bf16.msra.mxu0 %v523
      %625 = vmatprep.subr.bf16.mxu0 0
      %626 = vmatpush1.bf16.msra.mxu0 %v524
      %627 = vmatprep.subr.bf16.mxu0 0
      %628 = vmatpush1.bf16.msra.mxu0 %v525
      %629 = vmatprep.subr.bf16.mxu0 0
      %630 = vmatpush1.bf16.msra.mxu0 %v526
      %631 = vmatprep.subr.bf16.mxu0 0
      %632 = vmatpush1.bf16.msra.mxu0 %v527
      %633 = vmatprep.subr.bf16.mxu0 0
      %634 = vmatpush1.bf16.msra.mxu0 %v528
      %635 = vmatprep.subr.bf16.mxu0 0
      %636 = vmatpush1.bf16.msra.mxu0 %v529
      %637 = vmatprep.subr.bf16.mxu0 0
      %638 = vmatpush1.bf16.msra.mxu0 %v530
      %639 = vmatprep.subr.bf16.mxu0 0
      %640 = vmatpush1.bf16.msra.mxu0 %v531
      %641 = vmatprep.subr.bf16.mxu0 0
      %642 = vmatpush1.bf16.msra.mxu0 %v532
      %643 = vmatprep.subr.bf16.mxu0 0
      %644 = vmatpush1.bf16.msra.mxu0 %v533
      %645 = vmatprep.subr.bf16.mxu0 0
      %646 = vmatpush1.bf16.msra.mxu0 %v534
      %647 = vmatprep.subr.bf16.mxu0 0
      %648 = vmatpush1.bf16.msra.mxu0 %v535
      %649 = vmatprep.subr.bf16.mxu0 0
      %650 = vmatpush1.bf16.msra.mxu0 %v536
      %651 = vmatprep.subr.bf16.mxu0 0
      %652 = vmatpush1.bf16.msra.mxu0 %v537
      %653 = vmatprep.subr.bf16.mxu0 0
      %654 = vmatpush1.bf16.msra.mxu0 %v538
      %655 = vmatprep.mubr.bf16.mxu0 %v351
      %656 = vmatmul.mubr.bf16.gmra.mrb[0].mxu0 %v349
      %v657 = vpop.f32.mrb[0].mxu0
      %v658 = vadd.f32 %v618, %v657
      %v659 = vpop.f32.mrb[0].mxu0
      %v660 = vpop.f32.mrb[0].mxu0
      %v661 = vpop.f32.mrb[0].mxu0
      %662 = vdwg.mxu0
      %663 = vmatprep.subr.bf16.mxu0 0
      %664 = vmatpush1.bf16.msra.mxu0 %v539
      %665 = vmatprep.subr.bf16.mxu0 0
      %666 = vmatpush1.bf16.msra.mxu0 %v540
      %667 = vmatprep.subr.bf16.mxu0 0
      %668 = vmatpush1.bf16.msra.mxu0 %v541
      %669 = vmatprep.subr.bf16.mxu0 0
      %670 = vmatpush1.bf16.msra.mxu0 %v542
      %671 = vmatprep.subr.bf16.mxu0 0
      %672 = vmatpush1.bf16.msra.mxu0 0
      %673 = vmatprep.subr.bf16.mxu0 0
      %674 = vmatpush1.bf16.msra.mxu0 0
      %675 = vmatprep.subr.bf16.mxu0 0
      %676 = vmatpush1.bf16.msra.mxu0 0
      %677 = vmatprep.subr.bf16.mxu0 0
      %678 = vmatpush1.bf16.msra.mxu0 0
      %679 = vmatprep.subr.bf16.mxu0 0
      %680 = vmatpush1.bf16.msra.mxu0 0
      %681 = vmatprep.subr.bf16.mxu0 0
      %682 = vmatpush1.bf16.msra.mxu0 0
      %683 = vmatprep.subr.bf16.mxu0 0
      %684 = vmatpush1.bf16.msra.mxu0 0
      %685 = vmatprep.subr.bf16.mxu0 0
      %686 = vmatpush1.bf16.msra.mxu0 0
      %687 = vmatprep.subr.bf16.mxu0 0
      %688 = vmatpush1.bf16.msra.mxu0 0
      %689 = vmatprep.subr.bf16.mxu0 0
      %690 = vmatpush1.bf16.msra.mxu0 0
      %691 = vmatprep.subr.bf16.mxu0 0
      %692 = vmatpush1.bf16.msra.mxu0 0
      %693 = vmatprep.subr.bf16.mxu0 0
      %694 = vmatpush1.bf16.msra.mxu0 0
      %695 = vmatprep.mubr.bf16.mxu0 0
      %696 = vmatmul.mubr.bf16.gmra.mrb[0].mxu0 %v581
      %v697 = vpop.f32.mrb[0].mxu0
      %v698 = vadd.f32 %v658, %v697
      %v699 = vpop.f32.mrb[0].mxu0
      %v700 = vpop.f32.mrb[0].mxu0
      %v701 = vpop.f32.mrb[0].mxu0
      %702 = vdwg.mxu0
      %v703 = vld [vmem:[%s2] sm:$0x1]
      %v705 = vlaneseq
      %v706 = vshrl.u32 %v705, 7
      %v707 = vsub.s32 0, %v706
      %v708 = vrot.slane %v703, %v707
      %v710 = vmul.f32 %v698, %v708
      %v711 = vld [vmem:[%s3] sm:$0x1]
      %v713 = vlaneseq
      %v714 = vshrl.u32 %v713, 7
      %v715 = vsub.s32 0, %v714
      %v716 = vrot.slane %v711, %v715
      %v718 = vadd.f32 %v710, %v716
      %s719 = sld [smem:[#allocation2]]
      %vm720 = vcmp.gt.f32.partialorder %v718, 0.0
      %v721 = vstv %s719
      %v722 = vmul.f32 %v721, %v718
      %v723 = vsel %vm720, %v718, %v722
      %vm724 = vcmask 519168
      %725 = vst.msk [vmem:[%s257] sm:$0xf] %vm724, %v723
      %p726 = scmp.lt.s32.totalorder %s21, 1
      %s727 = scalar_select %p726, %s21, 1
      %p728 = scmp.lt.s32.totalorder %s22, 0
      %s729 = scalar_select %p728, %s22, 0
      %s730 = sadd.s32 %s729, %s727
      %s731 = smul.addr %s730, 4
      %s732 = scalar_lea.vmem %s5, %s731
      // Predicated region
      $region41: #{_lambda_.17} parent=39 // pred_check
        %p733 = pneg %p161
      $region42: #{_lambda_.17} parent=39 // pred_check_branch
        %735 = sbr.rel (%p733) target = $region44
      $region43: #{_lambda_.17} parent=39 // pred_region
        _
      $region44: #{_lambda_.17} parent=39 // pred_fallthru
        _
    $region40: #{_lambda_.17} parent=5 // pred_fallthru
      _
    %p736 = scmp.le.s32.totalorder 2, %s12
    // Predicated region
    $region45: #{_lambda_.17} parent=5 // pred_check
      %p737 = pneg %p736
    $region46: #{_lambda_.17} parent=5 // pred_check_branch
      %739 = sbr.rel (%p737) target = $region48
    $region47: #{_lambda_.17} parent=5 // pred_region
      %s740 = ssub.s32 %s12, 2
      // Predicated region
      $region49: #{_lambda_.17} parent=47 // pred_check
        %p741 = pneg %p167
      $region50: #{_lambda_.17} parent=47 // pred_check_branch
        %743 = sbr.rel (%p741) target = $region52
      $region51: #{_lambda_.17} parent=47 // pred_region
        %p744 = scmp.lt.s32.totalorder %s23, 1
        %s745 = scalar_select %p744, %s23, 1
        %p746 = scmp.lt.s32.totalorder %s24, 0
        %s747 = scalar_select %p746, %s24, 0
        %s748 = sadd.s32 %s747, %s745
        %s749 = smul.addr %s748, 4
        %s750 = scalar_lea.vmem %s5, %s749
      $region52: #{_lambda_.17} parent=47 // pred_fallthru
        _
    $region48: #{_lambda_.17} parent=5 // pred_fallthru
      _
  $region6: #{_lambda_.17} parent=0 // loop_footer
    %s16 = sadd.s32 1, %s12
  $region7: #{_lambda_.17} parent=0 // loop_footer_branch
    %11 = sbr.rel target = $region3
  $region8: #{_lambda_.17} parent=0 // loop_exit
    _

// kernel: _lambda_.18
$region0: #{_lambda_.18}
  #allocation0 [shape = 'u32[]', space=smem, size = 0x4, offset = 0x4, fixed_abs, tag = 'smem constant byte address 0x4 - core index']
  #allocation1 [shape = 'u32[144,128]{1,0:T(1,128)}', space=vmem, size = 0x12000, scoped, tag = 'internal scratch']
  %s0 = inlined_call_operand.vmem [shape: bf16[2,4,576], index: 0, kind: input, shape index: {}]
  %s1 = inlined_call_operand.vmem [shape: bf16[576,64], index: 1, kind: input, shape index: {}]
  %s2 = inlined_call_operand.vmem [shape: f32[1,64], index: 2, kind: input, shape index: {}]
  %s3 = inlined_call_operand.vmem [shape: f32[1,64], index: 3, kind: input, shape index: {}]
  %s4 = inlined_call_operand.vmem [shape: f32[2,4,64], index: 4, kind: input, shape index: {}]
  %s5 = inlined_call_operand.vmem [shape: f32[2,4,64], index: 5, kind: output, shape index: {}]
  %s6 = sld [smem:[#allocation0]]
  $region53: #{_lambda_.18} parent=0
    _
  %s8 = ssub.s32 1, %s6
  %s9 = scalar_select 0, %s8, %s6
  loop: start=0, step=1, limit=4
  $region2: #{_lambda_.18} parent=0 // loop_pre_header
    _
  $region3: #{_lambda_.18} parent=0 // loop_header
    %s11 = sphi 0, %s15
    %p12 = scmp.ge.s32.totalorder %s11, 4
    %s18 = sphi 0, %s30
    %s19 = sphi 0, %s26
    %s20 = sphi 0, %s18
    %s21 = sphi 0, %s19
    %s22 = sphi 0, %s20
    %s23 = sphi 0, %s21
    %s35 = sphi 0, %s37
    %s38 = sphi 0, %s35
    %s39 = sphi 0, %s38
    %s55 = sphi 0, %s39
    %s59 = sphi 0, %s59
    %s61 = sphi 0, %s59
    %s62 = sphi 0, %s61
    %s76 = sphi 0, %s62
    %s80 = sphi 0, %s80
    %s82 = sphi 0, %s80
    %s83 = sphi 0, %s82
    %s97 = sphi 0, %s83
    %s101 = sphi 0, %s101
    %s103 = sphi 0, %s101
    %s104 = sphi 0, %s103
    %s118 = sphi 0, %s104
    %s126 = sphi 0, %s128
    %s129 = sphi 0, %s126
    %s130 = sphi 0, %s129
    %s146 = sphi 0, %s130
    %s154 = sphi 0, %s156
    %s157 = sphi 0, %s154
    %s158 = sphi 0, %s157
    %s174 = sphi 0, %s158
  $region4: #{_lambda_.18} parent=0 // loop_header_branch
    %14 = sbr.rel (%p12) target = $region8
  $region5: #{_lambda_.18} parent=0 // loop_body
    %s16 = ssub.s32 %s11, 1
    %s17 = ssub.s32 %s11, 2
    %s24 = sadd.s32 1, %s19
    %p25 = scmp.ge.s32.totalorder %s24, 1
    %s26 = scalar_select %p25, 0, %s24
    %s27 = sadd.s32 1, %s18
    %s28 = scalar_select %p25, %s27, %s18
    %p29 = scmp.ge.s32.totalorder %s28, 2
    %s30 = scalar_select %p29, 0, %s28
    %s31 = ssub.s32 %s18, %s30
    %s32 = ssub.s32 %s19, %s26
    %s33 = sor.u32 %s31, %s32
    %p34 = scmp.eq.s32.totalorder %s33, 0
    %s36 = sadd.s32 %s35, 1
    %s37 = scalar_select %p34, %s35, %s36
    %p40 = pneg %p34
    %p41 = scmp.eq.s32.totalorder %s11, 1
    %p42 = por %p40, %p41
    %p43 = scmp.ne.s32.totalorder %s35, %s38
    %p44 = scmp.eq.s32.totalorder %s11, 0
    %p45 = por %p43, %p44
    %p46 = scmp.ne.s32.totalorder %s35, %s38
    %p47 = scmp.eq.s32.totalorder %s16, 1
    %p48 = por %p46, %p47
    %p49 = scmp.ne.s32.totalorder %s38, %s39
    %p50 = scmp.eq.s32.totalorder %s16, 0
    %p51 = por %p49, %p50
    %p52 = scmp.ne.s32.totalorder %s38, %s39
    %p53 = scmp.eq.s32.totalorder %s17, 1
    %p54 = por %p52, %p53
    %p56 = scmp.ne.s32.totalorder %s39, %s55
    %p57 = scmp.eq.s32.totalorder %s17, 0
    %p58 = por %p56, %p57
    %s60 = sadd.s32 %s59, 1
    %p63 = scmp.eq.s32.totalorder %s11, 1
    %p64 = scmp.ne.s32.totalorder %s59, %s61
    %p65 = scmp.eq.s32.totalorder %s11, 0
    %p66 = por %p64, %p65
    %p67 = scmp.ne.s32.totalorder %s59, %s61
    %p68 = scmp.eq.s32.totalorder %s16, 1
    %p69 = por %p67, %p68
    %p70 = scmp.ne.s32.totalorder %s61, %s62
    %p71 = scmp.eq.s32.totalorder %s16, 0
    %p72 = por %p70, %p71
    %p73 = scmp.ne.s32.totalorder %s61, %s62
    %p74 = scmp.eq.s32.totalorder %s17, 1
    %p75 = por %p73, %p74
    %p77 = scmp.ne.s32.totalorder %s62, %s76
    %p78 = scmp.eq.s32.totalorder %s17, 0
    %p79 = por %p77, %p78
    %s81 = sadd.s32 %s80, 1
    %p84 = scmp.eq.s32.totalorder %s11, 1
    %p85 = scmp.ne.s32.totalorder %s80, %s82
    %p86 = scmp.eq.s32.totalorder %s11, 0
    %p87 = por %p85, %p86
    %p88 = scmp.ne.s32.totalorder %s80, %s82
    %p89 = scmp.eq.s32.totalorder %s16, 1
    %p90 = por %p88, %p89
    %p91 = scmp.ne.s32.totalorder %s82, %s83
    %p92 = scmp.eq.s32.totalorder %s16, 0
    %p93 = por %p91, %p92
    %p94 = scmp.ne.s32.totalorder %s82, %s83
    %p95 = scmp.eq.s32.totalorder %s17, 1
    %p96 = por %p94, %p95
    %p98 = scmp.ne.s32.totalorder %s83, %s97
    %p99 = scmp.eq.s32.totalorder %s17, 0
    %p100 = por %p98, %p99
    %s102 = sadd.s32 %s101, 1
    %p105 = scmp.eq.s32.totalorder %s11, 1
    %p106 = scmp.ne.s32.totalorder %s101, %s103
    %p107 = scmp.eq.s32.totalorder %s11, 0
    %p108 = por %p106, %p107
    %p109 = scmp.ne.s32.totalorder %s101, %s103
    %p110 = scmp.eq.s32.totalorder %s16, 1
    %p111 = por %p109, %p110
    %p112 = scmp.ne.s32.totalorder %s103, %s104
    %p113 = scmp.eq.s32.totalorder %s16, 0
    %p114 = por %p112, %p113
    %p115 = scmp.ne.s32.totalorder %s103, %s104
    %p116 = scmp.eq.s32.totalorder %s17, 1
    %p117 = por %p115, %p116
    %p119 = scmp.ne.s32.totalorder %s104, %s118
    %p120 = scmp.eq.s32.totalorder %s17, 0
    %p121 = por %p119, %p120
    %s122 = ssub.s32 %s18, %s30
    %s123 = ssub.s32 %s19, %s26
    %s124 = sor.u32 %s122, %s123
    %p125 = scmp.eq.s32.totalorder %s124, 0
    %s127 = sadd.s32 %s126, 1
    %s128 = scalar_select %p125, %s126, %s127
    %p131 = pneg %p125
    %p132 = scmp.eq.s32.totalorder %s11, 1
    %p133 = por %p131, %p132
    %p134 = scmp.ne.s32.totalorder %s126, %s129
    %p135 = scmp.eq.s32.totalorder %s11, 0
    %p136 = por %p134, %p135
    %p137 = scmp.ne.s32.totalorder %s126, %s129
    %p138 = scmp.eq.s32.totalorder %s16, 1
    %p139 = por %p137, %p138
    %p140 = scmp.ne.s32.totalorder %s129, %s130
    %p141 = scmp.eq.s32.totalorder %s16, 0
    %p142 = por %p140, %p141
    %p143 = scmp.ne.s32.totalorder %s129, %s130
    %p144 = scmp.eq.s32.totalorder %s17, 1
    %p145 = por %p143, %p144
    %p147 = scmp.ne.s32.totalorder %s130, %s146
    %p148 = scmp.eq.s32.totalorder %s17, 0
    %p149 = por %p147, %p148
    %s150 = ssub.s32 %s18, %s30
    %s151 = ssub.s32 %s19, %s26
    %s152 = sor.u32 %s150, %s151
    %p153 = scmp.eq.s32.totalorder %s152, 0
    %s155 = sadd.s32 %s154, 1
    %s156 = scalar_select %p153, %s154, %s155
    %p159 = pneg %p153
    %p160 = scmp.eq.s32.totalorder %s11, 1
    %p161 = por %p159, %p160
    %p162 = scmp.ne.s32.totalorder %s154, %s157
    %p163 = scmp.eq.s32.totalorder %s11, 0
    %p164 = por %p162, %p163
    %p165 = scmp.ne.s32.totalorder %s154, %s157
    %p166 = scmp.eq.s32.totalorder %s16, 1
    %p167 = por %p165, %p166
    %p168 = scmp.ne.s32.totalorder %s157, %s158
    %p169 = scmp.eq.s32.totalorder %s16, 0
    %p170 = por %p168, %p169
    %p171 = scmp.ne.s32.totalorder %s157, %s158
    %p172 = scmp.eq.s32.totalorder %s17, 1
    %p173 = por %p171, %p172
    %p175 = scmp.ne.s32.totalorder %s158, %s174
    %p176 = scmp.eq.s32.totalorder %s17, 0
    %p177 = por %p175, %p176
    %p178 = scmp.le.s32.totalorder 1, %s11
    %p179 = scmp.lt.s32.totalorder %s11, 3
    %p180 = pnand %p178, %p179
    %p181 = pneg %p180
    // Predicated region
    $region9: #{_lambda_.18} parent=5 // pred_check
      _
    $region10: #{_lambda_.18} parent=5 // pred_check_branch
      %183 = sbr.rel (%p180) target = $region12
    $region11: #{_lambda_.18} parent=5 // pred_region
      %s184 = ssub.s32 %s11, 1
      // Predicated region
      $region13: #{_lambda_.18} parent=11 // pred_check
        %p185 = pneg %p72
      $region14: #{_lambda_.18} parent=11 // pred_check_branch
        %187 = sbr.rel (%p185) target = $region16
      $region15: #{_lambda_.18} parent=11 // pred_region
        _
      $region16: #{_lambda_.18} parent=11 // pred_fallthru
        _
      // Predicated region
      $region17: #{_lambda_.18} parent=11 // pred_check
        %p188 = pneg %p93
      $region18: #{_lambda_.18} parent=11 // pred_check_branch
        %190 = sbr.rel (%p188) target = $region20
      $region19: #{_lambda_.18} parent=11 // pred_region
        _
      $region20: #{_lambda_.18} parent=11 // pred_fallthru
        _
      // Predicated region
      $region21: #{_lambda_.18} parent=11 // pred_check
        %p191 = pneg %p114
      $region22: #{_lambda_.18} parent=11 // pred_check_branch
        %193 = sbr.rel (%p191) target = $region24
      $region23: #{_lambda_.18} parent=11 // pred_region
        _
      $region24: #{_lambda_.18} parent=11 // pred_fallthru
        _
    $region12: #{_lambda_.18} parent=5 // pred_fallthru
      _
    %p194 = scmp.lt.s32.totalorder %s11, 2
    // Predicated region
    $region25: #{_lambda_.18} parent=5 // pred_check
      %p195 = pneg %p194
    $region26: #{_lambda_.18} parent=5 // pred_check_branch
      %197 = sbr.rel (%p195) target = $region28
    $region27: #{_lambda_.18} parent=5 // pred_region
      // Predicated region
      $region29: #{_lambda_.18} parent=27 // pred_check
        %p198 = pneg %p45
      $region30: #{_lambda_.18} parent=27 // pred_check_branch
        %200 = sbr.rel (%p198) target = $region32
      $region31: #{_lambda_.18} parent=27 // pred_region
        %p201 = scmp.lt.s32.totalorder %s18, 1
        %s202 = scalar_select %p201, %s18, 1
        %p203 = scmp.lt.s32.totalorder %s19, 0
        %s204 = scalar_select %p203, %s19, 0
        %s205 = smul.addr %s204, 5
        %s206 = smul.addr %s202, 5
        %s207 = sadd.s32 %s205, %s206
        %s208 = smul.addr %s207, 2
        %s209 = scalar_lea.vmem %s0, %s208
      $region32: #{_lambda_.18} parent=27 // pred_fallthru
        _
      // Predicated region
      $region33: #{_lambda_.18} parent=27 // pred_check
        %p210 = pneg %p136
      $region34: #{_lambda_.18} parent=27 // pred_check_branch
        %212 = sbr.rel (%p210) target = $region36
      $region35: #{_lambda_.18} parent=27 // pred_region
        %p213 = scmp.lt.s32.totalorder %s18, 1
        %s214 = scalar_select %p213, %s18, 1
        %p215 = scmp.lt.s32.totalorder %s19, 0
        %s216 = scalar_select %p215, %s19, 0
        %s217 = sadd.s32 %s216, %s214
        %s218 = smul.addr %s217, 4
        %s219 = scalar_lea.vmem %s4, %s218
      $region36: #{_lambda_.18} parent=27 // pred_fallthru
        _
    $region28: #{_lambda_.18} parent=5 // pred_fallthru
      _
    %p220 = scmp.le.s32.totalorder 1, %s11
    %p221 = scmp.lt.s32.totalorder %s11, 3
    %p222 = pnand %p220, %p221
    %p223 = pneg %p222
    // Predicated region
    $region37: #{_lambda_.18} parent=5 // pred_check
      _
    $region38: #{_lambda_.18} parent=5 // pred_check_branch
      %225 = sbr.rel (%p222) target = $region40
    $region39: #{_lambda_.18} parent=5 // pred_region
      %s226 = ssub.s32 %s11, 1
      %p227 = scmp.lt.s32.totalorder %s20, 1
      %s228 = scalar_select %p227, %s20, 1
      %p229 = scmp.lt.s32.totalorder %s21, 0
      %s230 = scalar_select %p229, %s21, 0
      %s231 = smul.addr %s230, 5
      %s232 = smul.addr %s228, 5
      %s233 = sadd.s32 %s231, %s232
      %s234 = smul.addr %s233, 2
      %s235 = scalar_lea.vmem %s0, %s234
      %p236 = pneg %p51
      %p237 = pneg %p48
      %p238 = pneg %p72
      %p239 = pneg %p69
      %p240 = pneg %p93
      %p241 = pneg %p90
      %p242 = pneg %p114
      %p243 = pneg %p111
      %p244 = scmp.lt.s32.totalorder %s20, 1
      %s245 = scalar_select %p244, %s20, 1
      %p246 = scmp.lt.s32.totalorder %s21, 0
      %s247 = scalar_select %p246, %s21, 0
      %s248 = sadd.s32 %s247, %s245
      %s249 = smul.addr %s248, 4
      %s250 = scalar_lea.vmem %s4, %s249
      %p251 = pneg %p142
      %p252 = pneg %p139
      %p253 = pneg %p170
      %p254 = pneg %p167
      %p255 = scmp.lt.s32.totalorder %s20, 1
      %s256 = scalar_select %p255, %s20, 1
      %p257 = scmp.lt.s32.totalorder %s21, 0
      %s258 = scalar_select %p257, %s21, 0
      %s259 = sadd.s32 %s258, %s256
      %s260 = smul.addr %s259, 4
      %s261 = scalar_lea.vmem %s5, %s260
      %p262 = scmp.lt.s32.totalorder %s20, 1
      %s263 = scalar_select %p262, %s20, 1
      %p264 = scmp.lt.s32.totalorder %s21, 0
      %s265 = scalar_select %p264, %s21, 0
      %s266 = smul.addr %s265, 5
      %s267 = smul.addr %s263, 5
      %s268 = sadd.s32 %s266, %s267
      %s269 = smul.addr %s268, 2
      %s270 = scalar_lea.vmem %s0, %s269
      %p271 = scmp.lt.s32.totalorder %s20, 1
      %s272 = scalar_select %p271, %s20, 1
      %p273 = scmp.lt.s32.totalorder %s21, 0
      %s274 = scalar_select %p273, %s21, 0
      %s275 = sadd.s32 %s274, %s272
      %s276 = smul.addr %s275, 4
      %s277 = scalar_lea.vmem %s4, %s276
      %p278 = scmp.lt.s32.totalorder %s20, 1
      %s279 = scalar_select %p278, %s20, 1
      %p280 = scmp.lt.s32.totalorder %s21, 0
      %s281 = scalar_select %p280, %s21, 0
      %s282 = sadd.s32 %s281, %s279
      %s283 = smul.addr %s282, 4
      %s284 = scalar_lea.vmem %s5, %s283
      %v286 = vld [vmem:[%s270] sm:$0xff]
      %v287 = vld [vmem:[%s270 + $0x8] sm:$0x3]
      %v288 = vld [vmem:[%s1] sm:$0xf]
      %v289 = vld [vmem:[%s1 + $0x4] sm:$0xf]
      %v290 = vld [vmem:[%s1 + $0x8] sm:$0xf]
      %v291 = vld [vmem:[%s1 + $0xc] sm:$0xf]
      %v292 = vld [vmem:[%s1 + $0x10] sm:$0xf]
      %v293 = vld [vmem:[%s1 + $0x14] sm:$0xf]
      %v294 = vld [vmem:[%s1 + $0x18] sm:$0xf]
      %v295 = vld [vmem:[%s1 + $0x1c] sm:$0xf]
      %v296 = vld [vmem:[%s1 + $0x20] sm:$0xf]
      %v297 = vld [vmem:[%s1 + $0x24] sm:$0xf]
      %v298 = vld [vmem:[%s1 + $0x28] sm:$0xf]
      %v299 = vld [vmem:[%s1 + $0x2c] sm:$0xf]
      %v300 = vld [vmem:[%s1 + $0x30] sm:$0xf]
      %v301 = vld [vmem:[%s1 + $0x34] sm:$0xf]
      %v302 = vld [vmem:[%s1 + $0x38] sm:$0xf]
      %v303 = vld [vmem:[%s1 + $0x3c] sm:$0xf]
      %v304 = vld [vmem:[%s1 + $0x40] sm:$0xf]
      %v305 = vld [vmem:[%s1 + $0x44] sm:$0xf]
      %v306 = vld [vmem:[%s1 + $0x48] sm:$0xf]
      %v307 = vld [vmem:[%s1 + $0x4c] sm:$0xf]
      %v308 = vld [vmem:[%s1 + $0x50] sm:$0xf]
      %v309 = vld [vmem:[%s1 + $0x54] sm:$0xf]
      %v310 = vld [vmem:[%s1 + $0x58] sm:$0xf]
      %v311 = vld [vmem:[%s1 + $0x5c] sm:$0xf]
      %v312 = vld [vmem:[%s1 + $0x60] sm:$0xf]
      %v313 = vld [vmem:[%s1 + $0x64] sm:$0xf]
      %v314 = vld [vmem:[%s1 + $0x68] sm:$0xf]
      %v315 = vld [vmem:[%s1 + $0x6c] sm:$0xf]
      %v316 = vld [vmem:[%s1 + $0x70] sm:$0xf]
      %v317 = vld [vmem:[%s1 + $0x74] sm:$0xf]
      %v318 = vld [vmem:[%s1 + $0x78] sm:$0xf]
      %v319 = vld [vmem:[%s1 + $0x7c] sm:$0xf]
      %v320 = vld [vmem:[%s1 + $0x80] sm:$0xf]
      %v321 = vld [vmem:[%s1 + $0x84] sm:$0xf]
      %v322 = vld [vmem:[%s1 + $0x88] sm:$0xf]
      %v323 = vld [vmem:[%s1 + $0x8c] sm:$0xf]
      %v324 = vld [vmem:[%s1 + $0x90] sm:$0xf]
      %v325 = vld [vmem:[%s1 + $0x94] sm:$0xf]
      %v326 = vld [vmem:[%s1 + $0x98] sm:$0xf]
      %v327 = vld [vmem:[%s1 + $0x9c] sm:$0xf]
      %v328 = vld [vmem:[%s1 + $0xa0] sm:$0xf]
      %v329 = vld [vmem:[%s1 + $0xa4] sm:$0xf]
      %v330 = vld [vmem:[%s1 + $0xa8] sm:$0xf]
      %v331 = vld [vmem:[%s1 + $0xac] sm:$0xf]
      %v332 = vld [vmem:[%s1 + $0xb0] sm:$0xf]
      %v333 = vld [vmem:[%s1 + $0xb4] sm:$0xf]
      %v334 = vld [vmem:[%s1 + $0xb8] sm:$0xf]
      %v335 = vld [vmem:[%s1 + $0xbc] sm:$0xf]
      %v336 = vld [vmem:[%s1 + $0xc0] sm:$0xf]
      %v337 = vld [vmem:[%s1 + $0xc4] sm:$0xf]
      %v338 = vld [vmem:[%s1 + $0xc8] sm:$0xf]
      %v339 = vld [vmem:[%s1 + $0xcc] sm:$0xf]
      %v340 = vld [vmem:[%s1 + $0xd0] sm:$0xf]
      %v341 = vld [vmem:[%s1 + $0xd4] sm:$0xf]
      %v342 = vld [vmem:[%s1 + $0xd8] sm:$0xf]
      %v343 = vld [vmem:[%s1 + $0xdc] sm:$0xf]
      %v344 = vld [vmem:[%s1 + $0xe0] sm:$0xf]
      %v345 = vld [vmem:[%s1 + $0xe4] sm:$0xf]
      %v346 = vld [vmem:[%s1 + $0xe8] sm:$0xf]
      %v347 = vld [vmem:[%s1 + $0xec] sm:$0xf]
      %v348 = vld [vmem:[%s1 + $0xf0] sm:$0xf]
      %v349 = vld [vmem:[%s1 + $0xf4] sm:$0xf]
      %v350 = vld [vmem:[%s1 + $0xf8] sm:$0xf]
      %v351 = vld [vmem:[%s1 + $0xfc] sm:$0xf]
      %v352 = vld [vmem:[%s1 + $0x100] sm:$0xf]
      %v353 = vld [vmem:[%s1 + $0x104] sm:$0xf]
      %v354 = vld [vmem:[%s1 + $0x108] sm:$0xf]
      %v355 = vld [vmem:[%s1 + $0x10c] sm:$0xf]
      %v356 = vld [vmem:[%s1 + $0x110] sm:$0xf]
      %v357 = vld [vmem:[%s1 + $0x114] sm:$0xf]
      %v358 = vld [vmem:[%s1 + $0x118] sm:$0xf]
      %v359 = vld [vmem:[%s1 + $0x11c] sm:$0xf]
      %v362 = vcombine.high %v286, %v286
      %v364 = vunpack.c.l.s4 1983009808
      %v365 = vunpack.c.0.s8 %v364
      %v366 = vlaneseq
      %v367 = vshrl.u32 %v366, 7
      %v368 = vsub.s32 %v365, %v367
      %v369 = vrot.slane %v286, %v368
      %v371 = vunpack.c.l.s4 1983009808
      %v372 = vunpack.c.0.s8 %v371
      %v373 = vlaneseq
      %v374 = vshrl.u32 %v373, 7
      %v375 = vsub.s32 %v372, %v374
      %v376 = vrot.slane %v362, %v375
      %v377 = vcombine.high %v369, %v369
      %v378 = vcombine.high %v376, %v376
      %v380 = vunpack.c.l.s4 1983009808
      %v381 = vunpack.c.0.s8 %v380
      %v382 = vlaneseq
      %v383 = vshrl.u32 %v382, 7
      %v384 = vsub.s32 %v381, %v383
      %v385 = vrot.slane %v287, %v384
      %v462 = vunpack.c.l.b16 %v288
      %v463 = vunpack.c.l.b16 %v289
      %v464 = vunpack.c.l.b16 %v290
      %v465 = vunpack.c.l.b16 %v291
      %v466 = vunpack.c.l.b16 %v292
      %v467 = vunpack.c.l.b16 %v293
      %v468 = vunpack.c.l.b16 %v294
      %v469 = vunpack.c.l.b16 %v295
      %v470 = vunpack.c.l.b16 %v296
      %v471 = vunpack.c.l.b16 %v297
      %v472 = vunpack.c.l.b16 %v298
      %v473 = vunpack.c.l.b16 %v299
      %v474 = vunpack.c.l.b16 %v300
      %v475 = vunpack.c.l.b16 %v301
      %v476 = vunpack.c.l.b16 %v302
      %v477 = vunpack.c.l.b16 %v303
      %v478 = vunpack.c.l.b16 %v304
      %v479 = vunpack.c.l.b16 %v305
      %v480 = vunpack.c.l.b16 %v306
      %v481 = vunpack.c.l.b16 %v307
      %v482 = vunpack.c.l.b16 %v308
      %v483 = vunpack.c.l.b16 %v309
      %v484 = vunpack.c.l.b16 %v310
      %v485 = vunpack.c.l.b16 %v311
      %v486 = vunpack.c.l.b16 %v312
      %v487 = vunpack.c.l.b16 %v313
      %v488 = vunpack.c.l.b16 %v314
      %v489 = vunpack.c.l.b16 %v315
      %v490 = vunpack.c.l.b16 %v316
      %v491 = vunpack.c.l.b16 %v317
      %v492 = vunpack.c.l.b16 %v318
      %v493 = vunpack.c.l.b16 %v319
      %v494 = vunpack.c.l.b16 %v320
      %v495 = vunpack.c.l.b16 %v321
      %v496 = vunpack.c.l.b16 %v322
      %v497 = vunpack.c.l.b16 %v323
      %v498 = vunpack.c.l.b16 %v324
      %v499 = vunpack.c.l.b16 %v325
      %v500 = vunpack.c.l.b16 %v326
      %v501 = vunpack.c.l.b16 %v327
      %v502 = vunpack.c.l.b16 %v328
      %v503 = vunpack.c.l.b16 %v329
      %v504 = vunpack.c.l.b16 %v330
      %v505 = vunpack.c.l.b16 %v331
      %v506 = vunpack.c.l.b16 %v332
      %v507 = vunpack.c.l.b16 %v333
      %v508 = vunpack.c.l.b16 %v334
      %v509 = vunpack.c.l.b16 %v335
      %v510 = vunpack.c.l.b16 %v336
      %v511 = vunpack.c.l.b16 %v337
      %v512 = vunpack.c.l.b16 %v338
      %v513 = vunpack.c.l.b16 %v339
      %v514 = vunpack.c.l.b16 %v340
      %v515 = vunpack.c.l.b16 %v341
      %v516 = vunpack.c.l.b16 %v342
      %v517 = vunpack.c.l.b16 %v343
      %v518 = vunpack.c.l.b16 %v344
      %v519 = vunpack.c.l.b16 %v345
      %v520 = vunpack.c.l.b16 %v346
      %v521 = vunpack.c.l.b16 %v347
      %v522 = vunpack.c.l.b16 %v348
      %v523 = vunpack.c.l.b16 %v349
      %v524 = vunpack.c.l.b16 %v350
      %v525 = vunpack.c.l.b16 %v351
      %v526 = vunpack.c.l.b16 %v352
      %v527 = vunpack.c.l.b16 %v353
      %v528 = vunpack.c.l.b16 %v354
      %v529 = vunpack.c.l.b16 %v355
      %v530 = vunpack.c.l.b16 %v356
      %v531 = vunpack.c.l.b16 %v357
      %v532 = vunpack.c.l.b16 %v358
      %v533 = vunpack.c.l.b16 %v359
      %v534 = vpack.c.b16 %v463, %v462
      %v535 = vpack.c.b16 %v465, %v464
      %v536 = vpack.c.b16 %v467, %v466
      %v537 = vpack.c.b16 %v469, %v468
      %v538 = vpack.c.b16 %v471, %v470
      %v539 = vpack.c.b16 %v473, %v472
      %v540 = vpack.c.b16 %v475, %v474
      %v541 = vpack.c.b16 %v477, %v476
      %v542 = vpack.c.b16 %v479, %v478
      %v543 = vpack.c.b16 %v481, %v480
      %v544 = vpack.c.b16 %v483, %v482
      %v545 = vpack.c.b16 %v485, %v484
      %v546 = vpack.c.b16 %v487, %v486
      %v547 = vpack.c.b16 %v489, %v488
      %v548 = vpack.c.b16 %v491, %v490
      %v549 = vpack.c.b16 %v493, %v492
      %v550 = vpack.c.b16 %v495, %v494
      %v551 = vpack.c.b16 %v497, %v496
      %v552 = vpack.c.b16 %v499, %v498
      %v553 = vpack.c.b16 %v501, %v500
      %v554 = vpack.c.b16 %v503, %v502
      %v555 = vpack.c.b16 %v505, %v504
      %v556 = vpack.c.b16 %v507, %v506
      %v557 = vpack.c.b16 %v509, %v508
      %v558 = vpack.c.b16 %v511, %v510
      %v559 = vpack.c.b16 %v513, %v512
      %v560 = vpack.c.b16 %v515, %v514
      %v561 = vpack.c.b16 %v517, %v516
      %v562 = vpack.c.b16 %v519, %v518
      %v563 = vpack.c.b16 %v521, %v520
      %v564 = vpack.c.b16 %v523, %v522
      %v565 = vpack.c.b16 %v525, %v524
      %v566 = vpack.c.b16 %v527, %v526
      %v567 = vpack.c.b16 %v529, %v528
      %v568 = vpack.c.b16 %v531, %v530
      %v569 = vpack.c.b16 %v533, %v532
      %vm606 = vcmask 523264
      %v608 = vsel %vm606, %v385, 0
      %610 = vmatprep.subr.bf16.mxu0 0
      %611 = vmatpush1.bf16.msra.mxu0 %v534
      %612 = vmatprep.subr.bf16.mxu0 0
      %613 = vmatpush1.bf16.msra.mxu0 %v535
      %614 = vmatprep.subr.bf16.mxu0 0
      %615 = vmatpush1.bf16.msra.mxu0 %v536
      %616 = vmatprep.subr.bf16.mxu0 0
      %617 = vmatpush1.bf16.msra.mxu0 %v537
      %618 = vmatprep.subr.bf16.mxu0 0
      %619 = vmatpush1.bf16.msra.mxu0 %v538
      %620 = vmatprep.subr.bf16.mxu0 0
      %621 = vmatpush1.bf16.msra.mxu0 %v539
      %622 = vmatprep.subr.bf16.mxu0 0
      %623 = vmatpush1.bf16.msra.mxu0 %v540
      %624 = vmatprep.subr.bf16.mxu0 0
      %625 = vmatpush1.bf16.msra.mxu0 %v541
      %626 = vmatprep.subr.bf16.mxu0 0
      %627 = vmatpush1.bf16.msra.mxu0 %v542
      %628 = vmatprep.subr.bf16.mxu0 0
      %629 = vmatpush1.bf16.msra.mxu0 %v543
      %630 = vmatprep.subr.bf16.mxu0 0
      %631 = vmatpush1.bf16.msra.mxu0 %v544
      %632 = vmatprep.subr.bf16.mxu0 0
      %633 = vmatpush1.bf16.msra.mxu0 %v545
      %634 = vmatprep.subr.bf16.mxu0 0
      %635 = vmatpush1.bf16.msra.mxu0 %v546
      %636 = vmatprep.subr.bf16.mxu0 0
      %637 = vmatpush1.bf16.msra.mxu0 %v547
      %638 = vmatprep.subr.bf16.mxu0 0
      %639 = vmatpush1.bf16.msra.mxu0 %v548
      %640 = vmatprep.subr.bf16.mxu0 0
      %641 = vmatpush1.bf16.msra.mxu0 %v549
      %642 = vmatprep.mubr.bf16.mxu0 %v377
      %643 = vmatmul.mubr.bf16.gmra.mrb[0].mxu0 %v369
      %v644 = vpop.f32.mrb[0].mxu0
      %v645 = vadd.f32 0.0, %v644
      %v646 = vpop.f32.mrb[0].mxu0
      %v647 = vpop.f32.mrb[0].mxu0
      %v648 = vpop.f32.mrb[0].mxu0
      %649 = vdwg.mxu0
      %650 = vmatprep.subr.bf16.mxu0 0
      %651 = vmatpush1.bf16.msra.mxu0 %v550
      %652 = vmatprep.subr.bf16.mxu0 0
      %653 = vmatpush1.bf16.msra.mxu0 %v551
      %654 = vmatprep.subr.bf16.mxu0 0
      %655 = vmatpush1.bf16.msra.mxu0 %v552
      %656 = vmatprep.subr.bf16.mxu0 0
      %657 = vmatpush1.bf16.msra.mxu0 %v553
      %658 = vmatprep.subr.bf16.mxu0 0
      %659 = vmatpush1.bf16.msra.mxu0 %v554
      %660 = vmatprep.subr.bf16.mxu0 0
      %661 = vmatpush1.bf16.msra.mxu0 %v555
      %662 = vmatprep.subr.bf16.mxu0 0
      %663 = vmatpush1.bf16.msra.mxu0 %v556
      %664 = vmatprep.subr.bf16.mxu0 0
      %665 = vmatpush1.bf16.msra.mxu0 %v557
      %666 = vmatprep.subr.bf16.mxu0 0
      %667 = vmatpush1.bf16.msra.mxu0 %v558
      %668 = vmatprep.subr.bf16.mxu0 0
      %669 = vmatpush1.bf16.msra.mxu0 %v559
      %670 = vmatprep.subr.bf16.mxu0 0
      %671 = vmatpush1.bf16.msra.mxu0 %v560
      %672 = vmatprep.subr.bf16.mxu0 0
      %673 = vmatpush1.bf16.msra.mxu0 %v561
      %674 = vmatprep.subr.bf16.mxu0 0
      %675 = vmatpush1.bf16.msra.mxu0 %v562
      %676 = vmatprep.subr.bf16.mxu0 0
      %677 = vmatpush1.bf16.msra.mxu0 %v563
      %678 = vmatprep.subr.bf16.mxu0 0
      %679 = vmatpush1.bf16.msra.mxu0 %v564
      %680 = vmatprep.subr.bf16.mxu0 0
      %681 = vmatpush1.bf16.msra.mxu0 %v565
      %682 = vmatprep.mubr.bf16.mxu0 %v378
      %683 = vmatmul.mubr.bf16.gmra.mrb[0].mxu0 %v376
      %v684 = vpop.f32.mrb[0].mxu0
      %v685 = vadd.f32 %v645, %v684
      %v686 = vpop.f32.mrb[0].mxu0
      %v687 = vpop.f32.mrb[0].mxu0
      %v688 = vpop.f32.mrb[0].mxu0
      %689 = vdwg.mxu0
      %690 = vmatprep.subr.bf16.mxu0 0
      %691 = vmatpush1.bf16.msra.mxu0 %v566
      %692 = vmatprep.subr.bf16.mxu0 0
      %693 = vmatpush1.bf16.msra.mxu0 %v567
      %694 = vmatprep.subr.bf16.mxu0 0
      %695 = vmatpush1.bf16.msra.mxu0 %v568
      %696 = vmatprep.subr.bf16.mxu0 0
      %697 = vmatpush1.bf16.msra.mxu0 %v569
      %698 = vmatprep.subr.bf16.mxu0 0
      %699 = vmatpush1.bf16.msra.mxu0 0
      %700 = vmatprep.subr.bf16.mxu0 0
      %701 = vmatpush1.bf16.msra.mxu0 0
      %702 = vmatprep.subr.bf16.mxu0 0
      %703 = vmatpush1.bf16.msra.mxu0 0
      %704 = vmatprep.subr.bf16.mxu0 0
      %705 = vmatpush1.bf16.msra.mxu0 0
      %706 = vmatprep.subr.bf16.mxu0 0
      %707 = vmatpush1.bf16.msra.mxu0 0
      %708 = vmatprep.subr.bf16.mxu0 0
      %709 = vmatpush1.bf16.msra.mxu0 0
      %710 = vmatprep.subr.bf16.mxu0 0
      %711 = vmatpush1.bf16.msra.mxu0 0
      %712 = vmatprep.subr.bf16.mxu0 0
      %713 = vmatpush1.bf16.msra.mxu0 0
      %714 = vmatprep.subr.bf16.mxu0 0
      %715 = vmatpush1.bf16.msra.mxu0 0
      %716 = vmatprep.subr.bf16.mxu0 0
      %717 = vmatpush1.bf16.msra.mxu0 0
      %718 = vmatprep.subr.bf16.mxu0 0
      %719 = vmatpush1.bf16.msra.mxu0 0
      %720 = vmatprep.subr.bf16.mxu0 0
      %721 = vmatpush1.bf16.msra.mxu0 0
      %722 = vmatprep.mubr.bf16.mxu0 0
      %723 = vmatmul.mubr.bf16.gmra.mrb[0].mxu0 %v608
      %v724 = vpop.f32.mrb[0].mxu0
      %v725 = vadd.f32 %v685, %v724
      %v726 = vpop.f32.mrb[0].mxu0
      %v727 = vpop.f32.mrb[0].mxu0
      %v728 = vpop.f32.mrb[0].mxu0
      %729 = vdwg.mxu0
      %v730 = vld [vmem:[%s2] sm:$0x1]
      %v732 = vlaneseq
      %v733 = vshrl.u32 %v732, 7
      %v734 = vsub.s32 0, %v733
      %v735 = vrot.slane %v730, %v734
      %v737 = vmul.f32 %v725, %v735
      %v738 = vld [vmem:[%s3] sm:$0x1]
      %v740 = vlaneseq
      %v741 = vshrl.u32 %v740, 7
      %v742 = vsub.s32 0, %v741
      %v743 = vrot.slane %v738, %v742
      %v745 = vadd.f32 %v737, %v743
      %v746 = vld [vmem:[%s277] sm:$0xf]
      %v747 = vadd.f32 %v745, %v746
      %vm748 = vcmp.gt.f32.partialorder %v747, 0.0
      %v749 = vmul.f32 %v747, 0.2
      %v750 = vsel %vm748, %v747, %v749
      %vm751 = vcmask 519168
      %752 = vst.msk [vmem:[%s284] sm:$0xf] %vm751, %v750
      %p753 = scmp.lt.s32.totalorder %s20, 1
      %s754 = scalar_select %p753, %s20, 1
      %p755 = scmp.lt.s32.totalorder %s21, 0
      %s756 = scalar_select %p755, %s21, 0
      %s757 = sadd.s32 %s756, %s754
      %s758 = smul.addr %s757, 4
      %s759 = scalar_lea.vmem %s5, %s758
      // Predicated region
      $region41: #{_lambda_.18} parent=39 // pred_check
        %p760 = pneg %p167
      $region42: #{_lambda_.18} parent=39 // pred_check_branch
        %762 = sbr.rel (%p760) target = $region44
      $region43: #{_lambda_.18} parent=39 // pred_region
        _
      $region44: #{_lambda_.18} parent=39 // pred_fallthru
        _
    $region40: #{_lambda_.18} parent=5 // pred_fallthru
      _
    %p763 = scmp.le.s32.totalorder 2, %s11
    // Predicated region
    $region45: #{_lambda_.18} parent=5 // pred_check
      %p764 = pneg %p763
    $region46: #{_lambda_.18} parent=5 // pred_check_branch
      %766 = sbr.rel (%p764) target = $region48
    $region47: #{_lambda_.18} parent=5 // pred_region
      %s767 = ssub.s32 %s11, 2
      // Predicated region
      $region49: #{_lambda_.18} parent=47 // pred_check
        %p768 = pneg %p173
      $region50: #{_lambda_.18} parent=47 // pred_check_branch
        %770 = sbr.rel (%p768) target = $region52
      $region51: #{_lambda_.18} parent=47 // pred_region
        %p771 = scmp.lt.s32.totalorder %s22, 1
        %s772 = scalar_select %p771, %s22, 1
        %p773 = scmp.lt.s32.totalorder %s23, 0
        %s774 = scalar_select %p773, %s23, 0
        %s775 = sadd.s32 %s774, %s772
        %s776 = smul.addr %s775, 4
        %s777 = scalar_lea.vmem %s5, %s776
      $region52: #{_lambda_.18} parent=47 // pred_fallthru
        _
    $region48: #{_lambda_.18} parent=5 // pred_fallthru
      _
  $region6: #{_lambda_.18} parent=0 // loop_footer
    %s15 = sadd.s32 1, %s11
  $region7: #{_lambda_.18} parent=0 // loop_footer_branch
    %10 = sbr.rel target = $region3
  $region8: #{_lambda_.18} parent=0 // loop_exit
    _

// kernel: _lambda_.19
$region0: #{_lambda_.19}
  #allocation0 [shape = 'u32[]', space=smem, size = 0x4, offset = 0x4, fixed_abs, tag = 'smem constant byte address 0x4 - core index']
  #allocation1 [shape = 'u32[144,128]{1,0:T(1,128)}', space=vmem, size = 0x12000, scoped, tag = 'internal scratch']
  #allocation2 [shape = 'f32[1]{0:T(128)S(6)}', space=smem, size = 0x200, scoped, tag = 'scoped memory for _lambda_.19']
  %s0 = inlined_call_operand.vmem [shape: bf16[2,4,576], index: 0, kind: input, shape index: {}]
  %s1 = inlined_call_operand.vmem [shape: bf16[576,64], index: 1, kind: input, shape index: {}]
  %s2 = inlined_call_operand.vmem [shape: f32[1,64], index: 2, kind: input, shape index: {}]
  %s3 = inlined_call_operand.vmem [shape: f32[1,64], index: 3, kind: input, shape index: {}]
  %s4 = inlined_call_operand.<no memory space> [shape: f32[1], index: 4, kind: input, shape index: {}]
  %s5 = inlined_call_operand.hbm [shape: f32[2,4,64], index: 5, kind: output, shape index: {}]
  %s6 = sld [smem:[#allocation0]]
  $region53: #{_lambda_.19} parent=0
    _
  %s8 = ssub.s32 1, %s6
  %s9 = scalar_select 0, %s8, %s6
  %10 = sst [smem:[#allocation2]] %s4
  $region1: #{_lambda_.19} parent=0
    #allocation3 [shape = 'u8[4096]{0}', space=vmem, size = 0x1000, scoped, tag = 'output window, operand 0']
    #allocation4 [shape = 's32[2]{0}', space=sflag, size = 0x8, scoped, tag = 'scoped memory for _lambda_.19']
    %11 = vsyncpa [#allocation4], 0
    %s12 = scalar_lea.sflag [#allocation4], 1
    %13 = vsyncpa %s12, 0
    loop: start=0, step=1, limit=4
    $region2: #{_lambda_.19} parent=1 // loop_pre_header
      _
    $region3: #{_lambda_.19} parent=1 // loop_header
      %s15 = sphi 0, %s19
      %p16 = scmp.ge.s32.totalorder %s15, 4
      %s22 = sphi 0, %s34
      %s23 = sphi 0, %s30
      %s24 = sphi 0, %s22
      %s25 = sphi 0, %s23
      %s26 = sphi 0, %s24
      %s27 = sphi 0, %s25
      %s39 = sphi 0, %s41
      %s42 = sphi 0, %s39
      %s43 = sphi 0, %s42
      %s59 = sphi 0, %s43
      %s63 = sphi 0, %s63
      %s65 = sphi 0, %s63
      %s66 = sphi 0, %s65
      %s80 = sphi 0, %s66
      %s84 = sphi 0, %s84
      %s86 = sphi 0, %s84
      %s87 = sphi 0, %s86
      %s101 = sphi 0, %s87
      %s105 = sphi 0, %s105
      %s107 = sphi 0, %s105
      %s108 = sphi 0, %s107
      %s122 = sphi 0, %s108
      %s126 = sphi 0, %s126
      %s128 = sphi 0, %s126
      %s129 = sphi 0, %s128
      %s143 = sphi 0, %s129
      %s151 = sphi 0, %s153
      %s154 = sphi 0, %s151
      %s155 = sphi 0, %s154
      %s171 = sphi 0, %s155
    $region4: #{_lambda_.19} parent=1 // loop_header_branch
      %18 = sbr.rel (%p16) target = $region8
    $region5: #{_lambda_.19} parent=1 // loop_body
      %s20 = ssub.s32 %s15, 1
      %s21 = ssub.s32 %s15, 2
      %s28 = sadd.s32 1, %s23
      %p29 = scmp.ge.s32.totalorder %s28, 1
      %s30 = scalar_select %p29, 0, %s28
      %s31 = sadd.s32 1, %s22
      %s32 = scalar_select %p29, %s31, %s22
      %p33 = scmp.ge.s32.totalorder %s32, 2
      %s34 = scalar_select %p33, 0, %s32
      %s35 = ssub.s32 %s22, %s34
      %s36 = ssub.s32 %s23, %s30
      %s37 = sor.u32 %s35, %s36
      %p38 = scmp.eq.s32.totalorder %s37, 0
      %s40 = sadd.s32 %s39, 1
      %s41 = scalar_select %p38, %s39, %s40
      %p44 = pneg %p38
      %p45 = scmp.eq.s32.totalorder %s15, 1
      %p46 = por %p44, %p45
      %p47 = scmp.ne.s32.totalorder %s39, %s42
      %p48 = scmp.eq.s32.totalorder %s15, 0
      %p49 = por %p47, %p48
      %p50 = scmp.ne.s32.totalorder %s39, %s42
      %p51 = scmp.eq.s32.totalorder %s20, 1
      %p52 = por %p50, %p51
      %p53 = scmp.ne.s32.totalorder %s42, %s43
      %p54 = scmp.eq.s32.totalorder %s20, 0
      %p55 = por %p53, %p54
      %p56 = scmp.ne.s32.totalorder %s42, %s43
      %p57 = scmp.eq.s32.totalorder %s21, 1
      %p58 = por %p56, %p57
      %p60 = scmp.ne.s32.totalorder %s43, %s59
      %p61 = scmp.eq.s32.totalorder %s21, 0
      %p62 = por %p60, %p61
      %s64 = sadd.s32 %s63, 1
      %p67 = scmp.eq.s32.totalorder %s15, 1
      %p68 = scmp.ne.s32.totalorder %s63, %s65
      %p69 = scmp.eq.s32.totalorder %s15, 0
      %p70 = por %p68, %p69
      %p71 = scmp.ne.s32.totalorder %s63, %s65
      %p72 = scmp.eq.s32.totalorder %s20, 1
      %p73 = por %p71, %p72
      %p74 = scmp.ne.s32.totalorder %s65, %s66
      %p75 = scmp.eq.s32.totalorder %s20, 0
      %p76 = por %p74, %p75
      %p77 = scmp.ne.s32.totalorder %s65, %s66
      %p78 = scmp.eq.s32.totalorder %s21, 1
      %p79 = por %p77, %p78
      %p81 = scmp.ne.s32.totalorder %s66, %s80
      %p82 = scmp.eq.s32.totalorder %s21, 0
      %p83 = por %p81, %p82
      %s85 = sadd.s32 %s84, 1
      %p88 = scmp.eq.s32.totalorder %s15, 1
      %p89 = scmp.ne.s32.totalorder %s84, %s86
      %p90 = scmp.eq.s32.totalorder %s15, 0
      %p91 = por %p89, %p90
      %p92 = scmp.ne.s32.totalorder %s84, %s86
      %p93 = scmp.eq.s32.totalorder %s20, 1
      %p94 = por %p92, %p93
      %p95 = scmp.ne.s32.totalorder %s86, %s87
      %p96 = scmp.eq.s32.totalorder %s20, 0
      %p97 = por %p95, %p96
      %p98 = scmp.ne.s32.totalorder %s86, %s87
      %p99 = scmp.eq.s32.totalorder %s21, 1
      %p100 = por %p98, %p99
      %p102 = scmp.ne.s32.totalorder %s87, %s101
      %p103 = scmp.eq.s32.totalorder %s21, 0
      %p104 = por %p102, %p103
      %s106 = sadd.s32 %s105, 1
      %p109 = scmp.eq.s32.totalorder %s15, 1
      %p110 = scmp.ne.s32.totalorder %s105, %s107
      %p111 = scmp.eq.s32.totalorder %s15, 0
      %p112 = por %p110, %p111
      %p113 = scmp.ne.s32.totalorder %s105, %s107
      %p114 = scmp.eq.s32.totalorder %s20, 1
      %p115 = por %p113, %p114
      %p116 = scmp.ne.s32.totalorder %s107, %s108
      %p117 = scmp.eq.s32.totalorder %s20, 0
      %p118 = por %p116, %p117
      %p119 = scmp.ne.s32.totalorder %s107, %s108
      %p120 = scmp.eq.s32.totalorder %s21, 1
      %p121 = por %p119, %p120
      %p123 = scmp.ne.s32.totalorder %s108, %s122
      %p124 = scmp.eq.s32.totalorder %s21, 0
      %p125 = por %p123, %p124
      %s127 = sadd.s32 %s126, 1
      %p130 = scmp.eq.s32.totalorder %s15, 1
      %p131 = scmp.ne.s32.totalorder %s126, %s128
      %p132 = scmp.eq.s32.totalorder %s15, 0
      %p133 = por %p131, %p132
      %p134 = scmp.ne.s32.totalorder %s126, %s128
      %p135 = scmp.eq.s32.totalorder %s20, 1
      %p136 = por %p134, %p135
      %p137 = scmp.ne.s32.totalorder %s128, %s129
      %p138 = scmp.eq.s32.totalorder %s20, 0
      %p139 = por %p137, %p138
      %p140 = scmp.ne.s32.totalorder %s128, %s129
      %p141 = scmp.eq.s32.totalorder %s21, 1
      %p142 = por %p140, %p141
      %p144 = scmp.ne.s32.totalorder %s129, %s143
      %p145 = scmp.eq.s32.totalorder %s21, 0
      %p146 = por %p144, %p145
      %s147 = ssub.s32 %s22, %s34
      %s148 = ssub.s32 %s23, %s30
      %s149 = sor.u32 %s147, %s148
      %p150 = scmp.eq.s32.totalorder %s149, 0
      %s152 = sadd.s32 %s151, 1
      %s153 = scalar_select %p150, %s151, %s152
      %p156 = pneg %p150
      %p157 = scmp.eq.s32.totalorder %s15, 1
      %p158 = por %p156, %p157
      %p159 = scmp.ne.s32.totalorder %s151, %s154
      %p160 = scmp.eq.s32.totalorder %s15, 0
      %p161 = por %p159, %p160
      %p162 = scmp.ne.s32.totalorder %s151, %s154
      %p163 = scmp.eq.s32.totalorder %s20, 1
      %p164 = por %p162, %p163
      %p165 = scmp.ne.s32.totalorder %s154, %s155
      %p166 = scmp.eq.s32.totalorder %s20, 0
      %p167 = por %p165, %p166
      %p168 = scmp.ne.s32.totalorder %s154, %s155
      %p169 = scmp.eq.s32.totalorder %s21, 1
      %p170 = por %p168, %p169
      %p172 = scmp.ne.s32.totalorder %s155, %s171
      %p173 = scmp.eq.s32.totalorder %s21, 0
      %p174 = por %p172, %p173
      %p175 = scmp.le.s32.totalorder 1, %s15
      %p176 = scmp.lt.s32.totalorder %s15, 3
      %p177 = pnand %p175, %p176
      %p178 = pneg %p177
      // Predicated region
      $region9: #{_lambda_.19} parent=5 // pred_check
        _
      $region10: #{_lambda_.19} parent=5 // pred_check_branch
        %180 = sbr.rel (%p177) target = $region12
      $region11: #{_lambda_.19} parent=5 // pred_region
        %s181 = ssub.s32 %s15, 1
        // Predicated region
        $region13: #{_lambda_.19} parent=11 // pred_check
          %p182 = pneg %p76
        $region14: #{_lambda_.19} parent=11 // pred_check_branch
          %184 = sbr.rel (%p182) target = $region16
        $region15: #{_lambda_.19} parent=11 // pred_region
          _
        $region16: #{_lambda_.19} parent=11 // pred_fallthru
          _
        // Predicated region
        $region17: #{_lambda_.19} parent=11 // pred_check
          %p185 = pneg %p97
        $region18: #{_lambda_.19} parent=11 // pred_check_branch
          %187 = sbr.rel (%p185) target = $region20
        $region19: #{_lambda_.19} parent=11 // pred_region
          _
        $region20: #{_lambda_.19} parent=11 // pred_fallthru
          _
        // Predicated region
        $region21: #{_lambda_.19} parent=11 // pred_check
          %p188 = pneg %p118
        $region22: #{_lambda_.19} parent=11 // pred_check_branch
          %190 = sbr.rel (%p188) target = $region24
        $region23: #{_lambda_.19} parent=11 // pred_region
          _
        $region24: #{_lambda_.19} parent=11 // pred_fallthru
          _
        // Predicated region
        $region25: #{_lambda_.19} parent=11 // pred_check
          %p191 = pneg %p139
        $region26: #{_lambda_.19} parent=11 // pred_check_branch
          %193 = sbr.rel (%p191) target = $region28
        $region27: #{_lambda_.19} parent=11 // pred_region
          _
        $region28: #{_lambda_.19} parent=11 // pred_fallthru
          _
      $region12: #{_lambda_.19} parent=5 // pred_fallthru
        _
      %p194 = scmp.lt.s32.totalorder %s15, 2
      // Predicated region
      $region29: #{_lambda_.19} parent=5 // pred_check
        %p195 = pneg %p194
      $region30: #{_lambda_.19} parent=5 // pred_check_branch
        %197 = sbr.rel (%p195) target = $region32
      $region31: #{_lambda_.19} parent=5 // pred_region
        // Predicated region
        $region33: #{_lambda_.19} parent=31 // pred_check
          %p198 = pneg %p49
        $region34: #{_lambda_.19} parent=31 // pred_check_branch
          %200 = sbr.rel (%p198) target = $region36
        $region35: #{_lambda_.19} parent=31 // pred_region
          %p201 = scmp.lt.s32.totalorder %s22, 1
          %s202 = scalar_select %p201, %s22, 1
          %p203 = scmp.lt.s32.totalorder %s23, 0
          %s204 = scalar_select %p203, %s23, 0
          %s205 = smul.addr %s204, 5
          %s206 = smul.addr %s202, 5
          %s207 = sadd.s32 %s205, %s206
          %s208 = smul.addr %s207, 2
          %s209 = scalar_lea.vmem %s0, %s208
        $region36: #{_lambda_.19} parent=31 // pred_fallthru
          _
      $region32: #{_lambda_.19} parent=5 // pred_fallthru
        _
      %p210 = scmp.le.s32.totalorder 1, %s15
      %p211 = scmp.lt.s32.totalorder %s15, 3
      %p212 = pnand %p210, %p211
      %p213 = pneg %p212
      // Predicated region
      $region37: #{_lambda_.19} parent=5 // pred_check
        _
      $region38: #{_lambda_.19} parent=5 // pred_check_branch
        %215 = sbr.rel (%p212) target = $region40
      $region39: #{_lambda_.19} parent=5 // pred_region
        %s216 = ssub.s32 %s15, 1
        %p217 = scmp.lt.s32.totalorder %s24, 1
        %s218 = scalar_select %p217, %s24, 1
        %p219 = scmp.lt.s32.totalorder %s25, 0
        %s220 = scalar_select %p219, %s25, 0
        %s221 = smul.addr %s220, 5
        %s222 = smul.addr %s218, 5
        %s223 = sadd.s32 %s221, %s222
        %s224 = smul.addr %s223, 2
        %s225 = scalar_lea.vmem %s0, %s224
        %p226 = pneg %p55
        %p227 = pneg %p52
        %p228 = pneg %p76
        %p229 = pneg %p73
        %p230 = pneg %p97
        %p231 = pneg %p94
        %p232 = pneg %p118
        %p233 = pneg %p115
        %p234 = pneg %p139
        %p235 = pneg %p136
        %p236 = pneg %p167
        %p237 = pneg %p164
        %s238 = sand.u32 %s154, 1
        %s239 = scalar_lea.sflag [#allocation4], %s238
        %s240 = sand.u32 %s154, 1
        %s241 = smul.addr %s240, 4
        %s242 = scalar_lea.vmem [#allocation3], %s241
        %p243 = scmp.lt.s32.totalorder %s24, 1
        %s244 = scalar_select %p243, %s24, 1
        %p245 = scmp.lt.s32.totalorder %s25, 0
        %s246 = scalar_select %p245, %s25, 0
        %s247 = smul.addr %s246, 5
        %s248 = smul.addr %s244, 5
        %s249 = sadd.s32 %s247, %s248
        %s250 = smul.addr %s249, 2
        %s251 = scalar_lea.vmem %s0, %s250
        %v253 = vld [vmem:[%s251] sm:$0xff]
        %v254 = vld [vmem:[%s251 + $0x8] sm:$0x3]
        %v255 = vld [vmem:[%s1] sm:$0xf]
        %v256 = vld [vmem:[%s1 + $0x4] sm:$0xf]
        %v257 = vld [vmem:[%s1 + $0x8] sm:$0xf]
        %v258 = vld [vmem:[%s1 + $0xc] sm:$0xf]
        %v259 = vld [vmem:[%s1 + $0x10] sm:$0xf]
        %v260 = vld [vmem:[%s1 + $0x14] sm:$0xf]
        %v261 = vld [vmem:[%s1 + $0x18] sm:$0xf]
        %v262 = vld [vmem:[%s1 + $0x1c] sm:$0xf]
        %v263 = vld [vmem:[%s1 + $0x20] sm:$0xf]
        %v264 = vld [vmem:[%s1 + $0x24] sm:$0xf]
        %v265 = vld [vmem:[%s1 + $0x28] sm:$0xf]
        %v266 = vld [vmem:[%s1 + $0x2c] sm:$0xf]
        %v267 = vld [vmem:[%s1 + $0x30] sm:$0xf]
        %v268 = vld [vmem:[%s1 + $0x34] sm:$0xf]
        %v269 = vld [vmem:[%s1 + $0x38] sm:$0xf]
        %v270 = vld [vmem:[%s1 + $0x3c] sm:$0xf]
        %v271 = vld [vmem:[%s1 + $0x40] sm:$0xf]
        %v272 = vld [vmem:[%s1 + $0x44] sm:$0xf]
        %v273 = vld [vmem:[%s1 + $0x48] sm:$0xf]
        %v274 = vld [vmem:[%s1 + $0x4c] sm:$0xf]
        %v275 = vld [vmem:[%s1 + $0x50] sm:$0xf]
        %v276 = vld [vmem:[%s1 + $0x54] sm:$0xf]
        %v277 = vld [vmem:[%s1 + $0x58] sm:$0xf]
        %v278 = vld [vmem:[%s1 + $0x5c] sm:$0xf]
        %v279 = vld [vmem:[%s1 + $0x60] sm:$0xf]
        %v280 = vld [vmem:[%s1 + $0x64] sm:$0xf]
        %v281 = vld [vmem:[%s1 + $0x68] sm:$0xf]
        %v282 = vld [vmem:[%s1 + $0x6c] sm:$0xf]
        %v283 = vld [vmem:[%s1 + $0x70] sm:$0xf]
        %v284 = vld [vmem:[%s1 + $0x74] sm:$0xf]
        %v285 = vld [vmem:[%s1 + $0x78] sm:$0xf]
        %v286 = vld [vmem:[%s1 + $0x7c] sm:$0xf]
        %v287 = vld [vmem:[%s1 + $0x80] sm:$0xf]
        %v288 = vld [vmem:[%s1 + $0x84] sm:$0xf]
        %v289 = vld [vmem:[%s1 + $0x88] sm:$0xf]
        %v290 = vld [vmem:[%s1 + $0x8c] sm:$0xf]
        %v291 = vld [vmem:[%s1 + $0x90] sm:$0xf]
        %v292 = vld [vmem:[%s1 + $0x94] sm:$0xf]
        %v293 = vld [vmem:[%s1 + $0x98] sm:$0xf]
        %v294 = vld [vmem:[%s1 + $0x9c] sm:$0xf]
        %v295 = vld [vmem:[%s1 + $0xa0] sm:$0xf]
        %v296 = vld [vmem:[%s1 + $0xa4] sm:$0xf]
        %v297 = vld [vmem:[%s1 + $0xa8] sm:$0xf]
        %v298 = vld [vmem:[%s1 + $0xac] sm:$0xf]
        %v299 = vld [vmem:[%s1 + $0xb0] sm:$0xf]
        %v300 = vld [vmem:[%s1 + $0xb4] sm:$0xf]
        %v301 = vld [vmem:[%s1 + $0xb8] sm:$0xf]
        %v302 = vld [vmem:[%s1 + $0xbc] sm:$0xf]
        %v303 = vld [vmem:[%s1 + $0xc0] sm:$0xf]
        %v304 = vld [vmem:[%s1 + $0xc4] sm:$0xf]
        %v305 = vld [vmem:[%s1 + $0xc8] sm:$0xf]
        %v306 = vld [vmem:[%s1 + $0xcc] sm:$0xf]
        %v307 = vld [vmem:[%s1 + $0xd0] sm:$0xf]
        %v308 = vld [vmem:[%s1 + $0xd4] sm:$0xf]
        %v309 = vld [vmem:[%s1 + $0xd8] sm:$0xf]
        %v310 = vld [vmem:[%s1 + $0xdc] sm:$0xf]
        %v311 = vld [vmem:[%s1 + $0xe0] sm:$0xf]
        %v312 = vld [vmem:[%s1 + $0xe4] sm:$0xf]
        %v313 = vld [vmem:[%s1 + $0xe8] sm:$0xf]
        %v314 = vld [vmem:[%s1 + $0xec] sm:$0xf]
        %v315 = vld [vmem:[%s1 + $0xf0] sm:$0xf]
        %v316 = vld [vmem:[%s1 + $0xf4] sm:$0xf]
        %v317 = vld [vmem:[%s1 + $0xf8] sm:$0xf]
        %v318 = vld [vmem:[%s1 + $0xfc] sm:$0xf]
        %v319 = vld [vmem:[%s1 + $0x100] sm:$0xf]
        %v320 = vld [vmem:[%s1 + $0x104] sm:$0xf]
        %v321 = vld [vmem:[%s1 + $0x108] sm:$0xf]
        %v322 = vld [vmem:[%s1 + $0x10c] sm:$0xf]
        %v323 = vld [vmem:[%s1 + $0x110] sm:$0xf]
        %v324 = vld [vmem:[%s1 + $0x114] sm:$0xf]
        %v325 = vld [vmem:[%s1 + $0x118] sm:$0xf]
        %v326 = vld [vmem:[%s1 + $0x11c] sm:$0xf]
        %v329 = vcombine.high %v253, %v253
        %v331 = vunpack.c.l.s4 1983009808
        %v332 = vunpack.c.0.s8 %v331
        %v333 = vlaneseq
        %v334 = vshrl.u32 %v333, 7
        %v335 = vsub.s32 %v332, %v334
        %v336 = vrot.slane %v253, %v335
        %v338 = vunpack.c.l.s4 1983009808
        %v339 = vunpack.c.0.s8 %v338
        %v340 = vlaneseq
        %v341 = vshrl.u32 %v340, 7
        %v342 = vsub.s32 %v339, %v341
        %v343 = vrot.slane %v329, %v342
        %v344 = vcombine.high %v336, %v336
        %v345 = vcombine.high %v343, %v343
        %v347 = vunpack.c.l.s4 1983009808
        %v348 = vunpack.c.0.s8 %v347
        %v349 = vlaneseq
        %v350 = vshrl.u32 %v349, 7
        %v351 = vsub.s32 %v348, %v350
        %v352 = vrot.slane %v254, %v351
        %v429 = vunpack.c.l.b16 %v255
        %v430 = vunpack.c.l.b16 %v256
        %v431 = vunpack.c.l.b16 %v257
        %v432 = vunpack.c.l.b16 %v258
        %v433 = vunpack.c.l.b16 %v259
        %v434 = vunpack.c.l.b16 %v260
        %v435 = vunpack.c.l.b16 %v261
        %v436 = vunpack.c.l.b16 %v262
        %v437 = vunpack.c.l.b16 %v263
        %v438 = vunpack.c.l.b16 %v264
        %v439 = vunpack.c.l.b16 %v265
        %v440 = vunpack.c.l.b16 %v266
        %v441 = vunpack.c.l.b16 %v267
        %v442 = vunpack.c.l.b16 %v268
        %v443 = vunpack.c.l.b16 %v269
        %v444 = vunpack.c.l.b16 %v270
        %v445 = vunpack.c.l.b16 %v271
        %v446 = vunpack.c.l.b16 %v272
        %v447 = vunpack.c.l.b16 %v273
        %v448 = vunpack.c.l.b16 %v274
        %v449 = vunpack.c.l.b16 %v275
        %v450 = vunpack.c.l.b16 %v276
        %v451 = vunpack.c.l.b16 %v277
        %v452 = vunpack.c.l.b16 %v278
        %v453 = vunpack.c.l.b16 %v279
        %v454 = vunpack.c.l.b16 %v280
        %v455 = vunpack.c.l.b16 %v281
        %v456 = vunpack.c.l.b16 %v282
        %v457 = vunpack.c.l.b16 %v283
        %v458 = vunpack.c.l.b16 %v284
        %v459 = vunpack.c.l.b16 %v285
        %v460 = vunpack.c.l.b16 %v286
        %v461 = vunpack.c.l.b16 %v287
        %v462 = vunpack.c.l.b16 %v288
        %v463 = vunpack.c.l.b16 %v289
        %v464 = vunpack.c.l.b16 %v290
        %v465 = vunpack.c.l.b16 %v291
        %v466 = vunpack.c.l.b16 %v292
        %v467 = vunpack.c.l.b16 %v293
        %v468 = vunpack.c.l.b16 %v294
        %v469 = vunpack.c.l.b16 %v295
        %v470 = vunpack.c.l.b16 %v296
        %v471 = vunpack.c.l.b16 %v297
        %v472 = vunpack.c.l.b16 %v298
        %v473 = vunpack.c.l.b16 %v299
        %v474 = vunpack.c.l.b16 %v300
        %v475 = vunpack.c.l.b16 %v301
        %v476 = vunpack.c.l.b16 %v302
        %v477 = vunpack.c.l.b16 %v303
        %v478 = vunpack.c.l.b16 %v304
        %v479 = vunpack.c.l.b16 %v305
        %v480 = vunpack.c.l.b16 %v306
        %v481 = vunpack.c.l.b16 %v307
        %v482 = vunpack.c.l.b16 %v308
        %v483 = vunpack.c.l.b16 %v309
        %v484 = vunpack.c.l.b16 %v310
        %v485 = vunpack.c.l.b16 %v311
        %v486 = vunpack.c.l.b16 %v312
        %v487 = vunpack.c.l.b16 %v313
        %v488 = vunpack.c.l.b16 %v314
        %v489 = vunpack.c.l.b16 %v315
        %v490 = vunpack.c.l.b16 %v316
        %v491 = vunpack.c.l.b16 %v317
        %v492 = vunpack.c.l.b16 %v318
        %v493 = vunpack.c.l.b16 %v319
        %v494 = vunpack.c.l.b16 %v320
        %v495 = vunpack.c.l.b16 %v321
        %v496 = vunpack.c.l.b16 %v322
        %v497 = vunpack.c.l.b16 %v323
        %v498 = vunpack.c.l.b16 %v324
        %v499 = vunpack.c.l.b16 %v325
        %v500 = vunpack.c.l.b16 %v326
        %v501 = vpack.c.b16 %v430, %v429
        %v502 = vpack.c.b16 %v432, %v431
        %v503 = vpack.c.b16 %v434, %v433
        %v504 = vpack.c.b16 %v436, %v435
        %v505 = vpack.c.b16 %v438, %v437
        %v506 = vpack.c.b16 %v440, %v439
        %v507 = vpack.c.b16 %v442, %v441
        %v508 = vpack.c.b16 %v444, %v443
        %v509 = vpack.c.b16 %v446, %v445
        %v510 = vpack.c.b16 %v448, %v447
        %v511 = vpack.c.b16 %v450, %v449
        %v512 = vpack.c.b16 %v452, %v451
        %v513 = vpack.c.b16 %v454, %v453
        %v514 = vpack.c.b16 %v456, %v455
        %v515 = vpack.c.b16 %v458, %v457
        %v516 = vpack.c.b16 %v460, %v459
        %v517 = vpack.c.b16 %v462, %v461
        %v518 = vpack.c.b16 %v464, %v463
        %v519 = vpack.c.b16 %v466, %v465
        %v520 = vpack.c.b16 %v468, %v467
        %v521 = vpack.c.b16 %v470, %v469
        %v522 = vpack.c.b16 %v472, %v471
        %v523 = vpack.c.b16 %v474, %v473
        %v524 = vpack.c.b16 %v476, %v475
        %v525 = vpack.c.b16 %v478, %v477
        %v526 = vpack.c.b16 %v480, %v479
        %v527 = vpack.c.b16 %v482, %v481
        %v528 = vpack.c.b16 %v484, %v483
        %v529 = vpack.c.b16 %v486, %v485
        %v530 = vpack.c.b16 %v488, %v487
        %v531 = vpack.c.b16 %v490, %v489
        %v532 = vpack.c.b16 %v492, %v491
        %v533 = vpack.c.b16 %v494, %v493
        %v534 = vpack.c.b16 %v496, %v495
        %v535 = vpack.c.b16 %v498, %v497
        %v536 = vpack.c.b16 %v500, %v499
        %vm573 = vcmask 523264
        %v575 = vsel %vm573, %v352, 0
        %577 = vmatprep.subr.bf16.mxu0 0
        %578 = vmatpush1.bf16.msra.mxu0 %v501
        %579 = vmatprep.subr.bf16.mxu0 0
        %580 = vmatpush1.bf16.msra.mxu0 %v502
        %581 = vmatprep.subr.bf16.mxu0 0
        %582 = vmatpush1.bf16.msra.mxu0 %v503
        %583 = vmatprep.subr.bf16.mxu0 0
        %584 = vmatpush1.bf16.msra.mxu0 %v504
        %585 = vmatprep.subr.bf16.mxu0 0
        %586 = vmatpush1.bf16.msra.mxu0 %v505
        %587 = vmatprep.subr.bf16.mxu0 0
        %588 = vmatpush1.bf16.msra.mxu0 %v506
        %589 = vmatprep.subr.bf16.mxu0 0
        %590 = vmatpush1.bf16.msra.mxu0 %v507
        %591 = vmatprep.subr.bf16.mxu0 0
        %592 = vmatpush1.bf16.msra.mxu0 %v508
        %593 = vmatprep.subr.bf16.mxu0 0
        %594 = vmatpush1.bf16.msra.mxu0 %v509
        %595 = vmatprep.subr.bf16.mxu0 0
        %596 = vmatpush1.bf16.msra.mxu0 %v510
        %597 = vmatprep.subr.bf16.mxu0 0
        %598 = vmatpush1.bf16.msra.mxu0 %v511
        %599 = vmatprep.subr.bf16.mxu0 0
        %600 = vmatpush1.bf16.msra.mxu0 %v512
        %601 = vmatprep.subr.bf16.mxu0 0
        %602 = vmatpush1.bf16.msra.mxu0 %v513
        %603 = vmatprep.subr.bf16.mxu0 0
        %604 = vmatpush1.bf16.msra.mxu0 %v514
        %605 = vmatprep.subr.bf16.mxu0 0
        %606 = vmatpush1.bf16.msra.mxu0 %v515
        %607 = vmatprep.subr.bf16.mxu0 0
        %608 = vmatpush1.bf16.msra.mxu0 %v516
        %609 = vmatprep.mubr.bf16.mxu0 %v344
        %610 = vmatmul.mubr.bf16.gmra.mrb[0].mxu0 %v336
        %v611 = vpop.f32.mrb[0].mxu0
        %v612 = vadd.f32 0.0, %v611
        %v613 = vpop.f32.mrb[0].mxu0
        %v614 = vpop.f32.mrb[0].mxu0
        %v615 = vpop.f32.mrb[0].mxu0
        %616 = vdwg.mxu0
        %617 = vmatprep.subr.bf16.mxu0 0
        %618 = vmatpush1.bf16.msra.mxu0 %v517
        %619 = vmatprep.subr.bf16.mxu0 0
        %620 = vmatpush1.bf16.msra.mxu0 %v518
        %621 = vmatprep.subr.bf16.mxu0 0
        %622 = vmatpush1.bf16.msra.mxu0 %v519
        %623 = vmatprep.subr.bf16.mxu0 0
        %624 = vmatpush1.bf16.msra.mxu0 %v520
        %625 = vmatprep.subr.bf16.mxu0 0
        %626 = vmatpush1.bf16.msra.mxu0 %v521
        %627 = vmatprep.subr.bf16.mxu0 0
        %628 = vmatpush1.bf16.msra.mxu0 %v522
        %629 = vmatprep.subr.bf16.mxu0 0
        %630 = vmatpush1.bf16.msra.mxu0 %v523
        %631 = vmatprep.subr.bf16.mxu0 0
        %632 = vmatpush1.bf16.msra.mxu0 %v524
        %633 = vmatprep.subr.bf16.mxu0 0
        %634 = vmatpush1.bf16.msra.mxu0 %v525
        %635 = vmatprep.subr.bf16.mxu0 0
        %636 = vmatpush1.bf16.msra.mxu0 %v526
        %637 = vmatprep.subr.bf16.mxu0 0
        %638 = vmatpush1.bf16.msra.mxu0 %v527
        %639 = vmatprep.subr.bf16.mxu0 0
        %640 = vmatpush1.bf16.msra.mxu0 %v528
        %641 = vmatprep.subr.bf16.mxu0 0
        %642 = vmatpush1.bf16.msra.mxu0 %v529
        %643 = vmatprep.subr.bf16.mxu0 0
        %644 = vmatpush1.bf16.msra.mxu0 %v530
        %645 = vmatprep.subr.bf16.mxu0 0
        %646 = vmatpush1.bf16.msra.mxu0 %v531
        %647 = vmatprep.subr.bf16.mxu0 0
        %648 = vmatpush1.bf16.msra.mxu0 %v532
        %649 = vmatprep.mubr.bf16.mxu0 %v345
        %650 = vmatmul.mubr.bf16.gmra.mrb[0].mxu0 %v343
        %v651 = vpop.f32.mrb[0].mxu0
        %v652 = vadd.f32 %v612, %v651
        %v653 = vpop.f32.mrb[0].mxu0
        %v654 = vpop.f32.mrb[0].mxu0
        %v655 = vpop.f32.mrb[0].mxu0
        %656 = vdwg.mxu0
        %657 = vmatprep.subr.bf16.mxu0 0
        %658 = vmatpush1.bf16.msra.mxu0 %v533
        %659 = vmatprep.subr.bf16.mxu0 0
        %660 = vmatpush1.bf16.msra.mxu0 %v534
        %661 = vmatprep.subr.bf16.mxu0 0
        %662 = vmatpush1.bf16.msra.mxu0 %v535
        %663 = vmatprep.subr.bf16.mxu0 0
        %664 = vmatpush1.bf16.msra.mxu0 %v536
        %665 = vmatprep.subr.bf16.mxu0 0
        %666 = vmatpush1.bf16.msra.mxu0 0
        %667 = vmatprep.subr.bf16.mxu0 0
        %668 = vmatpush1.bf16.msra.mxu0 0
        %669 = vmatprep.subr.bf16.mxu0 0
        %670 = vmatpush1.bf16.msra.mxu0 0
        %671 = vmatprep.subr.bf16.mxu0 0
        %672 = vmatpush1.bf16.msra.mxu0 0
        %673 = vmatprep.subr.bf16.mxu0 0
        %674 = vmatpush1.bf16.msra.mxu0 0
        %675 = vmatprep.subr.bf16.mxu0 0
        %676 = vmatpush1.bf16.msra.mxu0 0
        %677 = vmatprep.subr.bf16.mxu0 0
        %678 = vmatpush1.bf16.msra.mxu0 0
        %679 = vmatprep.subr.bf16.mxu0 0
        %680 = vmatpush1.bf16.msra.mxu0 0
        %681 = vmatprep.subr.bf16.mxu0 0
        %682 = vmatpush1.bf16.msra.mxu0 0
        %683 = vmatprep.subr.bf16.mxu0 0
        %684 = vmatpush1.bf16.msra.mxu0 0
        %685 = vmatprep.subr.bf16.mxu0 0
        %686 = vmatpush1.bf16.msra.mxu0 0
        %687 = vmatprep.subr.bf16.mxu0 0
        %688 = vmatpush1.bf16.msra.mxu0 0
        %689 = vmatprep.mubr.bf16.mxu0 0
        %690 = vmatmul.mubr.bf16.gmra.mrb[0].mxu0 %v575
        %v691 = vpop.f32.mrb[0].mxu0
        %v692 = vadd.f32 %v652, %v691
        %v693 = vpop.f32.mrb[0].mxu0
        %v694 = vpop.f32.mrb[0].mxu0
        %v695 = vpop.f32.mrb[0].mxu0
        %696 = vdwg.mxu0
        %v697 = vld [vmem:[%s2] sm:$0x1]
        %v699 = vlaneseq
        %v700 = vshrl.u32 %v699, 7
        %v701 = vsub.s32 0, %v700
        %v702 = vrot.slane %v697, %v701
        %v704 = vmul.f32 %v692, %v702
        %v705 = vld [vmem:[%s3] sm:$0x1]
        %v707 = vlaneseq
        %v708 = vshrl.u32 %v707, 7
        %v709 = vsub.s32 0, %v708
        %v710 = vrot.slane %v705, %v709
        %v712 = vadd.f32 %v704, %v710
        %s713 = sld [smem:[#allocation2]]
        %vm714 = vcmp.gt.f32.partialorder %v712, 0.0
        %v715 = vstv %s713
        %v716 = vmul.f32 %v715, %v712
        %v717 = vsel %vm714, %v712, %v716
        %vm718 = vcmask 519168
        %719 = vst.msk [vmem:[%s242] sm:$0xf] %vm718, %v717
        %s720 = sand.u32 %s154, 1
        %s721 = scalar_lea.sflag [#allocation4], %s720
        %s722 = sand.u32 %s154, 1
        %s723 = smul.addr %s722, 4
        %s724 = scalar_lea.vmem [#allocation3], %s723
        // Predicated region
        $region41: #{_lambda_.19} parent=39 // pred_check
          %p725 = pneg %p164
        $region42: #{_lambda_.19} parent=39 // pred_check_branch
          %727 = sbr.rel (%p725) target = $region44
        $region43: #{_lambda_.19} parent=39 // pred_region
          %s729 = ssub.s32 64, 64
          %730 = vsyncadd %s721, %s729
          %s731 = sadd.s32 %s25, %s24
          %s732 = smul.addr %s731, 64
          %s733 = scalar_lea.hbm %s5, %s732
          %s735 = sshll.u32 %s724, 4
          %s736 = int_to_ptr.vmem [resolvable:$true] %s735
          %738 = dma.vmem_to_hbm [thread:$0]  %s736, 64, %s733, %s721
        $region44: #{_lambda_.19} parent=39 // pred_fallthru
          _
      $region40: #{_lambda_.19} parent=5 // pred_fallthru
        _
      %p739 = scmp.le.s32.totalorder 2, %s15
      // Predicated region
      $region45: #{_lambda_.19} parent=5 // pred_check
        %p740 = pneg %p739
      $region46: #{_lambda_.19} parent=5 // pred_check_branch
        %742 = sbr.rel (%p740) target = $region48
      $region47: #{_lambda_.19} parent=5 // pred_region
        %s743 = ssub.s32 %s15, 2
        // Predicated region
        $region49: #{_lambda_.19} parent=47 // pred_check
          %p744 = pneg %p170
        $region50: #{_lambda_.19} parent=47 // pred_check_branch
          %746 = sbr.rel (%p744) target = $region52
        $region51: #{_lambda_.19} parent=47 // pred_region
          %s747 = sand.u32 %s155, 1
          %s748 = scalar_lea.sflag [#allocation4], %s747
          %s749 = sand.u32 %s155, 1
          %s750 = smul.addr %s749, 4
          %s751 = scalar_lea.vmem [#allocation3], %s750
          %752 = dma.done %s748, 64
        $region52: #{_lambda_.19} parent=47 // pred_fallthru
          _
      $region48: #{_lambda_.19} parent=5 // pred_fallthru
        _
    $region6: #{_lambda_.19} parent=1 // loop_footer
      %s19 = sadd.s32 1, %s15
    $region7: #{_lambda_.19} parent=1 // loop_footer_branch
      %14 = sbr.rel target = $region3
    $region8: #{_lambda_.19} parent=1 // loop_exit
      _
    %753 = vsyncpa [#allocation4], 1
    %s754 = scalar_lea.sflag [#allocation4], 1
    %755 = vsyncpa %s754, 1

</llo_original>
